<compile_context>
chip_gen: v6e
topology: v6e:2x2x1
jax: 0.10.0
libtpu: 0.0.40
codegen_flags: <defaults>
</compile_context>

<pallas_src>
import functools

import jax
import jax.numpy as jnp
from jax.experimental import pallas as pl
from jax.experimental.pallas import tpu as pltpu


def _round_up(x, m):
    return (x + m - 1) // m * m


def lstm_kernel(bmax_ref, len_ref, x_ref, wih_ref, whh_ref, bias_ref,
                out_ref, hlast_ref, h_sc, c_sc):
    """One (batch_block, time_chunk) grid step of the masked LSTM recurrence.

    bmax_ref  : (n_batch_blocks,) int32 SMEM  per-batch-block max length (scalar prefetch)
    len_ref   : (Bb, 1)   int32   per-row valid lengths (grid-invariant along time)
    x_ref     : (Bb, Tc, D) f32   input chunk (batch-first)
    wih_ref   : (D, 4*Hp) f32     input weights,  per-gate padded layout (grid-invariant)
    whh_ref   : (Hp, 4*Hp) f32    recurrent weights, per-gate padded layout (grid-invariant)
    bias_ref  : (1, 4*Hp) f32     b_ih + b_hh, per-gate padded (grid-invariant)
    out_ref   : (Bb, Tc, Hp) f32  per-timestep hidden states (masked, batch-first)
    hlast_ref : (Bb, Hp) f32      hidden state at t = len-1 (resident across time chunks)
    h_sc,c_sc : (Bb, Hp) f32      carries across time chunks
    """
    b_idx = pl.program_id(0)
    t_idx = pl.program_id(1)                 # time-chunk index (sequential)
    Tc = x_ref.shape[1]
    Hp = h_sc.shape[-1]
    t0 = t_idx * Tc

    @pl.when(t_idx == 0)
    def _():
        h_sc[...] = jnp.zeros_like(h_sc)
        c_sc[...] = jnp.zeros_like(c_sc)

    # Ragged-batch skip: if every row of this batch block has already finished
    # before this time chunk starts, skip the recurrence entirely.
    block_active = t0 < bmax_ref[b_idx]

    @pl.when(block_active)
    def _():
        lens = len_ref[...]                  # (Bb, 1) int32
        wih = wih_ref[...]
        whh = whh_ref[...]
        bias = bias_ref[...]

        # Keep h/c in registers across the fully-unrolled inner loop; VMEM
        # scratch is only read/written at chunk boundaries.
        h = h_sc[...]
        c = c_sc[...]
        for i in range(Tc):
            # gates = x_t @ W_ih^T + b + h @ W_hh^T  (all f32; the x-projection
            # matmul is independent of the h chain, so the scheduler can hoist
            # it ahead of the serial recurrence).
            gates = (jnp.dot(x_ref[:, i, :], wih,
                             preferred_element_type=jnp.float32)
                     + bias
                     + jnp.dot(h, whh, preferred_element_type=jnp.float32))

            # 128-lane-aligned gate slices (gate order i, f, g, o; each padded to Hp)
            i_g = jax.nn.sigmoid(gates[:, 0 * Hp:1 * Hp])
            f_g = jax.nn.sigmoid(gates[:, 1 * Hp:2 * Hp])
            g_g = jnp.tanh(gates[:, 2 * Hp:3 * Hp])
            o_g = jax.nn.sigmoid(gates[:, 3 * Hp:4 * Hp])

            c_new = f_g * c + i_g * g_g
            h_new = o_g * jnp.tanh(c_new)

            mask = (t0 + i) < lens           # (Bb, 1) valid-timestep mask
            h = jnp.where(mask, h_new, h)
            c = jnp.where(mask, c_new, c)
            # Store into the VMEM-resident batch-first output block; the HBM
            # writeback is one lane-dense (Bb, Tc, Hp) DMA per chunk.
            out_ref[:, i, :] = jnp.where(mask, h_new, 0.0)

        h_sc[...] = h
        c_sc[...] = c

    @pl.when(jnp.logical_not(block_active))
    def _():
        out_ref[...] = jnp.zeros(out_ref.shape, out_ref.dtype)

    @pl.when(t_idx == pl.num_programs(1) - 1)
    def _():
        hlast_ref[...] = h_sc[...]


def lstm_forward(x, x_len, w_ih, w_hh, b_ih, b_hh, *, time_chunk=16, batch_block=64):
    """Eval-mode forward of the BiDAF LSTM module.

    x: (B, T, D) float32, x_len: (B,) int (assumes max(x_len) == T).
    w_ih: (4H, D), w_hh: (4H, H), b_ih/b_hh: (4H,). Gate order i, f, g, o.
    Returns (outputs (B, T, H) float32, h_last (B, H) float32).
    batch_block / time_chunk are per-generation tuning knobs (v5e: Bb~128,
    v6e/v7x: Bb~64-128 / Tc toward the small end on v7x's 64 MiB VMEM).
    """
    B, T, D = x.shape
    H = w_ih.shape[0] // 4
    Hp = _round_up(H, 128)                   # lane-align hidden / gate blocks

    # --- batch blocking: multiple of 8, >= 2 blocks when possible (v7x megacore)
    B8 = _round_up(B, 8)
    Bb = min(_round_up(batch_block, 8), B8)
    if B8 // Bb < 2 and B8 >= 16:
        Bb = _round_up(B8 // 2, 8)
    Bp = _round_up(B8, Bb)
    n_bblk = Bp // Bb

    # --- time chunking: multiple of 8
    Tc = min(_round_up(time_chunk, 8), _round_up(T, 8))
    T_pad = _round_up(T, Tc)

    # ---- parameter prep: per-gate padded layouts (all f32) --------------------
    w_ih = w_ih.astype(jnp.float32)
    w_hh = w_hh.astype(jnp.float32)
    wih_p = jnp.zeros((4, Hp, D), jnp.float32).at[:, :H, :].set(w_ih.reshape(4, H, D))
    wih_p = wih_p.transpose(2, 0, 1).reshape(D, 4 * Hp)          # (D, 4Hp)
    whh_p = jnp.zeros((4, Hp, Hp), jnp.float32).at[:, :H, :H].set(w_hh.reshape(4, H, H))
    whh_p = whh_p.transpose(2, 0, 1).reshape(Hp, 4 * Hp)         # (Hp, 4Hp)
    bias_p = jnp.zeros((4, Hp), jnp.float32).at[:, :H].set(
        (b_ih + b_hh).astype(jnp.float32).reshape(4, H))
    bias_p = bias_p.reshape(1, 4 * Hp)

    # ---- padded inputs, lengths, per-block max length (for chunk skipping) ----
    x_p = jnp.zeros((Bp, T_pad, D), jnp.float32).at[:B, :T, :].set(x.astype(jnp.float32))
    lens = jnp.zeros((Bp, 1), jnp.int32).at[:B, 0].set(x_len.astype(jnp.int32))
    block_max = jnp.max(lens.reshape(n_bblk, Bb), axis=1).astype(jnp.int32)  # (n_bblk,)

    # ---- scoped-VMEM budget derived from the actual blocks (review item 4) ----
    est = (2 * Bb * Tc * D          # x block (double-buffered)
           + 2 * Bb * Tc * Hp       # out block (double-buffered)
           + 2 * D * 4 * Hp         # W_ih (grid-invariant; default 2 buffers)
           + 2 * Hp * 4 * Hp        # W_hh
           + 2 * 4 * Hp             # bias
           + 2 * Bb * Hp            # h_last block
           + 2 * Bb                 # lens block
           + 2 * Bb * Hp) * 4       # h/c scratch
    vmem_limit = int(min(max(2 * est, 16 * 2 ** 20), 48 * 2 ** 20))

    grid = (n_bblk, T_pad // Tc)     # (parallel batch blocks, sequential time)

    out_pad, h_last = pl.pallas_call(
        lstm_kernel,
        out_shape=(jax.ShapeDtypeStruct((Bp, T_pad, Hp), jnp.float32),
                   jax.ShapeDtypeStruct((Bp, Hp), jnp.float32)),
        grid_spec=pltpu.PrefetchScalarGridSpec(
            num_scalar_prefetch=1,            # block_max lands in SMEM
            grid=grid,
            in_specs=[
                pl.BlockSpec((Bb, 1), lambda b, t, bm: (b, 0)),          # lengths
                pl.BlockSpec((Bb, Tc, D), lambda b, t, bm: (b, t, 0)),   # x chunk
                pl.BlockSpec((D, 4 * Hp), lambda b, t, bm: (0, 0)),      # W_ih (invariant)
                pl.BlockSpec((Hp, 4 * Hp), lambda b, t, bm: (0, 0)),     # W_hh (invariant)
                pl.BlockSpec((1, 4 * Hp), lambda b, t, bm: (0, 0)),      # bias (invariant)
            ],
            out_specs=[
                pl.BlockSpec((Bb, Tc, Hp), lambda b, t, bm: (b, t, 0)),  # outputs (batch-first)
                pl.BlockSpec((Bb, Hp), lambda b, t, bm: (b, 0)),         # h_last (resident over t)
            ],
            scratch_shapes=[
                pltpu.VMEM((Bb, Hp), jnp.float32),   # h carry
                pltpu.VMEM((Bb, Hp), jnp.float32),   # c carry
            ],
        ),
        compiler_params=pltpu.CompilerParams(
            # batch blocks are independent (megacore-splittable on v7x);
            # the time recurrence must stay sequential.
            dimension_semantics=("parallel", "arbitrary"),
            vmem_limit_bytes=vmem_limit),
    )(block_max, lens, x_p, wih_p, whh_p, bias_p)

    return out_pad[:B, :T, :H], h_last[:B, :H]


def init_lstm_params(key, input_size, hidden_size):
    """Match the module's reset_params(): orthogonal W_hh, kaiming-normal W_ih,
    zero biases except the forget-gate chunk of bias_hh = 1. Gate order i, f, g, o."""
    k1, k2 = jax.random.split(key)
    H, D = hidden_size, input_size
    a = jax.random.normal(k1, (4 * H, H), dtype=jnp.float32)
    q, r = jnp.linalg.qr(a)
    q = q * jnp.sign(jnp.diag(r))[None, :]
    w_hh = q.astype(jnp.float32)
    w_ih = jax.random.normal(k2, (4 * H, D), dtype=jnp.float32) * jnp.sqrt(2.0 / D)
    b_ih = jnp.zeros((4 * H,), jnp.float32)
    b_hh = jnp.zeros((4 * H,), jnp.float32).at[H:2 * H].set(1.0)
    return w_ih, w_hh, b_ih, b_hh


def lstm_ref(x, x_len, w_ih, w_hh, b_ih, b_hh):
    """Pure-JAX f32 reference with the same masking / packing semantics."""
    B, T, D = x.shape
    H = w_hh.shape[1]
    bias = (b_ih + b_hh).astype(jnp.float32)
    h = jnp.zeros((B, H), jnp.float32)
    c = jnp.zeros((B, H), jnp.float32)
    outs = []
    for t in range(T):
        gates = x[:, t, :] @ w_ih.T + bias + h @ w_hh.T
        i = jax.nn.sigmoid(gates[:, 0 * H:1 * H])
        f = jax.nn.sigmoid(gates[:, 1 * H:2 * H])
        g = jnp.tanh(gates[:, 2 * H:3 * H])
        o = jax.nn.sigmoid(gates[:, 3 * H:4 * H])
        c_new = f * c + i * g
        h_new = o * jnp.tanh(c_new)
        m = (t < x_len)[:, None]
        h = jnp.where(m, h_new, h)
        c = jnp.where(m, c_new, c)
        outs.append(jnp.where(m, h_new, 0.0))
    return jnp.stack(outs, axis=1), h


if __name__ == "__main__":
    # Small shapes: exercises H padding (48 -> 128), T padding (12 -> 16),
    # two batch blocks, multi-chunk h/c carry and ragged chunk skipping.
    B, T, D, H = 16, 12, 32, 48

    key = jax.random.PRNGKey(0)
    kx, kp = jax.random.split(key)
    x = jax.random.normal(kx, (B, T, D), dtype=jnp.float32)
    # max(x_len) == T; second half (second batch block) all <= 8 so the last
    # time chunk is skipped entirely in the time_chunk=8 run below.
    x_len = jnp.array([12, 7, 5, 12, 3, 9, 12, 1,
                       6, 8, 4, 2, 7, 5, 3, 8], dtype=jnp.int32)

    w_ih, w_hh, b_ih, b_hh = init_lstm_params(kp, D, H)

    out_r, h_r = lstm_ref(x, x_len, w_ih, w_hh, b_ih, b_hh)

    # default tiling (single time chunk at this T, two batch blocks)
    out1, h1 = jax.jit(lstm_forward)(x, x_len, w_ih, w_hh, b_ih, b_hh)
    jax.block_until_ready((out1, h1))
    # Tolerance allows for default-precision f32 MXU passes on real TPUs.
    assert jnp.allclose(out1, out_r, rtol=1e-2, atol=1e-2), "output mismatch (default tiling)"
    assert jnp.allclose(h1, h_r, rtol=1e-2, atol=1e-2), "h_last mismatch (default tiling)"

    # smaller chunks: exercises the h/c chunk carry across sequential grid
    # steps and the ragged chunk-skipping path.
    fwd_small = jax.jit(functools.partial(lstm_forward, time_chunk=8, batch_block=8))
    out2, h2 = fwd_small(x, x_len, w_ih, w_hh, b_ih, b_hh)
    jax.block_until_ready((out2, h2))
    assert jnp.allclose(out2, out_r, rtol=1e-2, atol=1e-2), "output mismatch (chunked tiling)"
    assert jnp.allclose(h2, h_r, rtol=1e-2, atol=1e-2), "h_last mismatch (chunked tiling)"

    print("KERNEL_OK")
</pallas_src>

<mosaic_0001>
module attributes {stable_mosaic.version = 11 : i64} {
  func.func @lstm_kernel(%arg0: i32, %arg1: i32, %arg2: memref<2xi32, #tpu.memory_space<smem>>, %arg3: memref<8x1xi32, #tpu.memory_space<vmem>>, %arg4: memref<8x16x32xf32, #tpu.memory_space<vmem>>, %arg5: memref<32x512xf32, #tpu.memory_space<vmem>>, %arg6: memref<128x512xf32, #tpu.memory_space<vmem>>, %arg7: memref<1x512xf32, #tpu.memory_space<vmem>>, %arg8: memref<8x16x128xf32, #tpu.memory_space<vmem>>, %arg9: memref<8x128xf32, #tpu.memory_space<vmem>>, %arg10: memref<8x128xf32, #tpu.memory_space<vmem>>, %arg11: memref<8x128xf32, #tpu.memory_space<vmem>>) attributes {dimension_semantics = [#tpu.dimension_semantics<parallel>, #tpu.dimension_semantics<arbitrary>], iteration_bounds = array<i64: 2, 1>, scalar_prefetch = 1 : i64, scratch_operands = 2 : i64, tpu.core_type = #tpu.core_type<tc>, window_params = [{transform_indices = @transform_0, window_bounds = array<i64: 8, 1>}, {transform_indices = @transform_1, window_bounds = array<i64: 8, 16, 32>}, {pipeline_mode = #tpu.pipeline_mode<synchronous>, transform_indices = @transform_2, window_bounds = array<i64: 32, 512>}, {pipeline_mode = #tpu.pipeline_mode<synchronous>, transform_indices = @transform_3, window_bounds = array<i64: 128, 512>}, {pipeline_mode = #tpu.pipeline_mode<synchronous>, transform_indices = @transform_4, window_bounds = array<i64: 1, 512>}, {transform_indices = @transform_5, window_bounds = array<i64: 8, 16, 128>}, {transform_indices = @transform_6, window_bounds = array<i64: 8, 128>}]} {
    %c16_i32 = arith.constant 16 : i32
    %0 = arith.muli %arg1, %c16_i32 : i32
    %c0_i32 = arith.constant 0 : i32
    %1 = arith.cmpi eq, %arg1, %c0_i32 : i32
    %2 = arith.extui %1 : i1 to i32
    %c0_i32_0 = arith.constant 0 : i32
    %3 = arith.cmpi ne, %2, %c0_i32_0 : i32
    scf.if %3 {
      %cst = arith.constant 0.000000e+00 : f32
      %15 = vector.broadcast %cst : f32 to vector<8x128xf32>
      %c0 = arith.constant 0 : index
      %c0_5 = arith.constant 0 : index
      %16 = vector.load %arg10[%c0, %c0_5] : memref<8x128xf32, #tpu.memory_space<vmem>>, vector<8x128xf32>
      tpu.vector_store %arg10[%c0, %c0_5], %15 {strides = array<i32>} : memref<8x128xf32, #tpu.memory_space<vmem>>, vector<8x128xf32>,
      %cst_6 = arith.constant 0.000000e+00 : f32
      %17 = vector.broadcast %cst_6 : f32 to vector<8x128xf32>
      %c0_7 = arith.constant 0 : index
      %c0_8 = arith.constant 0 : index
      %18 = vector.load %arg11[%c0_7, %c0_8] : memref<8x128xf32, #tpu.memory_space<vmem>>, vector<8x128xf32>
      tpu.vector_store %arg11[%c0_7, %c0_8], %17 {strides = array<i32>} : memref<8x128xf32, #tpu.memory_space<vmem>>, vector<8x128xf32>,
    } else {
    }
    %4 = arith.index_cast %arg0 : i32 to index
    %5 = memref.load %arg2[%4] : memref<2xi32, #tpu.memory_space<smem>>
    %6 = arith.cmpi slt, %0, %5 : i32
    %7 = arith.extui %6 : i1 to i32
    %c0_i32_1 = arith.constant 0 : i32
    %8 = arith.cmpi ne, %7, %c0_i32_1 : i32
    scf.if %8 {
      %c0 = arith.constant 0 : index
      %c0_5 = arith.constant 0 : index
      %15 = vector.load %arg3[%c0, %c0_5] : memref<8x1xi32, #tpu.memory_space<vmem>>, vector<8x1xi32>
      %c0_6 = arith.constant 0 : index
      %c0_7 = arith.constant 0 : index
      %16 = vector.load %arg5[%c0_6, %c0_7] : memref<32x512xf32, #tpu.memory_space<vmem>>, vector<32x512xf32>
      %c0_8 = arith.constant 0 : index
      %c0_9 = arith.constant 0 : index
      %17 = vector.load %arg6[%c0_8, %c0_9] : memref<128x512xf32, #tpu.memory_space<vmem>>, vector<128x512xf32>
      %c0_10 = arith.constant 0 : index
      %c0_11 = arith.constant 0 : index
      %18 = vector.load %arg7[%c0_10, %c0_11] : memref<1x512xf32, #tpu.memory_space<vmem>>, vector<1x512xf32>
      %c0_12 = arith.constant 0 : index
      %c0_13 = arith.constant 0 : index
      %19 = vector.load %arg10[%c0_12, %c0_13] : memref<8x128xf32, #tpu.memory_space<vmem>>, vector<8x128xf32>
      %c0_14 = arith.constant 0 : index
      %c0_15 = arith.constant 0 : index
      %20 = vector.load %arg11[%c0_14, %c0_15] : memref<8x128xf32, #tpu.memory_space<vmem>>, vector<8x128xf32>
      %c0_16 = arith.constant 0 : index
      %c0_17 = arith.constant 0 : index
      %c0_18 = arith.constant 0 : index
      %21 = vector.load %arg4[%c0_16, %c0_17, %c0_18] : memref<8x16x32xf32, #tpu.memory_space<vmem>>, vector<8x1x32xf32>
      %22 = vector.shape_cast %21 : vector<8x1x32xf32> to vector<8x32xf32>
      %cst = arith.constant dense<0.000000e+00> : vector<8x512xf32>
      %23 = tpu.matmul %22, %16, %cst {dimension_numbers = #tpu.dot_dimension_numbers<[1], [0], [0], [1], [0, 0, 1, 1], [], []>} : vector<8x32xf32>, vector<32x512xf32>, vector<8x512xf32> -> vector<8x512xf32>
      %24 = vector.broadcast %18 : vector<1x512xf32> to vector<8x512xf32>
      %25 = arith.addf %23, %24 : vector<8x512xf32>
      %cst_19 = arith.constant dense<0.000000e+00> : vector<8x512xf32>
      %26 = tpu.matmul %19, %17, %cst_19 {dimension_numbers = #tpu.dot_dimension_numbers<[1], [0], [0], [1], [0, 0, 1, 1], [], []>} : vector<8x128xf32>, vector<128x512xf32>, vector<8x512xf32> -> vector<8x512xf32>
      %27 = arith.addf %25, %26 : vector<8x512xf32>
      %28 = vector.extract_strided_slice %27 {offsets = [0, 0], sizes = [8, 128], strides = [1, 1]} : vector<8x512xf32> to vector<8x128xf32>
      %29 = arith.negf %28 : vector<8x128xf32>
      %30 = math.exp %29 : vector<8x128xf32>
      %cst_20 = arith.constant 1.000000e+00 : f32
      %31 = vector.broadcast %cst_20 : f32 to vector<8x128xf32>
      %32 = arith.addf %31, %30 : vector<8x128xf32>
      %33 = arith.divf %31, %32 : vector<8x128xf32>
      %34 = vector.extract_strided_slice %27 {offsets = [0, 128], sizes = [8, 128], strides = [1, 1]} : vector<8x512xf32> to vector<8x128xf32>
      %35 = arith.negf %34 : vector<8x128xf32>
      %36 = math.exp %35 : vector<8x128xf32>
      %cst_21 = arith.constant 1.000000e+00 : f32
      %37 = vector.broadcast %cst_21 : f32 to vector<8x128xf32>
      %38 = arith.addf %37, %36 : vector<8x128xf32>
      %39 = arith.divf %37, %38 : vector<8x128xf32>
      %40 = vector.extract_strided_slice %27 {offsets = [0, 256], sizes = [8, 128], strides = [1, 1]} : vector<8x512xf32> to vector<8x128xf32>
      %41 = math.tanh %40 : vector<8x128xf32>
      %42 = vector.extract_strided_slice %27 {offsets = [0, 384], sizes = [8, 128], strides = [1, 1]} : vector<8x512xf32> to vector<8x128xf32>
      %43 = arith.negf %42 : vector<8x128xf32>
      %44 = math.exp %43 : vector<8x128xf32>
      %cst_22 = arith.constant 1.000000e+00 : f32
      %45 = vector.broadcast %cst_22 : f32 to vector<8x128xf32>
      %46 = arith.addf %45, %44 : vector<8x128xf32>
      %47 = arith.divf %45, %46 : vector<8x128xf32>
      %48 = arith.mulf %39, %20 : vector<8x128xf32>
      %49 = arith.mulf %33, %41 : vector<8x128xf32>
      %50 = arith.addf %48, %49 : vector<8x128xf32>
      %51 = math.tanh %50 : vector<8x128xf32>
      %52 = arith.mulf %47, %51 : vector<8x128xf32>
      %c0_i32_23 = arith.constant 0 : i32
      %53 = arith.addi %0, %c0_i32_23 : i32
      %54 = vector.broadcast %53 : i32 to vector<8x1xi32>
      %55 = arith.cmpi slt, %54, %15 : vector<8x1xi32>
      %56 = vector.shape_cast %55 : vector<8x1xi1> to vector<8x1xi1>
      %57 = vector.broadcast %56 : vector<8x1xi1> to vector<8x128xi1>
      %58 = arith.select %57, %52, %19 : vector<8x128xi1>, vector<8x128xf32>
      %59 = vector.shape_cast %55 : vector<8x1xi1> to vector<8x1xi1>
      %60 = vector.broadcast %59 : vector<8x1xi1> to vector<8x128xi1>
      %61 = arith.select %60, %50, %20 : vector<8x128xi1>, vector<8x128xf32>
      %cst_24 = arith.constant 0.000000e+00 : f32
      %62 = vector.shape_cast %55 : vector<8x1xi1> to vector<8x1xi1>
      %63 = vector.broadcast %62 : vector<8x1xi1> to vector<8x128xi1>
      %64 = vector.broadcast %cst_24 : f32 to vector<8x128xf32>
      %65 = arith.select %63, %52, %64 : vector<8x128xi1>, vector<8x128xf32>
      %c0_25 = arith.constant 0 : index
      %c0_26 = arith.constant 0 : index
      %c0_27 = arith.constant 0 : index
      %66 = vector.load %arg8[%c0_25, %c0_26, %c0_27] : memref<8x16x128xf32, #tpu.memory_space<vmem>>, vector<8x1x128xf32>
      %67 = vector.shape_cast %66 : vector<8x1x128xf32> to vector<8x128xf32>
      %68 = vector.shape_cast %65 : vector<8x128xf32> to vector<8x1x128xf32>
      tpu.vector_store %arg8[%c0_25, %c0_26, %c0_27], %68 {strides = array<i32>} : memref<8x16x128xf32, #tpu.memory_space<vmem>>, vector<8x1x128xf32>,
      %c0_28 = arith.constant 0 : index
      %c1 = arith.constant 1 : index
      %c0_29 = arith.constant 0 : index
      %69 = vector.load %arg4[%c0_28, %c1, %c0_29] : memref<8x16x32xf32, #tpu.memory_space<vmem>>, vector<8x1x32xf32>
      %70 = vector.shape_cast %69 : vector<8x1x32xf32> to vector<8x32xf32>
      %cst_30 = arith.constant dense<0.000000e+00> : vector<8x512xf32>
      %71 = tpu.matmul %70, %16, %cst_30 {dimension_numbers = #tpu.dot_dimension_numbers<[1], [0], [0], [1], [0, 0, 1, 1], [], []>} : vector<8x32xf32>, vector<32x512xf32>, vector<8x512xf32> -> vector<8x512xf32>
      %72 = vector.broadcast %18 : vector<1x512xf32> to vector<8x512xf32>
      %73 = arith.addf %71, %72 : vector<8x512xf32>
      %cst_31 = arith.constant dense<0.000000e+00> : vector<8x512xf32>
      %74 = tpu.matmul %58, %17, %cst_31 {dimension_numbers = #tpu.dot_dimension_numbers<[1], [0], [0], [1], [0, 0, 1, 1], [], []>} : vector<8x128xf32>, vector<128x512xf32>, vector<8x512xf32> -> vector<8x512xf32>
      %75 = arith.addf %73, %74 : vector<8x512xf32>
      %76 = vector.extract_strided_slice %75 {offsets = [0, 0], sizes = [8, 128], strides = [1, 1]} : vector<8x512xf32> to vector<8x128xf32>
      %77 = arith.negf %76 : vector<8x128xf32>
      %78 = math.exp %77 : vector<8x128xf32>
      %cst_32 = arith.constant 1.000000e+00 : f32
      %79 = vector.broadcast %cst_32 : f32 to vector<8x128xf32>
      %80 = arith.addf %79, %78 : vector<8x128xf32>
      %81 = arith.divf %79, %80 : vector<8x128xf32>
      %82 = vector.extract_strided_slice %75 {offsets = [0, 128], sizes = [8, 128], strides = [1, 1]} : vector<8x512xf32> to vector<8x128xf32>
      %83 = arith.negf %82 : vector<8x128xf32>
      %84 = math.exp %83 : vector<8x128xf32>
      %cst_33 = arith.constant 1.000000e+00 : f32
      %85 = vector.broadcast %cst_33 : f32 to vector<8x128xf32>
      %86 = arith.addf %85, %84 : vector<8x128xf32>
      %87 = arith.divf %85, %86 : vector<8x128xf32>
      %88 = vector.extract_strided_slice %75 {offsets = [0, 256], sizes = [8, 128], strides = [1, 1]} : vector<8x512xf32> to vector<8x128xf32>
      %89 = math.tanh %88 : vector<8x128xf32>
      %90 = vector.extract_strided_slice %75 {offsets = [0, 384], sizes = [8, 128], strides = [1, 1]} : vector<8x512xf32> to vector<8x128xf32>
      %91 = arith.negf %90 : vector<8x128xf32>
      %92 = math.exp %91 : vector<8x128xf32>
      %cst_34 = arith.constant 1.000000e+00 : f32
      %93 = vector.broadcast %cst_34 : f32 to vector<8x128xf32>
      %94 = arith.addf %93, %92 : vector<8x128xf32>
      %95 = arith.divf %93, %94 : vector<8x128xf32>
      %96 = arith.mulf %87, %61 : vector<8x128xf32>
      %97 = arith.mulf %81, %89 : vector<8x128xf32>
      %98 = arith.addf %96, %97 : vector<8x128xf32>
      %99 = math.tanh %98 : vector<8x128xf32>
      %100 = arith.mulf %95, %99 : vector<8x128xf32>
      %c1_i32 = arith.constant 1 : i32
      %101 = arith.addi %0, %c1_i32 : i32
      %102 = vector.broadcast %101 : i32 to vector<8x1xi32>
      %103 = arith.cmpi slt, %102, %15 : vector<8x1xi32>
      %104 = vector.shape_cast %103 : vector<8x1xi1> to vector<8x1xi1>
      %105 = vector.broadcast %104 : vector<8x1xi1> to vector<8x128xi1>
      %106 = arith.select %105, %100, %58 : vector<8x128xi1>, vector<8x128xf32>
      %107 = vector.shape_cast %103 : vector<8x1xi1> to vector<8x1xi1>
      %108 = vector.broadcast %107 : vector<8x1xi1> to vector<8x128xi1>
      %109 = arith.select %108, %98, %61 : vector<8x128xi1>, vector<8x128xf32>
      %cst_35 = arith.constant 0.000000e+00 : f32
      %110 = vector.shape_cast %103 : vector<8x1xi1> to vector<8x1xi1>
      %111 = vector.broadcast %110 : vector<8x1xi1> to vector<8x128xi1>
      %112 = vector.broadcast %cst_35 : f32 to vector<8x128xf32>
      %113 = arith.select %111, %100, %112 : vector<8x128xi1>, vector<8x128xf32>
      %c0_36 = arith.constant 0 : index
      %c1_37 = arith.constant 1 : index
      %c0_38 = arith.constant 0 : index
      %114 = vector.load %arg8[%c0_36, %c1_37, %c0_38] : memref<8x16x128xf32, #tpu.memory_space<vmem>>, vector<8x1x128xf32>
      %115 = vector.shape_cast %114 : vector<8x1x128xf32> to vector<8x128xf32>
      %116 = vector.shape_cast %113 : vector<8x128xf32> to vector<8x1x128xf32>
      tpu.vector_store %arg8[%c0_36, %c1_37, %c0_38], %116 {strides = array<i32>} : memref<8x16x128xf32, #tpu.memory_space<vmem>>, vector<8x1x128xf32>,
      %c0_39 = arith.constant 0 : index
      %c2 = arith.constant 2 : index
      %c0_40 = arith.constant 0 : index
      %117 = vector.load %arg4[%c0_39, %c2, %c0_40] : memref<8x16x32xf32, #tpu.memory_space<vmem>>, vector<8x1x32xf32>
      %118 = vector.shape_cast %117 : vector<8x1x32xf32> to vector<8x32xf32>
      %cst_41 = arith.constant dense<0.000000e+00> : vector<8x512xf32>
      %119 = tpu.matmul %118, %16, %cst_41 {dimension_numbers = #tpu.dot_dimension_numbers<[1], [0], [0], [1], [0, 0, 1, 1], [], []>} : vector<8x32xf32>, vector<32x512xf32>, vector<8x512xf32> -> vector<8x512xf32>
      %120 = vector.broadcast %18 : vector<1x512xf32> to vector<8x512xf32>
      %121 = arith.addf %119, %120 : vector<8x512xf32>
      %cst_42 = arith.constant dense<0.000000e+00> : vector<8x512xf32>
      %122 = tpu.matmul %106, %17, %cst_42 {dimension_numbers = #tpu.dot_dimension_numbers<[1], [0], [0], [1], [0, 0, 1, 1], [], []>} : vector<8x128xf32>, vector<128x512xf32>, vector<8x512xf32> -> vector<8x512xf32>
      %123 = arith.addf %121, %122 : vector<8x512xf32>
      %124 = vector.extract_strided_slice %123 {offsets = [0, 0], sizes = [8, 128], strides = [1, 1]} : vector<8x512xf32> to vector<8x128xf32>
      %125 = arith.negf %124 : vector<8x128xf32>
      %126 = math.exp %125 : vector<8x128xf32>
      %cst_43 = arith.constant 1.000000e+00 : f32
      %127 = vector.broadcast %cst_43 : f32 to vector<8x128xf32>
      %128 = arith.addf %127, %126 : vector<8x128xf32>
      %129 = arith.divf %127, %128 : vector<8x128xf32>
      %130 = vector.extract_strided_slice %123 {offsets = [0, 128], sizes = [8, 128], strides = [1, 1]} : vector<8x512xf32> to vector<8x128xf32>
      %131 = arith.negf %130 : vector<8x128xf32>
      %132 = math.exp %131 : vector<8x128xf32>
      %cst_44 = arith.constant 1.000000e+00 : f32
      %133 = vector.broadcast %cst_44 : f32 to vector<8x128xf32>
      %134 = arith.addf %133, %132 : vector<8x128xf32>
      %135 = arith.divf %133, %134 : vector<8x128xf32>
      %136 = vector.extract_strided_slice %123 {offsets = [0, 256], sizes = [8, 128], strides = [1, 1]} : vector<8x512xf32> to vector<8x128xf32>
      %137 = math.tanh %136 : vector<8x128xf32>
      %138 = vector.extract_strided_slice %123 {offsets = [0, 384], sizes = [8, 128], strides = [1, 1]} : vector<8x512xf32> to vector<8x128xf32>
      %139 = arith.negf %138 : vector<8x128xf32>
      %140 = math.exp %139 : vector<8x128xf32>
      %cst_45 = arith.constant 1.000000e+00 : f32
      %141 = vector.broadcast %cst_45 : f32 to vector<8x128xf32>
      %142 = arith.addf %141, %140 : vector<8x128xf32>
      %143 = arith.divf %141, %142 : vector<8x128xf32>
      %144 = arith.mulf %135, %109 : vector<8x128xf32>
      %145 = arith.mulf %129, %137 : vector<8x128xf32>
      %146 = arith.addf %144, %145 : vector<8x128xf32>
      %147 = math.tanh %146 : vector<8x128xf32>
      %148 = arith.mulf %143, %147 : vector<8x128xf32>
      %c2_i32 = arith.constant 2 : i32
      %149 = arith.addi %0, %c2_i32 : i32
      %150 = vector.broadcast %149 : i32 to vector<8x1xi32>
      %151 = arith.cmpi slt, %150, %15 : vector<8x1xi32>
      %152 = vector.shape_cast %151 : vector<8x1xi1> to vector<8x1xi1>
      %153 = vector.broadcast %152 : vector<8x1xi1> to vector<8x128xi1>
      %154 = arith.select %153, %148, %106 : vector<8x128xi1>, vector<8x128xf32>
      %155 = vector.shape_cast %151 : vector<8x1xi1> to vector<8x1xi1>
      %156 = vector.broadcast %155 : vector<8x1xi1> to vector<8x128xi1>
      %157 = arith.select %156, %146, %109 : vector<8x128xi1>, vector<8x128xf32>
      %cst_46 = arith.constant 0.000000e+00 : f32
      %158 = vector.shape_cast %151 : vector<8x1xi1> to vector<8x1xi1>
      %159 = vector.broadcast %158 : vector<8x1xi1> to vector<8x128xi1>
      %160 = vector.broadcast %cst_46 : f32 to vector<8x128xf32>
      %161 = arith.select %159, %148, %160 : vector<8x128xi1>, vector<8x128xf32>
      %c0_47 = arith.constant 0 : index
      %c2_48 = arith.constant 2 : index
      %c0_49 = arith.constant 0 : index
      %162 = vector.load %arg8[%c0_47, %c2_48, %c0_49] : memref<8x16x128xf32, #tpu.memory_space<vmem>>, vector<8x1x128xf32>
      %163 = vector.shape_cast %162 : vector<8x1x128xf32> to vector<8x128xf32>
      %164 = vector.shape_cast %161 : vector<8x128xf32> to vector<8x1x128xf32>
      tpu.vector_store %arg8[%c0_47, %c2_48, %c0_49], %164 {strides = array<i32>} : memref<8x16x128xf32, #tpu.memory_space<vmem>>, vector<8x1x128xf32>,
      %c0_50 = arith.constant 0 : index
      %c3 = arith.constant 3 : index
      %c0_51 = arith.constant 0 : index
      %165 = vector.load %arg4[%c0_50, %c3, %c0_51] : memref<8x16x32xf32, #tpu.memory_space<vmem>>, vector<8x1x32xf32>
      %166 = vector.shape_cast %165 : vector<8x1x32xf32> to vector<8x32xf32>
      %cst_52 = arith.constant dense<0.000000e+00> : vector<8x512xf32>
      %167 = tpu.matmul %166, %16, %cst_52 {dimension_numbers = #tpu.dot_dimension_numbers<[1], [0], [0], [1], [0, 0, 1, 1], [], []>} : vector<8x32xf32>, vector<32x512xf32>, vector<8x512xf32> -> vector<8x512xf32>
      %168 = vector.broadcast %18 : vector<1x512xf32> to vector<8x512xf32>
      %169 = arith.addf %167, %168 : vector<8x512xf32>
      %cst_53 = arith.constant dense<0.000000e+00> : vector<8x512xf32>
      %170 = tpu.matmul %154, %17, %cst_53 {dimension_numbers = #tpu.dot_dimension_numbers<[1], [0], [0], [1], [0, 0, 1, 1], [], []>} : vector<8x128xf32>, vector<128x512xf32>, vector<8x512xf32> -> vector<8x512xf32>
      %171 = arith.addf %169, %170 : vector<8x512xf32>
      %172 = vector.extract_strided_slice %171 {offsets = [0, 0], sizes = [8, 128], strides = [1, 1]} : vector<8x512xf32> to vector<8x128xf32>
      %173 = arith.negf %172 : vector<8x128xf32>
      %174 = math.exp %173 : vector<8x128xf32>
      %cst_54 = arith.constant 1.000000e+00 : f32
      %175 = vector.broadcast %cst_54 : f32 to vector<8x128xf32>
      %176 = arith.addf %175, %174 : vector<8x128xf32>
      %177 = arith.divf %175, %176 : vector<8x128xf32>
      %178 = vector.extract_strided_slice %171 {offsets = [0, 128], sizes = [8, 128], strides = [1, 1]} : vector<8x512xf32> to vector<8x128xf32>
      %179 = arith.negf %178 : vector<8x128xf32>
      %180 = math.exp %179 : vector<8x128xf32>
      %cst_55 = arith.constant 1.000000e+00 : f32
      %181 = vector.broadcast %cst_55 : f32 to vector<8x128xf32>
      %182 = arith.addf %181, %180 : vector<8x128xf32>
      %183 = arith.divf %181, %182 : vector<8x128xf32>
      %184 = vector.extract_strided_slice %171 {offsets = [0, 256], sizes = [8, 128], strides = [1, 1]} : vector<8x512xf32> to vector<8x128xf32>
      %185 = math.tanh %184 : vector<8x128xf32>
      %186 = vector.extract_strided_slice %171 {offsets = [0, 384], sizes = [8, 128], strides = [1, 1]} : vector<8x512xf32> to vector<8x128xf32>
      %187 = arith.negf %186 : vector<8x128xf32>
      %188 = math.exp %187 : vector<8x128xf32>
      %cst_56 = arith.constant 1.000000e+00 : f32
      %189 = vector.broadcast %cst_56 : f32 to vector<8x128xf32>
      %190 = arith.addf %189, %188 : vector<8x128xf32>
      %191 = arith.divf %189, %190 : vector<8x128xf32>
      %192 = arith.mulf %183, %157 : vector<8x128xf32>
      %193 = arith.mulf %177, %185 : vector<8x128xf32>
      %194 = arith.addf %192, %193 : vector<8x128xf32>
      %195 = math.tanh %194 : vector<8x128xf32>
      %196 = arith.mulf %191, %195 : vector<8x128xf32>
      %c3_i32 = arith.constant 3 : i32
      %197 = arith.addi %0, %c3_i32 : i32
      %198 = vector.broadcast %197 : i32 to vector<8x1xi32>
      %199 = arith.cmpi slt, %198, %15 : vector<8x1xi32>
      %200 = vector.shape_cast %199 : vector<8x1xi1> to vector<8x1xi1>
      %201 = vector.broadcast %200 : vector<8x1xi1> to vector<8x128xi1>
      %202 = arith.select %201, %196, %154 : vector<8x128xi1>, vector<8x128xf32>
      %203 = vector.shape_cast %199 : vector<8x1xi1> to vector<8x1xi1>
      %204 = vector.broadcast %203 : vector<8x1xi1> to vector<8x128xi1>
      %205 = arith.select %204, %194, %157 : vector<8x128xi1>, vector<8x128xf32>
      %cst_57 = arith.constant 0.000000e+00 : f32
      %206 = vector.shape_cast %199 : vector<8x1xi1> to vector<8x1xi1>
      %207 = vector.broadcast %206 : vector<8x1xi1> to vector<8x128xi1>
      %208 = vector.broadcast %cst_57 : f32 to vector<8x128xf32>
      %209 = arith.select %207, %196, %208 : vector<8x128xi1>, vector<8x128xf32>
      %c0_58 = arith.constant 0 : index
      %c3_59 = arith.constant 3 : index
      %c0_60 = arith.constant 0 : index
      %210 = vector.load %arg8[%c0_58, %c3_59, %c0_60] : memref<8x16x128xf32, #tpu.memory_space<vmem>>, vector<8x1x128xf32>
      %211 = vector.shape_cast %210 : vector<8x1x128xf32> to vector<8x128xf32>
      %212 = vector.shape_cast %209 : vector<8x128xf32> to vector<8x1x128xf32>
      tpu.vector_store %arg8[%c0_58, %c3_59, %c0_60], %212 {strides = array<i32>} : memref<8x16x128xf32, #tpu.memory_space<vmem>>, vector<8x1x128xf32>,
      %c0_61 = arith.constant 0 : index
      %c4 = arith.constant 4 : index
      %c0_62 = arith.constant 0 : index
      %213 = vector.load %arg4[%c0_61, %c4, %c0_62] : memref<8x16x32xf32, #tpu.memory_space<vmem>>, vector<8x1x32xf32>
      %214 = vector.shape_cast %213 : vector<8x1x32xf32> to vector<8x32xf32>
      %cst_63 = arith.constant dense<0.000000e+00> : vector<8x512xf32>
      %215 = tpu.matmul %214, %16, %cst_63 {dimension_numbers = #tpu.dot_dimension_numbers<[1], [0], [0], [1], [0, 0, 1, 1], [], []>} : vector<8x32xf32>, vector<32x512xf32>, vector<8x512xf32> -> vector<8x512xf32>
      %216 = vector.broadcast %18 : vector<1x512xf32> to vector<8x512xf32>
      %217 = arith.addf %215, %216 : vector<8x512xf32>
      %cst_64 = arith.constant dense<0.000000e+00> : vector<8x512xf32>
      %218 = tpu.matmul %202, %17, %cst_64 {dimension_numbers = #tpu.dot_dimension_numbers<[1], [0], [0], [1], [0, 0, 1, 1], [], []>} : vector<8x128xf32>, vector<128x512xf32>, vector<8x512xf32> -> vector<8x512xf32>
      %219 = arith.addf %217, %218 : vector<8x512xf32>
      %220 = vector.extract_strided_slice %219 {offsets = [0, 0], sizes = [8, 128], strides = [1, 1]} : vector<8x512xf32> to vector<8x128xf32>
      %221 = arith.negf %220 : vector<8x128xf32>
      %222 = math.exp %221 : vector<8x128xf32>
      %cst_65 = arith.constant 1.000000e+00 : f32
      %223 = vector.broadcast %cst_65 : f32 to vector<8x128xf32>
      %224 = arith.addf %223, %222 : vector<8x128xf32>
      %225 = arith.divf %223, %224 : vector<8x128xf32>
      %226 = vector.extract_strided_slice %219 {offsets = [0, 128], sizes = [8, 128], strides = [1, 1]} : vector<8x512xf32> to vector<8x128xf32>
      %227 = arith.negf %226 : vector<8x128xf32>
      %228 = math.exp %227 : vector<8x128xf32>
      %cst_66 = arith.constant 1.000000e+00 : f32
      %229 = vector.broadcast %cst_66 : f32 to vector<8x128xf32>
      %230 = arith.addf %229, %228 : vector<8x128xf32>
      %231 = arith.divf %229, %230 : vector<8x128xf32>
      %232 = vector.extract_strided_slice %219 {offsets = [0, 256], sizes = [8, 128], strides = [1, 1]} : vector<8x512xf32> to vector<8x128xf32>
      %233 = math.tanh %232 : vector<8x128xf32>
      %234 = vector.extract_strided_slice %219 {offsets = [0, 384], sizes = [8, 128], strides = [1, 1]} : vector<8x512xf32> to vector<8x128xf32>
      %235 = arith.negf %234 : vector<8x128xf32>
      %236 = math.exp %235 : vector<8x128xf32>
      %cst_67 = arith.constant 1.000000e+00 : f32
      %237 = vector.broadcast %cst_67 : f32 to vector<8x128xf32>
      %238 = arith.addf %237, %236 : vector<8x128xf32>
      %239 = arith.divf %237, %238 : vector<8x128xf32>
      %240 = arith.mulf %231, %205 : vector<8x128xf32>
      %241 = arith.mulf %225, %233 : vector<8x128xf32>
      %242 = arith.addf %240, %241 : vector<8x128xf32>
      %243 = math.tanh %242 : vector<8x128xf32>
      %244 = arith.mulf %239, %243 : vector<8x128xf32>
      %c4_i32 = arith.constant 4 : i32
      %245 = arith.addi %0, %c4_i32 : i32
      %246 = vector.broadcast %245 : i32 to vector<8x1xi32>
      %247 = arith.cmpi slt, %246, %15 : vector<8x1xi32>
      %248 = vector.shape_cast %247 : vector<8x1xi1> to vector<8x1xi1>
      %249 = vector.broadcast %248 : vector<8x1xi1> to vector<8x128xi1>
      %250 = arith.select %249, %244, %202 : vector<8x128xi1>, vector<8x128xf32>
      %251 = vector.shape_cast %247 : vector<8x1xi1> to vector<8x1xi1>
      %252 = vector.broadcast %251 : vector<8x1xi1> to vector<8x128xi1>
      %253 = arith.select %252, %242, %205 : vector<8x128xi1>, vector<8x128xf32>
      %cst_68 = arith.constant 0.000000e+00 : f32
      %254 = vector.shape_cast %247 : vector<8x1xi1> to vector<8x1xi1>
      %255 = vector.broadcast %254 : vector<8x1xi1> to vector<8x128xi1>
      %256 = vector.broadcast %cst_68 : f32 to vector<8x128xf32>
      %257 = arith.select %255, %244, %256 : vector<8x128xi1>, vector<8x128xf32>
      %c0_69 = arith.constant 0 : index
      %c4_70 = arith.constant 4 : index
      %c0_71 = arith.constant 0 : index
      %258 = vector.load %arg8[%c0_69, %c4_70, %c0_71] : memref<8x16x128xf32, #tpu.memory_space<vmem>>, vector<8x1x128xf32>
      %259 = vector.shape_cast %258 : vector<8x1x128xf32> to vector<8x128xf32>
      %260 = vector.shape_cast %257 : vector<8x128xf32> to vector<8x1x128xf32>
      tpu.vector_store %arg8[%c0_69, %c4_70, %c0_71], %260 {strides = array<i32>} : memref<8x16x128xf32, #tpu.memory_space<vmem>>, vector<8x1x128xf32>,
      %c0_72 = arith.constant 0 : index
      %c5 = arith.constant 5 : index
      %c0_73 = arith.constant 0 : index
      %261 = vector.load %arg4[%c0_72, %c5, %c0_73] : memref<8x16x32xf32, #tpu.memory_space<vmem>>, vector<8x1x32xf32>
      %262 = vector.shape_cast %261 : vector<8x1x32xf32> to vector<8x32xf32>
      %cst_74 = arith.constant dense<0.000000e+00> : vector<8x512xf32>
      %263 = tpu.matmul %262, %16, %cst_74 {dimension_numbers = #tpu.dot_dimension_numbers<[1], [0], [0], [1], [0, 0, 1, 1], [], []>} : vector<8x32xf32>, vector<32x512xf32>, vector<8x512xf32> -> vector<8x512xf32>
      %264 = vector.broadcast %18 : vector<1x512xf32> to vector<8x512xf32>
      %265 = arith.addf %263, %264 : vector<8x512xf32>
      %cst_75 = arith.constant dense<0.000000e+00> : vector<8x512xf32>
      %266 = tpu.matmul %250, %17, %cst_75 {dimension_numbers = #tpu.dot_dimension_numbers<[1], [0], [0], [1], [0, 0, 1, 1], [], []>} : vector<8x128xf32>, vector<128x512xf32>, vector<8x512xf32> -> vector<8x512xf32>
      %267 = arith.addf %265, %266 : vector<8x512xf32>
      %268 = vector.extract_strided_slice %267 {offsets = [0, 0], sizes = [8, 128], strides = [1, 1]} : vector<8x512xf32> to vector<8x128xf32>
      %269 = arith.negf %268 : vector<8x128xf32>
      %270 = math.exp %269 : vector<8x128xf32>
      %cst_76 = arith.constant 1.000000e+00 : f32
      %271 = vector.broadcast %cst_76 : f32 to vector<8x128xf32>
      %272 = arith.addf %271, %270 : vector<8x128xf32>
      %273 = arith.divf %271, %272 : vector<8x128xf32>
      %274 = vector.extract_strided_slice %267 {offsets = [0, 128], sizes = [8, 128], strides = [1, 1]} : vector<8x512xf32> to vector<8x128xf32>
      %275 = arith.negf %274 : vector<8x128xf32>
      %276 = math.exp %275 : vector<8x128xf32>
      %cst_77 = arith.constant 1.000000e+00 : f32
      %277 = vector.broadcast %cst_77 : f32 to vector<8x128xf32>
      %278 = arith.addf %277, %276 : vector<8x128xf32>
      %279 = arith.divf %277, %278 : vector<8x128xf32>
      %280 = vector.extract_strided_slice %267 {offsets = [0, 256], sizes = [8, 128], strides = [1, 1]} : vector<8x512xf32> to vector<8x128xf32>
      %281 = math.tanh %280 : vector<8x128xf32>
      %282 = vector.extract_strided_slice %267 {offsets = [0, 384], sizes = [8, 128], strides = [1, 1]} : vector<8x512xf32> to vector<8x128xf32>
      %283 = arith.negf %282 : vector<8x128xf32>
      %284 = math.exp %283 : vector<8x128xf32>
      %cst_78 = arith.constant 1.000000e+00 : f32
      %285 = vector.broadcast %cst_78 : f32 to vector<8x128xf32>
      %286 = arith.addf %285, %284 : vector<8x128xf32>
      %287 = arith.divf %285, %286 : vector<8x128xf32>
      %288 = arith.mulf %279, %253 : vector<8x128xf32>
      %289 = arith.mulf %273, %281 : vector<8x128xf32>
      %290 = arith.addf %288, %289 : vector<8x128xf32>
      %291 = math.tanh %290 : vector<8x128xf32>
      %292 = arith.mulf %287, %291 : vector<8x128xf32>
      %c5_i32 = arith.constant 5 : i32
      %293 = arith.addi %0, %c5_i32 : i32
      %294 = vector.broadcast %293 : i32 to vector<8x1xi32>
      %295 = arith.cmpi slt, %294, %15 : vector<8x1xi32>
      %296 = vector.shape_cast %295 : vector<8x1xi1> to vector<8x1xi1>
      %297 = vector.broadcast %296 : vector<8x1xi1> to vector<8x128xi1>
      %298 = arith.select %297, %292, %250 : vector<8x128xi1>, vector<8x128xf32>
      %299 = vector.shape_cast %295 : vector<8x1xi1> to vector<8x1xi1>
      %300 = vector.broadcast %299 : vector<8x1xi1> to vector<8x128xi1>
      %301 = arith.select %300, %290, %253 : vector<8x128xi1>, vector<8x128xf32>
      %cst_79 = arith.constant 0.000000e+00 : f32
      %302 = vector.shape_cast %295 : vector<8x1xi1> to vector<8x1xi1>
      %303 = vector.broadcast %302 : vector<8x1xi1> to vector<8x128xi1>
      %304 = vector.broadcast %cst_79 : f32 to vector<8x128xf32>
      %305 = arith.select %303, %292, %304 : vector<8x128xi1>, vector<8x128xf32>
      %c0_80 = arith.constant 0 : index
      %c5_81 = arith.constant 5 : index
      %c0_82 = arith.constant 0 : index
      %306 = vector.load %arg8[%c0_80, %c5_81, %c0_82] : memref<8x16x128xf32, #tpu.memory_space<vmem>>, vector<8x1x128xf32>
      %307 = vector.shape_cast %306 : vector<8x1x128xf32> to vector<8x128xf32>
      %308 = vector.shape_cast %305 : vector<8x128xf32> to vector<8x1x128xf32>
      tpu.vector_store %arg8[%c0_80, %c5_81, %c0_82], %308 {strides = array<i32>} : memref<8x16x128xf32, #tpu.memory_space<vmem>>, vector<8x1x128xf32>,
      %c0_83 = arith.constant 0 : index
      %c6 = arith.constant 6 : index
      %c0_84 = arith.constant 0 : index
      %309 = vector.load %arg4[%c0_83, %c6, %c0_84] : memref<8x16x32xf32, #tpu.memory_space<vmem>>, vector<8x1x32xf32>
      %310 = vector.shape_cast %309 : vector<8x1x32xf32> to vector<8x32xf32>
      %cst_85 = arith.constant dense<0.000000e+00> : vector<8x512xf32>
      %311 = tpu.matmul %310, %16, %cst_85 {dimension_numbers = #tpu.dot_dimension_numbers<[1], [0], [0], [1], [0, 0, 1, 1], [], []>} : vector<8x32xf32>, vector<32x512xf32>, vector<8x512xf32> -> vector<8x512xf32>
      %312 = vector.broadcast %18 : vector<1x512xf32> to vector<8x512xf32>
      %313 = arith.addf %311, %312 : vector<8x512xf32>
      %cst_86 = arith.constant dense<0.000000e+00> : vector<8x512xf32>
      %314 = tpu.matmul %298, %17, %cst_86 {dimension_numbers = #tpu.dot_dimension_numbers<[1], [0], [0], [1], [0, 0, 1, 1], [], []>} : vector<8x128xf32>, vector<128x512xf32>, vector<8x512xf32> -> vector<8x512xf32>
      %315 = arith.addf %313, %314 : vector<8x512xf32>
      %316 = vector.extract_strided_slice %315 {offsets = [0, 0], sizes = [8, 128], strides = [1, 1]} : vector<8x512xf32> to vector<8x128xf32>
      %317 = arith.negf %316 : vector<8x128xf32>
      %318 = math.exp %317 : vector<8x128xf32>
      %cst_87 = arith.constant 1.000000e+00 : f32
      %319 = vector.broadcast %cst_87 : f32 to vector<8x128xf32>
      %320 = arith.addf %319, %318 : vector<8x128xf32>
      %321 = arith.divf %319, %320 : vector<8x128xf32>
      %322 = vector.extract_strided_slice %315 {offsets = [0, 128], sizes = [8, 128], strides = [1, 1]} : vector<8x512xf32> to vector<8x128xf32>
      %323 = arith.negf %322 : vector<8x128xf32>
      %324 = math.exp %323 : vector<8x128xf32>
      %cst_88 = arith.constant 1.000000e+00 : f32
      %325 = vector.broadcast %cst_88 : f32 to vector<8x128xf32>
      %326 = arith.addf %325, %324 : vector<8x128xf32>
      %327 = arith.divf %325, %326 : vector<8x128xf32>
      %328 = vector.extract_strided_slice %315 {offsets = [0, 256], sizes = [8, 128], strides = [1, 1]} : vector<8x512xf32> to vector<8x128xf32>
      %329 = math.tanh %328 : vector<8x128xf32>
      %330 = vector.extract_strided_slice %315 {offsets = [0, 384], sizes = [8, 128], strides = [1, 1]} : vector<8x512xf32> to vector<8x128xf32>
      %331 = arith.negf %330 : vector<8x128xf32>
      %332 = math.exp %331 : vector<8x128xf32>
      %cst_89 = arith.constant 1.000000e+00 : f32
      %333 = vector.broadcast %cst_89 : f32 to vector<8x128xf32>
      %334 = arith.addf %333, %332 : vector<8x128xf32>
      %335 = arith.divf %333, %334 : vector<8x128xf32>
      %336 = arith.mulf %327, %301 : vector<8x128xf32>
      %337 = arith.mulf %321, %329 : vector<8x128xf32>
      %338 = arith.addf %336, %337 : vector<8x128xf32>
      %339 = math.tanh %338 : vector<8x128xf32>
      %340 = arith.mulf %335, %339 : vector<8x128xf32>
      %c6_i32 = arith.constant 6 : i32
      %341 = arith.addi %0, %c6_i32 : i32
      %342 = vector.broadcast %341 : i32 to vector<8x1xi32>
      %343 = arith.cmpi slt, %342, %15 : vector<8x1xi32>
      %344 = vector.shape_cast %343 : vector<8x1xi1> to vector<8x1xi1>
      %345 = vector.broadcast %344 : vector<8x1xi1> to vector<8x128xi1>
      %346 = arith.select %345, %340, %298 : vector<8x128xi1>, vector<8x128xf32>
      %347 = vector.shape_cast %343 : vector<8x1xi1> to vector<8x1xi1>
      %348 = vector.broadcast %347 : vector<8x1xi1> to vector<8x128xi1>
      %349 = arith.select %348, %338, %301 : vector<8x128xi1>, vector<8x128xf32>
      %cst_90 = arith.constant 0.000000e+00 : f32
      %350 = vector.shape_cast %343 : vector<8x1xi1> to vector<8x1xi1>
      %351 = vector.broadcast %350 : vector<8x1xi1> to vector<8x128xi1>
      %352 = vector.broadcast %cst_90 : f32 to vector<8x128xf32>
      %353 = arith.select %351, %340, %352 : vector<8x128xi1>, vector<8x128xf32>
      %c0_91 = arith.constant 0 : index
      %c6_92 = arith.constant 6 : index
      %c0_93 = arith.constant 0 : index
      %354 = vector.load %arg8[%c0_91, %c6_92, %c0_93] : memref<8x16x128xf32, #tpu.memory_space<vmem>>, vector<8x1x128xf32>
      %355 = vector.shape_cast %354 : vector<8x1x128xf32> to vector<8x128xf32>
      %356 = vector.shape_cast %353 : vector<8x128xf32> to vector<8x1x128xf32>
      tpu.vector_store %arg8[%c0_91, %c6_92, %c0_93], %356 {strides = array<i32>} : memref<8x16x128xf32, #tpu.memory_space<vmem>>, vector<8x1x128xf32>,
      %c0_94 = arith.constant 0 : index
      %c7 = arith.constant 7 : index
      %c0_95 = arith.constant 0 : index
      %357 = vector.load %arg4[%c0_94, %c7, %c0_95] : memref<8x16x32xf32, #tpu.memory_space<vmem>>, vector<8x1x32xf32>
      %358 = vector.shape_cast %357 : vector<8x1x32xf32> to vector<8x32xf32>
      %cst_96 = arith.constant dense<0.000000e+00> : vector<8x512xf32>
      %359 = tpu.matmul %358, %16, %cst_96 {dimension_numbers = #tpu.dot_dimension_numbers<[1], [0], [0], [1], [0, 0, 1, 1], [], []>} : vector<8x32xf32>, vector<32x512xf32>, vector<8x512xf32> -> vector<8x512xf32>
      %360 = vector.broadcast %18 : vector<1x512xf32> to vector<8x512xf32>
      %361 = arith.addf %359, %360 : vector<8x512xf32>
      %cst_97 = arith.constant dense<0.000000e+00> : vector<8x512xf32>
      %362 = tpu.matmul %346, %17, %cst_97 {dimension_numbers = #tpu.dot_dimension_numbers<[1], [0], [0], [1], [0, 0, 1, 1], [], []>} : vector<8x128xf32>, vector<128x512xf32>, vector<8x512xf32> -> vector<8x512xf32>
      %363 = arith.addf %361, %362 : vector<8x512xf32>
      %364 = vector.extract_strided_slice %363 {offsets = [0, 0], sizes = [8, 128], strides = [1, 1]} : vector<8x512xf32> to vector<8x128xf32>
      %365 = arith.negf %364 : vector<8x128xf32>
      %366 = math.exp %365 : vector<8x128xf32>
      %cst_98 = arith.constant 1.000000e+00 : f32
      %367 = vector.broadcast %cst_98 : f32 to vector<8x128xf32>
      %368 = arith.addf %367, %366 : vector<8x128xf32>
      %369 = arith.divf %367, %368 : vector<8x128xf32>
      %370 = vector.extract_strided_slice %363 {offsets = [0, 128], sizes = [8, 128], strides = [1, 1]} : vector<8x512xf32> to vector<8x128xf32>
      %371 = arith.negf %370 : vector<8x128xf32>
      %372 = math.exp %371 : vector<8x128xf32>
      %cst_99 = arith.constant 1.000000e+00 : f32
      %373 = vector.broadcast %cst_99 : f32 to vector<8x128xf32>
      %374 = arith.addf %373, %372 : vector<8x128xf32>
      %375 = arith.divf %373, %374 : vector<8x128xf32>
      %376 = vector.extract_strided_slice %363 {offsets = [0, 256], sizes = [8, 128], strides = [1, 1]} : vector<8x512xf32> to vector<8x128xf32>
      %377 = math.tanh %376 : vector<8x128xf32>
      %378 = vector.extract_strided_slice %363 {offsets = [0, 384], sizes = [8, 128], strides = [1, 1]} : vector<8x512xf32> to vector<8x128xf32>
      %379 = arith.negf %378 : vector<8x128xf32>
      %380 = math.exp %379 : vector<8x128xf32>
      %cst_100 = arith.constant 1.000000e+00 : f32
      %381 = vector.broadcast %cst_100 : f32 to vector<8x128xf32>
      %382 = arith.addf %381, %380 : vector<8x128xf32>
      %383 = arith.divf %381, %382 : vector<8x128xf32>
      %384 = arith.mulf %375, %349 : vector<8x128xf32>
      %385 = arith.mulf %369, %377 : vector<8x128xf32>
      %386 = arith.addf %384, %385 : vector<8x128xf32>
      %387 = math.tanh %386 : vector<8x128xf32>
      %388 = arith.mulf %383, %387 : vector<8x128xf32>
      %c7_i32 = arith.constant 7 : i32
      %389 = arith.addi %0, %c7_i32 : i32
      %390 = vector.broadcast %389 : i32 to vector<8x1xi32>
      %391 = arith.cmpi slt, %390, %15 : vector<8x1xi32>
      %392 = vector.shape_cast %391 : vector<8x1xi1> to vector<8x1xi1>
      %393 = vector.broadcast %392 : vector<8x1xi1> to vector<8x128xi1>
      %394 = arith.select %393, %388, %346 : vector<8x128xi1>, vector<8x128xf32>
      %395 = vector.shape_cast %391 : vector<8x1xi1> to vector<8x1xi1>
      %396 = vector.broadcast %395 : vector<8x1xi1> to vector<8x128xi1>
      %397 = arith.select %396, %386, %349 : vector<8x128xi1>, vector<8x128xf32>
      %cst_101 = arith.constant 0.000000e+00 : f32
      %398 = vector.shape_cast %391 : vector<8x1xi1> to vector<8x1xi1>
      %399 = vector.broadcast %398 : vector<8x1xi1> to vector<8x128xi1>
      %400 = vector.broadcast %cst_101 : f32 to vector<8x128xf32>
      %401 = arith.select %399, %388, %400 : vector<8x128xi1>, vector<8x128xf32>
      %c0_102 = arith.constant 0 : index
      %c7_103 = arith.constant 7 : index
      %c0_104 = arith.constant 0 : index
      %402 = vector.load %arg8[%c0_102, %c7_103, %c0_104] : memref<8x16x128xf32, #tpu.memory_space<vmem>>, vector<8x1x128xf32>
      %403 = vector.shape_cast %402 : vector<8x1x128xf32> to vector<8x128xf32>
      %404 = vector.shape_cast %401 : vector<8x128xf32> to vector<8x1x128xf32>
      tpu.vector_store %arg8[%c0_102, %c7_103, %c0_104], %404 {strides = array<i32>} : memref<8x16x128xf32, #tpu.memory_space<vmem>>, vector<8x1x128xf32>,
      %c0_105 = arith.constant 0 : index
      %c8 = arith.constant 8 : index
      %c0_106 = arith.constant 0 : index
      %405 = vector.load %arg4[%c0_105, %c8, %c0_106] : memref<8x16x32xf32, #tpu.memory_space<vmem>>, vector<8x1x32xf32>
      %406 = vector.shape_cast %405 : vector<8x1x32xf32> to vector<8x32xf32>
      %cst_107 = arith.constant dense<0.000000e+00> : vector<8x512xf32>
      %407 = tpu.matmul %406, %16, %cst_107 {dimension_numbers = #tpu.dot_dimension_numbers<[1], [0], [0], [1], [0, 0, 1, 1], [], []>} : vector<8x32xf32>, vector<32x512xf32>, vector<8x512xf32> -> vector<8x512xf32>
      %408 = vector.broadcast %18 : vector<1x512xf32> to vector<8x512xf32>
      %409 = arith.addf %407, %408 : vector<8x512xf32>
      %cst_108 = arith.constant dense<0.000000e+00> : vector<8x512xf32>
      %410 = tpu.matmul %394, %17, %cst_108 {dimension_numbers = #tpu.dot_dimension_numbers<[1], [0], [0], [1], [0, 0, 1, 1], [], []>} : vector<8x128xf32>, vector<128x512xf32>, vector<8x512xf32> -> vector<8x512xf32>
      %411 = arith.addf %409, %410 : vector<8x512xf32>
      %412 = vector.extract_strided_slice %411 {offsets = [0, 0], sizes = [8, 128], strides = [1, 1]} : vector<8x512xf32> to vector<8x128xf32>
      %413 = arith.negf %412 : vector<8x128xf32>
      %414 = math.exp %413 : vector<8x128xf32>
      %cst_109 = arith.constant 1.000000e+00 : f32
      %415 = vector.broadcast %cst_109 : f32 to vector<8x128xf32>
      %416 = arith.addf %415, %414 : vector<8x128xf32>
      %417 = arith.divf %415, %416 : vector<8x128xf32>
      %418 = vector.extract_strided_slice %411 {offsets = [0, 128], sizes = [8, 128], strides = [1, 1]} : vector<8x512xf32> to vector<8x128xf32>
      %419 = arith.negf %418 : vector<8x128xf32>
      %420 = math.exp %419 : vector<8x128xf32>
      %cst_110 = arith.constant 1.000000e+00 : f32
      %421 = vector.broadcast %cst_110 : f32 to vector<8x128xf32>
      %422 = arith.addf %421, %420 : vector<8x128xf32>
      %423 = arith.divf %421, %422 : vector<8x128xf32>
      %424 = vector.extract_strided_slice %411 {offsets = [0, 256], sizes = [8, 128], strides = [1, 1]} : vector<8x512xf32> to vector<8x128xf32>
      %425 = math.tanh %424 : vector<8x128xf32>
      %426 = vector.extract_strided_slice %411 {offsets = [0, 384], sizes = [8, 128], strides = [1, 1]} : vector<8x512xf32> to vector<8x128xf32>
      %427 = arith.negf %426 : vector<8x128xf32>
      %428 = math.exp %427 : vector<8x128xf32>
      %cst_111 = arith.constant 1.000000e+00 : f32
      %429 = vector.broadcast %cst_111 : f32 to vector<8x128xf32>
      %430 = arith.addf %429, %428 : vector<8x128xf32>
      %431 = arith.divf %429, %430 : vector<8x128xf32>
      %432 = arith.mulf %423, %397 : vector<8x128xf32>
      %433 = arith.mulf %417, %425 : vector<8x128xf32>
      %434 = arith.addf %432, %433 : vector<8x128xf32>
      %435 = math.tanh %434 : vector<8x128xf32>
      %436 = arith.mulf %431, %435 : vector<8x128xf32>
      %c8_i32 = arith.constant 8 : i32
      %437 = arith.addi %0, %c8_i32 : i32
      %438 = vector.broadcast %437 : i32 to vector<8x1xi32>
      %439 = arith.cmpi slt, %438, %15 : vector<8x1xi32>
      %440 = vector.shape_cast %439 : vector<8x1xi1> to vector<8x1xi1>
      %441 = vector.broadcast %440 : vector<8x1xi1> to vector<8x128xi1>
      %442 = arith.select %441, %436, %394 : vector<8x128xi1>, vector<8x128xf32>
      %443 = vector.shape_cast %439 : vector<8x1xi1> to vector<8x1xi1>
      %444 = vector.broadcast %443 : vector<8x1xi1> to vector<8x128xi1>
      %445 = arith.select %444, %434, %397 : vector<8x128xi1>, vector<8x128xf32>
      %cst_112 = arith.constant 0.000000e+00 : f32
      %446 = vector.shape_cast %439 : vector<8x1xi1> to vector<8x1xi1>
      %447 = vector.broadcast %446 : vector<8x1xi1> to vector<8x128xi1>
      %448 = vector.broadcast %cst_112 : f32 to vector<8x128xf32>
      %449 = arith.select %447, %436, %448 : vector<8x128xi1>, vector<8x128xf32>
      %c0_113 = arith.constant 0 : index
      %c8_114 = arith.constant 8 : index
      %c0_115 = arith.constant 0 : index
      %450 = vector.load %arg8[%c0_113, %c8_114, %c0_115] : memref<8x16x128xf32, #tpu.memory_space<vmem>>, vector<8x1x128xf32>
      %451 = vector.shape_cast %450 : vector<8x1x128xf32> to vector<8x128xf32>
      %452 = vector.shape_cast %449 : vector<8x128xf32> to vector<8x1x128xf32>
      tpu.vector_store %arg8[%c0_113, %c8_114, %c0_115], %452 {strides = array<i32>} : memref<8x16x128xf32, #tpu.memory_space<vmem>>, vector<8x1x128xf32>,
      %c0_116 = arith.constant 0 : index
      %c9 = arith.constant 9 : index
      %c0_117 = arith.constant 0 : index
      %453 = vector.load %arg4[%c0_116, %c9, %c0_117] : memref<8x16x32xf32, #tpu.memory_space<vmem>>, vector<8x1x32xf32>
      %454 = vector.shape_cast %453 : vector<8x1x32xf32> to vector<8x32xf32>
      %cst_118 = arith.constant dense<0.000000e+00> : vector<8x512xf32>
      %455 = tpu.matmul %454, %16, %cst_118 {dimension_numbers = #tpu.dot_dimension_numbers<[1], [0], [0], [1], [0, 0, 1, 1], [], []>} : vector<8x32xf32>, vector<32x512xf32>, vector<8x512xf32> -> vector<8x512xf32>
      %456 = vector.broadcast %18 : vector<1x512xf32> to vector<8x512xf32>
      %457 = arith.addf %455, %456 : vector<8x512xf32>
      %cst_119 = arith.constant dense<0.000000e+00> : vector<8x512xf32>
      %458 = tpu.matmul %442, %17, %cst_119 {dimension_numbers = #tpu.dot_dimension_numbers<[1], [0], [0], [1], [0, 0, 1, 1], [], []>} : vector<8x128xf32>, vector<128x512xf32>, vector<8x512xf32> -> vector<8x512xf32>
      %459 = arith.addf %457, %458 : vector<8x512xf32>
      %460 = vector.extract_strided_slice %459 {offsets = [0, 0], sizes = [8, 128], strides = [1, 1]} : vector<8x512xf32> to vector<8x128xf32>
      %461 = arith.negf %460 : vector<8x128xf32>
      %462 = math.exp %461 : vector<8x128xf32>
      %cst_120 = arith.constant 1.000000e+00 : f32
      %463 = vector.broadcast %cst_120 : f32 to vector<8x128xf32>
      %464 = arith.addf %463, %462 : vector<8x128xf32>
      %465 = arith.divf %463, %464 : vector<8x128xf32>
      %466 = vector.extract_strided_slice %459 {offsets = [0, 128], sizes = [8, 128], strides = [1, 1]} : vector<8x512xf32> to vector<8x128xf32>
      %467 = arith.negf %466 : vector<8x128xf32>
      %468 = math.exp %467 : vector<8x128xf32>
      %cst_121 = arith.constant 1.000000e+00 : f32
      %469 = vector.broadcast %cst_121 : f32 to vector<8x128xf32>
      %470 = arith.addf %469, %468 : vector<8x128xf32>
      %471 = arith.divf %469, %470 : vector<8x128xf32>
      %472 = vector.extract_strided_slice %459 {offsets = [0, 256], sizes = [8, 128], strides = [1, 1]} : vector<8x512xf32> to vector<8x128xf32>
      %473 = math.tanh %472 : vector<8x128xf32>
      %474 = vector.extract_strided_slice %459 {offsets = [0, 384], sizes = [8, 128], strides = [1, 1]} : vector<8x512xf32> to vector<8x128xf32>
      %475 = arith.negf %474 : vector<8x128xf32>
      %476 = math.exp %475 : vector<8x128xf32>
      %cst_122 = arith.constant 1.000000e+00 : f32
      %477 = vector.broadcast %cst_122 : f32 to vector<8x128xf32>
      %478 = arith.addf %477, %476 : vector<8x128xf32>
      %479 = arith.divf %477, %478 : vector<8x128xf32>
      %480 = arith.mulf %471, %445 : vector<8x128xf32>
      %481 = arith.mulf %465, %473 : vector<8x128xf32>
      %482 = arith.addf %480, %481 : vector<8x128xf32>
      %483 = math.tanh %482 : vector<8x128xf32>
      %484 = arith.mulf %479, %483 : vector<8x128xf32>
      %c9_i32 = arith.constant 9 : i32
      %485 = arith.addi %0, %c9_i32 : i32
      %486 = vector.broadcast %485 : i32 to vector<8x1xi32>
      %487 = arith.cmpi slt, %486, %15 : vector<8x1xi32>
      %488 = vector.shape_cast %487 : vector<8x1xi1> to vector<8x1xi1>
      %489 = vector.broadcast %488 : vector<8x1xi1> to vector<8x128xi1>
      %490 = arith.select %489, %484, %442 : vector<8x128xi1>, vector<8x128xf32>
      %491 = vector.shape_cast %487 : vector<8x1xi1> to vector<8x1xi1>
      %492 = vector.broadcast %491 : vector<8x1xi1> to vector<8x128xi1>
      %493 = arith.select %492, %482, %445 : vector<8x128xi1>, vector<8x128xf32>
      %cst_123 = arith.constant 0.000000e+00 : f32
      %494 = vector.shape_cast %487 : vector<8x1xi1> to vector<8x1xi1>
      %495 = vector.broadcast %494 : vector<8x1xi1> to vector<8x128xi1>
      %496 = vector.broadcast %cst_123 : f32 to vector<8x128xf32>
      %497 = arith.select %495, %484, %496 : vector<8x128xi1>, vector<8x128xf32>
      %c0_124 = arith.constant 0 : index
      %c9_125 = arith.constant 9 : index
      %c0_126 = arith.constant 0 : index
      %498 = vector.load %arg8[%c0_124, %c9_125, %c0_126] : memref<8x16x128xf32, #tpu.memory_space<vmem>>, vector<8x1x128xf32>
      %499 = vector.shape_cast %498 : vector<8x1x128xf32> to vector<8x128xf32>
      %500 = vector.shape_cast %497 : vector<8x128xf32> to vector<8x1x128xf32>
      tpu.vector_store %arg8[%c0_124, %c9_125, %c0_126], %500 {strides = array<i32>} : memref<8x16x128xf32, #tpu.memory_space<vmem>>, vector<8x1x128xf32>,
      %c0_127 = arith.constant 0 : index
      %c10 = arith.constant 10 : index
      %c0_128 = arith.constant 0 : index
      %501 = vector.load %arg4[%c0_127, %c10, %c0_128] : memref<8x16x32xf32, #tpu.memory_space<vmem>>, vector<8x1x32xf32>
      %502 = vector.shape_cast %501 : vector<8x1x32xf32> to vector<8x32xf32>
      %cst_129 = arith.constant dense<0.000000e+00> : vector<8x512xf32>
      %503 = tpu.matmul %502, %16, %cst_129 {dimension_numbers = #tpu.dot_dimension_numbers<[1], [0], [0], [1], [0, 0, 1, 1], [], []>} : vector<8x32xf32>, vector<32x512xf32>, vector<8x512xf32> -> vector<8x512xf32>
      %504 = vector.broadcast %18 : vector<1x512xf32> to vector<8x512xf32>
      %505 = arith.addf %503, %504 : vector<8x512xf32>
      %cst_130 = arith.constant dense<0.000000e+00> : vector<8x512xf32>
      %506 = tpu.matmul %490, %17, %cst_130 {dimension_numbers = #tpu.dot_dimension_numbers<[1], [0], [0], [1], [0, 0, 1, 1], [], []>} : vector<8x128xf32>, vector<128x512xf32>, vector<8x512xf32> -> vector<8x512xf32>
      %507 = arith.addf %505, %506 : vector<8x512xf32>
      %508 = vector.extract_strided_slice %507 {offsets = [0, 0], sizes = [8, 128], strides = [1, 1]} : vector<8x512xf32> to vector<8x128xf32>
      %509 = arith.negf %508 : vector<8x128xf32>
      %510 = math.exp %509 : vector<8x128xf32>
      %cst_131 = arith.constant 1.000000e+00 : f32
      %511 = vector.broadcast %cst_131 : f32 to vector<8x128xf32>
      %512 = arith.addf %511, %510 : vector<8x128xf32>
      %513 = arith.divf %511, %512 : vector<8x128xf32>
      %514 = vector.extract_strided_slice %507 {offsets = [0, 128], sizes = [8, 128], strides = [1, 1]} : vector<8x512xf32> to vector<8x128xf32>
      %515 = arith.negf %514 : vector<8x128xf32>
      %516 = math.exp %515 : vector<8x128xf32>
      %cst_132 = arith.constant 1.000000e+00 : f32
      %517 = vector.broadcast %cst_132 : f32 to vector<8x128xf32>
      %518 = arith.addf %517, %516 : vector<8x128xf32>
      %519 = arith.divf %517, %518 : vector<8x128xf32>
      %520 = vector.extract_strided_slice %507 {offsets = [0, 256], sizes = [8, 128], strides = [1, 1]} : vector<8x512xf32> to vector<8x128xf32>
      %521 = math.tanh %520 : vector<8x128xf32>
      %522 = vector.extract_strided_slice %507 {offsets = [0, 384], sizes = [8, 128], strides = [1, 1]} : vector<8x512xf32> to vector<8x128xf32>
      %523 = arith.negf %522 : vector<8x128xf32>
      %524 = math.exp %523 : vector<8x128xf32>
      %cst_133 = arith.constant 1.000000e+00 : f32
      %525 = vector.broadcast %cst_133 : f32 to vector<8x128xf32>
      %526 = arith.addf %525, %524 : vector<8x128xf32>
      %527 = arith.divf %525, %526 : vector<8x128xf32>
      %528 = arith.mulf %519, %493 : vector<8x128xf32>
      %529 = arith.mulf %513, %521 : vector<8x128xf32>
      %530 = arith.addf %528, %529 : vector<8x128xf32>
      %531 = math.tanh %530 : vector<8x128xf32>
      %532 = arith.mulf %527, %531 : vector<8x128xf32>
      %c10_i32 = arith.constant 10 : i32
      %533 = arith.addi %0, %c10_i32 : i32
      %534 = vector.broadcast %533 : i32 to vector<8x1xi32>
      %535 = arith.cmpi slt, %534, %15 : vector<8x1xi32>
      %536 = vector.shape_cast %535 : vector<8x1xi1> to vector<8x1xi1>
      %537 = vector.broadcast %536 : vector<8x1xi1> to vector<8x128xi1>
      %538 = arith.select %537, %532, %490 : vector<8x128xi1>, vector<8x128xf32>
      %539 = vector.shape_cast %535 : vector<8x1xi1> to vector<8x1xi1>
      %540 = vector.broadcast %539 : vector<8x1xi1> to vector<8x128xi1>
      %541 = arith.select %540, %530, %493 : vector<8x128xi1>, vector<8x128xf32>
      %cst_134 = arith.constant 0.000000e+00 : f32
      %542 = vector.shape_cast %535 : vector<8x1xi1> to vector<8x1xi1>
      %543 = vector.broadcast %542 : vector<8x1xi1> to vector<8x128xi1>
      %544 = vector.broadcast %cst_134 : f32 to vector<8x128xf32>
      %545 = arith.select %543, %532, %544 : vector<8x128xi1>, vector<8x128xf32>
      %c0_135 = arith.constant 0 : index
      %c10_136 = arith.constant 10 : index
      %c0_137 = arith.constant 0 : index
      %546 = vector.load %arg8[%c0_135, %c10_136, %c0_137] : memref<8x16x128xf32, #tpu.memory_space<vmem>>, vector<8x1x128xf32>
      %547 = vector.shape_cast %546 : vector<8x1x128xf32> to vector<8x128xf32>
      %548 = vector.shape_cast %545 : vector<8x128xf32> to vector<8x1x128xf32>
      tpu.vector_store %arg8[%c0_135, %c10_136, %c0_137], %548 {strides = array<i32>} : memref<8x16x128xf32, #tpu.memory_space<vmem>>, vector<8x1x128xf32>,
      %c0_138 = arith.constant 0 : index
      %c11 = arith.constant 11 : index
      %c0_139 = arith.constant 0 : index
      %549 = vector.load %arg4[%c0_138, %c11, %c0_139] : memref<8x16x32xf32, #tpu.memory_space<vmem>>, vector<8x1x32xf32>
      %550 = vector.shape_cast %549 : vector<8x1x32xf32> to vector<8x32xf32>
      %cst_140 = arith.constant dense<0.000000e+00> : vector<8x512xf32>
      %551 = tpu.matmul %550, %16, %cst_140 {dimension_numbers = #tpu.dot_dimension_numbers<[1], [0], [0], [1], [0, 0, 1, 1], [], []>} : vector<8x32xf32>, vector<32x512xf32>, vector<8x512xf32> -> vector<8x512xf32>
      %552 = vector.broadcast %18 : vector<1x512xf32> to vector<8x512xf32>
      %553 = arith.addf %551, %552 : vector<8x512xf32>
      %cst_141 = arith.constant dense<0.000000e+00> : vector<8x512xf32>
      %554 = tpu.matmul %538, %17, %cst_141 {dimension_numbers = #tpu.dot_dimension_numbers<[1], [0], [0], [1], [0, 0, 1, 1], [], []>} : vector<8x128xf32>, vector<128x512xf32>, vector<8x512xf32> -> vector<8x512xf32>
      %555 = arith.addf %553, %554 : vector<8x512xf32>
      %556 = vector.extract_strided_slice %555 {offsets = [0, 0], sizes = [8, 128], strides = [1, 1]} : vector<8x512xf32> to vector<8x128xf32>
      %557 = arith.negf %556 : vector<8x128xf32>
      %558 = math.exp %557 : vector<8x128xf32>
      %cst_142 = arith.constant 1.000000e+00 : f32
      %559 = vector.broadcast %cst_142 : f32 to vector<8x128xf32>
      %560 = arith.addf %559, %558 : vector<8x128xf32>
      %561 = arith.divf %559, %560 : vector<8x128xf32>
      %562 = vector.extract_strided_slice %555 {offsets = [0, 128], sizes = [8, 128], strides = [1, 1]} : vector<8x512xf32> to vector<8x128xf32>
      %563 = arith.negf %562 : vector<8x128xf32>
      %564 = math.exp %563 : vector<8x128xf32>
      %cst_143 = arith.constant 1.000000e+00 : f32
      %565 = vector.broadcast %cst_143 : f32 to vector<8x128xf32>
      %566 = arith.addf %565, %564 : vector<8x128xf32>
      %567 = arith.divf %565, %566 : vector<8x128xf32>
      %568 = vector.extract_strided_slice %555 {offsets = [0, 256], sizes = [8, 128], strides = [1, 1]} : vector<8x512xf32> to vector<8x128xf32>
      %569 = math.tanh %568 : vector<8x128xf32>
      %570 = vector.extract_strided_slice %555 {offsets = [0, 384], sizes = [8, 128], strides = [1, 1]} : vector<8x512xf32> to vector<8x128xf32>
      %571 = arith.negf %570 : vector<8x128xf32>
      %572 = math.exp %571 : vector<8x128xf32>
      %cst_144 = arith.constant 1.000000e+00 : f32
      %573 = vector.broadcast %cst_144 : f32 to vector<8x128xf32>
      %574 = arith.addf %573, %572 : vector<8x128xf32>
      %575 = arith.divf %573, %574 : vector<8x128xf32>
      %576 = arith.mulf %567, %541 : vector<8x128xf32>
      %577 = arith.mulf %561, %569 : vector<8x128xf32>
      %578 = arith.addf %576, %577 : vector<8x128xf32>
      %579 = math.tanh %578 : vector<8x128xf32>
      %580 = arith.mulf %575, %579 : vector<8x128xf32>
      %c11_i32 = arith.constant 11 : i32
      %581 = arith.addi %0, %c11_i32 : i32
      %582 = vector.broadcast %581 : i32 to vector<8x1xi32>
      %583 = arith.cmpi slt, %582, %15 : vector<8x1xi32>
      %584 = vector.shape_cast %583 : vector<8x1xi1> to vector<8x1xi1>
      %585 = vector.broadcast %584 : vector<8x1xi1> to vector<8x128xi1>
      %586 = arith.select %585, %580, %538 : vector<8x128xi1>, vector<8x128xf32>
      %587 = vector.shape_cast %583 : vector<8x1xi1> to vector<8x1xi1>
      %588 = vector.broadcast %587 : vector<8x1xi1> to vector<8x128xi1>
      %589 = arith.select %588, %578, %541 : vector<8x128xi1>, vector<8x128xf32>
      %cst_145 = arith.constant 0.000000e+00 : f32
      %590 = vector.shape_cast %583 : vector<8x1xi1> to vector<8x1xi1>
      %591 = vector.broadcast %590 : vector<8x1xi1> to vector<8x128xi1>
      %592 = vector.broadcast %cst_145 : f32 to vector<8x128xf32>
      %593 = arith.select %591, %580, %592 : vector<8x128xi1>, vector<8x128xf32>
      %c0_146 = arith.constant 0 : index
      %c11_147 = arith.constant 11 : index
      %c0_148 = arith.constant 0 : index
      %594 = vector.load %arg8[%c0_146, %c11_147, %c0_148] : memref<8x16x128xf32, #tpu.memory_space<vmem>>, vector<8x1x128xf32>
      %595 = vector.shape_cast %594 : vector<8x1x128xf32> to vector<8x128xf32>
      %596 = vector.shape_cast %593 : vector<8x128xf32> to vector<8x1x128xf32>
      tpu.vector_store %arg8[%c0_146, %c11_147, %c0_148], %596 {strides = array<i32>} : memref<8x16x128xf32, #tpu.memory_space<vmem>>, vector<8x1x128xf32>,
      %c0_149 = arith.constant 0 : index
      %c12 = arith.constant 12 : index
      %c0_150 = arith.constant 0 : index
      %597 = vector.load %arg4[%c0_149, %c12, %c0_150] : memref<8x16x32xf32, #tpu.memory_space<vmem>>, vector<8x1x32xf32>
      %598 = vector.shape_cast %597 : vector<8x1x32xf32> to vector<8x32xf32>
      %cst_151 = arith.constant dense<0.000000e+00> : vector<8x512xf32>
      %599 = tpu.matmul %598, %16, %cst_151 {dimension_numbers = #tpu.dot_dimension_numbers<[1], [0], [0], [1], [0, 0, 1, 1], [], []>} : vector<8x32xf32>, vector<32x512xf32>, vector<8x512xf32> -> vector<8x512xf32>
      %600 = vector.broadcast %18 : vector<1x512xf32> to vector<8x512xf32>
      %601 = arith.addf %599, %600 : vector<8x512xf32>
      %cst_152 = arith.constant dense<0.000000e+00> : vector<8x512xf32>
      %602 = tpu.matmul %586, %17, %cst_152 {dimension_numbers = #tpu.dot_dimension_numbers<[1], [0], [0], [1], [0, 0, 1, 1], [], []>} : vector<8x128xf32>, vector<128x512xf32>, vector<8x512xf32> -> vector<8x512xf32>
      %603 = arith.addf %601, %602 : vector<8x512xf32>
      %604 = vector.extract_strided_slice %603 {offsets = [0, 0], sizes = [8, 128], strides = [1, 1]} : vector<8x512xf32> to vector<8x128xf32>
      %605 = arith.negf %604 : vector<8x128xf32>
      %606 = math.exp %605 : vector<8x128xf32>
      %cst_153 = arith.constant 1.000000e+00 : f32
      %607 = vector.broadcast %cst_153 : f32 to vector<8x128xf32>
      %608 = arith.addf %607, %606 : vector<8x128xf32>
      %609 = arith.divf %607, %608 : vector<8x128xf32>
      %610 = vector.extract_strided_slice %603 {offsets = [0, 128], sizes = [8, 128], strides = [1, 1]} : vector<8x512xf32> to vector<8x128xf32>
      %611 = arith.negf %610 : vector<8x128xf32>
      %612 = math.exp %611 : vector<8x128xf32>
      %cst_154 = arith.constant 1.000000e+00 : f32
      %613 = vector.broadcast %cst_154 : f32 to vector<8x128xf32>
      %614 = arith.addf %613, %612 : vector<8x128xf32>
      %615 = arith.divf %613, %614 : vector<8x128xf32>
      %616 = vector.extract_strided_slice %603 {offsets = [0, 256], sizes = [8, 128], strides = [1, 1]} : vector<8x512xf32> to vector<8x128xf32>
      %617 = math.tanh %616 : vector<8x128xf32>
      %618 = vector.extract_strided_slice %603 {offsets = [0, 384], sizes = [8, 128], strides = [1, 1]} : vector<8x512xf32> to vector<8x128xf32>
      %619 = arith.negf %618 : vector<8x128xf32>
      %620 = math.exp %619 : vector<8x128xf32>
      %cst_155 = arith.constant 1.000000e+00 : f32
      %621 = vector.broadcast %cst_155 : f32 to vector<8x128xf32>
      %622 = arith.addf %621, %620 : vector<8x128xf32>
      %623 = arith.divf %621, %622 : vector<8x128xf32>
      %624 = arith.mulf %615, %589 : vector<8x128xf32>
      %625 = arith.mulf %609, %617 : vector<8x128xf32>
      %626 = arith.addf %624, %625 : vector<8x128xf32>
      %627 = math.tanh %626 : vector<8x128xf32>
      %628 = arith.mulf %623, %627 : vector<8x128xf32>
      %c12_i32 = arith.constant 12 : i32
      %629 = arith.addi %0, %c12_i32 : i32
      %630 = vector.broadcast %629 : i32 to vector<8x1xi32>
      %631 = arith.cmpi slt, %630, %15 : vector<8x1xi32>
      %632 = vector.shape_cast %631 : vector<8x1xi1> to vector<8x1xi1>
      %633 = vector.broadcast %632 : vector<8x1xi1> to vector<8x128xi1>
      %634 = arith.select %633, %628, %586 : vector<8x128xi1>, vector<8x128xf32>
      %635 = vector.shape_cast %631 : vector<8x1xi1> to vector<8x1xi1>
      %636 = vector.broadcast %635 : vector<8x1xi1> to vector<8x128xi1>
      %637 = arith.select %636, %626, %589 : vector<8x128xi1>, vector<8x128xf32>
      %cst_156 = arith.constant 0.000000e+00 : f32
      %638 = vector.shape_cast %631 : vector<8x1xi1> to vector<8x1xi1>
      %639 = vector.broadcast %638 : vector<8x1xi1> to vector<8x128xi1>
      %640 = vector.broadcast %cst_156 : f32 to vector<8x128xf32>
      %641 = arith.select %639, %628, %640 : vector<8x128xi1>, vector<8x128xf32>
      %c0_157 = arith.constant 0 : index
      %c12_158 = arith.constant 12 : index
      %c0_159 = arith.constant 0 : index
      %642 = vector.load %arg8[%c0_157, %c12_158, %c0_159] : memref<8x16x128xf32, #tpu.memory_space<vmem>>, vector<8x1x128xf32>
      %643 = vector.shape_cast %642 : vector<8x1x128xf32> to vector<8x128xf32>
      %644 = vector.shape_cast %641 : vector<8x128xf32> to vector<8x1x128xf32>
      tpu.vector_store %arg8[%c0_157, %c12_158, %c0_159], %644 {strides = array<i32>} : memref<8x16x128xf32, #tpu.memory_space<vmem>>, vector<8x1x128xf32>,
      %c0_160 = arith.constant 0 : index
      %c13 = arith.constant 13 : index
      %c0_161 = arith.constant 0 : index
      %645 = vector.load %arg4[%c0_160, %c13, %c0_161] : memref<8x16x32xf32, #tpu.memory_space<vmem>>, vector<8x1x32xf32>
      %646 = vector.shape_cast %645 : vector<8x1x32xf32> to vector<8x32xf32>
      %cst_162 = arith.constant dense<0.000000e+00> : vector<8x512xf32>
      %647 = tpu.matmul %646, %16, %cst_162 {dimension_numbers = #tpu.dot_dimension_numbers<[1], [0], [0], [1], [0, 0, 1, 1], [], []>} : vector<8x32xf32>, vector<32x512xf32>, vector<8x512xf32> -> vector<8x512xf32>
      %648 = vector.broadcast %18 : vector<1x512xf32> to vector<8x512xf32>
      %649 = arith.addf %647, %648 : vector<8x512xf32>
      %cst_163 = arith.constant dense<0.000000e+00> : vector<8x512xf32>
      %650 = tpu.matmul %634, %17, %cst_163 {dimension_numbers = #tpu.dot_dimension_numbers<[1], [0], [0], [1], [0, 0, 1, 1], [], []>} : vector<8x128xf32>, vector<128x512xf32>, vector<8x512xf32> -> vector<8x512xf32>
      %651 = arith.addf %649, %650 : vector<8x512xf32>
      %652 = vector.extract_strided_slice %651 {offsets = [0, 0], sizes = [8, 128], strides = [1, 1]} : vector<8x512xf32> to vector<8x128xf32>
      %653 = arith.negf %652 : vector<8x128xf32>
      %654 = math.exp %653 : vector<8x128xf32>
      %cst_164 = arith.constant 1.000000e+00 : f32
      %655 = vector.broadcast %cst_164 : f32 to vector<8x128xf32>
      %656 = arith.addf %655, %654 : vector<8x128xf32>
      %657 = arith.divf %655, %656 : vector<8x128xf32>
      %658 = vector.extract_strided_slice %651 {offsets = [0, 128], sizes = [8, 128], strides = [1, 1]} : vector<8x512xf32> to vector<8x128xf32>
      %659 = arith.negf %658 : vector<8x128xf32>
      %660 = math.exp %659 : vector<8x128xf32>
      %cst_165 = arith.constant 1.000000e+00 : f32
      %661 = vector.broadcast %cst_165 : f32 to vector<8x128xf32>
      %662 = arith.addf %661, %660 : vector<8x128xf32>
      %663 = arith.divf %661, %662 : vector<8x128xf32>
      %664 = vector.extract_strided_slice %651 {offsets = [0, 256], sizes = [8, 128], strides = [1, 1]} : vector<8x512xf32> to vector<8x128xf32>
      %665 = math.tanh %664 : vector<8x128xf32>
      %666 = vector.extract_strided_slice %651 {offsets = [0, 384], sizes = [8, 128], strides = [1, 1]} : vector<8x512xf32> to vector<8x128xf32>
      %667 = arith.negf %666 : vector<8x128xf32>
      %668 = math.exp %667 : vector<8x128xf32>
      %cst_166 = arith.constant 1.000000e+00 : f32
      %669 = vector.broadcast %cst_166 : f32 to vector<8x128xf32>
      %670 = arith.addf %669, %668 : vector<8x128xf32>
      %671 = arith.divf %669, %670 : vector<8x128xf32>
      %672 = arith.mulf %663, %637 : vector<8x128xf32>
      %673 = arith.mulf %657, %665 : vector<8x128xf32>
      %674 = arith.addf %672, %673 : vector<8x128xf32>
      %675 = math.tanh %674 : vector<8x128xf32>
      %676 = arith.mulf %671, %675 : vector<8x128xf32>
      %c13_i32 = arith.constant 13 : i32
      %677 = arith.addi %0, %c13_i32 : i32
      %678 = vector.broadcast %677 : i32 to vector<8x1xi32>
      %679 = arith.cmpi slt, %678, %15 : vector<8x1xi32>
      %680 = vector.shape_cast %679 : vector<8x1xi1> to vector<8x1xi1>
      %681 = vector.broadcast %680 : vector<8x1xi1> to vector<8x128xi1>
      %682 = arith.select %681, %676, %634 : vector<8x128xi1>, vector<8x128xf32>
      %683 = vector.shape_cast %679 : vector<8x1xi1> to vector<8x1xi1>
      %684 = vector.broadcast %683 : vector<8x1xi1> to vector<8x128xi1>
      %685 = arith.select %684, %674, %637 : vector<8x128xi1>, vector<8x128xf32>
      %cst_167 = arith.constant 0.000000e+00 : f32
      %686 = vector.shape_cast %679 : vector<8x1xi1> to vector<8x1xi1>
      %687 = vector.broadcast %686 : vector<8x1xi1> to vector<8x128xi1>
      %688 = vector.broadcast %cst_167 : f32 to vector<8x128xf32>
      %689 = arith.select %687, %676, %688 : vector<8x128xi1>, vector<8x128xf32>
      %c0_168 = arith.constant 0 : index
      %c13_169 = arith.constant 13 : index
      %c0_170 = arith.constant 0 : index
      %690 = vector.load %arg8[%c0_168, %c13_169, %c0_170] : memref<8x16x128xf32, #tpu.memory_space<vmem>>, vector<8x1x128xf32>
      %691 = vector.shape_cast %690 : vector<8x1x128xf32> to vector<8x128xf32>
      %692 = vector.shape_cast %689 : vector<8x128xf32> to vector<8x1x128xf32>
      tpu.vector_store %arg8[%c0_168, %c13_169, %c0_170], %692 {strides = array<i32>} : memref<8x16x128xf32, #tpu.memory_space<vmem>>, vector<8x1x128xf32>,
      %c0_171 = arith.constant 0 : index
      %c14 = arith.constant 14 : index
      %c0_172 = arith.constant 0 : index
      %693 = vector.load %arg4[%c0_171, %c14, %c0_172] : memref<8x16x32xf32, #tpu.memory_space<vmem>>, vector<8x1x32xf32>
      %694 = vector.shape_cast %693 : vector<8x1x32xf32> to vector<8x32xf32>
      %cst_173 = arith.constant dense<0.000000e+00> : vector<8x512xf32>
      %695 = tpu.matmul %694, %16, %cst_173 {dimension_numbers = #tpu.dot_dimension_numbers<[1], [0], [0], [1], [0, 0, 1, 1], [], []>} : vector<8x32xf32>, vector<32x512xf32>, vector<8x512xf32> -> vector<8x512xf32>
      %696 = vector.broadcast %18 : vector<1x512xf32> to vector<8x512xf32>
      %697 = arith.addf %695, %696 : vector<8x512xf32>
      %cst_174 = arith.constant dense<0.000000e+00> : vector<8x512xf32>
      %698 = tpu.matmul %682, %17, %cst_174 {dimension_numbers = #tpu.dot_dimension_numbers<[1], [0], [0], [1], [0, 0, 1, 1], [], []>} : vector<8x128xf32>, vector<128x512xf32>, vector<8x512xf32> -> vector<8x512xf32>
      %699 = arith.addf %697, %698 : vector<8x512xf32>
      %700 = vector.extract_strided_slice %699 {offsets = [0, 0], sizes = [8, 128], strides = [1, 1]} : vector<8x512xf32> to vector<8x128xf32>
      %701 = arith.negf %700 : vector<8x128xf32>
      %702 = math.exp %701 : vector<8x128xf32>
      %cst_175 = arith.constant 1.000000e+00 : f32
      %703 = vector.broadcast %cst_175 : f32 to vector<8x128xf32>
      %704 = arith.addf %703, %702 : vector<8x128xf32>
      %705 = arith.divf %703, %704 : vector<8x128xf32>
      %706 = vector.extract_strided_slice %699 {offsets = [0, 128], sizes = [8, 128], strides = [1, 1]} : vector<8x512xf32> to vector<8x128xf32>
      %707 = arith.negf %706 : vector<8x128xf32>
      %708 = math.exp %707 : vector<8x128xf32>
      %cst_176 = arith.constant 1.000000e+00 : f32
      %709 = vector.broadcast %cst_176 : f32 to vector<8x128xf32>
      %710 = arith.addf %709, %708 : vector<8x128xf32>
      %711 = arith.divf %709, %710 : vector<8x128xf32>
      %712 = vector.extract_strided_slice %699 {offsets = [0, 256], sizes = [8, 128], strides = [1, 1]} : vector<8x512xf32> to vector<8x128xf32>
      %713 = math.tanh %712 : vector<8x128xf32>
      %714 = vector.extract_strided_slice %699 {offsets = [0, 384], sizes = [8, 128], strides = [1, 1]} : vector<8x512xf32> to vector<8x128xf32>
      %715 = arith.negf %714 : vector<8x128xf32>
      %716 = math.exp %715 : vector<8x128xf32>
      %cst_177 = arith.constant 1.000000e+00 : f32
      %717 = vector.broadcast %cst_177 : f32 to vector<8x128xf32>
      %718 = arith.addf %717, %716 : vector<8x128xf32>
      %719 = arith.divf %717, %718 : vector<8x128xf32>
      %720 = arith.mulf %711, %685 : vector<8x128xf32>
      %721 = arith.mulf %705, %713 : vector<8x128xf32>
      %722 = arith.addf %720, %721 : vector<8x128xf32>
      %723 = math.tanh %722 : vector<8x128xf32>
      %724 = arith.mulf %719, %723 : vector<8x128xf32>
      %c14_i32 = arith.constant 14 : i32
      %725 = arith.addi %0, %c14_i32 : i32
      %726 = vector.broadcast %725 : i32 to vector<8x1xi32>
      %727 = arith.cmpi slt, %726, %15 : vector<8x1xi32>
      %728 = vector.shape_cast %727 : vector<8x1xi1> to vector<8x1xi1>
      %729 = vector.broadcast %728 : vector<8x1xi1> to vector<8x128xi1>
      %730 = arith.select %729, %724, %682 : vector<8x128xi1>, vector<8x128xf32>
      %731 = vector.shape_cast %727 : vector<8x1xi1> to vector<8x1xi1>
      %732 = vector.broadcast %731 : vector<8x1xi1> to vector<8x128xi1>
      %733 = arith.select %732, %722, %685 : vector<8x128xi1>, vector<8x128xf32>
      %cst_178 = arith.constant 0.000000e+00 : f32
      %734 = vector.shape_cast %727 : vector<8x1xi1> to vector<8x1xi1>
      %735 = vector.broadcast %734 : vector<8x1xi1> to vector<8x128xi1>
      %736 = vector.broadcast %cst_178 : f32 to vector<8x128xf32>
      %737 = arith.select %735, %724, %736 : vector<8x128xi1>, vector<8x128xf32>
      %c0_179 = arith.constant 0 : index
      %c14_180 = arith.constant 14 : index
      %c0_181 = arith.constant 0 : index
      %738 = vector.load %arg8[%c0_179, %c14_180, %c0_181] : memref<8x16x128xf32, #tpu.memory_space<vmem>>, vector<8x1x128xf32>
      %739 = vector.shape_cast %738 : vector<8x1x128xf32> to vector<8x128xf32>
      %740 = vector.shape_cast %737 : vector<8x128xf32> to vector<8x1x128xf32>
      tpu.vector_store %arg8[%c0_179, %c14_180, %c0_181], %740 {strides = array<i32>} : memref<8x16x128xf32, #tpu.memory_space<vmem>>, vector<8x1x128xf32>,
      %c0_182 = arith.constant 0 : index
      %c15 = arith.constant 15 : index
      %c0_183 = arith.constant 0 : index
      %741 = vector.load %arg4[%c0_182, %c15, %c0_183] : memref<8x16x32xf32, #tpu.memory_space<vmem>>, vector<8x1x32xf32>
      %742 = vector.shape_cast %741 : vector<8x1x32xf32> to vector<8x32xf32>
      %cst_184 = arith.constant dense<0.000000e+00> : vector<8x512xf32>
      %743 = tpu.matmul %742, %16, %cst_184 {dimension_numbers = #tpu.dot_dimension_numbers<[1], [0], [0], [1], [0, 0, 1, 1], [], []>} : vector<8x32xf32>, vector<32x512xf32>, vector<8x512xf32> -> vector<8x512xf32>
      %744 = vector.broadcast %18 : vector<1x512xf32> to vector<8x512xf32>
      %745 = arith.addf %743, %744 : vector<8x512xf32>
      %cst_185 = arith.constant dense<0.000000e+00> : vector<8x512xf32>
      %746 = tpu.matmul %730, %17, %cst_185 {dimension_numbers = #tpu.dot_dimension_numbers<[1], [0], [0], [1], [0, 0, 1, 1], [], []>} : vector<8x128xf32>, vector<128x512xf32>, vector<8x512xf32> -> vector<8x512xf32>
      %747 = arith.addf %745, %746 : vector<8x512xf32>
      %748 = vector.extract_strided_slice %747 {offsets = [0, 0], sizes = [8, 128], strides = [1, 1]} : vector<8x512xf32> to vector<8x128xf32>
      %749 = arith.negf %748 : vector<8x128xf32>
      %750 = math.exp %749 : vector<8x128xf32>
      %cst_186 = arith.constant 1.000000e+00 : f32
      %751 = vector.broadcast %cst_186 : f32 to vector<8x128xf32>
      %752 = arith.addf %751, %750 : vector<8x128xf32>
      %753 = arith.divf %751, %752 : vector<8x128xf32>
      %754 = vector.extract_strided_slice %747 {offsets = [0, 128], sizes = [8, 128], strides = [1, 1]} : vector<8x512xf32> to vector<8x128xf32>
      %755 = arith.negf %754 : vector<8x128xf32>
      %756 = math.exp %755 : vector<8x128xf32>
      %cst_187 = arith.constant 1.000000e+00 : f32
      %757 = vector.broadcast %cst_187 : f32 to vector<8x128xf32>
      %758 = arith.addf %757, %756 : vector<8x128xf32>
      %759 = arith.divf %757, %758 : vector<8x128xf32>
      %760 = vector.extract_strided_slice %747 {offsets = [0, 256], sizes = [8, 128], strides = [1, 1]} : vector<8x512xf32> to vector<8x128xf32>
      %761 = math.tanh %760 : vector<8x128xf32>
      %762 = vector.extract_strided_slice %747 {offsets = [0, 384], sizes = [8, 128], strides = [1, 1]} : vector<8x512xf32> to vector<8x128xf32>
      %763 = arith.negf %762 : vector<8x128xf32>
      %764 = math.exp %763 : vector<8x128xf32>
      %cst_188 = arith.constant 1.000000e+00 : f32
      %765 = vector.broadcast %cst_188 : f32 to vector<8x128xf32>
      %766 = arith.addf %765, %764 : vector<8x128xf32>
      %767 = arith.divf %765, %766 : vector<8x128xf32>
      %768 = arith.mulf %759, %733 : vector<8x128xf32>
      %769 = arith.mulf %753, %761 : vector<8x128xf32>
      %770 = arith.addf %768, %769 : vector<8x128xf32>
      %771 = math.tanh %770 : vector<8x128xf32>
      %772 = arith.mulf %767, %771 : vector<8x128xf32>
      %c15_i32 = arith.constant 15 : i32
      %773 = arith.addi %0, %c15_i32 : i32
      %774 = vector.broadcast %773 : i32 to vector<8x1xi32>
      %775 = arith.cmpi slt, %774, %15 : vector<8x1xi32>
      %776 = vector.shape_cast %775 : vector<8x1xi1> to vector<8x1xi1>
      %777 = vector.broadcast %776 : vector<8x1xi1> to vector<8x128xi1>
      %778 = arith.select %777, %772, %730 : vector<8x128xi1>, vector<8x128xf32>
      %779 = vector.shape_cast %775 : vector<8x1xi1> to vector<8x1xi1>
      %780 = vector.broadcast %779 : vector<8x1xi1> to vector<8x128xi1>
      %781 = arith.select %780, %770, %733 : vector<8x128xi1>, vector<8x128xf32>
      %cst_189 = arith.constant 0.000000e+00 : f32
      %782 = vector.shape_cast %775 : vector<8x1xi1> to vector<8x1xi1>
      %783 = vector.broadcast %782 : vector<8x1xi1> to vector<8x128xi1>
      %784 = vector.broadcast %cst_189 : f32 to vector<8x128xf32>
      %785 = arith.select %783, %772, %784 : vector<8x128xi1>, vector<8x128xf32>
      %c0_190 = arith.constant 0 : index
      %c15_191 = arith.constant 15 : index
      %c0_192 = arith.constant 0 : index
      %786 = vector.load %arg8[%c0_190, %c15_191, %c0_192] : memref<8x16x128xf32, #tpu.memory_space<vmem>>, vector<8x1x128xf32>
      %787 = vector.shape_cast %786 : vector<8x1x128xf32> to vector<8x128xf32>
      %788 = vector.shape_cast %785 : vector<8x128xf32> to vector<8x1x128xf32>
      tpu.vector_store %arg8[%c0_190, %c15_191, %c0_192], %788 {strides = array<i32>} : memref<8x16x128xf32, #tpu.memory_space<vmem>>, vector<8x1x128xf32>,
      %c0_193 = arith.constant 0 : index
      %c0_194 = arith.constant 0 : index
      %789 = vector.load %arg10[%c0_193, %c0_194] : memref<8x128xf32, #tpu.memory_space<vmem>>, vector<8x128xf32>
      tpu.vector_store %arg10[%c0_193, %c0_194], %778 {strides = array<i32>} : memref<8x128xf32, #tpu.memory_space<vmem>>, vector<8x128xf32>,
      %c0_195 = arith.constant 0 : index
      %c0_196 = arith.constant 0 : index
      %790 = vector.load %arg11[%c0_195, %c0_196] : memref<8x128xf32, #tpu.memory_space<vmem>>, vector<8x128xf32>
      tpu.vector_store %arg11[%c0_195, %c0_196], %781 {strides = array<i32>} : memref<8x128xf32, #tpu.memory_space<vmem>>, vector<8x128xf32>,
    } else {
    }
    %true = arith.constant true
    %9 = arith.xori %6, %true : i1
    %10 = arith.extui %9 : i1 to i32
    %c0_i32_2 = arith.constant 0 : i32
    %11 = arith.cmpi ne, %10, %c0_i32_2 : i32
    scf.if %11 {
      %cst = arith.constant 0.000000e+00 : f32
      %15 = vector.broadcast %cst : f32 to vector<8x16x128xf32>
      %c0 = arith.constant 0 : index
      %c0_5 = arith.constant 0 : index
      %c0_6 = arith.constant 0 : index
      %16 = vector.load %arg8[%c0, %c0_5, %c0_6] : memref<8x16x128xf32, #tpu.memory_space<vmem>>, vector<8x16x128xf32>
      tpu.vector_store %arg8[%c0, %c0_5, %c0_6], %15 {strides = array<i32>} : memref<8x16x128xf32, #tpu.memory_space<vmem>>, vector<8x16x128xf32>,
    } else {
    }
    %c0_i32_3 = arith.constant 0 : i32
    %12 = arith.cmpi eq, %arg1, %c0_i32_3 : i32
    %13 = arith.extui %12 : i1 to i32
    %c0_i32_4 = arith.constant 0 : i32
    %14 = arith.cmpi ne, %13, %c0_i32_4 : i32
    scf.if %14 {
      %c0 = arith.constant 0 : index
      %c0_5 = arith.constant 0 : index
      %15 = vector.load %arg10[%c0, %c0_5] : memref<8x128xf32, #tpu.memory_space<vmem>>, vector<8x128xf32>
      %c0_6 = arith.constant 0 : index
      %c0_7 = arith.constant 0 : index
      %16 = vector.load %arg9[%c0_6, %c0_7] : memref<8x128xf32, #tpu.memory_space<vmem>>, vector<8x128xf32>
      tpu.vector_store %arg9[%c0_6, %c0_7], %15 {strides = array<i32>} : memref<8x128xf32, #tpu.memory_space<vmem>>, vector<8x128xf32>,
    } else {
    }
    return
  }
  func.func @transform_0(%arg0: i32, %arg1: i32, %arg2: memref<2xi32, #tpu.memory_space<smem>>) -> (i32, i32) {
    %c0_i32 = arith.constant 0 : i32
    %c0_i32_0 = arith.constant 0 : i32
    return %arg0, %c0_i32 : i32, i32
  }
  func.func @transform_1(%arg0: i32, %arg1: i32, %arg2: memref<2xi32, #tpu.memory_space<smem>>) -> (i32, i32, i32) {
    %c0_i32 = arith.constant 0 : i32
    %c0_i32_0 = arith.constant 0 : i32
    return %arg0, %arg1, %c0_i32 : i32, i32, i32
  }
  func.func @transform_2(%arg0: i32, %arg1: i32, %arg2: memref<2xi32, #tpu.memory_space<smem>>) -> (i32, i32) {
    %c0_i32 = arith.constant 0 : i32
    %c0_i32_0 = arith.constant 0 : i32
    %c0_i32_1 = arith.constant 0 : i32
    return %c0_i32, %c0_i32_0 : i32, i32
  }
  func.func @transform_3(%arg0: i32, %arg1: i32, %arg2: memref<2xi32, #tpu.memory_space<smem>>) -> (i32, i32) {
    %c0_i32 = arith.constant 0 : i32
    %c0_i32_0 = arith.constant 0 : i32
    %c0_i32_1 = arith.constant 0 : i32
    return %c0_i32, %c0_i32_0 : i32, i32
  }
  func.func @transform_4(%arg0: i32, %arg1: i32, %arg2: memref<2xi32, #tpu.memory_space<smem>>) -> (i32, i32) {
    %c0_i32 = arith.constant 0 : i32
    %c0_i32_0 = arith.constant 0 : i32
    %c0_i32_1 = arith.constant 0 : i32
    return %c0_i32, %c0_i32_0 : i32, i32
  }
  func.func @transform_5(%arg0: i32, %arg1: i32, %arg2: memref<2xi32, #tpu.memory_space<smem>>) -> (i32, i32, i32) {
    %c0_i32 = arith.constant 0 : i32
    %c0_i32_0 = arith.constant 0 : i32
    return %arg0, %arg1, %c0_i32 : i32, i32, i32
  }
  func.func @transform_6(%arg0: i32, %arg1: i32, %arg2: memref<2xi32, #tpu.memory_space<smem>>) -> (i32, i32) {
    %c0_i32 = arith.constant 0 : i32
    %c0_i32_0 = arith.constant 0 : i32
    return %arg0, %c0_i32 : i32, i32
  }
}

</mosaic_0001>

<llo_original>
// kernel: lstm_forward.1
$region0: #{lstm_forward.1}
  #allocation0 [shape = 'u32[]', space=smem, size = 0x4, offset = 0x4, fixed_abs, tag = 'smem constant byte address 0x4 - core index']
  #allocation1 [shape = 'u32[144,128]{1,0:T(1,128)}', space=vmem, size = 0x12000, scoped, tag = 'internal scratch']
  #allocation2 [shape = 'f32[8,128]{1,0:T(8,128)}', space=vmem, size = 0x1000, scoped, tag = 'scratch operand']
  #allocation3 [shape = 'f32[8,128]{1,0:T(8,128)}', space=vmem, size = 0x1000, scoped, tag = 'scratch operand']
  #allocation4 [shape = 's32[1]{0}', space=sflag, size = 0x4, scoped, tag = 'scoped memory for lstm_forward.1']
  #allocation5 [shape = 'u8[512]{0}', space=smem, size = 0x200, scoped, tag = 'prefetched SMEM operand 0']
  %s0 = inlined_call_operand.vmem [shape: s32[2], index: 0, kind: input, shape index: {}]
  %s1 = inlined_call_operand.vmem [shape: s32[16,1], index: 1, kind: input, shape index: {}]
  %s2 = inlined_call_operand.vmem [shape: f32[16,16,32], index: 2, kind: input, shape index: {}]
  %s3 = inlined_call_operand.vmem [shape: f32[32,512], index: 3, kind: input, shape index: {}]
  %s4 = inlined_call_operand.vmem [shape: f32[128,512], index: 4, kind: input, shape index: {}]
  %s5 = inlined_call_operand.vmem [shape: f32[1,512], index: 5, kind: input, shape index: {}]
  %s6 = inlined_call_operand.vmem [shape: f32[16,16,128], index: 6, kind: output, shape index: {0}]
  %s7 = inlined_call_operand.hbm [shape: f32[16,128], index: 7, kind: output, shape index: {1}]
  %8 = xla_tuple %s6, %s7
  %s9 = sld [smem:[#allocation0]]
  $region77: #{lstm_forward.1} parent=0
    _
  %s11 = ssub.s32 1, %s9
  %s12 = scalar_select 0, %s11, %s9
  %s13 = sshll.u32 %s0, 4
  %s14 = int_to_ptr.vmem [resolvable:$true] %s13
  %16 = dma.vmem_to_smem %s14, 16, [#allocation5], [#allocation4]
  %17 = dma.done [#allocation4], 16
  %18 = sfence
  $region1: #{lstm_forward.1} parent=0
    #allocation6 [shape = 'u8[8192]{0}', space=vmem, size = 0x2000, scoped, tag = 'output window, operand 1']
    #allocation7 [shape = 's32[2]{0}', space=sflag, size = 0x8, scoped, tag = 'scoped memory for lstm_forward.1']
    %19 = vsyncpa [#allocation7], 0
    %s20 = scalar_lea.sflag [#allocation7], 1
    %21 = vsyncpa %s20, 0
    loop: start=0, step=1, limit=4
    $region2: #{lstm_forward.1} parent=1 // loop_pre_header
      _
    $region3: #{lstm_forward.1} parent=1 // loop_header
      %s23 = sphi 0, %s27
      %p24 = scmp.ge.s32.totalorder %s23, 4
      %s30 = sphi 0, %s42
      %s31 = sphi 0, %s38
      %s32 = sphi 0, %s30
      %s33 = sphi 0, %s31
      %s34 = sphi 0, %s32
      %s35 = sphi 0, %s33
      %s45 = sphi 0, %s47
      %s48 = sphi 0, %s45
      %s49 = sphi 0, %s48
      %s65 = sphi 0, %s49
      %s73 = sphi 0, %s75
      %s76 = sphi 0, %s73
      %s77 = sphi 0, %s76
      %s93 = sphi 0, %s77
      %s97 = sphi 0, %s97
      %s99 = sphi 0, %s97
      %s100 = sphi 0, %s99
      %s114 = sphi 0, %s100
      %s118 = sphi 0, %s118
      %s120 = sphi 0, %s118
      %s121 = sphi 0, %s120
      %s135 = sphi 0, %s121
      %s139 = sphi 0, %s139
      %s141 = sphi 0, %s139
      %s142 = sphi 0, %s141
      %s156 = sphi 0, %s142
      %s164 = sphi 0, %s166
      %s167 = sphi 0, %s164
      %s168 = sphi 0, %s167
      %s184 = sphi 0, %s168
      %s190 = sphi 0, %s192
      %s193 = sphi 0, %s190
      %s194 = sphi 0, %s193
      %s210 = sphi 0, %s194
    $region4: #{lstm_forward.1} parent=1 // loop_header_branch
      %26 = sbr.rel (%p24) target = $region8
    $region5: #{lstm_forward.1} parent=1 // loop_body
      %s28 = ssub.s32 %s23, 1
      %s29 = ssub.s32 %s23, 2
      %s36 = sadd.s32 1, %s31
      %p37 = scmp.ge.s32.totalorder %s36, 1
      %s38 = scalar_select %p37, 0, %s36
      %s39 = sadd.s32 1, %s30
      %s40 = scalar_select %p37, %s39, %s30
      %p41 = scmp.ge.s32.totalorder %s40, 2
      %s42 = scalar_select %p41, 0, %s40
      %s43 = ssub.s32 %s30, %s42
      %p44 = scmp.eq.s32.totalorder %s43, 0
      %s46 = sadd.s32 %s45, 1
      %s47 = scalar_select %p44, %s45, %s46
      %p50 = pneg %p44
      %p51 = scmp.eq.s32.totalorder %s23, 1
      %p52 = por %p50, %p51
      %p53 = scmp.ne.s32.totalorder %s45, %s48
      %p54 = scmp.eq.s32.totalorder %s23, 0
      %p55 = por %p53, %p54
      %p56 = scmp.ne.s32.totalorder %s45, %s48
      %p57 = scmp.eq.s32.totalorder %s28, 1
      %p58 = por %p56, %p57
      %p59 = scmp.ne.s32.totalorder %s48, %s49
      %p60 = scmp.eq.s32.totalorder %s28, 0
      %p61 = por %p59, %p60
      %p62 = scmp.ne.s32.totalorder %s48, %s49
      %p63 = scmp.eq.s32.totalorder %s29, 1
      %p64 = por %p62, %p63
      %p66 = scmp.ne.s32.totalorder %s49, %s65
      %p67 = scmp.eq.s32.totalorder %s29, 0
      %p68 = por %p66, %p67
      %s69 = ssub.s32 %s30, %s42
      %s70 = ssub.s32 %s31, %s38
      %s71 = sor.u32 %s69, %s70
      %p72 = scmp.eq.s32.totalorder %s71, 0
      %s74 = sadd.s32 %s73, 1
      %s75 = scalar_select %p72, %s73, %s74
      %p78 = pneg %p72
      %p79 = scmp.eq.s32.totalorder %s23, 1
      %p80 = por %p78, %p79
      %p81 = scmp.ne.s32.totalorder %s73, %s76
      %p82 = scmp.eq.s32.totalorder %s23, 0
      %p83 = por %p81, %p82
      %p84 = scmp.ne.s32.totalorder %s73, %s76
      %p85 = scmp.eq.s32.totalorder %s28, 1
      %p86 = por %p84, %p85
      %p87 = scmp.ne.s32.totalorder %s76, %s77
      %p88 = scmp.eq.s32.totalorder %s28, 0
      %p89 = por %p87, %p88
      %p90 = scmp.ne.s32.totalorder %s76, %s77
      %p91 = scmp.eq.s32.totalorder %s29, 1
      %p92 = por %p90, %p91
      %p94 = scmp.ne.s32.totalorder %s77, %s93
      %p95 = scmp.eq.s32.totalorder %s29, 0
      %p96 = por %p94, %p95
      %s98 = sadd.s32 %s97, 1
      %p101 = scmp.eq.s32.totalorder %s23, 1
      %p102 = scmp.ne.s32.totalorder %s97, %s99
      %p103 = scmp.eq.s32.totalorder %s23, 0
      %p104 = por %p102, %p103
      %p105 = scmp.ne.s32.totalorder %s97, %s99
      %p106 = scmp.eq.s32.totalorder %s28, 1
      %p107 = por %p105, %p106
      %p108 = scmp.ne.s32.totalorder %s99, %s100
      %p109 = scmp.eq.s32.totalorder %s28, 0
      %p110 = por %p108, %p109
      %p111 = scmp.ne.s32.totalorder %s99, %s100
      %p112 = scmp.eq.s32.totalorder %s29, 1
      %p113 = por %p111, %p112
      %p115 = scmp.ne.s32.totalorder %s100, %s114
      %p116 = scmp.eq.s32.totalorder %s29, 0
      %p117 = por %p115, %p116
      %s119 = sadd.s32 %s118, 1
      %p122 = scmp.eq.s32.totalorder %s23, 1
      %p123 = scmp.ne.s32.totalorder %s118, %s120
      %p124 = scmp.eq.s32.totalorder %s23, 0
      %p125 = por %p123, %p124
      %p126 = scmp.ne.s32.totalorder %s118, %s120
      %p127 = scmp.eq.s32.totalorder %s28, 1
      %p128 = por %p126, %p127
      %p129 = scmp.ne.s32.totalorder %s120, %s121
      %p130 = scmp.eq.s32.totalorder %s28, 0
      %p131 = por %p129, %p130
      %p132 = scmp.ne.s32.totalorder %s120, %s121
      %p133 = scmp.eq.s32.totalorder %s29, 1
      %p134 = por %p132, %p133
      %p136 = scmp.ne.s32.totalorder %s121, %s135
      %p137 = scmp.eq.s32.totalorder %s29, 0
      %p138 = por %p136, %p137
      %s140 = sadd.s32 %s139, 1
      %p143 = scmp.eq.s32.totalorder %s23, 1
      %p144 = scmp.ne.s32.totalorder %s139, %s141
      %p145 = scmp.eq.s32.totalorder %s23, 0
      %p146 = por %p144, %p145
      %p147 = scmp.ne.s32.totalorder %s139, %s141
      %p148 = scmp.eq.s32.totalorder %s28, 1
      %p149 = por %p147, %p148
      %p150 = scmp.ne.s32.totalorder %s141, %s142
      %p151 = scmp.eq.s32.totalorder %s28, 0
      %p152 = por %p150, %p151
      %p153 = scmp.ne.s32.totalorder %s141, %s142
      %p154 = scmp.eq.s32.totalorder %s29, 1
      %p155 = por %p153, %p154
      %p157 = scmp.ne.s32.totalorder %s142, %s156
      %p158 = scmp.eq.s32.totalorder %s29, 0
      %p159 = por %p157, %p158
      %s160 = ssub.s32 %s30, %s42
      %s161 = ssub.s32 %s31, %s38
      %s162 = sor.u32 %s160, %s161
      %p163 = scmp.eq.s32.totalorder %s162, 0
      %s165 = sadd.s32 %s164, 1
      %s166 = scalar_select %p163, %s164, %s165
      %p169 = pneg %p163
      %p170 = scmp.eq.s32.totalorder %s23, 1
      %p171 = por %p169, %p170
      %p172 = scmp.ne.s32.totalorder %s164, %s167
      %p173 = scmp.eq.s32.totalorder %s23, 0
      %p174 = por %p172, %p173
      %p175 = scmp.ne.s32.totalorder %s164, %s167
      %p176 = scmp.eq.s32.totalorder %s28, 1
      %p177 = por %p175, %p176
      %p178 = scmp.ne.s32.totalorder %s167, %s168
      %p179 = scmp.eq.s32.totalorder %s28, 0
      %p180 = por %p178, %p179
      %p181 = scmp.ne.s32.totalorder %s167, %s168
      %p182 = scmp.eq.s32.totalorder %s29, 1
      %p183 = por %p181, %p182
      %p185 = scmp.ne.s32.totalorder %s168, %s184
      %p186 = scmp.eq.s32.totalorder %s29, 0
      %p187 = por %p185, %p186
      %s188 = ssub.s32 %s30, %s42
      %p189 = scmp.eq.s32.totalorder %s188, 0
      %s191 = sadd.s32 %s190, 1
      %s192 = scalar_select %p189, %s190, %s191
      %p195 = pneg %p189
      %p196 = scmp.eq.s32.totalorder %s23, 1
      %p197 = por %p195, %p196
      %p198 = scmp.ne.s32.totalorder %s190, %s193
      %p199 = scmp.eq.s32.totalorder %s23, 0
      %p200 = por %p198, %p199
      %p201 = scmp.ne.s32.totalorder %s190, %s193
      %p202 = scmp.eq.s32.totalorder %s28, 1
      %p203 = por %p201, %p202
      %p204 = scmp.ne.s32.totalorder %s193, %s194
      %p205 = scmp.eq.s32.totalorder %s28, 0
      %p206 = por %p204, %p205
      %p207 = scmp.ne.s32.totalorder %s193, %s194
      %p208 = scmp.eq.s32.totalorder %s29, 1
      %p209 = por %p207, %p208
      %p211 = scmp.ne.s32.totalorder %s194, %s210
      %p212 = scmp.eq.s32.totalorder %s29, 0
      %p213 = por %p211, %p212
      %p214 = scmp.le.s32.totalorder 1, %s23
      %p215 = scmp.lt.s32.totalorder %s23, 3
      %p216 = pnand %p214, %p215
      %p217 = pneg %p216
      // Predicated region
      $region9: #{lstm_forward.1} parent=5 // pred_check
        _
      $region10: #{lstm_forward.1} parent=5 // pred_check_branch
        %219 = sbr.rel (%p216) target = $region12
      $region11: #{lstm_forward.1} parent=5 // pred_region
        %s220 = ssub.s32 %s23, 1
        // Predicated region
        $region13: #{lstm_forward.1} parent=11 // pred_check
          %p221 = pneg %p110
        $region14: #{lstm_forward.1} parent=11 // pred_check_branch
          %223 = sbr.rel (%p221) target = $region16
        $region15: #{lstm_forward.1} parent=11 // pred_region
          _
        $region16: #{lstm_forward.1} parent=11 // pred_fallthru
          _
        // Predicated region
        $region17: #{lstm_forward.1} parent=11 // pred_check
          %p224 = pneg %p131
        $region18: #{lstm_forward.1} parent=11 // pred_check_branch
          %226 = sbr.rel (%p224) target = $region20
        $region19: #{lstm_forward.1} parent=11 // pred_region
          _
        $region20: #{lstm_forward.1} parent=11 // pred_fallthru
          _
        // Predicated region
        $region21: #{lstm_forward.1} parent=11 // pred_check
          %p227 = pneg %p152
        $region22: #{lstm_forward.1} parent=11 // pred_check_branch
          %229 = sbr.rel (%p227) target = $region24
        $region23: #{lstm_forward.1} parent=11 // pred_region
          _
        $region24: #{lstm_forward.1} parent=11 // pred_fallthru
          _
      $region12: #{lstm_forward.1} parent=5 // pred_fallthru
        _
      %p230 = scmp.lt.s32.totalorder %s23, 2
      // Predicated region
      $region25: #{lstm_forward.1} parent=5 // pred_check
        %p231 = pneg %p230
      $region26: #{lstm_forward.1} parent=5 // pred_check_branch
        %233 = sbr.rel (%p231) target = $region28
      $region27: #{lstm_forward.1} parent=5 // pred_region
        // Predicated region
        $region29: #{lstm_forward.1} parent=27 // pred_check
          %p234 = pneg %p55
        $region30: #{lstm_forward.1} parent=27 // pred_check_branch
          %236 = sbr.rel (%p234) target = $region32
        $region31: #{lstm_forward.1} parent=27 // pred_region
          %p237 = scmp.lt.s32.totalorder %s30, 1
          %s238 = scalar_select %p237, %s30, 1
          %s239 = smul.addr %s238, 8
          %s240 = scalar_lea.vmem %s1, %s239
        $region32: #{lstm_forward.1} parent=27 // pred_fallthru
          _
        // Predicated region
        $region33: #{lstm_forward.1} parent=27 // pred_check
          %p241 = pneg %p83
        $region34: #{lstm_forward.1} parent=27 // pred_check_branch
          %243 = sbr.rel (%p241) target = $region36
        $region35: #{lstm_forward.1} parent=27 // pred_region
          %s244 = smul.u32 8, %s30
          %s245 = smul.u32 2, %s31
          %p246 = scmp.lt.s32.totalorder %s244, 15
          %s247 = scalar_select %p246, %s244, 15
          %p248 = scmp.lt.s32.totalorder %s245, 1
          %s249 = scalar_select %p248, %s245, 1
          %s250 = smul.addr %s247, 2
          %s251 = sadd.s32 %s249, %s250
          %s252 = smul.addr %s251, 8
          %s253 = scalar_lea.vmem %s2, %s252
          %s254 = smul.u32 8, %s30
          %s255 = smul.u32 2, %s31
        $region36: #{lstm_forward.1} parent=27 // pred_fallthru
          _
      $region28: #{lstm_forward.1} parent=5 // pred_fallthru
        _
      %p256 = scmp.le.s32.totalorder 1, %s23
      %p257 = scmp.lt.s32.totalorder %s23, 3
      %p258 = pnand %p256, %p257
      %p259 = pneg %p258
      // Predicated region
      $region37: #{lstm_forward.1} parent=5 // pred_check
        _
      $region38: #{lstm_forward.1} parent=5 // pred_check_branch
        %261 = sbr.rel (%p258) target = $region40
      $region39: #{lstm_forward.1} parent=5 // pred_region
        %s262 = ssub.s32 %s23, 1
        %p263 = scmp.lt.s32.totalorder %s32, 1
        %s264 = scalar_select %p263, %s32, 1
        %s265 = smul.addr %s264, 8
        %s266 = scalar_lea.vmem %s1, %s265
        %p267 = pneg %p61
        %p268 = pneg %p58
        %s269 = smul.u32 8, %s32
        %s270 = smul.u32 2, %s33
        %p271 = scmp.lt.s32.totalorder %s269, 15
        %s272 = scalar_select %p271, %s269, 15
        %p273 = scmp.lt.s32.totalorder %s270, 1
        %s274 = scalar_select %p273, %s270, 1
        %s275 = smul.addr %s272, 2
        %s276 = sadd.s32 %s274, %s275
        %s277 = smul.addr %s276, 8
        %s278 = scalar_lea.vmem %s2, %s277
        %p279 = pneg %p89
        %p280 = pneg %p86
        %p281 = pneg %p110
        %p282 = pneg %p107
        %p283 = pneg %p131
        %p284 = pneg %p128
        %p285 = pneg %p152
        %p286 = pneg %p149
        %p287 = pneg %p180
        %p288 = pneg %p177
        %s289 = smul.u32 8, %s32
        %s290 = smul.u32 2, %s33
        %p291 = scmp.lt.s32.totalorder %s289, 15
        %s292 = scalar_select %p291, %s289, 15
        %p293 = scmp.lt.s32.totalorder %s290, 1
        %s294 = scalar_select %p293, %s290, 1
        %s295 = smul.addr %s292, 2
        %s296 = sadd.s32 %s294, %s295
        %s297 = smul.addr %s296, 8
        %s298 = scalar_lea.vmem %s6, %s297
        %p299 = pneg %p206
        %p300 = pneg %p203
        %s301 = sand.u32 %s193, 1
        %s302 = scalar_lea.sflag [#allocation7], %s301
        %s303 = sand.u32 %s193, 1
        %s304 = smul.addr %s303, 8
        %s305 = scalar_lea.vmem [#allocation6], %s304
        %p306 = scmp.lt.s32.totalorder %s32, 1
        %s307 = scalar_select %p306, %s32, 1
        %s308 = smul.addr %s307, 8
        %s309 = scalar_lea.vmem %s1, %s308
        %s310 = smul.u32 8, %s32
        %s311 = smul.u32 2, %s33
        %p312 = scmp.lt.s32.totalorder %s310, 15
        %s313 = scalar_select %p312, %s310, 15
        %p314 = scmp.lt.s32.totalorder %s311, 1
        %s315 = scalar_select %p314, %s311, 1
        %s316 = smul.addr %s313, 2
        %s317 = sadd.s32 %s315, %s316
        %s318 = smul.addr %s317, 8
        %s319 = scalar_lea.vmem %s2, %s318
        %s320 = smul.u32 8, %s32
        %s321 = smul.u32 2, %s33
        %s322 = smul.u32 8, %s32
        %s323 = smul.u32 2, %s33
        %p324 = scmp.lt.s32.totalorder %s322, 15
        %s325 = scalar_select %p324, %s322, 15
        %p326 = scmp.lt.s32.totalorder %s323, 1
        %s327 = scalar_select %p326, %s323, 1
        %s328 = smul.addr %s325, 2
        %s329 = sadd.s32 %s327, %s328
        %s330 = smul.addr %s329, 8
        %s331 = scalar_lea.vmem %s6, %s330
        %s332 = smul.u32 8, %s32
        %s333 = smul.u32 2, %s33
        %s334 = smul.u32 %s33, 16
        %p335 = scmp.eq.s32.totalorder %s33, 0
        // Predicated region
        $region41: #{lstm_forward.1} parent=39 // pred_check
          %p336 = pneg %p335
        $region42: #{lstm_forward.1} parent=39 // pred_check_branch
          %338 = sbr.rel (%p336) target = $region44
        $region43: #{lstm_forward.1} parent=39 // pred_region
          %339 = vst [vmem:[#allocation2] sm:$0xff] 0.0
          %340 = vst [vmem:[#allocation3] sm:$0xff] 0.0
        $region44: #{lstm_forward.1} parent=39 // pred_fallthru
          _
        %s341 = sld [smem:[#allocation5 + %s32]]
        %p342 = scmp.lt.s32.totalorder %s334, %s341
        // Predicated region
        $region45: #{lstm_forward.1} parent=39 // pred_check
          %p343 = pneg %p342
        $region46: #{lstm_forward.1} parent=39 // pred_check_branch
          %345 = sbr.rel (%p343) target = $region48
        $region47: #{lstm_forward.1} parent=39 // pred_region
          %v346 = vld [vmem:[%s309] sm:$0xff]
          %v347 = vld [vmem:[%s3] sm:$0xff]
          %v348 = vld [vmem:[%s3 + $0x8] sm:$0xff]
          %v349 = vld [vmem:[%s3 + $0x10] sm:$0xff]
          %v350 = vld [vmem:[%s3 + $0x18] sm:$0xff]
          %v351 = vld [vmem:[%s3 + $0x20] sm:$0xff]
          %v352 = vld [vmem:[%s3 + $0x28] sm:$0xff]
          %v353 = vld [vmem:[%s3 + $0x30] sm:$0xff]
          %v354 = vld [vmem:[%s3 + $0x38] sm:$0xff]
          %v355 = vld [vmem:[%s3 + $0x40] sm:$0xff]
          %v356 = vld [vmem:[%s3 + $0x48] sm:$0xff]
          %v357 = vld [vmem:[%s3 + $0x50] sm:$0xff]
          %v358 = vld [vmem:[%s3 + $0x58] sm:$0xff]
          %v359 = vld [vmem:[%s3 + $0x60] sm:$0xff]
          %v360 = vld [vmem:[%s3 + $0x68] sm:$0xff]
          %v361 = vld [vmem:[%s3 + $0x70] sm:$0xff]
          %v362 = vld [vmem:[%s3 + $0x78] sm:$0xff]
          %v363 = vld [vmem:[%s4] sm:$0xff]
          %v364 = vld [vmem:[%s4 + $0x8] sm:$0xff]
          %v365 = vld [vmem:[%s4 + $0x10] sm:$0xff]
          %v366 = vld [vmem:[%s4 + $0x18] sm:$0xff]
          %v367 = vld [vmem:[%s4 + $0x20] sm:$0xff]
          %v368 = vld [vmem:[%s4 + $0x28] sm:$0xff]
          %v369 = vld [vmem:[%s4 + $0x30] sm:$0xff]
          %v370 = vld [vmem:[%s4 + $0x38] sm:$0xff]
          %v371 = vld [vmem:[%s4 + $0x40] sm:$0xff]
          %v372 = vld [vmem:[%s4 + $0x48] sm:$0xff]
          %v373 = vld [vmem:[%s4 + $0x50] sm:$0xff]
          %v374 = vld [vmem:[%s4 + $0x58] sm:$0xff]
          %v375 = vld [vmem:[%s4 + $0x60] sm:$0xff]
          %v376 = vld [vmem:[%s4 + $0x68] sm:$0xff]
          %v377 = vld [vmem:[%s4 + $0x70] sm:$0xff]
          %v378 = vld [vmem:[%s4 + $0x78] sm:$0xff]
          %v379 = vld [vmem:[%s4 + $0x80] sm:$0xff]
          %v380 = vld [vmem:[%s4 + $0x88] sm:$0xff]
          %v381 = vld [vmem:[%s4 + $0x90] sm:$0xff]
          %v382 = vld [vmem:[%s4 + $0x98] sm:$0xff]
          %v383 = vld [vmem:[%s4 + $0xa0] sm:$0xff]
          %v384 = vld [vmem:[%s4 + $0xa8] sm:$0xff]
          %v385 = vld [vmem:[%s4 + $0xb0] sm:$0xff]
          %v386 = vld [vmem:[%s4 + $0xb8] sm:$0xff]
          %v387 = vld [vmem:[%s4 + $0xc0] sm:$0xff]
          %v388 = vld [vmem:[%s4 + $0xc8] sm:$0xff]
          %v389 = vld [vmem:[%s4 + $0xd0] sm:$0xff]
          %v390 = vld [vmem:[%s4 + $0xd8] sm:$0xff]
          %v391 = vld [vmem:[%s4 + $0xe0] sm:$0xff]
          %v392 = vld [vmem:[%s4 + $0xe8] sm:$0xff]
          %v393 = vld [vmem:[%s4 + $0xf0] sm:$0xff]
          %v394 = vld [vmem:[%s4 + $0xf8] sm:$0xff]
          %v395 = vld [vmem:[%s4 + $0x100] sm:$0xff]
          %v396 = vld [vmem:[%s4 + $0x108] sm:$0xff]
          %v397 = vld [vmem:[%s4 + $0x110] sm:$0xff]
          %v398 = vld [vmem:[%s4 + $0x118] sm:$0xff]
          %v399 = vld [vmem:[%s4 + $0x120] sm:$0xff]
          %v400 = vld [vmem:[%s4 + $0x128] sm:$0xff]
          %v401 = vld [vmem:[%s4 + $0x130] sm:$0xff]
          %v402 = vld [vmem:[%s4 + $0x138] sm:$0xff]
          %v403 = vld [vmem:[%s4 + $0x140] sm:$0xff]
          %v404 = vld [vmem:[%s4 + $0x148] sm:$0xff]
          %v405 = vld [vmem:[%s4 + $0x150] sm:$0xff]
          %v406 = vld [vmem:[%s4 + $0x158] sm:$0xff]
          %v407 = vld [vmem:[%s4 + $0x160] sm:$0xff]
          %v408 = vld [vmem:[%s4 + $0x168] sm:$0xff]
          %v409 = vld [vmem:[%s4 + $0x170] sm:$0xff]
          %v410 = vld [vmem:[%s4 + $0x178] sm:$0xff]
          %v411 = vld [vmem:[%s4 + $0x180] sm:$0xff]
          %v412 = vld [vmem:[%s4 + $0x188] sm:$0xff]
          %v413 = vld [vmem:[%s4 + $0x190] sm:$0xff]
          %v414 = vld [vmem:[%s4 + $0x198] sm:$0xff]
          %v415 = vld [vmem:[%s4 + $0x1a0] sm:$0xff]
          %v416 = vld [vmem:[%s4 + $0x1a8] sm:$0xff]
          %v417 = vld [vmem:[%s4 + $0x1b0] sm:$0xff]
          %v418 = vld [vmem:[%s4 + $0x1b8] sm:$0xff]
          %v419 = vld [vmem:[%s4 + $0x1c0] sm:$0xff]
          %v420 = vld [vmem:[%s4 + $0x1c8] sm:$0xff]
          %v421 = vld [vmem:[%s4 + $0x1d0] sm:$0xff]
          %v422 = vld [vmem:[%s4 + $0x1d8] sm:$0xff]
          %v423 = vld [vmem:[%s4 + $0x1e0] sm:$0xff]
          %v424 = vld [vmem:[%s4 + $0x1e8] sm:$0xff]
          %v425 = vld [vmem:[%s4 + $0x1f0] sm:$0xff]
          %v426 = vld [vmem:[%s4 + $0x1f8] sm:$0xff]
          %v427 = vld [vmem:[%s5] sm:$0xf]
          %v428 = vld [vmem:[#allocation2] sm:$0xff]
          %v429 = vld [vmem:[#allocation3] sm:$0xff]
          %v430 = vld [vmem:[%s319] sm:$0x1]
          %v431 = vld [vmem:[%s319 + $0x10] sm:$0x1]
          %v432 = vld [vmem:[%s319 + $0x20] sm:$0x1]
          %v433 = vld [vmem:[%s319 + $0x30] sm:$0x1]
          %v434 = vld [vmem:[%s319 + $0x40] sm:$0x1]
          %v435 = vld [vmem:[%s319 + $0x50] sm:$0x1]
          %v436 = vld [vmem:[%s319 + $0x60] sm:$0x1]
          %v437 = vld [vmem:[%s319 + $0x70] sm:$0x1]
          %v439 = vlaneseq
          %v440 = vshrl.u32 %v439, 7
          %v441 = vsub.s32 0, %v440
          %v442 = vrot.slane %v427, %v441
          %v443 = vlaneseq
          %v444 = vshrl.u32 %v443, 7
          %v445 = vsub.s32 1, %v444
          %v446 = vrot.slane %v427, %v445
          %v447 = vlaneseq
          %v448 = vshrl.u32 %v447, 7
          %v449 = vsub.s32 2, %v448
          %v450 = vrot.slane %v427, %v449
          %v451 = vlaneseq
          %v452 = vshrl.u32 %v451, 7
          %v453 = vsub.s32 3, %v452
          %v454 = vrot.slane %v427, %v453
          %v467 = vrot.slane %v431, 7
          %vm468 = vcmask 1041409
          %v469 = vsel %vm468, %v467, %v430
          %v470 = vrot.slane %v432, 6
          %vm471 = vcmask 1042434
          %v472 = vsel %vm471, %v470, %v469
          %v473 = vrot.slane %v433, 5
          %vm474 = vcmask 1043459
          %v475 = vsel %vm474, %v473, %v472
          %v476 = vrot.slane %v434, 4
          %vm477 = vcmask 1044484
          %v478 = vsel %vm477, %v476, %v475
          %v479 = vrot.slane %v435, 3
          %vm480 = vcmask 1045509
          %v481 = vsel %vm480, %v479, %v478
          %v482 = vrot.slane %v436, 2
          %vm483 = vcmask 1046534
          %v484 = vsel %vm483, %v482, %v481
          %v485 = vrot.slane %v437, 1
          %vm486 = vcmask 1047559
          %v487 = vsel %vm486, %v485, %v484
          %vm488 = vcmask 261120
          %v489 = vsel %vm488, %v487, 0
          %491 = vmatprep.subr.mxu0 0.0
          %492 = vmatpush1.msra.mxu0 0.0
          %493 = vmatprep.subr.mxu0 0.0
          %494 = vmatpush1.msra.mxu0 0.0
          %495 = vmatprep.subr.mxu0 0.0
          %496 = vmatpush1.msra.mxu0 0.0
          %497 = vmatprep.subr.mxu0 0.0
          %498 = vmatpush1.msra.mxu0 0.0
          %499 = vmatprep.subr.mxu0 0.0
          %500 = vmatpush1.msra.mxu0 0.0
          %501 = vmatprep.subr.mxu0 0.0
          %502 = vmatpush1.msra.mxu0 0.0
          %503 = vmatprep.subr.mxu0 0.0
          %504 = vmatpush1.msra.mxu0 0.0
          %505 = vmatprep.subr.mxu0 0.0
          %506 = vmatpush1.msra.mxu0 0.0
          %507 = vmatprep.subr.mxu0 0.0
          %508 = vmatpush1.msra.mxu0 0.0
          %509 = vmatprep.subr.mxu0 0.0
          %510 = vmatpush1.msra.mxu0 0.0
          %511 = vmatprep.subr.mxu0 0.0
          %512 = vmatpush1.msra.mxu0 0.0
          %513 = vmatprep.subr.mxu0 0.0
          %514 = vmatpush1.msra.mxu0 0.0
          %515 = vmatprep.subr.mxu0 %v360
          %516 = vmatpush1.msra.mxu0 %v359
          %517 = vmatprep.subr.mxu0 %v356
          %518 = vmatpush1.msra.mxu0 %v355
          %519 = vmatprep.subr.mxu0 %v352
          %520 = vmatpush1.msra.mxu0 %v351
          %521 = vmatprep.subr.mxu0 %v348
          %522 = vmatpush1.msra.mxu0 %v347
          %523 = vmatprep.subr.mxu0 0.0
          %524 = vmatpush2.msra.mxu0 0.0
          %525 = vmatprep.subr.mxu0 0.0
          %526 = vmatpush2.msra.mxu0 0.0
          %527 = vmatprep.subr.mxu0 0.0
          %528 = vmatpush2.msra.mxu0 0.0
          %529 = vmatprep.subr.mxu0 0.0
          %530 = vmatpush2.msra.mxu0 0.0
          %531 = vmatprep.subr.mxu0 0.0
          %532 = vmatpush2.msra.mxu0 0.0
          %533 = vmatprep.subr.mxu0 0.0
          %534 = vmatpush2.msra.mxu0 0.0
          %535 = vmatprep.subr.mxu0 0.0
          %536 = vmatpush2.msra.mxu0 0.0
          %537 = vmatprep.subr.mxu0 0.0
          %538 = vmatpush2.msra.mxu0 0.0
          %539 = vmatprep.subr.mxu0 0.0
          %540 = vmatpush2.msra.mxu0 0.0
          %541 = vmatprep.subr.mxu0 0.0
          %542 = vmatpush2.msra.mxu0 0.0
          %543 = vmatprep.subr.mxu0 0.0
          %544 = vmatpush2.msra.mxu0 0.0
          %545 = vmatprep.subr.mxu0 0.0
          %546 = vmatpush2.msra.mxu0 0.0
          %547 = vmatprep.subr.mxu0 0.0
          %548 = vmatpush2.msra.mxu0 0.0
          %549 = vmatprep.subr.mxu0 0.0
          %550 = vmatpush2.msra.mxu0 0.0
          %551 = vmatprep.subr.mxu0 0.0
          %552 = vmatpush2.msra.mxu0 0.0
          %553 = vmatprep.subr.mxu0 0.0
          %554 = vmatpush2.msra.mxu0 0.0
          %555 = vmatprep.mubr.f32.mxu0 0.0
          %556 = vmatmul.mubr.f32.gmra.mxu0 %v489
          %v557 = vpop.f32.mrf.mxu0
          %v558 = vadd.f32 %v442, %v557
          %v559 = vpop.f32.mrf.mxu0
          %v560 = vadd.f32 %v446, %v559
          %561 = vdwg.mxu0
          %562 = vmatprep.subr.mxu0 0.0
          %563 = vmatpush1.msra.mxu0 0.0
          %564 = vmatprep.subr.mxu0 0.0
          %565 = vmatpush1.msra.mxu0 0.0
          %566 = vmatprep.subr.mxu0 0.0
          %567 = vmatpush1.msra.mxu0 0.0
          %568 = vmatprep.subr.mxu0 0.0
          %569 = vmatpush1.msra.mxu0 0.0
          %570 = vmatprep.subr.mxu0 0.0
          %571 = vmatpush1.msra.mxu0 0.0
          %572 = vmatprep.subr.mxu0 0.0
          %573 = vmatpush1.msra.mxu0 0.0
          %574 = vmatprep.subr.mxu0 0.0
          %575 = vmatpush1.msra.mxu0 0.0
          %576 = vmatprep.subr.mxu0 0.0
          %577 = vmatpush1.msra.mxu0 0.0
          %578 = vmatprep.subr.mxu0 0.0
          %579 = vmatpush1.msra.mxu0 0.0
          %580 = vmatprep.subr.mxu0 0.0
          %581 = vmatpush1.msra.mxu0 0.0
          %582 = vmatprep.subr.mxu0 0.0
          %583 = vmatpush1.msra.mxu0 0.0
          %584 = vmatprep.subr.mxu0 0.0
          %585 = vmatpush1.msra.mxu0 0.0
          %586 = vmatprep.subr.mxu0 %v362
          %587 = vmatpush1.msra.mxu0 %v361
          %588 = vmatprep.subr.mxu0 %v358
          %589 = vmatpush1.msra.mxu0 %v357
          %590 = vmatprep.subr.mxu0 %v354
          %591 = vmatpush1.msra.mxu0 %v353
          %592 = vmatprep.subr.mxu0 %v350
          %593 = vmatpush1.msra.mxu0 %v349
          %594 = vmatprep.subr.mxu0 0.0
          %595 = vmatpush2.msra.mxu0 0.0
          %596 = vmatprep.subr.mxu0 0.0
          %597 = vmatpush2.msra.mxu0 0.0
          %598 = vmatprep.subr.mxu0 0.0
          %599 = vmatpush2.msra.mxu0 0.0
          %600 = vmatprep.subr.mxu0 0.0
          %601 = vmatpush2.msra.mxu0 0.0
          %602 = vmatprep.subr.mxu0 0.0
          %603 = vmatpush2.msra.mxu0 0.0
          %604 = vmatprep.subr.mxu0 0.0
          %605 = vmatpush2.msra.mxu0 0.0
          %606 = vmatprep.subr.mxu0 0.0
          %607 = vmatpush2.msra.mxu0 0.0
          %608 = vmatprep.subr.mxu0 0.0
          %609 = vmatpush2.msra.mxu0 0.0
          %610 = vmatprep.subr.mxu0 0.0
          %611 = vmatpush2.msra.mxu0 0.0
          %612 = vmatprep.subr.mxu0 0.0
          %613 = vmatpush2.msra.mxu0 0.0
          %614 = vmatprep.subr.mxu0 0.0
          %615 = vmatpush2.msra.mxu0 0.0
          %616 = vmatprep.subr.mxu0 0.0
          %617 = vmatpush2.msra.mxu0 0.0
          %618 = vmatprep.subr.mxu0 0.0
          %619 = vmatpush2.msra.mxu0 0.0
          %620 = vmatprep.subr.mxu0 0.0
          %621 = vmatpush2.msra.mxu0 0.0
          %622 = vmatprep.subr.mxu0 0.0
          %623 = vmatpush2.msra.mxu0 0.0
          %624 = vmatprep.subr.mxu0 0.0
          %625 = vmatpush2.msra.mxu0 0.0
          %626 = vmatprep.mubr.f32.mxu0 0.0
          %627 = vmatmul.mubr.f32.gmra.mxu0 %v489
          %v628 = vpop.f32.mrf.mxu0
          %v629 = vadd.f32 %v450, %v628
          %v630 = vpop.f32.mrf.mxu0
          %v631 = vadd.f32 %v454, %v630
          %632 = vdwg.mxu0
          %633 = vmatprep.subr.mxu0 %v424
          %634 = vmatpush1.msra.mxu0 %v423
          %635 = vmatprep.subr.mxu0 %v420
          %636 = vmatpush1.msra.mxu0 %v419
          %637 = vmatprep.subr.mxu0 %v416
          %638 = vmatpush1.msra.mxu0 %v415
          %639 = vmatprep.subr.mxu0 %v412
          %640 = vmatpush1.msra.mxu0 %v411
          %641 = vmatprep.subr.mxu0 %v408
          %642 = vmatpush1.msra.mxu0 %v407
          %643 = vmatprep.subr.mxu0 %v404
          %644 = vmatpush1.msra.mxu0 %v403
          %645 = vmatprep.subr.mxu0 %v400
          %646 = vmatpush1.msra.mxu0 %v399
          %647 = vmatprep.subr.mxu0 %v396
          %648 = vmatpush1.msra.mxu0 %v395
          %649 = vmatprep.subr.mxu0 %v392
          %650 = vmatpush1.msra.mxu0 %v391
          %651 = vmatprep.subr.mxu0 %v388
          %652 = vmatpush1.msra.mxu0 %v387
          %653 = vmatprep.subr.mxu0 %v384
          %654 = vmatpush1.msra.mxu0 %v383
          %655 = vmatprep.subr.mxu0 %v380
          %656 = vmatpush1.msra.mxu0 %v379
          %657 = vmatprep.subr.mxu0 %v376
          %658 = vmatpush1.msra.mxu0 %v375
          %659 = vmatprep.subr.mxu0 %v372
          %660 = vmatpush1.msra.mxu0 %v371
          %661 = vmatprep.subr.mxu0 %v368
          %662 = vmatpush1.msra.mxu0 %v367
          %663 = vmatprep.subr.mxu0 %v364
          %664 = vmatpush1.msra.mxu0 %v363
          %665 = vmatprep.subr.mxu0 0.0
          %666 = vmatpush2.msra.mxu0 0.0
          %667 = vmatprep.subr.mxu0 0.0
          %668 = vmatpush2.msra.mxu0 0.0
          %669 = vmatprep.subr.mxu0 0.0
          %670 = vmatpush2.msra.mxu0 0.0
          %671 = vmatprep.subr.mxu0 0.0
          %672 = vmatpush2.msra.mxu0 0.0
          %673 = vmatprep.subr.mxu0 0.0
          %674 = vmatpush2.msra.mxu0 0.0
          %675 = vmatprep.subr.mxu0 0.0
          %676 = vmatpush2.msra.mxu0 0.0
          %677 = vmatprep.subr.mxu0 0.0
          %678 = vmatpush2.msra.mxu0 0.0
          %679 = vmatprep.subr.mxu0 0.0
          %680 = vmatpush2.msra.mxu0 0.0
          %681 = vmatprep.subr.mxu0 0.0
          %682 = vmatpush2.msra.mxu0 0.0
          %683 = vmatprep.subr.mxu0 0.0
          %684 = vmatpush2.msra.mxu0 0.0
          %685 = vmatprep.subr.mxu0 0.0
          %686 = vmatpush2.msra.mxu0 0.0
          %687 = vmatprep.subr.mxu0 0.0
          %688 = vmatpush2.msra.mxu0 0.0
          %689 = vmatprep.subr.mxu0 0.0
          %690 = vmatpush2.msra.mxu0 0.0
          %691 = vmatprep.subr.mxu0 0.0
          %692 = vmatpush2.msra.mxu0 0.0
          %693 = vmatprep.subr.mxu0 0.0
          %694 = vmatpush2.msra.mxu0 0.0
          %695 = vmatprep.subr.mxu0 0.0
          %696 = vmatpush2.msra.mxu0 0.0
          %697 = vmatprep.mubr.f32.mxu0 0.0
          %698 = vmatmul.mubr.f32.gmra.mxu0 %v428
          %v699 = vpop.f32.mrf.mxu0
          %v700 = vadd.f32 0.0, %v699
          %v701 = vpop.f32.mrf.mxu0
          %v702 = vadd.f32 0.0, %v701
          %703 = vdwg.mxu0
          %704 = vmatprep.subr.mxu0 %v426
          %705 = vmatpush1.msra.mxu0 %v425
          %706 = vmatprep.subr.mxu0 %v422
          %707 = vmatpush1.msra.mxu0 %v421
          %708 = vmatprep.subr.mxu0 %v418
          %709 = vmatpush1.msra.mxu0 %v417
          %710 = vmatprep.subr.mxu0 %v414
          %711 = vmatpush1.msra.mxu0 %v413
          %712 = vmatprep.subr.mxu0 %v410
          %713 = vmatpush1.msra.mxu0 %v409
          %714 = vmatprep.subr.mxu0 %v406
          %715 = vmatpush1.msra.mxu0 %v405
          %716 = vmatprep.subr.mxu0 %v402
          %717 = vmatpush1.msra.mxu0 %v401
          %718 = vmatprep.subr.mxu0 %v398
          %719 = vmatpush1.msra.mxu0 %v397
          %720 = vmatprep.subr.mxu0 %v394
          %721 = vmatpush1.msra.mxu0 %v393
          %722 = vmatprep.subr.mxu0 %v390
          %723 = vmatpush1.msra.mxu0 %v389
          %724 = vmatprep.subr.mxu0 %v386
          %725 = vmatpush1.msra.mxu0 %v385
          %726 = vmatprep.subr.mxu0 %v382
          %727 = vmatpush1.msra.mxu0 %v381
          %728 = vmatprep.subr.mxu0 %v378
          %729 = vmatpush1.msra.mxu0 %v377
          %730 = vmatprep.subr.mxu0 %v374
          %731 = vmatpush1.msra.mxu0 %v373
          %732 = vmatprep.subr.mxu0 %v370
          %733 = vmatpush1.msra.mxu0 %v369
          %734 = vmatprep.subr.mxu0 %v366
          %735 = vmatpush1.msra.mxu0 %v365
          %736 = vmatprep.subr.mxu0 0.0
          %737 = vmatpush2.msra.mxu0 0.0
          %738 = vmatprep.subr.mxu0 0.0
          %739 = vmatpush2.msra.mxu0 0.0
          %740 = vmatprep.subr.mxu0 0.0
          %741 = vmatpush2.msra.mxu0 0.0
          %742 = vmatprep.subr.mxu0 0.0
          %743 = vmatpush2.msra.mxu0 0.0
          %744 = vmatprep.subr.mxu0 0.0
          %745 = vmatpush2.msra.mxu0 0.0
          %746 = vmatprep.subr.mxu0 0.0
          %747 = vmatpush2.msra.mxu0 0.0
          %748 = vmatprep.subr.mxu0 0.0
          %749 = vmatpush2.msra.mxu0 0.0
          %750 = vmatprep.subr.mxu0 0.0
          %751 = vmatpush2.msra.mxu0 0.0
          %752 = vmatprep.subr.mxu0 0.0
          %753 = vmatpush2.msra.mxu0 0.0
          %754 = vmatprep.subr.mxu0 0.0
          %755 = vmatpush2.msra.mxu0 0.0
          %756 = vmatprep.subr.mxu0 0.0
          %757 = vmatpush2.msra.mxu0 0.0
          %758 = vmatprep.subr.mxu0 0.0
          %759 = vmatpush2.msra.mxu0 0.0
          %760 = vmatprep.subr.mxu0 0.0
          %761 = vmatpush2.msra.mxu0 0.0
          %762 = vmatprep.subr.mxu0 0.0
          %763 = vmatpush2.msra.mxu0 0.0
          %764 = vmatprep.subr.mxu0 0.0
          %765 = vmatpush2.msra.mxu0 0.0
          %766 = vmatprep.subr.mxu0 0.0
          %767 = vmatpush2.msra.mxu0 0.0
          %768 = vmatprep.mubr.f32.mxu0 0.0
          %769 = vmatmul.mubr.f32.gmra.mxu0 %v428
          %v770 = vpop.f32.mrf.mxu0
          %v771 = vadd.f32 0.0, %v770
          %v772 = vpop.f32.mrf.mxu0
          %v773 = vadd.f32 0.0, %v772
          %774 = vdwg.mxu0
          %v775 = vadd.f32 %v558, %v700
          %v776 = vadd.f32 %v560, %v702
          %v777 = vadd.f32 %v629, %v771
          %v778 = vadd.f32 %v631, %v773
          %v779 = vxor.u32 %v775, 2147483648
          %v780 = vmul.f32 %v779, 1.442695
          %v781 = vpow.pop %v780
          %v782 = vadd.f32 %v781, 1.0
          %v783 = vrcp.pop %v782
          %v784 = vmul.f32 1.0, %v783
          %v785 = vxor.u32 %v776, 2147483648
          %v786 = vmul.f32 %v785, 1.442695
          %v787 = vpow.pop %v786
          %v788 = vadd.f32 %v787, 1.0
          %v789 = vrcp.pop %v788
          %v790 = vmul.f32 1.0, %v789
          %v791 = vtanh.pop %v777
          %v792 = vxor.u32 %v778, 2147483648
          %v793 = vmul.f32 %v792, 1.442695
          %v794 = vpow.pop %v793
          %v795 = vadd.f32 %v794, 1.0
          %v796 = vrcp.pop %v795
          %v797 = vmul.f32 1.0, %v796
          %v798 = vmul.f32 %v790, %v429
          %v799 = vmul.f32 %v784, %v791
          %v800 = vadd.f32 %v798, %v799
          %v801 = vtanh.pop %v800
          %v802 = vmul.f32 %v797, %v801
          %v803 = vstv %s334
          %vm804 = vcmp.lt.s32.totalorder %v803, %v346
          %v805 = vsel %vm804, 1, 0
          %806 = vset.pattern.permute.xlu0 0
          %807 = vperm.xlu0 %806, %v805
          %v808 = vpop.permute.xlu0 %807
          %vm809 = vcmp.eq.s32.totalorder %v808, 1
          %v810 = vsel %vm809, %v802, %v428
          %v811 = vsel %vm809, %v800, %v429
          %v812 = vsel %vm809, %v802, 0.0
          %v814 = vcombine.high %v812, %v812
          %v816 = vunpack.c.l.s4 1966171168
          %v817 = vunpack.c.0.s8 %v816
          %v818 = vlaneseq
          %v819 = vshrl.u32 %v818, 7
          %v820 = vsub.s32 %v817, %v819
          %v821 = vrot.slane %v812, %v820
          %v823 = vunpack.c.l.s4 1966171168
          %v824 = vunpack.c.0.s8 %v823
          %v825 = vlaneseq
          %v826 = vshrl.u32 %v825, 7
          %v827 = vsub.s32 %v824, %v826
          %v828 = vrot.slane %v814, %v827
          %v829 = vcombine.high %v821, %v821
          %v830 = vcombine.high %v828, %v828
          %v832 = vunpack.c.l.s4 1966171168
          %v833 = vunpack.c.0.s8 %v832
          %v834 = vlaneseq
          %v835 = vshrl.u32 %v834, 7
          %v836 = vsub.s32 %v833, %v835
          %v837 = vrot.slane %v821, %v836
          %v839 = vunpack.c.l.s4 1966171168
          %v840 = vunpack.c.0.s8 %v839
          %v841 = vlaneseq
          %v842 = vshrl.u32 %v841, 7
          %v843 = vsub.s32 %v840, %v842
          %v844 = vrot.slane %v828, %v843
          %v846 = vunpack.c.l.s4 1966171168
          %v847 = vunpack.c.0.s8 %v846
          %v848 = vlaneseq
          %v849 = vshrl.u32 %v848, 7
          %v850 = vsub.s32 %v847, %v849
          %v851 = vrot.slane %v829, %v850
          %v853 = vunpack.c.l.s4 1966171168
          %v854 = vunpack.c.0.s8 %v853
          %v855 = vlaneseq
          %v856 = vshrl.u32 %v855, 7
          %v857 = vsub.s32 %v854, %v856
          %v858 = vrot.slane %v830, %v857
          %v859 = vcombine.high %v837, %v837
          %v860 = vcombine.high %v844, %v844
          %v861 = vcombine.high %v851, %v851
          %v862 = vcombine.high %v858, %v858
          %871 = vst [vmem:[%s331] sm:$0x1] %v837
          %872 = vst [vmem:[%s331 + $0x10] sm:$0x1] %v851
          %873 = vst [vmem:[%s331 + $0x20] sm:$0x1] %v859
          %874 = vst [vmem:[%s331 + $0x30] sm:$0x1] %v861
          %875 = vst [vmem:[%s331 + $0x40] sm:$0x1] %v844
          %876 = vst [vmem:[%s331 + $0x50] sm:$0x1] %v858
          %877 = vst [vmem:[%s331 + $0x60] sm:$0x1] %v860
          %878 = vst [vmem:[%s331 + $0x70] sm:$0x1] %v862
          %v879 = vld [vmem:[%s319 + $0x1] sm:$0x1]
          %v880 = vld [vmem:[%s319 + $0x11] sm:$0x1]
          %v881 = vld [vmem:[%s319 + $0x21] sm:$0x1]
          %v882 = vld [vmem:[%s319 + $0x31] sm:$0x1]
          %v883 = vld [vmem:[%s319 + $0x41] sm:$0x1]
          %v884 = vld [vmem:[%s319 + $0x51] sm:$0x1]
          %v885 = vld [vmem:[%s319 + $0x61] sm:$0x1]
          %v886 = vld [vmem:[%s319 + $0x71] sm:$0x1]
          %v895 = vrot.slane %v880, 7
          %v896 = vsel %vm468, %v895, %v879
          %v897 = vrot.slane %v881, 6
          %v898 = vsel %vm471, %v897, %v896
          %v899 = vrot.slane %v882, 5
          %v900 = vsel %vm474, %v899, %v898
          %v901 = vrot.slane %v883, 4
          %v902 = vsel %vm477, %v901, %v900
          %v903 = vrot.slane %v884, 3
          %v904 = vsel %vm480, %v903, %v902
          %v905 = vrot.slane %v885, 2
          %v906 = vsel %vm483, %v905, %v904
          %v907 = vrot.slane %v886, 1
          %v908 = vsel %vm486, %v907, %v906
          %v909 = vsel %vm488, %v908, 0
          %911 = vmatprep.subr.mxu0 0.0
          %912 = vmatpush1.msra.mxu0 0.0
          %913 = vmatprep.subr.mxu0 0.0
          %914 = vmatpush1.msra.mxu0 0.0
          %915 = vmatprep.subr.mxu0 0.0
          %916 = vmatpush1.msra.mxu0 0.0
          %917 = vmatprep.subr.mxu0 0.0
          %918 = vmatpush1.msra.mxu0 0.0
          %919 = vmatprep.subr.mxu0 0.0
          %920 = vmatpush1.msra.mxu0 0.0
          %921 = vmatprep.subr.mxu0 0.0
          %922 = vmatpush1.msra.mxu0 0.0
          %923 = vmatprep.subr.mxu0 0.0
          %924 = vmatpush1.msra.mxu0 0.0
          %925 = vmatprep.subr.mxu0 0.0
          %926 = vmatpush1.msra.mxu0 0.0
          %927 = vmatprep.subr.mxu0 0.0
          %928 = vmatpush1.msra.mxu0 0.0
          %929 = vmatprep.subr.mxu0 0.0
          %930 = vmatpush1.msra.mxu0 0.0
          %931 = vmatprep.subr.mxu0 0.0
          %932 = vmatpush1.msra.mxu0 0.0
          %933 = vmatprep.subr.mxu0 0.0
          %934 = vmatpush1.msra.mxu0 0.0
          %935 = vmatprep.subr.mxu0 %v360
          %936 = vmatpush1.msra.mxu0 %v359
          %937 = vmatprep.subr.mxu0 %v356
          %938 = vmatpush1.msra.mxu0 %v355
          %939 = vmatprep.subr.mxu0 %v352
          %940 = vmatpush1.msra.mxu0 %v351
          %941 = vmatprep.subr.mxu0 %v348
          %942 = vmatpush1.msra.mxu0 %v347
          %943 = vmatprep.subr.mxu0 0.0
          %944 = vmatpush2.msra.mxu0 0.0
          %945 = vmatprep.subr.mxu0 0.0
          %946 = vmatpush2.msra.mxu0 0.0
          %947 = vmatprep.subr.mxu0 0.0
          %948 = vmatpush2.msra.mxu0 0.0
          %949 = vmatprep.subr.mxu0 0.0
          %950 = vmatpush2.msra.mxu0 0.0
          %951 = vmatprep.subr.mxu0 0.0
          %952 = vmatpush2.msra.mxu0 0.0
          %953 = vmatprep.subr.mxu0 0.0
          %954 = vmatpush2.msra.mxu0 0.0
          %955 = vmatprep.subr.mxu0 0.0
          %956 = vmatpush2.msra.mxu0 0.0
          %957 = vmatprep.subr.mxu0 0.0
          %958 = vmatpush2.msra.mxu0 0.0
          %959 = vmatprep.subr.mxu0 0.0
          %960 = vmatpush2.msra.mxu0 0.0
          %961 = vmatprep.subr.mxu0 0.0
          %962 = vmatpush2.msra.mxu0 0.0
          %963 = vmatprep.subr.mxu0 0.0
          %964 = vmatpush2.msra.mxu0 0.0
          %965 = vmatprep.subr.mxu0 0.0
          %966 = vmatpush2.msra.mxu0 0.0
          %967 = vmatprep.subr.mxu0 0.0
          %968 = vmatpush2.msra.mxu0 0.0
          %969 = vmatprep.subr.mxu0 0.0
          %970 = vmatpush2.msra.mxu0 0.0
          %971 = vmatprep.subr.mxu0 0.0
          %972 = vmatpush2.msra.mxu0 0.0
          %973 = vmatprep.subr.mxu0 0.0
          %974 = vmatpush2.msra.mxu0 0.0
          %975 = vmatprep.mubr.f32.mxu0 0.0
          %976 = vmatmul.mubr.f32.gmra.mxu0 %v909
          %v977 = vpop.f32.mrf.mxu0
          %v978 = vadd.f32 %v442, %v977
          %v979 = vpop.f32.mrf.mxu0
          %v980 = vadd.f32 %v446, %v979
          %981 = vdwg.mxu0
          %982 = vmatprep.subr.mxu0 0.0
          %983 = vmatpush1.msra.mxu0 0.0
          %984 = vmatprep.subr.mxu0 0.0
          %985 = vmatpush1.msra.mxu0 0.0
          %986 = vmatprep.subr.mxu0 0.0
          %987 = vmatpush1.msra.mxu0 0.0
          %988 = vmatprep.subr.mxu0 0.0
          %989 = vmatpush1.msra.mxu0 0.0
          %990 = vmatprep.subr.mxu0 0.0
          %991 = vmatpush1.msra.mxu0 0.0
          %992 = vmatprep.subr.mxu0 0.0
          %993 = vmatpush1.msra.mxu0 0.0
          %994 = vmatprep.subr.mxu0 0.0
          %995 = vmatpush1.msra.mxu0 0.0
          %996 = vmatprep.subr.mxu0 0.0
          %997 = vmatpush1.msra.mxu0 0.0
          %998 = vmatprep.subr.mxu0 0.0
          %999 = vmatpush1.msra.mxu0 0.0
          %1000 = vmatprep.subr.mxu0 0.0
          %1001 = vmatpush1.msra.mxu0 0.0
          %1002 = vmatprep.subr.mxu0 0.0
          %1003 = vmatpush1.msra.mxu0 0.0
          %1004 = vmatprep.subr.mxu0 0.0
          %1005 = vmatpush1.msra.mxu0 0.0
          %1006 = vmatprep.subr.mxu0 %v362
          %1007 = vmatpush1.msra.mxu0 %v361
          %1008 = vmatprep.subr.mxu0 %v358
          %1009 = vmatpush1.msra.mxu0 %v357
          %1010 = vmatprep.subr.mxu0 %v354
          %1011 = vmatpush1.msra.mxu0 %v353
          %1012 = vmatprep.subr.mxu0 %v350
          %1013 = vmatpush1.msra.mxu0 %v349
          %1014 = vmatprep.subr.mxu0 0.0
          %1015 = vmatpush2.msra.mxu0 0.0
          %1016 = vmatprep.subr.mxu0 0.0
          %1017 = vmatpush2.msra.mxu0 0.0
          %1018 = vmatprep.subr.mxu0 0.0
          %1019 = vmatpush2.msra.mxu0 0.0
          %1020 = vmatprep.subr.mxu0 0.0
          %1021 = vmatpush2.msra.mxu0 0.0
          %1022 = vmatprep.subr.mxu0 0.0
          %1023 = vmatpush2.msra.mxu0 0.0
          %1024 = vmatprep.subr.mxu0 0.0
          %1025 = vmatpush2.msra.mxu0 0.0
          %1026 = vmatprep.subr.mxu0 0.0
          %1027 = vmatpush2.msra.mxu0 0.0
          %1028 = vmatprep.subr.mxu0 0.0
          %1029 = vmatpush2.msra.mxu0 0.0
          %1030 = vmatprep.subr.mxu0 0.0
          %1031 = vmatpush2.msra.mxu0 0.0
          %1032 = vmatprep.subr.mxu0 0.0
          %1033 = vmatpush2.msra.mxu0 0.0
          %1034 = vmatprep.subr.mxu0 0.0
          %1035 = vmatpush2.msra.mxu0 0.0
          %1036 = vmatprep.subr.mxu0 0.0
          %1037 = vmatpush2.msra.mxu0 0.0
          %1038 = vmatprep.subr.mxu0 0.0
          %1039 = vmatpush2.msra.mxu0 0.0
          %1040 = vmatprep.subr.mxu0 0.0
          %1041 = vmatpush2.msra.mxu0 0.0
          %1042 = vmatprep.subr.mxu0 0.0
          %1043 = vmatpush2.msra.mxu0 0.0
          %1044 = vmatprep.subr.mxu0 0.0
          %1045 = vmatpush2.msra.mxu0 0.0
          %1046 = vmatprep.mubr.f32.mxu0 0.0
          %1047 = vmatmul.mubr.f32.gmra.mxu0 %v909
          %v1048 = vpop.f32.mrf.mxu0
          %v1049 = vadd.f32 %v450, %v1048
          %v1050 = vpop.f32.mrf.mxu0
          %v1051 = vadd.f32 %v454, %v1050
          %1052 = vdwg.mxu0
          %1053 = vmatprep.subr.mxu0 %v424
          %1054 = vmatpush1.msra.mxu0 %v423
          %1055 = vmatprep.subr.mxu0 %v420
          %1056 = vmatpush1.msra.mxu0 %v419
          %1057 = vmatprep.subr.mxu0 %v416
          %1058 = vmatpush1.msra.mxu0 %v415
          %1059 = vmatprep.subr.mxu0 %v412
          %1060 = vmatpush1.msra.mxu0 %v411
          %1061 = vmatprep.subr.mxu0 %v408
          %1062 = vmatpush1.msra.mxu0 %v407
          %1063 = vmatprep.subr.mxu0 %v404
          %1064 = vmatpush1.msra.mxu0 %v403
          %1065 = vmatprep.subr.mxu0 %v400
          %1066 = vmatpush1.msra.mxu0 %v399
          %1067 = vmatprep.subr.mxu0 %v396
          %1068 = vmatpush1.msra.mxu0 %v395
          %1069 = vmatprep.subr.mxu0 %v392
          %1070 = vmatpush1.msra.mxu0 %v391
          %1071 = vmatprep.subr.mxu0 %v388
          %1072 = vmatpush1.msra.mxu0 %v387
          %1073 = vmatprep.subr.mxu0 %v384
          %1074 = vmatpush1.msra.mxu0 %v383
          %1075 = vmatprep.subr.mxu0 %v380
          %1076 = vmatpush1.msra.mxu0 %v379
          %1077 = vmatprep.subr.mxu0 %v376
          %1078 = vmatpush1.msra.mxu0 %v375
          %1079 = vmatprep.subr.mxu0 %v372
          %1080 = vmatpush1.msra.mxu0 %v371
          %1081 = vmatprep.subr.mxu0 %v368
          %1082 = vmatpush1.msra.mxu0 %v367
          %1083 = vmatprep.subr.mxu0 %v364
          %1084 = vmatpush1.msra.mxu0 %v363
          %1085 = vmatprep.subr.mxu0 0.0
          %1086 = vmatpush2.msra.mxu0 0.0
          %1087 = vmatprep.subr.mxu0 0.0
          %1088 = vmatpush2.msra.mxu0 0.0
          %1089 = vmatprep.subr.mxu0 0.0
          %1090 = vmatpush2.msra.mxu0 0.0
          %1091 = vmatprep.subr.mxu0 0.0
          %1092 = vmatpush2.msra.mxu0 0.0
          %1093 = vmatprep.subr.mxu0 0.0
          %1094 = vmatpush2.msra.mxu0 0.0
          %1095 = vmatprep.subr.mxu0 0.0
          %1096 = vmatpush2.msra.mxu0 0.0
          %1097 = vmatprep.subr.mxu0 0.0
          %1098 = vmatpush2.msra.mxu0 0.0
          %1099 = vmatprep.subr.mxu0 0.0
          %1100 = vmatpush2.msra.mxu0 0.0
          %1101 = vmatprep.subr.mxu0 0.0
          %1102 = vmatpush2.msra.mxu0 0.0
          %1103 = vmatprep.subr.mxu0 0.0
          %1104 = vmatpush2.msra.mxu0 0.0
          %1105 = vmatprep.subr.mxu0 0.0
          %1106 = vmatpush2.msra.mxu0 0.0
          %1107 = vmatprep.subr.mxu0 0.0
          %1108 = vmatpush2.msra.mxu0 0.0
          %1109 = vmatprep.subr.mxu0 0.0
          %1110 = vmatpush2.msra.mxu0 0.0
          %1111 = vmatprep.subr.mxu0 0.0
          %1112 = vmatpush2.msra.mxu0 0.0
          %1113 = vmatprep.subr.mxu0 0.0
          %1114 = vmatpush2.msra.mxu0 0.0
          %1115 = vmatprep.subr.mxu0 0.0
          %1116 = vmatpush2.msra.mxu0 0.0
          %1117 = vmatprep.mubr.f32.mxu0 0.0
          %1118 = vmatmul.mubr.f32.gmra.mxu0 %v810
          %v1119 = vpop.f32.mrf.mxu0
          %v1120 = vadd.f32 0.0, %v1119
          %v1121 = vpop.f32.mrf.mxu0
          %v1122 = vadd.f32 0.0, %v1121
          %1123 = vdwg.mxu0
          %1124 = vmatprep.subr.mxu0 %v426
          %1125 = vmatpush1.msra.mxu0 %v425
          %1126 = vmatprep.subr.mxu0 %v422
          %1127 = vmatpush1.msra.mxu0 %v421
          %1128 = vmatprep.subr.mxu0 %v418
          %1129 = vmatpush1.msra.mxu0 %v417
          %1130 = vmatprep.subr.mxu0 %v414
          %1131 = vmatpush1.msra.mxu0 %v413
          %1132 = vmatprep.subr.mxu0 %v410
          %1133 = vmatpush1.msra.mxu0 %v409
          %1134 = vmatprep.subr.mxu0 %v406
          %1135 = vmatpush1.msra.mxu0 %v405
          %1136 = vmatprep.subr.mxu0 %v402
          %1137 = vmatpush1.msra.mxu0 %v401
          %1138 = vmatprep.subr.mxu0 %v398
          %1139 = vmatpush1.msra.mxu0 %v397
          %1140 = vmatprep.subr.mxu0 %v394
          %1141 = vmatpush1.msra.mxu0 %v393
          %1142 = vmatprep.subr.mxu0 %v390
          %1143 = vmatpush1.msra.mxu0 %v389
          %1144 = vmatprep.subr.mxu0 %v386
          %1145 = vmatpush1.msra.mxu0 %v385
          %1146 = vmatprep.subr.mxu0 %v382
          %1147 = vmatpush1.msra.mxu0 %v381
          %1148 = vmatprep.subr.mxu0 %v378
          %1149 = vmatpush1.msra.mxu0 %v377
          %1150 = vmatprep.subr.mxu0 %v374
          %1151 = vmatpush1.msra.mxu0 %v373
          %1152 = vmatprep.subr.mxu0 %v370
          %1153 = vmatpush1.msra.mxu0 %v369
          %1154 = vmatprep.subr.mxu0 %v366
          %1155 = vmatpush1.msra.mxu0 %v365
          %1156 = vmatprep.subr.mxu0 0.0
          %1157 = vmatpush2.msra.mxu0 0.0
          %1158 = vmatprep.subr.mxu0 0.0
          %1159 = vmatpush2.msra.mxu0 0.0
          %1160 = vmatprep.subr.mxu0 0.0
          %1161 = vmatpush2.msra.mxu0 0.0
          %1162 = vmatprep.subr.mxu0 0.0
          %1163 = vmatpush2.msra.mxu0 0.0
          %1164 = vmatprep.subr.mxu0 0.0
          %1165 = vmatpush2.msra.mxu0 0.0
          %1166 = vmatprep.subr.mxu0 0.0
          %1167 = vmatpush2.msra.mxu0 0.0
          %1168 = vmatprep.subr.mxu0 0.0
          %1169 = vmatpush2.msra.mxu0 0.0
          %1170 = vmatprep.subr.mxu0 0.0
          %1171 = vmatpush2.msra.mxu0 0.0
          %1172 = vmatprep.subr.mxu0 0.0
          %1173 = vmatpush2.msra.mxu0 0.0
          %1174 = vmatprep.subr.mxu0 0.0
          %1175 = vmatpush2.msra.mxu0 0.0
          %1176 = vmatprep.subr.mxu0 0.0
          %1177 = vmatpush2.msra.mxu0 0.0
          %1178 = vmatprep.subr.mxu0 0.0
          %1179 = vmatpush2.msra.mxu0 0.0
          %1180 = vmatprep.subr.mxu0 0.0
          %1181 = vmatpush2.msra.mxu0 0.0
          %1182 = vmatprep.subr.mxu0 0.0
          %1183 = vmatpush2.msra.mxu0 0.0
          %1184 = vmatprep.subr.mxu0 0.0
          %1185 = vmatpush2.msra.mxu0 0.0
          %1186 = vmatprep.subr.mxu0 0.0
          %1187 = vmatpush2.msra.mxu0 0.0
          %1188 = vmatprep.mubr.f32.mxu0 0.0
          %1189 = vmatmul.mubr.f32.gmra.mxu0 %v810
          %v1190 = vpop.f32.mrf.mxu0
          %v1191 = vadd.f32 0.0, %v1190
          %v1192 = vpop.f32.mrf.mxu0
          %v1193 = vadd.f32 0.0, %v1192
          %1194 = vdwg.mxu0
          %v1195 = vadd.f32 %v978, %v1120
          %v1196 = vadd.f32 %v980, %v1122
          %v1197 = vadd.f32 %v1049, %v1191
          %v1198 = vadd.f32 %v1051, %v1193
          %v1199 = vxor.u32 %v1195, 2147483648
          %v1200 = vmul.f32 %v1199, 1.442695
          %v1201 = vpow.pop %v1200
          %v1202 = vadd.f32 %v1201, 1.0
          %v1203 = vrcp.pop %v1202
          %v1204 = vmul.f32 1.0, %v1203
          %v1205 = vxor.u32 %v1196, 2147483648
          %v1206 = vmul.f32 %v1205, 1.442695
          %v1207 = vpow.pop %v1206
          %v1208 = vadd.f32 %v1207, 1.0
          %v1209 = vrcp.pop %v1208
          %v1210 = vmul.f32 1.0, %v1209
          %v1211 = vtanh.pop %v1197
          %v1212 = vxor.u32 %v1198, 2147483648
          %v1213 = vmul.f32 %v1212, 1.442695
          %v1214 = vpow.pop %v1213
          %v1215 = vadd.f32 %v1214, 1.0
          %v1216 = vrcp.pop %v1215
          %v1217 = vmul.f32 1.0, %v1216
          %v1218 = vmul.f32 %v1210, %v811
          %v1219 = vmul.f32 %v1204, %v1211
          %v1220 = vadd.f32 %v1218, %v1219
          %v1221 = vtanh.pop %v1220
          %v1222 = vmul.f32 %v1217, %v1221
          %s1223 = sadd.s32 %s334, 1
          %v1224 = vstv %s1223
          %vm1225 = vcmp.lt.s32.totalorder %v1224, %v346
          %v1226 = vsel %vm1225, 1, 0
          %1227 = vset.pattern.permute.xlu0 0
          %1228 = vperm.xlu0 %1227, %v1226
          %v1229 = vpop.permute.xlu0 %1228
          %vm1230 = vcmp.eq.s32.totalorder %v1229, 1
          %v1231 = vsel %vm1230, %v1222, %v810
          %v1232 = vsel %vm1230, %v1220, %v811
          %v1233 = vsel %vm1230, %v1222, 0.0
          %v1235 = vcombine.high %v1233, %v1233
          %v1237 = vunpack.c.l.s4 1966171168
          %v1238 = vunpack.c.0.s8 %v1237
          %v1239 = vlaneseq
          %v1240 = vshrl.u32 %v1239, 7
          %v1241 = vsub.s32 %v1238, %v1240
          %v1242 = vrot.slane %v1233, %v1241
          %v1244 = vunpack.c.l.s4 1966171168
          %v1245 = vunpack.c.0.s8 %v1244
          %v1246 = vlaneseq
          %v1247 = vshrl.u32 %v1246, 7
          %v1248 = vsub.s32 %v1245, %v1247
          %v1249 = vrot.slane %v1235, %v1248
          %v1250 = vcombine.high %v1242, %v1242
          %v1251 = vcombine.high %v1249, %v1249
          %v1253 = vunpack.c.l.s4 1966171168
          %v1254 = vunpack.c.0.s8 %v1253
          %v1255 = vlaneseq
          %v1256 = vshrl.u32 %v1255, 7
          %v1257 = vsub.s32 %v1254, %v1256
          %v1258 = vrot.slane %v1242, %v1257
          %v1260 = vunpack.c.l.s4 1966171168
          %v1261 = vunpack.c.0.s8 %v1260
          %v1262 = vlaneseq
          %v1263 = vshrl.u32 %v1262, 7
          %v1264 = vsub.s32 %v1261, %v1263
          %v1265 = vrot.slane %v1249, %v1264
          %v1267 = vunpack.c.l.s4 1966171168
          %v1268 = vunpack.c.0.s8 %v1267
          %v1269 = vlaneseq
          %v1270 = vshrl.u32 %v1269, 7
          %v1271 = vsub.s32 %v1268, %v1270
          %v1272 = vrot.slane %v1250, %v1271
          %v1274 = vunpack.c.l.s4 1966171168
          %v1275 = vunpack.c.0.s8 %v1274
          %v1276 = vlaneseq
          %v1277 = vshrl.u32 %v1276, 7
          %v1278 = vsub.s32 %v1275, %v1277
          %v1279 = vrot.slane %v1251, %v1278
          %v1280 = vcombine.high %v1258, %v1258
          %v1281 = vcombine.high %v1265, %v1265
          %v1282 = vcombine.high %v1272, %v1272
          %v1283 = vcombine.high %v1279, %v1279
          %1292 = vst [vmem:[%s331 + $0x1] sm:$0x1] %v1258
          %1293 = vst [vmem:[%s331 + $0x11] sm:$0x1] %v1272
          %1294 = vst [vmem:[%s331 + $0x21] sm:$0x1] %v1280
          %1295 = vst [vmem:[%s331 + $0x31] sm:$0x1] %v1282
          %1296 = vst [vmem:[%s331 + $0x41] sm:$0x1] %v1265
          %1297 = vst [vmem:[%s331 + $0x51] sm:$0x1] %v1279
          %1298 = vst [vmem:[%s331 + $0x61] sm:$0x1] %v1281
          %1299 = vst [vmem:[%s331 + $0x71] sm:$0x1] %v1283
          %v1300 = vld [vmem:[%s319 + $0x2] sm:$0x1]
          %v1301 = vld [vmem:[%s319 + $0x12] sm:$0x1]
          %v1302 = vld [vmem:[%s319 + $0x22] sm:$0x1]
          %v1303 = vld [vmem:[%s319 + $0x32] sm:$0x1]
          %v1304 = vld [vmem:[%s319 + $0x42] sm:$0x1]
          %v1305 = vld [vmem:[%s319 + $0x52] sm:$0x1]
          %v1306 = vld [vmem:[%s319 + $0x62] sm:$0x1]
          %v1307 = vld [vmem:[%s319 + $0x72] sm:$0x1]
          %v1316 = vrot.slane %v1301, 7
          %v1317 = vsel %vm468, %v1316, %v1300
          %v1318 = vrot.slane %v1302, 6
          %v1319 = vsel %vm471, %v1318, %v1317
          %v1320 = vrot.slane %v1303, 5
          %v1321 = vsel %vm474, %v1320, %v1319
          %v1322 = vrot.slane %v1304, 4
          %v1323 = vsel %vm477, %v1322, %v1321
          %v1324 = vrot.slane %v1305, 3
          %v1325 = vsel %vm480, %v1324, %v1323
          %v1326 = vrot.slane %v1306, 2
          %v1327 = vsel %vm483, %v1326, %v1325
          %v1328 = vrot.slane %v1307, 1
          %v1329 = vsel %vm486, %v1328, %v1327
          %v1330 = vsel %vm488, %v1329, 0
          %1332 = vmatprep.subr.mxu0 0.0
          %1333 = vmatpush1.msra.mxu0 0.0
          %1334 = vmatprep.subr.mxu0 0.0
          %1335 = vmatpush1.msra.mxu0 0.0
          %1336 = vmatprep.subr.mxu0 0.0
          %1337 = vmatpush1.msra.mxu0 0.0
          %1338 = vmatprep.subr.mxu0 0.0
          %1339 = vmatpush1.msra.mxu0 0.0
          %1340 = vmatprep.subr.mxu0 0.0
          %1341 = vmatpush1.msra.mxu0 0.0
          %1342 = vmatprep.subr.mxu0 0.0
          %1343 = vmatpush1.msra.mxu0 0.0
          %1344 = vmatprep.subr.mxu0 0.0
          %1345 = vmatpush1.msra.mxu0 0.0
          %1346 = vmatprep.subr.mxu0 0.0
          %1347 = vmatpush1.msra.mxu0 0.0
          %1348 = vmatprep.subr.mxu0 0.0
          %1349 = vmatpush1.msra.mxu0 0.0
          %1350 = vmatprep.subr.mxu0 0.0
          %1351 = vmatpush1.msra.mxu0 0.0
          %1352 = vmatprep.subr.mxu0 0.0
          %1353 = vmatpush1.msra.mxu0 0.0
          %1354 = vmatprep.subr.mxu0 0.0
          %1355 = vmatpush1.msra.mxu0 0.0
          %1356 = vmatprep.subr.mxu0 %v360
          %1357 = vmatpush1.msra.mxu0 %v359
          %1358 = vmatprep.subr.mxu0 %v356
          %1359 = vmatpush1.msra.mxu0 %v355
          %1360 = vmatprep.subr.mxu0 %v352
          %1361 = vmatpush1.msra.mxu0 %v351
          %1362 = vmatprep.subr.mxu0 %v348
          %1363 = vmatpush1.msra.mxu0 %v347
          %1364 = vmatprep.subr.mxu0 0.0
          %1365 = vmatpush2.msra.mxu0 0.0
          %1366 = vmatprep.subr.mxu0 0.0
          %1367 = vmatpush2.msra.mxu0 0.0
          %1368 = vmatprep.subr.mxu0 0.0
          %1369 = vmatpush2.msra.mxu0 0.0
          %1370 = vmatprep.subr.mxu0 0.0
          %1371 = vmatpush2.msra.mxu0 0.0
          %1372 = vmatprep.subr.mxu0 0.0
          %1373 = vmatpush2.msra.mxu0 0.0
          %1374 = vmatprep.subr.mxu0 0.0
          %1375 = vmatpush2.msra.mxu0 0.0
          %1376 = vmatprep.subr.mxu0 0.0
          %1377 = vmatpush2.msra.mxu0 0.0
          %1378 = vmatprep.subr.mxu0 0.0
          %1379 = vmatpush2.msra.mxu0 0.0
          %1380 = vmatprep.subr.mxu0 0.0
          %1381 = vmatpush2.msra.mxu0 0.0
          %1382 = vmatprep.subr.mxu0 0.0
          %1383 = vmatpush2.msra.mxu0 0.0
          %1384 = vmatprep.subr.mxu0 0.0
          %1385 = vmatpush2.msra.mxu0 0.0
          %1386 = vmatprep.subr.mxu0 0.0
          %1387 = vmatpush2.msra.mxu0 0.0
          %1388 = vmatprep.subr.mxu0 0.0
          %1389 = vmatpush2.msra.mxu0 0.0
          %1390 = vmatprep.subr.mxu0 0.0
          %1391 = vmatpush2.msra.mxu0 0.0
          %1392 = vmatprep.subr.mxu0 0.0
          %1393 = vmatpush2.msra.mxu0 0.0
          %1394 = vmatprep.subr.mxu0 0.0
          %1395 = vmatpush2.msra.mxu0 0.0
          %1396 = vmatprep.mubr.f32.mxu0 0.0
          %1397 = vmatmul.mubr.f32.gmra.mxu0 %v1330
          %v1398 = vpop.f32.mrf.mxu0
          %v1399 = vadd.f32 %v442, %v1398
          %v1400 = vpop.f32.mrf.mxu0
          %v1401 = vadd.f32 %v446, %v1400
          %1402 = vdwg.mxu0
          %1403 = vmatprep.subr.mxu0 0.0
          %1404 = vmatpush1.msra.mxu0 0.0
          %1405 = vmatprep.subr.mxu0 0.0
          %1406 = vmatpush1.msra.mxu0 0.0
          %1407 = vmatprep.subr.mxu0 0.0
          %1408 = vmatpush1.msra.mxu0 0.0
          %1409 = vmatprep.subr.mxu0 0.0
          %1410 = vmatpush1.msra.mxu0 0.0
          %1411 = vmatprep.subr.mxu0 0.0
          %1412 = vmatpush1.msra.mxu0 0.0
          %1413 = vmatprep.subr.mxu0 0.0
          %1414 = vmatpush1.msra.mxu0 0.0
          %1415 = vmatprep.subr.mxu0 0.0
          %1416 = vmatpush1.msra.mxu0 0.0
          %1417 = vmatprep.subr.mxu0 0.0
          %1418 = vmatpush1.msra.mxu0 0.0
          %1419 = vmatprep.subr.mxu0 0.0
          %1420 = vmatpush1.msra.mxu0 0.0
          %1421 = vmatprep.subr.mxu0 0.0
          %1422 = vmatpush1.msra.mxu0 0.0
          %1423 = vmatprep.subr.mxu0 0.0
          %1424 = vmatpush1.msra.mxu0 0.0
          %1425 = vmatprep.subr.mxu0 0.0
          %1426 = vmatpush1.msra.mxu0 0.0
          %1427 = vmatprep.subr.mxu0 %v362
          %1428 = vmatpush1.msra.mxu0 %v361
          %1429 = vmatprep.subr.mxu0 %v358
          %1430 = vmatpush1.msra.mxu0 %v357
          %1431 = vmatprep.subr.mxu0 %v354
          %1432 = vmatpush1.msra.mxu0 %v353
          %1433 = vmatprep.subr.mxu0 %v350
          %1434 = vmatpush1.msra.mxu0 %v349
          %1435 = vmatprep.subr.mxu0 0.0
          %1436 = vmatpush2.msra.mxu0 0.0
          %1437 = vmatprep.subr.mxu0 0.0
          %1438 = vmatpush2.msra.mxu0 0.0
          %1439 = vmatprep.subr.mxu0 0.0
          %1440 = vmatpush2.msra.mxu0 0.0
          %1441 = vmatprep.subr.mxu0 0.0
          %1442 = vmatpush2.msra.mxu0 0.0
          %1443 = vmatprep.subr.mxu0 0.0
          %1444 = vmatpush2.msra.mxu0 0.0
          %1445 = vmatprep.subr.mxu0 0.0
          %1446 = vmatpush2.msra.mxu0 0.0
          %1447 = vmatprep.subr.mxu0 0.0
          %1448 = vmatpush2.msra.mxu0 0.0
          %1449 = vmatprep.subr.mxu0 0.0
          %1450 = vmatpush2.msra.mxu0 0.0
          %1451 = vmatprep.subr.mxu0 0.0
          %1452 = vmatpush2.msra.mxu0 0.0
          %1453 = vmatprep.subr.mxu0 0.0
          %1454 = vmatpush2.msra.mxu0 0.0
          %1455 = vmatprep.subr.mxu0 0.0
          %1456 = vmatpush2.msra.mxu0 0.0
          %1457 = vmatprep.subr.mxu0 0.0
          %1458 = vmatpush2.msra.mxu0 0.0
          %1459 = vmatprep.subr.mxu0 0.0
          %1460 = vmatpush2.msra.mxu0 0.0
          %1461 = vmatprep.subr.mxu0 0.0
          %1462 = vmatpush2.msra.mxu0 0.0
          %1463 = vmatprep.subr.mxu0 0.0
          %1464 = vmatpush2.msra.mxu0 0.0
          %1465 = vmatprep.subr.mxu0 0.0
          %1466 = vmatpush2.msra.mxu0 0.0
          %1467 = vmatprep.mubr.f32.mxu0 0.0
          %1468 = vmatmul.mubr.f32.gmra.mxu0 %v1330
          %v1469 = vpop.f32.mrf.mxu0
          %v1470 = vadd.f32 %v450, %v1469
          %v1471 = vpop.f32.mrf.mxu0
          %v1472 = vadd.f32 %v454, %v1471
          %1473 = vdwg.mxu0
          %1474 = vmatprep.subr.mxu0 %v424
          %1475 = vmatpush1.msra.mxu0 %v423
          %1476 = vmatprep.subr.mxu0 %v420
          %1477 = vmatpush1.msra.mxu0 %v419
          %1478 = vmatprep.subr.mxu0 %v416
          %1479 = vmatpush1.msra.mxu0 %v415
          %1480 = vmatprep.subr.mxu0 %v412
          %1481 = vmatpush1.msra.mxu0 %v411
          %1482 = vmatprep.subr.mxu0 %v408
          %1483 = vmatpush1.msra.mxu0 %v407
          %1484 = vmatprep.subr.mxu0 %v404
          %1485 = vmatpush1.msra.mxu0 %v403
          %1486 = vmatprep.subr.mxu0 %v400
          %1487 = vmatpush1.msra.mxu0 %v399
          %1488 = vmatprep.subr.mxu0 %v396
          %1489 = vmatpush1.msra.mxu0 %v395
          %1490 = vmatprep.subr.mxu0 %v392
          %1491 = vmatpush1.msra.mxu0 %v391
          %1492 = vmatprep.subr.mxu0 %v388
          %1493 = vmatpush1.msra.mxu0 %v387
          %1494 = vmatprep.subr.mxu0 %v384
          %1495 = vmatpush1.msra.mxu0 %v383
          %1496 = vmatprep.subr.mxu0 %v380
          %1497 = vmatpush1.msra.mxu0 %v379
          %1498 = vmatprep.subr.mxu0 %v376
          %1499 = vmatpush1.msra.mxu0 %v375
          %1500 = vmatprep.subr.mxu0 %v372
          %1501 = vmatpush1.msra.mxu0 %v371
          %1502 = vmatprep.subr.mxu0 %v368
          %1503 = vmatpush1.msra.mxu0 %v367
          %1504 = vmatprep.subr.mxu0 %v364
          %1505 = vmatpush1.msra.mxu0 %v363
          %1506 = vmatprep.subr.mxu0 0.0
          %1507 = vmatpush2.msra.mxu0 0.0
          %1508 = vmatprep.subr.mxu0 0.0
          %1509 = vmatpush2.msra.mxu0 0.0
          %1510 = vmatprep.subr.mxu0 0.0
          %1511 = vmatpush2.msra.mxu0 0.0
          %1512 = vmatprep.subr.mxu0 0.0
          %1513 = vmatpush2.msra.mxu0 0.0
          %1514 = vmatprep.subr.mxu0 0.0
          %1515 = vmatpush2.msra.mxu0 0.0
          %1516 = vmatprep.subr.mxu0 0.0
          %1517 = vmatpush2.msra.mxu0 0.0
          %1518 = vmatprep.subr.mxu0 0.0
          %1519 = vmatpush2.msra.mxu0 0.0
          %1520 = vmatprep.subr.mxu0 0.0
          %1521 = vmatpush2.msra.mxu0 0.0
          %1522 = vmatprep.subr.mxu0 0.0
          %1523 = vmatpush2.msra.mxu0 0.0
          %1524 = vmatprep.subr.mxu0 0.0
          %1525 = vmatpush2.msra.mxu0 0.0
          %1526 = vmatprep.subr.mxu0 0.0
          %1527 = vmatpush2.msra.mxu0 0.0
          %1528 = vmatprep.subr.mxu0 0.0
          %1529 = vmatpush2.msra.mxu0 0.0
          %1530 = vmatprep.subr.mxu0 0.0
          %1531 = vmatpush2.msra.mxu0 0.0
          %1532 = vmatprep.subr.mxu0 0.0
          %1533 = vmatpush2.msra.mxu0 0.0
          %1534 = vmatprep.subr.mxu0 0.0
          %1535 = vmatpush2.msra.mxu0 0.0
          %1536 = vmatprep.subr.mxu0 0.0
          %1537 = vmatpush2.msra.mxu0 0.0
          %1538 = vmatprep.mubr.f32.mxu0 0.0
          %1539 = vmatmul.mubr.f32.gmra.mxu0 %v1231
          %v1540 = vpop.f32.mrf.mxu0
          %v1541 = vadd.f32 0.0, %v1540
          %v1542 = vpop.f32.mrf.mxu0
          %v1543 = vadd.f32 0.0, %v1542
          %1544 = vdwg.mxu0
          %1545 = vmatprep.subr.mxu0 %v426
          %1546 = vmatpush1.msra.mxu0 %v425
          %1547 = vmatprep.subr.mxu0 %v422
          %1548 = vmatpush1.msra.mxu0 %v421
          %1549 = vmatprep.subr.mxu0 %v418
          %1550 = vmatpush1.msra.mxu0 %v417
          %1551 = vmatprep.subr.mxu0 %v414
          %1552 = vmatpush1.msra.mxu0 %v413
          %1553 = vmatprep.subr.mxu0 %v410
          %1554 = vmatpush1.msra.mxu0 %v409
          %1555 = vmatprep.subr.mxu0 %v406
          %1556 = vmatpush1.msra.mxu0 %v405
          %1557 = vmatprep.subr.mxu0 %v402
          %1558 = vmatpush1.msra.mxu0 %v401
          %1559 = vmatprep.subr.mxu0 %v398
          %1560 = vmatpush1.msra.mxu0 %v397
          %1561 = vmatprep.subr.mxu0 %v394
          %1562 = vmatpush1.msra.mxu0 %v393
          %1563 = vmatprep.subr.mxu0 %v390
          %1564 = vmatpush1.msra.mxu0 %v389
          %1565 = vmatprep.subr.mxu0 %v386
          %1566 = vmatpush1.msra.mxu0 %v385
          %1567 = vmatprep.subr.mxu0 %v382
          %1568 = vmatpush1.msra.mxu0 %v381
          %1569 = vmatprep.subr.mxu0 %v378
          %1570 = vmatpush1.msra.mxu0 %v377
          %1571 = vmatprep.subr.mxu0 %v374
          %1572 = vmatpush1.msra.mxu0 %v373
          %1573 = vmatprep.subr.mxu0 %v370
          %1574 = vmatpush1.msra.mxu0 %v369
          %1575 = vmatprep.subr.mxu0 %v366
          %1576 = vmatpush1.msra.mxu0 %v365
          %1577 = vmatprep.subr.mxu0 0.0
          %1578 = vmatpush2.msra.mxu0 0.0
          %1579 = vmatprep.subr.mxu0 0.0
          %1580 = vmatpush2.msra.mxu0 0.0
          %1581 = vmatprep.subr.mxu0 0.0
          %1582 = vmatpush2.msra.mxu0 0.0
          %1583 = vmatprep.subr.mxu0 0.0
          %1584 = vmatpush2.msra.mxu0 0.0
          %1585 = vmatprep.subr.mxu0 0.0
          %1586 = vmatpush2.msra.mxu0 0.0
          %1587 = vmatprep.subr.mxu0 0.0
          %1588 = vmatpush2.msra.mxu0 0.0
          %1589 = vmatprep.subr.mxu0 0.0
          %1590 = vmatpush2.msra.mxu0 0.0
          %1591 = vmatprep.subr.mxu0 0.0
          %1592 = vmatpush2.msra.mxu0 0.0
          %1593 = vmatprep.subr.mxu0 0.0
          %1594 = vmatpush2.msra.mxu0 0.0
          %1595 = vmatprep.subr.mxu0 0.0
          %1596 = vmatpush2.msra.mxu0 0.0
          %1597 = vmatprep.subr.mxu0 0.0
          %1598 = vmatpush2.msra.mxu0 0.0
          %1599 = vmatprep.subr.mxu0 0.0
          %1600 = vmatpush2.msra.mxu0 0.0
          %1601 = vmatprep.subr.mxu0 0.0
          %1602 = vmatpush2.msra.mxu0 0.0
          %1603 = vmatprep.subr.mxu0 0.0
          %1604 = vmatpush2.msra.mxu0 0.0
          %1605 = vmatprep.subr.mxu0 0.0
          %1606 = vmatpush2.msra.mxu0 0.0
          %1607 = vmatprep.subr.mxu0 0.0
          %1608 = vmatpush2.msra.mxu0 0.0
          %1609 = vmatprep.mubr.f32.mxu0 0.0
          %1610 = vmatmul.mubr.f32.gmra.mxu0 %v1231
          %v1611 = vpop.f32.mrf.mxu0
          %v1612 = vadd.f32 0.0, %v1611
          %v1613 = vpop.f32.mrf.mxu0
          %v1614 = vadd.f32 0.0, %v1613
          %1615 = vdwg.mxu0
          %v1616 = vadd.f32 %v1399, %v1541
          %v1617 = vadd.f32 %v1401, %v1543
          %v1618 = vadd.f32 %v1470, %v1612
          %v1619 = vadd.f32 %v1472, %v1614
          %v1620 = vxor.u32 %v1616, 2147483648
          %v1621 = vmul.f32 %v1620, 1.442695
          %v1622 = vpow.pop %v1621
          %v1623 = vadd.f32 %v1622, 1.0
          %v1624 = vrcp.pop %v1623
          %v1625 = vmul.f32 1.0, %v1624
          %v1626 = vxor.u32 %v1617, 2147483648
          %v1627 = vmul.f32 %v1626, 1.442695
          %v1628 = vpow.pop %v1627
          %v1629 = vadd.f32 %v1628, 1.0
          %v1630 = vrcp.pop %v1629
          %v1631 = vmul.f32 1.0, %v1630
          %v1632 = vtanh.pop %v1618
          %v1633 = vxor.u32 %v1619, 2147483648
          %v1634 = vmul.f32 %v1633, 1.442695
          %v1635 = vpow.pop %v1634
          %v1636 = vadd.f32 %v1635, 1.0
          %v1637 = vrcp.pop %v1636
          %v1638 = vmul.f32 1.0, %v1637
          %v1639 = vmul.f32 %v1631, %v1232
          %v1640 = vmul.f32 %v1625, %v1632
          %v1641 = vadd.f32 %v1639, %v1640
          %v1642 = vtanh.pop %v1641
          %v1643 = vmul.f32 %v1638, %v1642
          %s1644 = sadd.s32 %s334, 2
          %v1645 = vstv %s1644
          %vm1646 = vcmp.lt.s32.totalorder %v1645, %v346
          %v1647 = vsel %vm1646, 1, 0
          %1648 = vset.pattern.permute.xlu0 0
          %1649 = vperm.xlu0 %1648, %v1647
          %v1650 = vpop.permute.xlu0 %1649
          %vm1651 = vcmp.eq.s32.totalorder %v1650, 1
          %v1652 = vsel %vm1651, %v1643, %v1231
          %v1653 = vsel %vm1651, %v1641, %v1232
          %v1654 = vsel %vm1651, %v1643, 0.0
          %v1656 = vcombine.high %v1654, %v1654
          %v1658 = vunpack.c.l.s4 1966171168
          %v1659 = vunpack.c.0.s8 %v1658
          %v1660 = vlaneseq
          %v1661 = vshrl.u32 %v1660, 7
          %v1662 = vsub.s32 %v1659, %v1661
          %v1663 = vrot.slane %v1654, %v1662
          %v1665 = vunpack.c.l.s4 1966171168
          %v1666 = vunpack.c.0.s8 %v1665
          %v1667 = vlaneseq
          %v1668 = vshrl.u32 %v1667, 7
          %v1669 = vsub.s32 %v1666, %v1668
          %v1670 = vrot.slane %v1656, %v1669
          %v1671 = vcombine.high %v1663, %v1663
          %v1672 = vcombine.high %v1670, %v1670
          %v1674 = vunpack.c.l.s4 1966171168
          %v1675 = vunpack.c.0.s8 %v1674
          %v1676 = vlaneseq
          %v1677 = vshrl.u32 %v1676, 7
          %v1678 = vsub.s32 %v1675, %v1677
          %v1679 = vrot.slane %v1663, %v1678
          %v1681 = vunpack.c.l.s4 1966171168
          %v1682 = vunpack.c.0.s8 %v1681
          %v1683 = vlaneseq
          %v1684 = vshrl.u32 %v1683, 7
          %v1685 = vsub.s32 %v1682, %v1684
          %v1686 = vrot.slane %v1670, %v1685
          %v1688 = vunpack.c.l.s4 1966171168
          %v1689 = vunpack.c.0.s8 %v1688
          %v1690 = vlaneseq
          %v1691 = vshrl.u32 %v1690, 7
          %v1692 = vsub.s32 %v1689, %v1691
          %v1693 = vrot.slane %v1671, %v1692
          %v1695 = vunpack.c.l.s4 1966171168
          %v1696 = vunpack.c.0.s8 %v1695
          %v1697 = vlaneseq
          %v1698 = vshrl.u32 %v1697, 7
          %v1699 = vsub.s32 %v1696, %v1698
          %v1700 = vrot.slane %v1672, %v1699
          %v1701 = vcombine.high %v1679, %v1679
          %v1702 = vcombine.high %v1686, %v1686
          %v1703 = vcombine.high %v1693, %v1693
          %v1704 = vcombine.high %v1700, %v1700
          %1713 = vst [vmem:[%s331 + $0x2] sm:$0x1] %v1679
          %1714 = vst [vmem:[%s331 + $0x12] sm:$0x1] %v1693
          %1715 = vst [vmem:[%s331 + $0x22] sm:$0x1] %v1701
          %1716 = vst [vmem:[%s331 + $0x32] sm:$0x1] %v1703
          %1717 = vst [vmem:[%s331 + $0x42] sm:$0x1] %v1686
          %1718 = vst [vmem:[%s331 + $0x52] sm:$0x1] %v1700
          %1719 = vst [vmem:[%s331 + $0x62] sm:$0x1] %v1702
          %1720 = vst [vmem:[%s331 + $0x72] sm:$0x1] %v1704
          %v1721 = vld [vmem:[%s319 + $0x3] sm:$0x1]
          %v1722 = vld [vmem:[%s319 + $0x13] sm:$0x1]
          %v1723 = vld [vmem:[%s319 + $0x23] sm:$0x1]
          %v1724 = vld [vmem:[%s319 + $0x33] sm:$0x1]
          %v1725 = vld [vmem:[%s319 + $0x43] sm:$0x1]
          %v1726 = vld [vmem:[%s319 + $0x53] sm:$0x1]
          %v1727 = vld [vmem:[%s319 + $0x63] sm:$0x1]
          %v1728 = vld [vmem:[%s319 + $0x73] sm:$0x1]
          %v1737 = vrot.slane %v1722, 7
          %v1738 = vsel %vm468, %v1737, %v1721
          %v1739 = vrot.slane %v1723, 6
          %v1740 = vsel %vm471, %v1739, %v1738
          %v1741 = vrot.slane %v1724, 5
          %v1742 = vsel %vm474, %v1741, %v1740
          %v1743 = vrot.slane %v1725, 4
          %v1744 = vsel %vm477, %v1743, %v1742
          %v1745 = vrot.slane %v1726, 3
          %v1746 = vsel %vm480, %v1745, %v1744
          %v1747 = vrot.slane %v1727, 2
          %v1748 = vsel %vm483, %v1747, %v1746
          %v1749 = vrot.slane %v1728, 1
          %v1750 = vsel %vm486, %v1749, %v1748
          %v1751 = vsel %vm488, %v1750, 0
          %1753 = vmatprep.subr.mxu0 0.0
          %1754 = vmatpush1.msra.mxu0 0.0
          %1755 = vmatprep.subr.mxu0 0.0
          %1756 = vmatpush1.msra.mxu0 0.0
          %1757 = vmatprep.subr.mxu0 0.0
          %1758 = vmatpush1.msra.mxu0 0.0
          %1759 = vmatprep.subr.mxu0 0.0
          %1760 = vmatpush1.msra.mxu0 0.0
          %1761 = vmatprep.subr.mxu0 0.0
          %1762 = vmatpush1.msra.mxu0 0.0
          %1763 = vmatprep.subr.mxu0 0.0
          %1764 = vmatpush1.msra.mxu0 0.0
          %1765 = vmatprep.subr.mxu0 0.0
          %1766 = vmatpush1.msra.mxu0 0.0
          %1767 = vmatprep.subr.mxu0 0.0
          %1768 = vmatpush1.msra.mxu0 0.0
          %1769 = vmatprep.subr.mxu0 0.0
          %1770 = vmatpush1.msra.mxu0 0.0
          %1771 = vmatprep.subr.mxu0 0.0
          %1772 = vmatpush1.msra.mxu0 0.0
          %1773 = vmatprep.subr.mxu0 0.0
          %1774 = vmatpush1.msra.mxu0 0.0
          %1775 = vmatprep.subr.mxu0 0.0
          %1776 = vmatpush1.msra.mxu0 0.0
          %1777 = vmatprep.subr.mxu0 %v360
          %1778 = vmatpush1.msra.mxu0 %v359
          %1779 = vmatprep.subr.mxu0 %v356
          %1780 = vmatpush1.msra.mxu0 %v355
          %1781 = vmatprep.subr.mxu0 %v352
          %1782 = vmatpush1.msra.mxu0 %v351
          %1783 = vmatprep.subr.mxu0 %v348
          %1784 = vmatpush1.msra.mxu0 %v347
          %1785 = vmatprep.subr.mxu0 0.0
          %1786 = vmatpush2.msra.mxu0 0.0
          %1787 = vmatprep.subr.mxu0 0.0
          %1788 = vmatpush2.msra.mxu0 0.0
          %1789 = vmatprep.subr.mxu0 0.0
          %1790 = vmatpush2.msra.mxu0 0.0
          %1791 = vmatprep.subr.mxu0 0.0
          %1792 = vmatpush2.msra.mxu0 0.0
          %1793 = vmatprep.subr.mxu0 0.0
          %1794 = vmatpush2.msra.mxu0 0.0
          %1795 = vmatprep.subr.mxu0 0.0
          %1796 = vmatpush2.msra.mxu0 0.0
          %1797 = vmatprep.subr.mxu0 0.0
          %1798 = vmatpush2.msra.mxu0 0.0
          %1799 = vmatprep.subr.mxu0 0.0
          %1800 = vmatpush2.msra.mxu0 0.0
          %1801 = vmatprep.subr.mxu0 0.0
          %1802 = vmatpush2.msra.mxu0 0.0
          %1803 = vmatprep.subr.mxu0 0.0
          %1804 = vmatpush2.msra.mxu0 0.0
          %1805 = vmatprep.subr.mxu0 0.0
          %1806 = vmatpush2.msra.mxu0 0.0
          %1807 = vmatprep.subr.mxu0 0.0
          %1808 = vmatpush2.msra.mxu0 0.0
          %1809 = vmatprep.subr.mxu0 0.0
          %1810 = vmatpush2.msra.mxu0 0.0
          %1811 = vmatprep.subr.mxu0 0.0
          %1812 = vmatpush2.msra.mxu0 0.0
          %1813 = vmatprep.subr.mxu0 0.0
          %1814 = vmatpush2.msra.mxu0 0.0
          %1815 = vmatprep.subr.mxu0 0.0
          %1816 = vmatpush2.msra.mxu0 0.0
          %1817 = vmatprep.mubr.f32.mxu0 0.0
          %1818 = vmatmul.mubr.f32.gmra.mxu0 %v1751
          %v1819 = vpop.f32.mrf.mxu0
          %v1820 = vadd.f32 %v442, %v1819
          %v1821 = vpop.f32.mrf.mxu0
          %v1822 = vadd.f32 %v446, %v1821
          %1823 = vdwg.mxu0
          %1824 = vmatprep.subr.mxu0 0.0
          %1825 = vmatpush1.msra.mxu0 0.0
          %1826 = vmatprep.subr.mxu0 0.0
          %1827 = vmatpush1.msra.mxu0 0.0
          %1828 = vmatprep.subr.mxu0 0.0
          %1829 = vmatpush1.msra.mxu0 0.0
          %1830 = vmatprep.subr.mxu0 0.0
          %1831 = vmatpush1.msra.mxu0 0.0
          %1832 = vmatprep.subr.mxu0 0.0
          %1833 = vmatpush1.msra.mxu0 0.0
          %1834 = vmatprep.subr.mxu0 0.0
          %1835 = vmatpush1.msra.mxu0 0.0
          %1836 = vmatprep.subr.mxu0 0.0
          %1837 = vmatpush1.msra.mxu0 0.0
          %1838 = vmatprep.subr.mxu0 0.0
          %1839 = vmatpush1.msra.mxu0 0.0
          %1840 = vmatprep.subr.mxu0 0.0
          %1841 = vmatpush1.msra.mxu0 0.0
          %1842 = vmatprep.subr.mxu0 0.0
          %1843 = vmatpush1.msra.mxu0 0.0
          %1844 = vmatprep.subr.mxu0 0.0
          %1845 = vmatpush1.msra.mxu0 0.0
          %1846 = vmatprep.subr.mxu0 0.0
          %1847 = vmatpush1.msra.mxu0 0.0
          %1848 = vmatprep.subr.mxu0 %v362
          %1849 = vmatpush1.msra.mxu0 %v361
          %1850 = vmatprep.subr.mxu0 %v358
          %1851 = vmatpush1.msra.mxu0 %v357
          %1852 = vmatprep.subr.mxu0 %v354
          %1853 = vmatpush1.msra.mxu0 %v353
          %1854 = vmatprep.subr.mxu0 %v350
          %1855 = vmatpush1.msra.mxu0 %v349
          %1856 = vmatprep.subr.mxu0 0.0
          %1857 = vmatpush2.msra.mxu0 0.0
          %1858 = vmatprep.subr.mxu0 0.0
          %1859 = vmatpush2.msra.mxu0 0.0
          %1860 = vmatprep.subr.mxu0 0.0
          %1861 = vmatpush2.msra.mxu0 0.0
          %1862 = vmatprep.subr.mxu0 0.0
          %1863 = vmatpush2.msra.mxu0 0.0
          %1864 = vmatprep.subr.mxu0 0.0
          %1865 = vmatpush2.msra.mxu0 0.0
          %1866 = vmatprep.subr.mxu0 0.0
          %1867 = vmatpush2.msra.mxu0 0.0
          %1868 = vmatprep.subr.mxu0 0.0
          %1869 = vmatpush2.msra.mxu0 0.0
          %1870 = vmatprep.subr.mxu0 0.0
          %1871 = vmatpush2.msra.mxu0 0.0
          %1872 = vmatprep.subr.mxu0 0.0
          %1873 = vmatpush2.msra.mxu0 0.0
          %1874 = vmatprep.subr.mxu0 0.0
          %1875 = vmatpush2.msra.mxu0 0.0
          %1876 = vmatprep.subr.mxu0 0.0
          %1877 = vmatpush2.msra.mxu0 0.0
          %1878 = vmatprep.subr.mxu0 0.0
          %1879 = vmatpush2.msra.mxu0 0.0
          %1880 = vmatprep.subr.mxu0 0.0
          %1881 = vmatpush2.msra.mxu0 0.0
          %1882 = vmatprep.subr.mxu0 0.0
          %1883 = vmatpush2.msra.mxu0 0.0
          %1884 = vmatprep.subr.mxu0 0.0
          %1885 = vmatpush2.msra.mxu0 0.0
          %1886 = vmatprep.subr.mxu0 0.0
          %1887 = vmatpush2.msra.mxu0 0.0
          %1888 = vmatprep.mubr.f32.mxu0 0.0
          %1889 = vmatmul.mubr.f32.gmra.mxu0 %v1751
          %v1890 = vpop.f32.mrf.mxu0
          %v1891 = vadd.f32 %v450, %v1890
          %v1892 = vpop.f32.mrf.mxu0
          %v1893 = vadd.f32 %v454, %v1892
          %1894 = vdwg.mxu0
          %1895 = vmatprep.subr.mxu0 %v424
          %1896 = vmatpush1.msra.mxu0 %v423
          %1897 = vmatprep.subr.mxu0 %v420
          %1898 = vmatpush1.msra.mxu0 %v419
          %1899 = vmatprep.subr.mxu0 %v416
          %1900 = vmatpush1.msra.mxu0 %v415
          %1901 = vmatprep.subr.mxu0 %v412
          %1902 = vmatpush1.msra.mxu0 %v411
          %1903 = vmatprep.subr.mxu0 %v408
          %1904 = vmatpush1.msra.mxu0 %v407
          %1905 = vmatprep.subr.mxu0 %v404
          %1906 = vmatpush1.msra.mxu0 %v403
          %1907 = vmatprep.subr.mxu0 %v400
          %1908 = vmatpush1.msra.mxu0 %v399
          %1909 = vmatprep.subr.mxu0 %v396
          %1910 = vmatpush1.msra.mxu0 %v395
          %1911 = vmatprep.subr.mxu0 %v392
          %1912 = vmatpush1.msra.mxu0 %v391
          %1913 = vmatprep.subr.mxu0 %v388
          %1914 = vmatpush1.msra.mxu0 %v387
          %1915 = vmatprep.subr.mxu0 %v384
          %1916 = vmatpush1.msra.mxu0 %v383
          %1917 = vmatprep.subr.mxu0 %v380
          %1918 = vmatpush1.msra.mxu0 %v379
          %1919 = vmatprep.subr.mxu0 %v376
          %1920 = vmatpush1.msra.mxu0 %v375
          %1921 = vmatprep.subr.mxu0 %v372
          %1922 = vmatpush1.msra.mxu0 %v371
          %1923 = vmatprep.subr.mxu0 %v368
          %1924 = vmatpush1.msra.mxu0 %v367
          %1925 = vmatprep.subr.mxu0 %v364
          %1926 = vmatpush1.msra.mxu0 %v363
          %1927 = vmatprep.subr.mxu0 0.0
          %1928 = vmatpush2.msra.mxu0 0.0
          %1929 = vmatprep.subr.mxu0 0.0
          %1930 = vmatpush2.msra.mxu0 0.0
          %1931 = vmatprep.subr.mxu0 0.0
          %1932 = vmatpush2.msra.mxu0 0.0
          %1933 = vmatprep.subr.mxu0 0.0
          %1934 = vmatpush2.msra.mxu0 0.0
          %1935 = vmatprep.subr.mxu0 0.0
          %1936 = vmatpush2.msra.mxu0 0.0
          %1937 = vmatprep.subr.mxu0 0.0
          %1938 = vmatpush2.msra.mxu0 0.0
          %1939 = vmatprep.subr.mxu0 0.0
          %1940 = vmatpush2.msra.mxu0 0.0
          %1941 = vmatprep.subr.mxu0 0.0
          %1942 = vmatpush2.msra.mxu0 0.0
          %1943 = vmatprep.subr.mxu0 0.0
          %1944 = vmatpush2.msra.mxu0 0.0
          %1945 = vmatprep.subr.mxu0 0.0
          %1946 = vmatpush2.msra.mxu0 0.0
          %1947 = vmatprep.subr.mxu0 0.0
          %1948 = vmatpush2.msra.mxu0 0.0
          %1949 = vmatprep.subr.mxu0 0.0
          %1950 = vmatpush2.msra.mxu0 0.0
          %1951 = vmatprep.subr.mxu0 0.0
          %1952 = vmatpush2.msra.mxu0 0.0
          %1953 = vmatprep.subr.mxu0 0.0
          %1954 = vmatpush2.msra.mxu0 0.0
          %1955 = vmatprep.subr.mxu0 0.0
          %1956 = vmatpush2.msra.mxu0 0.0
          %1957 = vmatprep.subr.mxu0 0.0
          %1958 = vmatpush2.msra.mxu0 0.0
          %1959 = vmatprep.mubr.f32.mxu0 0.0
          %1960 = vmatmul.mubr.f32.gmra.mxu0 %v1652
          %v1961 = vpop.f32.mrf.mxu0
          %v1962 = vadd.f32 0.0, %v1961
          %v1963 = vpop.f32.mrf.mxu0
          %v1964 = vadd.f32 0.0, %v1963
          %1965 = vdwg.mxu0
          %1966 = vmatprep.subr.mxu0 %v426
          %1967 = vmatpush1.msra.mxu0 %v425
          %1968 = vmatprep.subr.mxu0 %v422
          %1969 = vmatpush1.msra.mxu0 %v421
          %1970 = vmatprep.subr.mxu0 %v418
          %1971 = vmatpush1.msra.mxu0 %v417
          %1972 = vmatprep.subr.mxu0 %v414
          %1973 = vmatpush1.msra.mxu0 %v413
          %1974 = vmatprep.subr.mxu0 %v410
          %1975 = vmatpush1.msra.mxu0 %v409
          %1976 = vmatprep.subr.mxu0 %v406
          %1977 = vmatpush1.msra.mxu0 %v405
          %1978 = vmatprep.subr.mxu0 %v402
          %1979 = vmatpush1.msra.mxu0 %v401
          %1980 = vmatprep.subr.mxu0 %v398
          %1981 = vmatpush1.msra.mxu0 %v397
          %1982 = vmatprep.subr.mxu0 %v394
          %1983 = vmatpush1.msra.mxu0 %v393
          %1984 = vmatprep.subr.mxu0 %v390
          %1985 = vmatpush1.msra.mxu0 %v389
          %1986 = vmatprep.subr.mxu0 %v386
          %1987 = vmatpush1.msra.mxu0 %v385
          %1988 = vmatprep.subr.mxu0 %v382
          %1989 = vmatpush1.msra.mxu0 %v381
          %1990 = vmatprep.subr.mxu0 %v378
          %1991 = vmatpush1.msra.mxu0 %v377
          %1992 = vmatprep.subr.mxu0 %v374
          %1993 = vmatpush1.msra.mxu0 %v373
          %1994 = vmatprep.subr.mxu0 %v370
          %1995 = vmatpush1.msra.mxu0 %v369
          %1996 = vmatprep.subr.mxu0 %v366
          %1997 = vmatpush1.msra.mxu0 %v365
          %1998 = vmatprep.subr.mxu0 0.0
          %1999 = vmatpush2.msra.mxu0 0.0
          %2000 = vmatprep.subr.mxu0 0.0
          %2001 = vmatpush2.msra.mxu0 0.0
          %2002 = vmatprep.subr.mxu0 0.0
          %2003 = vmatpush2.msra.mxu0 0.0
          %2004 = vmatprep.subr.mxu0 0.0
          %2005 = vmatpush2.msra.mxu0 0.0
          %2006 = vmatprep.subr.mxu0 0.0
          %2007 = vmatpush2.msra.mxu0 0.0
          %2008 = vmatprep.subr.mxu0 0.0
          %2009 = vmatpush2.msra.mxu0 0.0
          %2010 = vmatprep.subr.mxu0 0.0
          %2011 = vmatpush2.msra.mxu0 0.0
          %2012 = vmatprep.subr.mxu0 0.0
          %2013 = vmatpush2.msra.mxu0 0.0
          %2014 = vmatprep.subr.mxu0 0.0
          %2015 = vmatpush2.msra.mxu0 0.0
          %2016 = vmatprep.subr.mxu0 0.0
          %2017 = vmatpush2.msra.mxu0 0.0
          %2018 = vmatprep.subr.mxu0 0.0
          %2019 = vmatpush2.msra.mxu0 0.0
          %2020 = vmatprep.subr.mxu0 0.0
          %2021 = vmatpush2.msra.mxu0 0.0
          %2022 = vmatprep.subr.mxu0 0.0
          %2023 = vmatpush2.msra.mxu0 0.0
          %2024 = vmatprep.subr.mxu0 0.0
          %2025 = vmatpush2.msra.mxu0 0.0
          %2026 = vmatprep.subr.mxu0 0.0
          %2027 = vmatpush2.msra.mxu0 0.0
          %2028 = vmatprep.subr.mxu0 0.0
          %2029 = vmatpush2.msra.mxu0 0.0
          %2030 = vmatprep.mubr.f32.mxu0 0.0
          %2031 = vmatmul.mubr.f32.gmra.mxu0 %v1652
          %v2032 = vpop.f32.mrf.mxu0
          %v2033 = vadd.f32 0.0, %v2032
          %v2034 = vpop.f32.mrf.mxu0
          %v2035 = vadd.f32 0.0, %v2034
          %2036 = vdwg.mxu0
          %v2037 = vadd.f32 %v1820, %v1962
          %v2038 = vadd.f32 %v1822, %v1964
          %v2039 = vadd.f32 %v1891, %v2033
          %v2040 = vadd.f32 %v1893, %v2035
          %v2041 = vxor.u32 %v2037, 2147483648
          %v2042 = vmul.f32 %v2041, 1.442695
          %v2043 = vpow.pop %v2042
          %v2044 = vadd.f32 %v2043, 1.0
          %v2045 = vrcp.pop %v2044
          %v2046 = vmul.f32 1.0, %v2045
          %v2047 = vxor.u32 %v2038, 2147483648
          %v2048 = vmul.f32 %v2047, 1.442695
          %v2049 = vpow.pop %v2048
          %v2050 = vadd.f32 %v2049, 1.0
          %v2051 = vrcp.pop %v2050
          %v2052 = vmul.f32 1.0, %v2051
          %v2053 = vtanh.pop %v2039
          %v2054 = vxor.u32 %v2040, 2147483648
          %v2055 = vmul.f32 %v2054, 1.442695
          %v2056 = vpow.pop %v2055
          %v2057 = vadd.f32 %v2056, 1.0
          %v2058 = vrcp.pop %v2057
          %v2059 = vmul.f32 1.0, %v2058
          %v2060 = vmul.f32 %v2052, %v1653
          %v2061 = vmul.f32 %v2046, %v2053
          %v2062 = vadd.f32 %v2060, %v2061
          %v2063 = vtanh.pop %v2062
          %v2064 = vmul.f32 %v2059, %v2063
          %s2065 = sadd.s32 %s334, 3
          %v2066 = vstv %s2065
          %vm2067 = vcmp.lt.s32.totalorder %v2066, %v346
          %v2068 = vsel %vm2067, 1, 0
          %2069 = vset.pattern.permute.xlu0 0
          %2070 = vperm.xlu0 %2069, %v2068
          %v2071 = vpop.permute.xlu0 %2070
          %vm2072 = vcmp.eq.s32.totalorder %v2071, 1
          %v2073 = vsel %vm2072, %v2064, %v1652
          %v2074 = vsel %vm2072, %v2062, %v1653
          %v2075 = vsel %vm2072, %v2064, 0.0
          %v2077 = vcombine.high %v2075, %v2075
          %v2079 = vunpack.c.l.s4 1966171168
          %v2080 = vunpack.c.0.s8 %v2079
          %v2081 = vlaneseq
          %v2082 = vshrl.u32 %v2081, 7
          %v2083 = vsub.s32 %v2080, %v2082
          %v2084 = vrot.slane %v2075, %v2083
          %v2086 = vunpack.c.l.s4 1966171168
          %v2087 = vunpack.c.0.s8 %v2086
          %v2088 = vlaneseq
          %v2089 = vshrl.u32 %v2088, 7
          %v2090 = vsub.s32 %v2087, %v2089
          %v2091 = vrot.slane %v2077, %v2090
          %v2092 = vcombine.high %v2084, %v2084
          %v2093 = vcombine.high %v2091, %v2091
          %v2095 = vunpack.c.l.s4 1966171168
          %v2096 = vunpack.c.0.s8 %v2095
          %v2097 = vlaneseq
          %v2098 = vshrl.u32 %v2097, 7
          %v2099 = vsub.s32 %v2096, %v2098
          %v2100 = vrot.slane %v2084, %v2099
          %v2102 = vunpack.c.l.s4 1966171168
          %v2103 = vunpack.c.0.s8 %v2102
          %v2104 = vlaneseq
          %v2105 = vshrl.u32 %v2104, 7
          %v2106 = vsub.s32 %v2103, %v2105
          %v2107 = vrot.slane %v2091, %v2106
          %v2109 = vunpack.c.l.s4 1966171168
          %v2110 = vunpack.c.0.s8 %v2109
          %v2111 = vlaneseq
          %v2112 = vshrl.u32 %v2111, 7
          %v2113 = vsub.s32 %v2110, %v2112
          %v2114 = vrot.slane %v2092, %v2113
          %v2116 = vunpack.c.l.s4 1966171168
          %v2117 = vunpack.c.0.s8 %v2116
          %v2118 = vlaneseq
          %v2119 = vshrl.u32 %v2118, 7
          %v2120 = vsub.s32 %v2117, %v2119
          %v2121 = vrot.slane %v2093, %v2120
          %v2122 = vcombine.high %v2100, %v2100
          %v2123 = vcombine.high %v2107, %v2107
          %v2124 = vcombine.high %v2114, %v2114
          %v2125 = vcombine.high %v2121, %v2121
          %2134 = vst [vmem:[%s331 + $0x3] sm:$0x1] %v2100
          %2135 = vst [vmem:[%s331 + $0x13] sm:$0x1] %v2114
          %2136 = vst [vmem:[%s331 + $0x23] sm:$0x1] %v2122
          %2137 = vst [vmem:[%s331 + $0x33] sm:$0x1] %v2124
          %2138 = vst [vmem:[%s331 + $0x43] sm:$0x1] %v2107
          %2139 = vst [vmem:[%s331 + $0x53] sm:$0x1] %v2121
          %2140 = vst [vmem:[%s331 + $0x63] sm:$0x1] %v2123
          %2141 = vst [vmem:[%s331 + $0x73] sm:$0x1] %v2125
          %v2142 = vld [vmem:[%s319 + $0x4] sm:$0x1]
          %v2143 = vld [vmem:[%s319 + $0x14] sm:$0x1]
          %v2144 = vld [vmem:[%s319 + $0x24] sm:$0x1]
          %v2145 = vld [vmem:[%s319 + $0x34] sm:$0x1]
          %v2146 = vld [vmem:[%s319 + $0x44] sm:$0x1]
          %v2147 = vld [vmem:[%s319 + $0x54] sm:$0x1]
          %v2148 = vld [vmem:[%s319 + $0x64] sm:$0x1]
          %v2149 = vld [vmem:[%s319 + $0x74] sm:$0x1]
          %v2158 = vrot.slane %v2143, 7
          %v2159 = vsel %vm468, %v2158, %v2142
          %v2160 = vrot.slane %v2144, 6
          %v2161 = vsel %vm471, %v2160, %v2159
          %v2162 = vrot.slane %v2145, 5
          %v2163 = vsel %vm474, %v2162, %v2161
          %v2164 = vrot.slane %v2146, 4
          %v2165 = vsel %vm477, %v2164, %v2163
          %v2166 = vrot.slane %v2147, 3
          %v2167 = vsel %vm480, %v2166, %v2165
          %v2168 = vrot.slane %v2148, 2
          %v2169 = vsel %vm483, %v2168, %v2167
          %v2170 = vrot.slane %v2149, 1
          %v2171 = vsel %vm486, %v2170, %v2169
          %v2172 = vsel %vm488, %v2171, 0
          %2174 = vmatprep.subr.mxu0 0.0
          %2175 = vmatpush1.msra.mxu0 0.0
          %2176 = vmatprep.subr.mxu0 0.0
          %2177 = vmatpush1.msra.mxu0 0.0
          %2178 = vmatprep.subr.mxu0 0.0
          %2179 = vmatpush1.msra.mxu0 0.0
          %2180 = vmatprep.subr.mxu0 0.0
          %2181 = vmatpush1.msra.mxu0 0.0
          %2182 = vmatprep.subr.mxu0 0.0
          %2183 = vmatpush1.msra.mxu0 0.0
          %2184 = vmatprep.subr.mxu0 0.0
          %2185 = vmatpush1.msra.mxu0 0.0
          %2186 = vmatprep.subr.mxu0 0.0
          %2187 = vmatpush1.msra.mxu0 0.0
          %2188 = vmatprep.subr.mxu0 0.0
          %2189 = vmatpush1.msra.mxu0 0.0
          %2190 = vmatprep.subr.mxu0 0.0
          %2191 = vmatpush1.msra.mxu0 0.0
          %2192 = vmatprep.subr.mxu0 0.0
          %2193 = vmatpush1.msra.mxu0 0.0
          %2194 = vmatprep.subr.mxu0 0.0
          %2195 = vmatpush1.msra.mxu0 0.0
          %2196 = vmatprep.subr.mxu0 0.0
          %2197 = vmatpush1.msra.mxu0 0.0
          %2198 = vmatprep.subr.mxu0 %v360
          %2199 = vmatpush1.msra.mxu0 %v359
          %2200 = vmatprep.subr.mxu0 %v356
          %2201 = vmatpush1.msra.mxu0 %v355
          %2202 = vmatprep.subr.mxu0 %v352
          %2203 = vmatpush1.msra.mxu0 %v351
          %2204 = vmatprep.subr.mxu0 %v348
          %2205 = vmatpush1.msra.mxu0 %v347
          %2206 = vmatprep.subr.mxu0 0.0
          %2207 = vmatpush2.msra.mxu0 0.0
          %2208 = vmatprep.subr.mxu0 0.0
          %2209 = vmatpush2.msra.mxu0 0.0
          %2210 = vmatprep.subr.mxu0 0.0
          %2211 = vmatpush2.msra.mxu0 0.0
          %2212 = vmatprep.subr.mxu0 0.0
          %2213 = vmatpush2.msra.mxu0 0.0
          %2214 = vmatprep.subr.mxu0 0.0
          %2215 = vmatpush2.msra.mxu0 0.0
          %2216 = vmatprep.subr.mxu0 0.0
          %2217 = vmatpush2.msra.mxu0 0.0
          %2218 = vmatprep.subr.mxu0 0.0
          %2219 = vmatpush2.msra.mxu0 0.0
          %2220 = vmatprep.subr.mxu0 0.0
          %2221 = vmatpush2.msra.mxu0 0.0
          %2222 = vmatprep.subr.mxu0 0.0
          %2223 = vmatpush2.msra.mxu0 0.0
          %2224 = vmatprep.subr.mxu0 0.0
          %2225 = vmatpush2.msra.mxu0 0.0
          %2226 = vmatprep.subr.mxu0 0.0
          %2227 = vmatpush2.msra.mxu0 0.0
          %2228 = vmatprep.subr.mxu0 0.0
          %2229 = vmatpush2.msra.mxu0 0.0
          %2230 = vmatprep.subr.mxu0 0.0
          %2231 = vmatpush2.msra.mxu0 0.0
          %2232 = vmatprep.subr.mxu0 0.0
          %2233 = vmatpush2.msra.mxu0 0.0
          %2234 = vmatprep.subr.mxu0 0.0
          %2235 = vmatpush2.msra.mxu0 0.0
          %2236 = vmatprep.subr.mxu0 0.0
          %2237 = vmatpush2.msra.mxu0 0.0
          %2238 = vmatprep.mubr.f32.mxu0 0.0
          %2239 = vmatmul.mubr.f32.gmra.mxu0 %v2172
          %v2240 = vpop.f32.mrf.mxu0
          %v2241 = vadd.f32 %v442, %v2240
          %v2242 = vpop.f32.mrf.mxu0
          %v2243 = vadd.f32 %v446, %v2242
          %2244 = vdwg.mxu0
          %2245 = vmatprep.subr.mxu0 0.0
          %2246 = vmatpush1.msra.mxu0 0.0
          %2247 = vmatprep.subr.mxu0 0.0
          %2248 = vmatpush1.msra.mxu0 0.0
          %2249 = vmatprep.subr.mxu0 0.0
          %2250 = vmatpush1.msra.mxu0 0.0
          %2251 = vmatprep.subr.mxu0 0.0
          %2252 = vmatpush1.msra.mxu0 0.0
          %2253 = vmatprep.subr.mxu0 0.0
          %2254 = vmatpush1.msra.mxu0 0.0
          %2255 = vmatprep.subr.mxu0 0.0
          %2256 = vmatpush1.msra.mxu0 0.0
          %2257 = vmatprep.subr.mxu0 0.0
          %2258 = vmatpush1.msra.mxu0 0.0
          %2259 = vmatprep.subr.mxu0 0.0
          %2260 = vmatpush1.msra.mxu0 0.0
          %2261 = vmatprep.subr.mxu0 0.0
          %2262 = vmatpush1.msra.mxu0 0.0
          %2263 = vmatprep.subr.mxu0 0.0
          %2264 = vmatpush1.msra.mxu0 0.0
          %2265 = vmatprep.subr.mxu0 0.0
          %2266 = vmatpush1.msra.mxu0 0.0
          %2267 = vmatprep.subr.mxu0 0.0
          %2268 = vmatpush1.msra.mxu0 0.0
          %2269 = vmatprep.subr.mxu0 %v362
          %2270 = vmatpush1.msra.mxu0 %v361
          %2271 = vmatprep.subr.mxu0 %v358
          %2272 = vmatpush1.msra.mxu0 %v357
          %2273 = vmatprep.subr.mxu0 %v354
          %2274 = vmatpush1.msra.mxu0 %v353
          %2275 = vmatprep.subr.mxu0 %v350
          %2276 = vmatpush1.msra.mxu0 %v349
          %2277 = vmatprep.subr.mxu0 0.0
          %2278 = vmatpush2.msra.mxu0 0.0
          %2279 = vmatprep.subr.mxu0 0.0
          %2280 = vmatpush2.msra.mxu0 0.0
          %2281 = vmatprep.subr.mxu0 0.0
          %2282 = vmatpush2.msra.mxu0 0.0
          %2283 = vmatprep.subr.mxu0 0.0
          %2284 = vmatpush2.msra.mxu0 0.0
          %2285 = vmatprep.subr.mxu0 0.0
          %2286 = vmatpush2.msra.mxu0 0.0
          %2287 = vmatprep.subr.mxu0 0.0
          %2288 = vmatpush2.msra.mxu0 0.0
          %2289 = vmatprep.subr.mxu0 0.0
          %2290 = vmatpush2.msra.mxu0 0.0
          %2291 = vmatprep.subr.mxu0 0.0
          %2292 = vmatpush2.msra.mxu0 0.0
          %2293 = vmatprep.subr.mxu0 0.0
          %2294 = vmatpush2.msra.mxu0 0.0
          %2295 = vmatprep.subr.mxu0 0.0
          %2296 = vmatpush2.msra.mxu0 0.0
          %2297 = vmatprep.subr.mxu0 0.0
          %2298 = vmatpush2.msra.mxu0 0.0
          %2299 = vmatprep.subr.mxu0 0.0
          %2300 = vmatpush2.msra.mxu0 0.0
          %2301 = vmatprep.subr.mxu0 0.0
          %2302 = vmatpush2.msra.mxu0 0.0
          %2303 = vmatprep.subr.mxu0 0.0
          %2304 = vmatpush2.msra.mxu0 0.0
          %2305 = vmatprep.subr.mxu0 0.0
          %2306 = vmatpush2.msra.mxu0 0.0
          %2307 = vmatprep.subr.mxu0 0.0
          %2308 = vmatpush2.msra.mxu0 0.0
          %2309 = vmatprep.mubr.f32.mxu0 0.0
          %2310 = vmatmul.mubr.f32.gmra.mxu0 %v2172
          %v2311 = vpop.f32.mrf.mxu0
          %v2312 = vadd.f32 %v450, %v2311
          %v2313 = vpop.f32.mrf.mxu0
          %v2314 = vadd.f32 %v454, %v2313
          %2315 = vdwg.mxu0
          %2316 = vmatprep.subr.mxu0 %v424
          %2317 = vmatpush1.msra.mxu0 %v423
          %2318 = vmatprep.subr.mxu0 %v420
          %2319 = vmatpush1.msra.mxu0 %v419
          %2320 = vmatprep.subr.mxu0 %v416
          %2321 = vmatpush1.msra.mxu0 %v415
          %2322 = vmatprep.subr.mxu0 %v412
          %2323 = vmatpush1.msra.mxu0 %v411
          %2324 = vmatprep.subr.mxu0 %v408
          %2325 = vmatpush1.msra.mxu0 %v407
          %2326 = vmatprep.subr.mxu0 %v404
          %2327 = vmatpush1.msra.mxu0 %v403
          %2328 = vmatprep.subr.mxu0 %v400
          %2329 = vmatpush1.msra.mxu0 %v399
          %2330 = vmatprep.subr.mxu0 %v396
          %2331 = vmatpush1.msra.mxu0 %v395
          %2332 = vmatprep.subr.mxu0 %v392
          %2333 = vmatpush1.msra.mxu0 %v391
          %2334 = vmatprep.subr.mxu0 %v388
          %2335 = vmatpush1.msra.mxu0 %v387
          %2336 = vmatprep.subr.mxu0 %v384
          %2337 = vmatpush1.msra.mxu0 %v383
          %2338 = vmatprep.subr.mxu0 %v380
          %2339 = vmatpush1.msra.mxu0 %v379
          %2340 = vmatprep.subr.mxu0 %v376
          %2341 = vmatpush1.msra.mxu0 %v375
          %2342 = vmatprep.subr.mxu0 %v372
          %2343 = vmatpush1.msra.mxu0 %v371
          %2344 = vmatprep.subr.mxu0 %v368
          %2345 = vmatpush1.msra.mxu0 %v367
          %2346 = vmatprep.subr.mxu0 %v364
          %2347 = vmatpush1.msra.mxu0 %v363
          %2348 = vmatprep.subr.mxu0 0.0
          %2349 = vmatpush2.msra.mxu0 0.0
          %2350 = vmatprep.subr.mxu0 0.0
          %2351 = vmatpush2.msra.mxu0 0.0
          %2352 = vmatprep.subr.mxu0 0.0
          %2353 = vmatpush2.msra.mxu0 0.0
          %2354 = vmatprep.subr.mxu0 0.0
          %2355 = vmatpush2.msra.mxu0 0.0
          %2356 = vmatprep.subr.mxu0 0.0
          %2357 = vmatpush2.msra.mxu0 0.0
          %2358 = vmatprep.subr.mxu0 0.0
          %2359 = vmatpush2.msra.mxu0 0.0
          %2360 = vmatprep.subr.mxu0 0.0
          %2361 = vmatpush2.msra.mxu0 0.0
          %2362 = vmatprep.subr.mxu0 0.0
          %2363 = vmatpush2.msra.mxu0 0.0
          %2364 = vmatprep.subr.mxu0 0.0
          %2365 = vmatpush2.msra.mxu0 0.0
          %2366 = vmatprep.subr.mxu0 0.0
          %2367 = vmatpush2.msra.mxu0 0.0
          %2368 = vmatprep.subr.mxu0 0.0
          %2369 = vmatpush2.msra.mxu0 0.0
          %2370 = vmatprep.subr.mxu0 0.0
          %2371 = vmatpush2.msra.mxu0 0.0
          %2372 = vmatprep.subr.mxu0 0.0
          %2373 = vmatpush2.msra.mxu0 0.0
          %2374 = vmatprep.subr.mxu0 0.0
          %2375 = vmatpush2.msra.mxu0 0.0
          %2376 = vmatprep.subr.mxu0 0.0
          %2377 = vmatpush2.msra.mxu0 0.0
          %2378 = vmatprep.subr.mxu0 0.0
          %2379 = vmatpush2.msra.mxu0 0.0
          %2380 = vmatprep.mubr.f32.mxu0 0.0
          %2381 = vmatmul.mubr.f32.gmra.mxu0 %v2073
          %v2382 = vpop.f32.mrf.mxu0
          %v2383 = vadd.f32 0.0, %v2382
          %v2384 = vpop.f32.mrf.mxu0
          %v2385 = vadd.f32 0.0, %v2384
          %2386 = vdwg.mxu0
          %2387 = vmatprep.subr.mxu0 %v426
          %2388 = vmatpush1.msra.mxu0 %v425
          %2389 = vmatprep.subr.mxu0 %v422
          %2390 = vmatpush1.msra.mxu0 %v421
          %2391 = vmatprep.subr.mxu0 %v418
          %2392 = vmatpush1.msra.mxu0 %v417
          %2393 = vmatprep.subr.mxu0 %v414
          %2394 = vmatpush1.msra.mxu0 %v413
          %2395 = vmatprep.subr.mxu0 %v410
          %2396 = vmatpush1.msra.mxu0 %v409
          %2397 = vmatprep.subr.mxu0 %v406
          %2398 = vmatpush1.msra.mxu0 %v405
          %2399 = vmatprep.subr.mxu0 %v402
          %2400 = vmatpush1.msra.mxu0 %v401
          %2401 = vmatprep.subr.mxu0 %v398
          %2402 = vmatpush1.msra.mxu0 %v397
          %2403 = vmatprep.subr.mxu0 %v394
          %2404 = vmatpush1.msra.mxu0 %v393
          %2405 = vmatprep.subr.mxu0 %v390
          %2406 = vmatpush1.msra.mxu0 %v389
          %2407 = vmatprep.subr.mxu0 %v386
          %2408 = vmatpush1.msra.mxu0 %v385
          %2409 = vmatprep.subr.mxu0 %v382
          %2410 = vmatpush1.msra.mxu0 %v381
          %2411 = vmatprep.subr.mxu0 %v378
          %2412 = vmatpush1.msra.mxu0 %v377
          %2413 = vmatprep.subr.mxu0 %v374
          %2414 = vmatpush1.msra.mxu0 %v373
          %2415 = vmatprep.subr.mxu0 %v370
          %2416 = vmatpush1.msra.mxu0 %v369
          %2417 = vmatprep.subr.mxu0 %v366
          %2418 = vmatpush1.msra.mxu0 %v365
          %2419 = vmatprep.subr.mxu0 0.0
          %2420 = vmatpush2.msra.mxu0 0.0
          %2421 = vmatprep.subr.mxu0 0.0
          %2422 = vmatpush2.msra.mxu0 0.0
          %2423 = vmatprep.subr.mxu0 0.0
          %2424 = vmatpush2.msra.mxu0 0.0
          %2425 = vmatprep.subr.mxu0 0.0
          %2426 = vmatpush2.msra.mxu0 0.0
          %2427 = vmatprep.subr.mxu0 0.0
          %2428 = vmatpush2.msra.mxu0 0.0
          %2429 = vmatprep.subr.mxu0 0.0
          %2430 = vmatpush2.msra.mxu0 0.0
          %2431 = vmatprep.subr.mxu0 0.0
          %2432 = vmatpush2.msra.mxu0 0.0
          %2433 = vmatprep.subr.mxu0 0.0
          %2434 = vmatpush2.msra.mxu0 0.0
          %2435 = vmatprep.subr.mxu0 0.0
          %2436 = vmatpush2.msra.mxu0 0.0
          %2437 = vmatprep.subr.mxu0 0.0
          %2438 = vmatpush2.msra.mxu0 0.0
          %2439 = vmatprep.subr.mxu0 0.0
          %2440 = vmatpush2.msra.mxu0 0.0
          %2441 = vmatprep.subr.mxu0 0.0
          %2442 = vmatpush2.msra.mxu0 0.0
          %2443 = vmatprep.subr.mxu0 0.0
          %2444 = vmatpush2.msra.mxu0 0.0
          %2445 = vmatprep.subr.mxu0 0.0
          %2446 = vmatpush2.msra.mxu0 0.0
          %2447 = vmatprep.subr.mxu0 0.0
          %2448 = vmatpush2.msra.mxu0 0.0
          %2449 = vmatprep.subr.mxu0 0.0
          %2450 = vmatpush2.msra.mxu0 0.0
          %2451 = vmatprep.mubr.f32.mxu0 0.0
          %2452 = vmatmul.mubr.f32.gmra.mxu0 %v2073
          %v2453 = vpop.f32.mrf.mxu0
          %v2454 = vadd.f32 0.0, %v2453
          %v2455 = vpop.f32.mrf.mxu0
          %v2456 = vadd.f32 0.0, %v2455
          %2457 = vdwg.mxu0
          %v2458 = vadd.f32 %v2241, %v2383
          %v2459 = vadd.f32 %v2243, %v2385
          %v2460 = vadd.f32 %v2312, %v2454
          %v2461 = vadd.f32 %v2314, %v2456
          %v2462 = vxor.u32 %v2458, 2147483648
          %v2463 = vmul.f32 %v2462, 1.442695
          %v2464 = vpow.pop %v2463
          %v2465 = vadd.f32 %v2464, 1.0
          %v2466 = vrcp.pop %v2465
          %v2467 = vmul.f32 1.0, %v2466
          %v2468 = vxor.u32 %v2459, 2147483648
          %v2469 = vmul.f32 %v2468, 1.442695
          %v2470 = vpow.pop %v2469
          %v2471 = vadd.f32 %v2470, 1.0
          %v2472 = vrcp.pop %v2471
          %v2473 = vmul.f32 1.0, %v2472
          %v2474 = vtanh.pop %v2460
          %v2475 = vxor.u32 %v2461, 2147483648
          %v2476 = vmul.f32 %v2475, 1.442695
          %v2477 = vpow.pop %v2476
          %v2478 = vadd.f32 %v2477, 1.0
          %v2479 = vrcp.pop %v2478
          %v2480 = vmul.f32 1.0, %v2479
          %v2481 = vmul.f32 %v2473, %v2074
          %v2482 = vmul.f32 %v2467, %v2474
          %v2483 = vadd.f32 %v2481, %v2482
          %v2484 = vtanh.pop %v2483
          %v2485 = vmul.f32 %v2480, %v2484
          %s2486 = sadd.s32 %s334, 4
          %v2487 = vstv %s2486
          %vm2488 = vcmp.lt.s32.totalorder %v2487, %v346
          %v2489 = vsel %vm2488, 1, 0
          %2490 = vset.pattern.permute.xlu0 0
          %2491 = vperm.xlu0 %2490, %v2489
          %v2492 = vpop.permute.xlu0 %2491
          %vm2493 = vcmp.eq.s32.totalorder %v2492, 1
          %v2494 = vsel %vm2493, %v2485, %v2073
          %v2495 = vsel %vm2493, %v2483, %v2074
          %v2496 = vsel %vm2493, %v2485, 0.0
          %v2498 = vcombine.high %v2496, %v2496
          %v2500 = vunpack.c.l.s4 1966171168
          %v2501 = vunpack.c.0.s8 %v2500
          %v2502 = vlaneseq
          %v2503 = vshrl.u32 %v2502, 7
          %v2504 = vsub.s32 %v2501, %v2503
          %v2505 = vrot.slane %v2496, %v2504
          %v2507 = vunpack.c.l.s4 1966171168
          %v2508 = vunpack.c.0.s8 %v2507
          %v2509 = vlaneseq
          %v2510 = vshrl.u32 %v2509, 7
          %v2511 = vsub.s32 %v2508, %v2510
          %v2512 = vrot.slane %v2498, %v2511
          %v2513 = vcombine.high %v2505, %v2505
          %v2514 = vcombine.high %v2512, %v2512
          %v2516 = vunpack.c.l.s4 1966171168
          %v2517 = vunpack.c.0.s8 %v2516
          %v2518 = vlaneseq
          %v2519 = vshrl.u32 %v2518, 7
          %v2520 = vsub.s32 %v2517, %v2519
          %v2521 = vrot.slane %v2505, %v2520
          %v2523 = vunpack.c.l.s4 1966171168
          %v2524 = vunpack.c.0.s8 %v2523
          %v2525 = vlaneseq
          %v2526 = vshrl.u32 %v2525, 7
          %v2527 = vsub.s32 %v2524, %v2526
          %v2528 = vrot.slane %v2512, %v2527
          %v2530 = vunpack.c.l.s4 1966171168
          %v2531 = vunpack.c.0.s8 %v2530
          %v2532 = vlaneseq
          %v2533 = vshrl.u32 %v2532, 7
          %v2534 = vsub.s32 %v2531, %v2533
          %v2535 = vrot.slane %v2513, %v2534
          %v2537 = vunpack.c.l.s4 1966171168
          %v2538 = vunpack.c.0.s8 %v2537
          %v2539 = vlaneseq
          %v2540 = vshrl.u32 %v2539, 7
          %v2541 = vsub.s32 %v2538, %v2540
          %v2542 = vrot.slane %v2514, %v2541
          %v2543 = vcombine.high %v2521, %v2521
          %v2544 = vcombine.high %v2528, %v2528
          %v2545 = vcombine.high %v2535, %v2535
          %v2546 = vcombine.high %v2542, %v2542
          %2555 = vst [vmem:[%s331 + $0x4] sm:$0x1] %v2521
          %2556 = vst [vmem:[%s331 + $0x14] sm:$0x1] %v2535
          %2557 = vst [vmem:[%s331 + $0x24] sm:$0x1] %v2543
          %2558 = vst [vmem:[%s331 + $0x34] sm:$0x1] %v2545
          %2559 = vst [vmem:[%s331 + $0x44] sm:$0x1] %v2528
          %2560 = vst [vmem:[%s331 + $0x54] sm:$0x1] %v2542
          %2561 = vst [vmem:[%s331 + $0x64] sm:$0x1] %v2544
          %2562 = vst [vmem:[%s331 + $0x74] sm:$0x1] %v2546
          %v2563 = vld [vmem:[%s319 + $0x5] sm:$0x1]
          %v2564 = vld [vmem:[%s319 + $0x15] sm:$0x1]
          %v2565 = vld [vmem:[%s319 + $0x25] sm:$0x1]
          %v2566 = vld [vmem:[%s319 + $0x35] sm:$0x1]
          %v2567 = vld [vmem:[%s319 + $0x45] sm:$0x1]
          %v2568 = vld [vmem:[%s319 + $0x55] sm:$0x1]
          %v2569 = vld [vmem:[%s319 + $0x65] sm:$0x1]
          %v2570 = vld [vmem:[%s319 + $0x75] sm:$0x1]
          %v2579 = vrot.slane %v2564, 7
          %v2580 = vsel %vm468, %v2579, %v2563
          %v2581 = vrot.slane %v2565, 6
          %v2582 = vsel %vm471, %v2581, %v2580
          %v2583 = vrot.slane %v2566, 5
          %v2584 = vsel %vm474, %v2583, %v2582
          %v2585 = vrot.slane %v2567, 4
          %v2586 = vsel %vm477, %v2585, %v2584
          %v2587 = vrot.slane %v2568, 3
          %v2588 = vsel %vm480, %v2587, %v2586
          %v2589 = vrot.slane %v2569, 2
          %v2590 = vsel %vm483, %v2589, %v2588
          %v2591 = vrot.slane %v2570, 1
          %v2592 = vsel %vm486, %v2591, %v2590
          %v2593 = vsel %vm488, %v2592, 0
          %2595 = vmatprep.subr.mxu0 0.0
          %2596 = vmatpush1.msra.mxu0 0.0
          %2597 = vmatprep.subr.mxu0 0.0
          %2598 = vmatpush1.msra.mxu0 0.0
          %2599 = vmatprep.subr.mxu0 0.0
          %2600 = vmatpush1.msra.mxu0 0.0
          %2601 = vmatprep.subr.mxu0 0.0
          %2602 = vmatpush1.msra.mxu0 0.0
          %2603 = vmatprep.subr.mxu0 0.0
          %2604 = vmatpush1.msra.mxu0 0.0
          %2605 = vmatprep.subr.mxu0 0.0
          %2606 = vmatpush1.msra.mxu0 0.0
          %2607 = vmatprep.subr.mxu0 0.0
          %2608 = vmatpush1.msra.mxu0 0.0
          %2609 = vmatprep.subr.mxu0 0.0
          %2610 = vmatpush1.msra.mxu0 0.0
          %2611 = vmatprep.subr.mxu0 0.0
          %2612 = vmatpush1.msra.mxu0 0.0
          %2613 = vmatprep.subr.mxu0 0.0
          %2614 = vmatpush1.msra.mxu0 0.0
          %2615 = vmatprep.subr.mxu0 0.0
          %2616 = vmatpush1.msra.mxu0 0.0
          %2617 = vmatprep.subr.mxu0 0.0
          %2618 = vmatpush1.msra.mxu0 0.0
          %2619 = vmatprep.subr.mxu0 %v360
          %2620 = vmatpush1.msra.mxu0 %v359
          %2621 = vmatprep.subr.mxu0 %v356
          %2622 = vmatpush1.msra.mxu0 %v355
          %2623 = vmatprep.subr.mxu0 %v352
          %2624 = vmatpush1.msra.mxu0 %v351
          %2625 = vmatprep.subr.mxu0 %v348
          %2626 = vmatpush1.msra.mxu0 %v347
          %2627 = vmatprep.subr.mxu0 0.0
          %2628 = vmatpush2.msra.mxu0 0.0
          %2629 = vmatprep.subr.mxu0 0.0
          %2630 = vmatpush2.msra.mxu0 0.0
          %2631 = vmatprep.subr.mxu0 0.0
          %2632 = vmatpush2.msra.mxu0 0.0
          %2633 = vmatprep.subr.mxu0 0.0
          %2634 = vmatpush2.msra.mxu0 0.0
          %2635 = vmatprep.subr.mxu0 0.0
          %2636 = vmatpush2.msra.mxu0 0.0
          %2637 = vmatprep.subr.mxu0 0.0
          %2638 = vmatpush2.msra.mxu0 0.0
          %2639 = vmatprep.subr.mxu0 0.0
          %2640 = vmatpush2.msra.mxu0 0.0
          %2641 = vmatprep.subr.mxu0 0.0
          %2642 = vmatpush2.msra.mxu0 0.0
          %2643 = vmatprep.subr.mxu0 0.0
          %2644 = vmatpush2.msra.mxu0 0.0
          %2645 = vmatprep.subr.mxu0 0.0
          %2646 = vmatpush2.msra.mxu0 0.0
          %2647 = vmatprep.subr.mxu0 0.0
          %2648 = vmatpush2.msra.mxu0 0.0
          %2649 = vmatprep.subr.mxu0 0.0
          %2650 = vmatpush2.msra.mxu0 0.0
          %2651 = vmatprep.subr.mxu0 0.0
          %2652 = vmatpush2.msra.mxu0 0.0
          %2653 = vmatprep.subr.mxu0 0.0
          %2654 = vmatpush2.msra.mxu0 0.0
          %2655 = vmatprep.subr.mxu0 0.0
          %2656 = vmatpush2.msra.mxu0 0.0
          %2657 = vmatprep.subr.mxu0 0.0
          %2658 = vmatpush2.msra.mxu0 0.0
          %2659 = vmatprep.mubr.f32.mxu0 0.0
          %2660 = vmatmul.mubr.f32.gmra.mxu0 %v2593
          %v2661 = vpop.f32.mrf.mxu0
          %v2662 = vadd.f32 %v442, %v2661
          %v2663 = vpop.f32.mrf.mxu0
          %v2664 = vadd.f32 %v446, %v2663
          %2665 = vdwg.mxu0
          %2666 = vmatprep.subr.mxu0 0.0
          %2667 = vmatpush1.msra.mxu0 0.0
          %2668 = vmatprep.subr.mxu0 0.0
          %2669 = vmatpush1.msra.mxu0 0.0
          %2670 = vmatprep.subr.mxu0 0.0
          %2671 = vmatpush1.msra.mxu0 0.0
          %2672 = vmatprep.subr.mxu0 0.0
          %2673 = vmatpush1.msra.mxu0 0.0
          %2674 = vmatprep.subr.mxu0 0.0
          %2675 = vmatpush1.msra.mxu0 0.0
          %2676 = vmatprep.subr.mxu0 0.0
          %2677 = vmatpush1.msra.mxu0 0.0
          %2678 = vmatprep.subr.mxu0 0.0
          %2679 = vmatpush1.msra.mxu0 0.0
          %2680 = vmatprep.subr.mxu0 0.0
          %2681 = vmatpush1.msra.mxu0 0.0
          %2682 = vmatprep.subr.mxu0 0.0
          %2683 = vmatpush1.msra.mxu0 0.0
          %2684 = vmatprep.subr.mxu0 0.0
          %2685 = vmatpush1.msra.mxu0 0.0
          %2686 = vmatprep.subr.mxu0 0.0
          %2687 = vmatpush1.msra.mxu0 0.0
          %2688 = vmatprep.subr.mxu0 0.0
          %2689 = vmatpush1.msra.mxu0 0.0
          %2690 = vmatprep.subr.mxu0 %v362
          %2691 = vmatpush1.msra.mxu0 %v361
          %2692 = vmatprep.subr.mxu0 %v358
          %2693 = vmatpush1.msra.mxu0 %v357
          %2694 = vmatprep.subr.mxu0 %v354
          %2695 = vmatpush1.msra.mxu0 %v353
          %2696 = vmatprep.subr.mxu0 %v350
          %2697 = vmatpush1.msra.mxu0 %v349
          %2698 = vmatprep.subr.mxu0 0.0
          %2699 = vmatpush2.msra.mxu0 0.0
          %2700 = vmatprep.subr.mxu0 0.0
          %2701 = vmatpush2.msra.mxu0 0.0
          %2702 = vmatprep.subr.mxu0 0.0
          %2703 = vmatpush2.msra.mxu0 0.0
          %2704 = vmatprep.subr.mxu0 0.0
          %2705 = vmatpush2.msra.mxu0 0.0
          %2706 = vmatprep.subr.mxu0 0.0
          %2707 = vmatpush2.msra.mxu0 0.0
          %2708 = vmatprep.subr.mxu0 0.0
          %2709 = vmatpush2.msra.mxu0 0.0
          %2710 = vmatprep.subr.mxu0 0.0
          %2711 = vmatpush2.msra.mxu0 0.0
          %2712 = vmatprep.subr.mxu0 0.0
          %2713 = vmatpush2.msra.mxu0 0.0
          %2714 = vmatprep.subr.mxu0 0.0
          %2715 = vmatpush2.msra.mxu0 0.0
          %2716 = vmatprep.subr.mxu0 0.0
          %2717 = vmatpush2.msra.mxu0 0.0
          %2718 = vmatprep.subr.mxu0 0.0
          %2719 = vmatpush2.msra.mxu0 0.0
          %2720 = vmatprep.subr.mxu0 0.0
          %2721 = vmatpush2.msra.mxu0 0.0
          %2722 = vmatprep.subr.mxu0 0.0
          %2723 = vmatpush2.msra.mxu0 0.0
          %2724 = vmatprep.subr.mxu0 0.0
          %2725 = vmatpush2.msra.mxu0 0.0
          %2726 = vmatprep.subr.mxu0 0.0
          %2727 = vmatpush2.msra.mxu0 0.0
          %2728 = vmatprep.subr.mxu0 0.0
          %2729 = vmatpush2.msra.mxu0 0.0
          %2730 = vmatprep.mubr.f32.mxu0 0.0
          %2731 = vmatmul.mubr.f32.gmra.mxu0 %v2593
          %v2732 = vpop.f32.mrf.mxu0
          %v2733 = vadd.f32 %v450, %v2732
          %v2734 = vpop.f32.mrf.mxu0
          %v2735 = vadd.f32 %v454, %v2734
          %2736 = vdwg.mxu0
          %2737 = vmatprep.subr.mxu0 %v424
          %2738 = vmatpush1.msra.mxu0 %v423
          %2739 = vmatprep.subr.mxu0 %v420
          %2740 = vmatpush1.msra.mxu0 %v419
          %2741 = vmatprep.subr.mxu0 %v416
          %2742 = vmatpush1.msra.mxu0 %v415
          %2743 = vmatprep.subr.mxu0 %v412
          %2744 = vmatpush1.msra.mxu0 %v411
          %2745 = vmatprep.subr.mxu0 %v408
          %2746 = vmatpush1.msra.mxu0 %v407
          %2747 = vmatprep.subr.mxu0 %v404
          %2748 = vmatpush1.msra.mxu0 %v403
          %2749 = vmatprep.subr.mxu0 %v400
          %2750 = vmatpush1.msra.mxu0 %v399
          %2751 = vmatprep.subr.mxu0 %v396
          %2752 = vmatpush1.msra.mxu0 %v395
          %2753 = vmatprep.subr.mxu0 %v392
          %2754 = vmatpush1.msra.mxu0 %v391
          %2755 = vmatprep.subr.mxu0 %v388
          %2756 = vmatpush1.msra.mxu0 %v387
          %2757 = vmatprep.subr.mxu0 %v384
          %2758 = vmatpush1.msra.mxu0 %v383
          %2759 = vmatprep.subr.mxu0 %v380
          %2760 = vmatpush1.msra.mxu0 %v379
          %2761 = vmatprep.subr.mxu0 %v376
          %2762 = vmatpush1.msra.mxu0 %v375
          %2763 = vmatprep.subr.mxu0 %v372
          %2764 = vmatpush1.msra.mxu0 %v371
          %2765 = vmatprep.subr.mxu0 %v368
          %2766 = vmatpush1.msra.mxu0 %v367
          %2767 = vmatprep.subr.mxu0 %v364
          %2768 = vmatpush1.msra.mxu0 %v363
          %2769 = vmatprep.subr.mxu0 0.0
          %2770 = vmatpush2.msra.mxu0 0.0
          %2771 = vmatprep.subr.mxu0 0.0
          %2772 = vmatpush2.msra.mxu0 0.0
          %2773 = vmatprep.subr.mxu0 0.0
          %2774 = vmatpush2.msra.mxu0 0.0
          %2775 = vmatprep.subr.mxu0 0.0
          %2776 = vmatpush2.msra.mxu0 0.0
          %2777 = vmatprep.subr.mxu0 0.0
          %2778 = vmatpush2.msra.mxu0 0.0
          %2779 = vmatprep.subr.mxu0 0.0
          %2780 = vmatpush2.msra.mxu0 0.0
          %2781 = vmatprep.subr.mxu0 0.0
          %2782 = vmatpush2.msra.mxu0 0.0
          %2783 = vmatprep.subr.mxu0 0.0
          %2784 = vmatpush2.msra.mxu0 0.0
          %2785 = vmatprep.subr.mxu0 0.0
          %2786 = vmatpush2.msra.mxu0 0.0
          %2787 = vmatprep.subr.mxu0 0.0
          %2788 = vmatpush2.msra.mxu0 0.0
          %2789 = vmatprep.subr.mxu0 0.0
          %2790 = vmatpush2.msra.mxu0 0.0
          %2791 = vmatprep.subr.mxu0 0.0
          %2792 = vmatpush2.msra.mxu0 0.0
          %2793 = vmatprep.subr.mxu0 0.0
          %2794 = vmatpush2.msra.mxu0 0.0
          %2795 = vmatprep.subr.mxu0 0.0
          %2796 = vmatpush2.msra.mxu0 0.0
          %2797 = vmatprep.subr.mxu0 0.0
          %2798 = vmatpush2.msra.mxu0 0.0
          %2799 = vmatprep.subr.mxu0 0.0
          %2800 = vmatpush2.msra.mxu0 0.0
          %2801 = vmatprep.mubr.f32.mxu0 0.0
          %2802 = vmatmul.mubr.f32.gmra.mxu0 %v2494
          %v2803 = vpop.f32.mrf.mxu0
          %v2804 = vadd.f32 0.0, %v2803
          %v2805 = vpop.f32.mrf.mxu0
          %v2806 = vadd.f32 0.0, %v2805
          %2807 = vdwg.mxu0
          %2808 = vmatprep.subr.mxu0 %v426
          %2809 = vmatpush1.msra.mxu0 %v425
          %2810 = vmatprep.subr.mxu0 %v422
          %2811 = vmatpush1.msra.mxu0 %v421
          %2812 = vmatprep.subr.mxu0 %v418
          %2813 = vmatpush1.msra.mxu0 %v417
          %2814 = vmatprep.subr.mxu0 %v414
          %2815 = vmatpush1.msra.mxu0 %v413
          %2816 = vmatprep.subr.mxu0 %v410
          %2817 = vmatpush1.msra.mxu0 %v409
          %2818 = vmatprep.subr.mxu0 %v406
          %2819 = vmatpush1.msra.mxu0 %v405
          %2820 = vmatprep.subr.mxu0 %v402
          %2821 = vmatpush1.msra.mxu0 %v401
          %2822 = vmatprep.subr.mxu0 %v398
          %2823 = vmatpush1.msra.mxu0 %v397
          %2824 = vmatprep.subr.mxu0 %v394
          %2825 = vmatpush1.msra.mxu0 %v393
          %2826 = vmatprep.subr.mxu0 %v390
          %2827 = vmatpush1.msra.mxu0 %v389
          %2828 = vmatprep.subr.mxu0 %v386
          %2829 = vmatpush1.msra.mxu0 %v385
          %2830 = vmatprep.subr.mxu0 %v382
          %2831 = vmatpush1.msra.mxu0 %v381
          %2832 = vmatprep.subr.mxu0 %v378
          %2833 = vmatpush1.msra.mxu0 %v377
          %2834 = vmatprep.subr.mxu0 %v374
          %2835 = vmatpush1.msra.mxu0 %v373
          %2836 = vmatprep.subr.mxu0 %v370
          %2837 = vmatpush1.msra.mxu0 %v369
          %2838 = vmatprep.subr.mxu0 %v366
          %2839 = vmatpush1.msra.mxu0 %v365
          %2840 = vmatprep.subr.mxu0 0.0
          %2841 = vmatpush2.msra.mxu0 0.0
          %2842 = vmatprep.subr.mxu0 0.0
          %2843 = vmatpush2.msra.mxu0 0.0
          %2844 = vmatprep.subr.mxu0 0.0
          %2845 = vmatpush2.msra.mxu0 0.0
          %2846 = vmatprep.subr.mxu0 0.0
          %2847 = vmatpush2.msra.mxu0 0.0
          %2848 = vmatprep.subr.mxu0 0.0
          %2849 = vmatpush2.msra.mxu0 0.0
          %2850 = vmatprep.subr.mxu0 0.0
          %2851 = vmatpush2.msra.mxu0 0.0
          %2852 = vmatprep.subr.mxu0 0.0
          %2853 = vmatpush2.msra.mxu0 0.0
          %2854 = vmatprep.subr.mxu0 0.0
          %2855 = vmatpush2.msra.mxu0 0.0
          %2856 = vmatprep.subr.mxu0 0.0
          %2857 = vmatpush2.msra.mxu0 0.0
          %2858 = vmatprep.subr.mxu0 0.0
          %2859 = vmatpush2.msra.mxu0 0.0
          %2860 = vmatprep.subr.mxu0 0.0
          %2861 = vmatpush2.msra.mxu0 0.0
          %2862 = vmatprep.subr.mxu0 0.0
          %2863 = vmatpush2.msra.mxu0 0.0
          %2864 = vmatprep.subr.mxu0 0.0
          %2865 = vmatpush2.msra.mxu0 0.0
          %2866 = vmatprep.subr.mxu0 0.0
          %2867 = vmatpush2.msra.mxu0 0.0
          %2868 = vmatprep.subr.mxu0 0.0
          %2869 = vmatpush2.msra.mxu0 0.0
          %2870 = vmatprep.subr.mxu0 0.0
          %2871 = vmatpush2.msra.mxu0 0.0
          %2872 = vmatprep.mubr.f32.mxu0 0.0
          %2873 = vmatmul.mubr.f32.gmra.mxu0 %v2494
          %v2874 = vpop.f32.mrf.mxu0
          %v2875 = vadd.f32 0.0, %v2874
          %v2876 = vpop.f32.mrf.mxu0
          %v2877 = vadd.f32 0.0, %v2876
          %2878 = vdwg.mxu0
          %v2879 = vadd.f32 %v2662, %v2804
          %v2880 = vadd.f32 %v2664, %v2806
          %v2881 = vadd.f32 %v2733, %v2875
          %v2882 = vadd.f32 %v2735, %v2877
          %v2883 = vxor.u32 %v2879, 2147483648
          %v2884 = vmul.f32 %v2883, 1.442695
          %v2885 = vpow.pop %v2884
          %v2886 = vadd.f32 %v2885, 1.0
          %v2887 = vrcp.pop %v2886
          %v2888 = vmul.f32 1.0, %v2887
          %v2889 = vxor.u32 %v2880, 2147483648
          %v2890 = vmul.f32 %v2889, 1.442695
          %v2891 = vpow.pop %v2890
          %v2892 = vadd.f32 %v2891, 1.0
          %v2893 = vrcp.pop %v2892
          %v2894 = vmul.f32 1.0, %v2893
          %v2895 = vtanh.pop %v2881
          %v2896 = vxor.u32 %v2882, 2147483648
          %v2897 = vmul.f32 %v2896, 1.442695
          %v2898 = vpow.pop %v2897
          %v2899 = vadd.f32 %v2898, 1.0
          %v2900 = vrcp.pop %v2899
          %v2901 = vmul.f32 1.0, %v2900
          %v2902 = vmul.f32 %v2894, %v2495
          %v2903 = vmul.f32 %v2888, %v2895
          %v2904 = vadd.f32 %v2902, %v2903
          %v2905 = vtanh.pop %v2904
          %v2906 = vmul.f32 %v2901, %v2905
          %s2907 = sadd.s32 %s334, 5
          %v2908 = vstv %s2907
          %vm2909 = vcmp.lt.s32.totalorder %v2908, %v346
          %v2910 = vsel %vm2909, 1, 0
          %2911 = vset.pattern.permute.xlu0 0
          %2912 = vperm.xlu0 %2911, %v2910
          %v2913 = vpop.permute.xlu0 %2912
          %vm2914 = vcmp.eq.s32.totalorder %v2913, 1
          %v2915 = vsel %vm2914, %v2906, %v2494
          %v2916 = vsel %vm2914, %v2904, %v2495
          %v2917 = vsel %vm2914, %v2906, 0.0
          %v2919 = vcombine.high %v2917, %v2917
          %v2921 = vunpack.c.l.s4 1966171168
          %v2922 = vunpack.c.0.s8 %v2921
          %v2923 = vlaneseq
          %v2924 = vshrl.u32 %v2923, 7
          %v2925 = vsub.s32 %v2922, %v2924
          %v2926 = vrot.slane %v2917, %v2925
          %v2928 = vunpack.c.l.s4 1966171168
          %v2929 = vunpack.c.0.s8 %v2928
          %v2930 = vlaneseq
          %v2931 = vshrl.u32 %v2930, 7
          %v2932 = vsub.s32 %v2929, %v2931
          %v2933 = vrot.slane %v2919, %v2932
          %v2934 = vcombine.high %v2926, %v2926
          %v2935 = vcombine.high %v2933, %v2933
          %v2937 = vunpack.c.l.s4 1966171168
          %v2938 = vunpack.c.0.s8 %v2937
          %v2939 = vlaneseq
          %v2940 = vshrl.u32 %v2939, 7
          %v2941 = vsub.s32 %v2938, %v2940
          %v2942 = vrot.slane %v2926, %v2941
          %v2944 = vunpack.c.l.s4 1966171168
          %v2945 = vunpack.c.0.s8 %v2944
          %v2946 = vlaneseq
          %v2947 = vshrl.u32 %v2946, 7
          %v2948 = vsub.s32 %v2945, %v2947
          %v2949 = vrot.slane %v2933, %v2948
          %v2951 = vunpack.c.l.s4 1966171168
          %v2952 = vunpack.c.0.s8 %v2951
          %v2953 = vlaneseq
          %v2954 = vshrl.u32 %v2953, 7
          %v2955 = vsub.s32 %v2952, %v2954
          %v2956 = vrot.slane %v2934, %v2955
          %v2958 = vunpack.c.l.s4 1966171168
          %v2959 = vunpack.c.0.s8 %v2958
          %v2960 = vlaneseq
          %v2961 = vshrl.u32 %v2960, 7
          %v2962 = vsub.s32 %v2959, %v2961
          %v2963 = vrot.slane %v2935, %v2962
          %v2964 = vcombine.high %v2942, %v2942
          %v2965 = vcombine.high %v2949, %v2949
          %v2966 = vcombine.high %v2956, %v2956
          %v2967 = vcombine.high %v2963, %v2963
          %2976 = vst [vmem:[%s331 + $0x5] sm:$0x1] %v2942
          %2977 = vst [vmem:[%s331 + $0x15] sm:$0x1] %v2956
          %2978 = vst [vmem:[%s331 + $0x25] sm:$0x1] %v2964
          %2979 = vst [vmem:[%s331 + $0x35] sm:$0x1] %v2966
          %2980 = vst [vmem:[%s331 + $0x45] sm:$0x1] %v2949
          %2981 = vst [vmem:[%s331 + $0x55] sm:$0x1] %v2963
          %2982 = vst [vmem:[%s331 + $0x65] sm:$0x1] %v2965
          %2983 = vst [vmem:[%s331 + $0x75] sm:$0x1] %v2967
          %v2984 = vld [vmem:[%s319 + $0x6] sm:$0x1]
          %v2985 = vld [vmem:[%s319 + $0x16] sm:$0x1]
          %v2986 = vld [vmem:[%s319 + $0x26] sm:$0x1]
          %v2987 = vld [vmem:[%s319 + $0x36] sm:$0x1]
          %v2988 = vld [vmem:[%s319 + $0x46] sm:$0x1]
          %v2989 = vld [vmem:[%s319 + $0x56] sm:$0x1]
          %v2990 = vld [vmem:[%s319 + $0x66] sm:$0x1]
          %v2991 = vld [vmem:[%s319 + $0x76] sm:$0x1]
          %v3000 = vrot.slane %v2985, 7
          %v3001 = vsel %vm468, %v3000, %v2984
          %v3002 = vrot.slane %v2986, 6
          %v3003 = vsel %vm471, %v3002, %v3001
          %v3004 = vrot.slane %v2987, 5
          %v3005 = vsel %vm474, %v3004, %v3003
          %v3006 = vrot.slane %v2988, 4
          %v3007 = vsel %vm477, %v3006, %v3005
          %v3008 = vrot.slane %v2989, 3
          %v3009 = vsel %vm480, %v3008, %v3007
          %v3010 = vrot.slane %v2990, 2
          %v3011 = vsel %vm483, %v3010, %v3009
          %v3012 = vrot.slane %v2991, 1
          %v3013 = vsel %vm486, %v3012, %v3011
          %v3014 = vsel %vm488, %v3013, 0
          %3016 = vmatprep.subr.mxu0 0.0
          %3017 = vmatpush1.msra.mxu0 0.0
          %3018 = vmatprep.subr.mxu0 0.0
          %3019 = vmatpush1.msra.mxu0 0.0
          %3020 = vmatprep.subr.mxu0 0.0
          %3021 = vmatpush1.msra.mxu0 0.0
          %3022 = vmatprep.subr.mxu0 0.0
          %3023 = vmatpush1.msra.mxu0 0.0
          %3024 = vmatprep.subr.mxu0 0.0
          %3025 = vmatpush1.msra.mxu0 0.0
          %3026 = vmatprep.subr.mxu0 0.0
          %3027 = vmatpush1.msra.mxu0 0.0
          %3028 = vmatprep.subr.mxu0 0.0
          %3029 = vmatpush1.msra.mxu0 0.0
          %3030 = vmatprep.subr.mxu0 0.0
          %3031 = vmatpush1.msra.mxu0 0.0
          %3032 = vmatprep.subr.mxu0 0.0
          %3033 = vmatpush1.msra.mxu0 0.0
          %3034 = vmatprep.subr.mxu0 0.0
          %3035 = vmatpush1.msra.mxu0 0.0
          %3036 = vmatprep.subr.mxu0 0.0
          %3037 = vmatpush1.msra.mxu0 0.0
          %3038 = vmatprep.subr.mxu0 0.0
          %3039 = vmatpush1.msra.mxu0 0.0
          %3040 = vmatprep.subr.mxu0 %v360
          %3041 = vmatpush1.msra.mxu0 %v359
          %3042 = vmatprep.subr.mxu0 %v356
          %3043 = vmatpush1.msra.mxu0 %v355
          %3044 = vmatprep.subr.mxu0 %v352
          %3045 = vmatpush1.msra.mxu0 %v351
          %3046 = vmatprep.subr.mxu0 %v348
          %3047 = vmatpush1.msra.mxu0 %v347
          %3048 = vmatprep.subr.mxu0 0.0
          %3049 = vmatpush2.msra.mxu0 0.0
          %3050 = vmatprep.subr.mxu0 0.0
          %3051 = vmatpush2.msra.mxu0 0.0
          %3052 = vmatprep.subr.mxu0 0.0
          %3053 = vmatpush2.msra.mxu0 0.0
          %3054 = vmatprep.subr.mxu0 0.0
          %3055 = vmatpush2.msra.mxu0 0.0
          %3056 = vmatprep.subr.mxu0 0.0
          %3057 = vmatpush2.msra.mxu0 0.0
          %3058 = vmatprep.subr.mxu0 0.0
          %3059 = vmatpush2.msra.mxu0 0.0
          %3060 = vmatprep.subr.mxu0 0.0
          %3061 = vmatpush2.msra.mxu0 0.0
          %3062 = vmatprep.subr.mxu0 0.0
          %3063 = vmatpush2.msra.mxu0 0.0
          %3064 = vmatprep.subr.mxu0 0.0
          %3065 = vmatpush2.msra.mxu0 0.0
          %3066 = vmatprep.subr.mxu0 0.0
          %3067 = vmatpush2.msra.mxu0 0.0
          %3068 = vmatprep.subr.mxu0 0.0
          %3069 = vmatpush2.msra.mxu0 0.0
          %3070 = vmatprep.subr.mxu0 0.0
          %3071 = vmatpush2.msra.mxu0 0.0
          %3072 = vmatprep.subr.mxu0 0.0
          %3073 = vmatpush2.msra.mxu0 0.0
          %3074 = vmatprep.subr.mxu0 0.0
          %3075 = vmatpush2.msra.mxu0 0.0
          %3076 = vmatprep.subr.mxu0 0.0
          %3077 = vmatpush2.msra.mxu0 0.0
          %3078 = vmatprep.subr.mxu0 0.0
          %3079 = vmatpush2.msra.mxu0 0.0
          %3080 = vmatprep.mubr.f32.mxu0 0.0
          %3081 = vmatmul.mubr.f32.gmra.mxu0 %v3014
          %v3082 = vpop.f32.mrf.mxu0
          %v3083 = vadd.f32 %v442, %v3082
          %v3084 = vpop.f32.mrf.mxu0
          %v3085 = vadd.f32 %v446, %v3084
          %3086 = vdwg.mxu0
          %3087 = vmatprep.subr.mxu0 0.0
          %3088 = vmatpush1.msra.mxu0 0.0
          %3089 = vmatprep.subr.mxu0 0.0
          %3090 = vmatpush1.msra.mxu0 0.0
          %3091 = vmatprep.subr.mxu0 0.0
          %3092 = vmatpush1.msra.mxu0 0.0
          %3093 = vmatprep.subr.mxu0 0.0
          %3094 = vmatpush1.msra.mxu0 0.0
          %3095 = vmatprep.subr.mxu0 0.0
          %3096 = vmatpush1.msra.mxu0 0.0
          %3097 = vmatprep.subr.mxu0 0.0
          %3098 = vmatpush1.msra.mxu0 0.0
          %3099 = vmatprep.subr.mxu0 0.0
          %3100 = vmatpush1.msra.mxu0 0.0
          %3101 = vmatprep.subr.mxu0 0.0
          %3102 = vmatpush1.msra.mxu0 0.0
          %3103 = vmatprep.subr.mxu0 0.0
          %3104 = vmatpush1.msra.mxu0 0.0
          %3105 = vmatprep.subr.mxu0 0.0
          %3106 = vmatpush1.msra.mxu0 0.0
          %3107 = vmatprep.subr.mxu0 0.0
          %3108 = vmatpush1.msra.mxu0 0.0
          %3109 = vmatprep.subr.mxu0 0.0
          %3110 = vmatpush1.msra.mxu0 0.0
          %3111 = vmatprep.subr.mxu0 %v362
          %3112 = vmatpush1.msra.mxu0 %v361
          %3113 = vmatprep.subr.mxu0 %v358
          %3114 = vmatpush1.msra.mxu0 %v357
          %3115 = vmatprep.subr.mxu0 %v354
          %3116 = vmatpush1.msra.mxu0 %v353
          %3117 = vmatprep.subr.mxu0 %v350
          %3118 = vmatpush1.msra.mxu0 %v349
          %3119 = vmatprep.subr.mxu0 0.0
          %3120 = vmatpush2.msra.mxu0 0.0
          %3121 = vmatprep.subr.mxu0 0.0
          %3122 = vmatpush2.msra.mxu0 0.0
          %3123 = vmatprep.subr.mxu0 0.0
          %3124 = vmatpush2.msra.mxu0 0.0
          %3125 = vmatprep.subr.mxu0 0.0
          %3126 = vmatpush2.msra.mxu0 0.0
          %3127 = vmatprep.subr.mxu0 0.0
          %3128 = vmatpush2.msra.mxu0 0.0
          %3129 = vmatprep.subr.mxu0 0.0
          %3130 = vmatpush2.msra.mxu0 0.0
          %3131 = vmatprep.subr.mxu0 0.0
          %3132 = vmatpush2.msra.mxu0 0.0
          %3133 = vmatprep.subr.mxu0 0.0
          %3134 = vmatpush2.msra.mxu0 0.0
          %3135 = vmatprep.subr.mxu0 0.0
          %3136 = vmatpush2.msra.mxu0 0.0
          %3137 = vmatprep.subr.mxu0 0.0
          %3138 = vmatpush2.msra.mxu0 0.0
          %3139 = vmatprep.subr.mxu0 0.0
          %3140 = vmatpush2.msra.mxu0 0.0
          %3141 = vmatprep.subr.mxu0 0.0
          %3142 = vmatpush2.msra.mxu0 0.0
          %3143 = vmatprep.subr.mxu0 0.0
          %3144 = vmatpush2.msra.mxu0 0.0
          %3145 = vmatprep.subr.mxu0 0.0
          %3146 = vmatpush2.msra.mxu0 0.0
          %3147 = vmatprep.subr.mxu0 0.0
          %3148 = vmatpush2.msra.mxu0 0.0
          %3149 = vmatprep.subr.mxu0 0.0
          %3150 = vmatpush2.msra.mxu0 0.0
          %3151 = vmatprep.mubr.f32.mxu0 0.0
          %3152 = vmatmul.mubr.f32.gmra.mxu0 %v3014
          %v3153 = vpop.f32.mrf.mxu0
          %v3154 = vadd.f32 %v450, %v3153
          %v3155 = vpop.f32.mrf.mxu0
          %v3156 = vadd.f32 %v454, %v3155
          %3157 = vdwg.mxu0
          %3158 = vmatprep.subr.mxu0 %v424
          %3159 = vmatpush1.msra.mxu0 %v423
          %3160 = vmatprep.subr.mxu0 %v420
          %3161 = vmatpush1.msra.mxu0 %v419
          %3162 = vmatprep.subr.mxu0 %v416
          %3163 = vmatpush1.msra.mxu0 %v415
          %3164 = vmatprep.subr.mxu0 %v412
          %3165 = vmatpush1.msra.mxu0 %v411
          %3166 = vmatprep.subr.mxu0 %v408
          %3167 = vmatpush1.msra.mxu0 %v407
          %3168 = vmatprep.subr.mxu0 %v404
          %3169 = vmatpush1.msra.mxu0 %v403
          %3170 = vmatprep.subr.mxu0 %v400
          %3171 = vmatpush1.msra.mxu0 %v399
          %3172 = vmatprep.subr.mxu0 %v396
          %3173 = vmatpush1.msra.mxu0 %v395
          %3174 = vmatprep.subr.mxu0 %v392
          %3175 = vmatpush1.msra.mxu0 %v391
          %3176 = vmatprep.subr.mxu0 %v388
          %3177 = vmatpush1.msra.mxu0 %v387
          %3178 = vmatprep.subr.mxu0 %v384
          %3179 = vmatpush1.msra.mxu0 %v383
          %3180 = vmatprep.subr.mxu0 %v380
          %3181 = vmatpush1.msra.mxu0 %v379
          %3182 = vmatprep.subr.mxu0 %v376
          %3183 = vmatpush1.msra.mxu0 %v375
          %3184 = vmatprep.subr.mxu0 %v372
          %3185 = vmatpush1.msra.mxu0 %v371
          %3186 = vmatprep.subr.mxu0 %v368
          %3187 = vmatpush1.msra.mxu0 %v367
          %3188 = vmatprep.subr.mxu0 %v364
          %3189 = vmatpush1.msra.mxu0 %v363
          %3190 = vmatprep.subr.mxu0 0.0
          %3191 = vmatpush2.msra.mxu0 0.0
          %3192 = vmatprep.subr.mxu0 0.0
          %3193 = vmatpush2.msra.mxu0 0.0
          %3194 = vmatprep.subr.mxu0 0.0
          %3195 = vmatpush2.msra.mxu0 0.0
          %3196 = vmatprep.subr.mxu0 0.0
          %3197 = vmatpush2.msra.mxu0 0.0
          %3198 = vmatprep.subr.mxu0 0.0
          %3199 = vmatpush2.msra.mxu0 0.0
          %3200 = vmatprep.subr.mxu0 0.0
          %3201 = vmatpush2.msra.mxu0 0.0
          %3202 = vmatprep.subr.mxu0 0.0
          %3203 = vmatpush2.msra.mxu0 0.0
          %3204 = vmatprep.subr.mxu0 0.0
          %3205 = vmatpush2.msra.mxu0 0.0
          %3206 = vmatprep.subr.mxu0 0.0
          %3207 = vmatpush2.msra.mxu0 0.0
          %3208 = vmatprep.subr.mxu0 0.0
          %3209 = vmatpush2.msra.mxu0 0.0
          %3210 = vmatprep.subr.mxu0 0.0
          %3211 = vmatpush2.msra.mxu0 0.0
          %3212 = vmatprep.subr.mxu0 0.0
          %3213 = vmatpush2.msra.mxu0 0.0
          %3214 = vmatprep.subr.mxu0 0.0
          %3215 = vmatpush2.msra.mxu0 0.0
          %3216 = vmatprep.subr.mxu0 0.0
          %3217 = vmatpush2.msra.mxu0 0.0
          %3218 = vmatprep.subr.mxu0 0.0
          %3219 = vmatpush2.msra.mxu0 0.0
          %3220 = vmatprep.subr.mxu0 0.0
          %3221 = vmatpush2.msra.mxu0 0.0
          %3222 = vmatprep.mubr.f32.mxu0 0.0
          %3223 = vmatmul.mubr.f32.gmra.mxu0 %v2915
          %v3224 = vpop.f32.mrf.mxu0
          %v3225 = vadd.f32 0.0, %v3224
          %v3226 = vpop.f32.mrf.mxu0
          %v3227 = vadd.f32 0.0, %v3226
          %3228 = vdwg.mxu0
          %3229 = vmatprep.subr.mxu0 %v426
          %3230 = vmatpush1.msra.mxu0 %v425
          %3231 = vmatprep.subr.mxu0 %v422
          %3232 = vmatpush1.msra.mxu0 %v421
          %3233 = vmatprep.subr.mxu0 %v418
          %3234 = vmatpush1.msra.mxu0 %v417
          %3235 = vmatprep.subr.mxu0 %v414
          %3236 = vmatpush1.msra.mxu0 %v413
          %3237 = vmatprep.subr.mxu0 %v410
          %3238 = vmatpush1.msra.mxu0 %v409
          %3239 = vmatprep.subr.mxu0 %v406
          %3240 = vmatpush1.msra.mxu0 %v405
          %3241 = vmatprep.subr.mxu0 %v402
          %3242 = vmatpush1.msra.mxu0 %v401
          %3243 = vmatprep.subr.mxu0 %v398
          %3244 = vmatpush1.msra.mxu0 %v397
          %3245 = vmatprep.subr.mxu0 %v394
          %3246 = vmatpush1.msra.mxu0 %v393
          %3247 = vmatprep.subr.mxu0 %v390
          %3248 = vmatpush1.msra.mxu0 %v389
          %3249 = vmatprep.subr.mxu0 %v386
          %3250 = vmatpush1.msra.mxu0 %v385
          %3251 = vmatprep.subr.mxu0 %v382
          %3252 = vmatpush1.msra.mxu0 %v381
          %3253 = vmatprep.subr.mxu0 %v378
          %3254 = vmatpush1.msra.mxu0 %v377
          %3255 = vmatprep.subr.mxu0 %v374
          %3256 = vmatpush1.msra.mxu0 %v373
          %3257 = vmatprep.subr.mxu0 %v370
          %3258 = vmatpush1.msra.mxu0 %v369
          %3259 = vmatprep.subr.mxu0 %v366
          %3260 = vmatpush1.msra.mxu0 %v365
          %3261 = vmatprep.subr.mxu0 0.0
          %3262 = vmatpush2.msra.mxu0 0.0
          %3263 = vmatprep.subr.mxu0 0.0
          %3264 = vmatpush2.msra.mxu0 0.0
          %3265 = vmatprep.subr.mxu0 0.0
          %3266 = vmatpush2.msra.mxu0 0.0
          %3267 = vmatprep.subr.mxu0 0.0
          %3268 = vmatpush2.msra.mxu0 0.0
          %3269 = vmatprep.subr.mxu0 0.0
          %3270 = vmatpush2.msra.mxu0 0.0
          %3271 = vmatprep.subr.mxu0 0.0
          %3272 = vmatpush2.msra.mxu0 0.0
          %3273 = vmatprep.subr.mxu0 0.0
          %3274 = vmatpush2.msra.mxu0 0.0
          %3275 = vmatprep.subr.mxu0 0.0
          %3276 = vmatpush2.msra.mxu0 0.0
          %3277 = vmatprep.subr.mxu0 0.0
          %3278 = vmatpush2.msra.mxu0 0.0
          %3279 = vmatprep.subr.mxu0 0.0
          %3280 = vmatpush2.msra.mxu0 0.0
          %3281 = vmatprep.subr.mxu0 0.0
          %3282 = vmatpush2.msra.mxu0 0.0
          %3283 = vmatprep.subr.mxu0 0.0
          %3284 = vmatpush2.msra.mxu0 0.0
          %3285 = vmatprep.subr.mxu0 0.0
          %3286 = vmatpush2.msra.mxu0 0.0
          %3287 = vmatprep.subr.mxu0 0.0
          %3288 = vmatpush2.msra.mxu0 0.0
          %3289 = vmatprep.subr.mxu0 0.0
          %3290 = vmatpush2.msra.mxu0 0.0
          %3291 = vmatprep.subr.mxu0 0.0
          %3292 = vmatpush2.msra.mxu0 0.0
          %3293 = vmatprep.mubr.f32.mxu0 0.0
          %3294 = vmatmul.mubr.f32.gmra.mxu0 %v2915
          %v3295 = vpop.f32.mrf.mxu0
          %v3296 = vadd.f32 0.0, %v3295
          %v3297 = vpop.f32.mrf.mxu0
          %v3298 = vadd.f32 0.0, %v3297
          %3299 = vdwg.mxu0
          %v3300 = vadd.f32 %v3083, %v3225
          %v3301 = vadd.f32 %v3085, %v3227
          %v3302 = vadd.f32 %v3154, %v3296
          %v3303 = vadd.f32 %v3156, %v3298
          %v3304 = vxor.u32 %v3300, 2147483648
          %v3305 = vmul.f32 %v3304, 1.442695
          %v3306 = vpow.pop %v3305
          %v3307 = vadd.f32 %v3306, 1.0
          %v3308 = vrcp.pop %v3307
          %v3309 = vmul.f32 1.0, %v3308
          %v3310 = vxor.u32 %v3301, 2147483648
          %v3311 = vmul.f32 %v3310, 1.442695
          %v3312 = vpow.pop %v3311
          %v3313 = vadd.f32 %v3312, 1.0
          %v3314 = vrcp.pop %v3313
          %v3315 = vmul.f32 1.0, %v3314
          %v3316 = vtanh.pop %v3302
          %v3317 = vxor.u32 %v3303, 2147483648
          %v3318 = vmul.f32 %v3317, 1.442695
          %v3319 = vpow.pop %v3318
          %v3320 = vadd.f32 %v3319, 1.0
          %v3321 = vrcp.pop %v3320
          %v3322 = vmul.f32 1.0, %v3321
          %v3323 = vmul.f32 %v3315, %v2916
          %v3324 = vmul.f32 %v3309, %v3316
          %v3325 = vadd.f32 %v3323, %v3324
          %v3326 = vtanh.pop %v3325
          %v3327 = vmul.f32 %v3322, %v3326
          %s3328 = sadd.s32 %s334, 6
          %v3329 = vstv %s3328
          %vm3330 = vcmp.lt.s32.totalorder %v3329, %v346
          %v3331 = vsel %vm3330, 1, 0
          %3332 = vset.pattern.permute.xlu0 0
          %3333 = vperm.xlu0 %3332, %v3331
          %v3334 = vpop.permute.xlu0 %3333
          %vm3335 = vcmp.eq.s32.totalorder %v3334, 1
          %v3336 = vsel %vm3335, %v3327, %v2915
          %v3337 = vsel %vm3335, %v3325, %v2916
          %v3338 = vsel %vm3335, %v3327, 0.0
          %v3340 = vcombine.high %v3338, %v3338
          %v3342 = vunpack.c.l.s4 1966171168
          %v3343 = vunpack.c.0.s8 %v3342
          %v3344 = vlaneseq
          %v3345 = vshrl.u32 %v3344, 7
          %v3346 = vsub.s32 %v3343, %v3345
          %v3347 = vrot.slane %v3338, %v3346
          %v3349 = vunpack.c.l.s4 1966171168
          %v3350 = vunpack.c.0.s8 %v3349
          %v3351 = vlaneseq
          %v3352 = vshrl.u32 %v3351, 7
          %v3353 = vsub.s32 %v3350, %v3352
          %v3354 = vrot.slane %v3340, %v3353
          %v3355 = vcombine.high %v3347, %v3347
          %v3356 = vcombine.high %v3354, %v3354
          %v3358 = vunpack.c.l.s4 1966171168
          %v3359 = vunpack.c.0.s8 %v3358
          %v3360 = vlaneseq
          %v3361 = vshrl.u32 %v3360, 7
          %v3362 = vsub.s32 %v3359, %v3361
          %v3363 = vrot.slane %v3347, %v3362
          %v3365 = vunpack.c.l.s4 1966171168
          %v3366 = vunpack.c.0.s8 %v3365
          %v3367 = vlaneseq
          %v3368 = vshrl.u32 %v3367, 7
          %v3369 = vsub.s32 %v3366, %v3368
          %v3370 = vrot.slane %v3354, %v3369
          %v3372 = vunpack.c.l.s4 1966171168
          %v3373 = vunpack.c.0.s8 %v3372
          %v3374 = vlaneseq
          %v3375 = vshrl.u32 %v3374, 7
          %v3376 = vsub.s32 %v3373, %v3375
          %v3377 = vrot.slane %v3355, %v3376
          %v3379 = vunpack.c.l.s4 1966171168
          %v3380 = vunpack.c.0.s8 %v3379
          %v3381 = vlaneseq
          %v3382 = vshrl.u32 %v3381, 7
          %v3383 = vsub.s32 %v3380, %v3382
          %v3384 = vrot.slane %v3356, %v3383
          %v3385 = vcombine.high %v3363, %v3363
          %v3386 = vcombine.high %v3370, %v3370
          %v3387 = vcombine.high %v3377, %v3377
          %v3388 = vcombine.high %v3384, %v3384
          %3397 = vst [vmem:[%s331 + $0x6] sm:$0x1] %v3363
          %3398 = vst [vmem:[%s331 + $0x16] sm:$0x1] %v3377
          %3399 = vst [vmem:[%s331 + $0x26] sm:$0x1] %v3385
          %3400 = vst [vmem:[%s331 + $0x36] sm:$0x1] %v3387
          %3401 = vst [vmem:[%s331 + $0x46] sm:$0x1] %v3370
          %3402 = vst [vmem:[%s331 + $0x56] sm:$0x1] %v3384
          %3403 = vst [vmem:[%s331 + $0x66] sm:$0x1] %v3386
          %3404 = vst [vmem:[%s331 + $0x76] sm:$0x1] %v3388
          %v3405 = vld [vmem:[%s319 + $0x7] sm:$0x1]
          %v3406 = vld [vmem:[%s319 + $0x17] sm:$0x1]
          %v3407 = vld [vmem:[%s319 + $0x27] sm:$0x1]
          %v3408 = vld [vmem:[%s319 + $0x37] sm:$0x1]
          %v3409 = vld [vmem:[%s319 + $0x47] sm:$0x1]
          %v3410 = vld [vmem:[%s319 + $0x57] sm:$0x1]
          %v3411 = vld [vmem:[%s319 + $0x67] sm:$0x1]
          %v3412 = vld [vmem:[%s319 + $0x77] sm:$0x1]
          %v3421 = vrot.slane %v3406, 7
          %v3422 = vsel %vm468, %v3421, %v3405
          %v3423 = vrot.slane %v3407, 6
          %v3424 = vsel %vm471, %v3423, %v3422
          %v3425 = vrot.slane %v3408, 5
          %v3426 = vsel %vm474, %v3425, %v3424
          %v3427 = vrot.slane %v3409, 4
          %v3428 = vsel %vm477, %v3427, %v3426
          %v3429 = vrot.slane %v3410, 3
          %v3430 = vsel %vm480, %v3429, %v3428
          %v3431 = vrot.slane %v3411, 2
          %v3432 = vsel %vm483, %v3431, %v3430
          %v3433 = vrot.slane %v3412, 1
          %v3434 = vsel %vm486, %v3433, %v3432
          %v3435 = vsel %vm488, %v3434, 0
          %3437 = vmatprep.subr.mxu0 0.0
          %3438 = vmatpush1.msra.mxu0 0.0
          %3439 = vmatprep.subr.mxu0 0.0
          %3440 = vmatpush1.msra.mxu0 0.0
          %3441 = vmatprep.subr.mxu0 0.0
          %3442 = vmatpush1.msra.mxu0 0.0
          %3443 = vmatprep.subr.mxu0 0.0
          %3444 = vmatpush1.msra.mxu0 0.0
          %3445 = vmatprep.subr.mxu0 0.0
          %3446 = vmatpush1.msra.mxu0 0.0
          %3447 = vmatprep.subr.mxu0 0.0
          %3448 = vmatpush1.msra.mxu0 0.0
          %3449 = vmatprep.subr.mxu0 0.0
          %3450 = vmatpush1.msra.mxu0 0.0
          %3451 = vmatprep.subr.mxu0 0.0
          %3452 = vmatpush1.msra.mxu0 0.0
          %3453 = vmatprep.subr.mxu0 0.0
          %3454 = vmatpush1.msra.mxu0 0.0
          %3455 = vmatprep.subr.mxu0 0.0
          %3456 = vmatpush1.msra.mxu0 0.0
          %3457 = vmatprep.subr.mxu0 0.0
          %3458 = vmatpush1.msra.mxu0 0.0
          %3459 = vmatprep.subr.mxu0 0.0
          %3460 = vmatpush1.msra.mxu0 0.0
          %3461 = vmatprep.subr.mxu0 %v360
          %3462 = vmatpush1.msra.mxu0 %v359
          %3463 = vmatprep.subr.mxu0 %v356
          %3464 = vmatpush1.msra.mxu0 %v355
          %3465 = vmatprep.subr.mxu0 %v352
          %3466 = vmatpush1.msra.mxu0 %v351
          %3467 = vmatprep.subr.mxu0 %v348
          %3468 = vmatpush1.msra.mxu0 %v347
          %3469 = vmatprep.subr.mxu0 0.0
          %3470 = vmatpush2.msra.mxu0 0.0
          %3471 = vmatprep.subr.mxu0 0.0
          %3472 = vmatpush2.msra.mxu0 0.0
          %3473 = vmatprep.subr.mxu0 0.0
          %3474 = vmatpush2.msra.mxu0 0.0
          %3475 = vmatprep.subr.mxu0 0.0
          %3476 = vmatpush2.msra.mxu0 0.0
          %3477 = vmatprep.subr.mxu0 0.0
          %3478 = vmatpush2.msra.mxu0 0.0
          %3479 = vmatprep.subr.mxu0 0.0
          %3480 = vmatpush2.msra.mxu0 0.0
          %3481 = vmatprep.subr.mxu0 0.0
          %3482 = vmatpush2.msra.mxu0 0.0
          %3483 = vmatprep.subr.mxu0 0.0
          %3484 = vmatpush2.msra.mxu0 0.0
          %3485 = vmatprep.subr.mxu0 0.0
          %3486 = vmatpush2.msra.mxu0 0.0
          %3487 = vmatprep.subr.mxu0 0.0
          %3488 = vmatpush2.msra.mxu0 0.0
          %3489 = vmatprep.subr.mxu0 0.0
          %3490 = vmatpush2.msra.mxu0 0.0
          %3491 = vmatprep.subr.mxu0 0.0
          %3492 = vmatpush2.msra.mxu0 0.0
          %3493 = vmatprep.subr.mxu0 0.0
          %3494 = vmatpush2.msra.mxu0 0.0
          %3495 = vmatprep.subr.mxu0 0.0
          %3496 = vmatpush2.msra.mxu0 0.0
          %3497 = vmatprep.subr.mxu0 0.0
          %3498 = vmatpush2.msra.mxu0 0.0
          %3499 = vmatprep.subr.mxu0 0.0
          %3500 = vmatpush2.msra.mxu0 0.0
          %3501 = vmatprep.mubr.f32.mxu0 0.0
          %3502 = vmatmul.mubr.f32.gmra.mxu0 %v3435
          %v3503 = vpop.f32.mrf.mxu0
          %v3504 = vadd.f32 %v442, %v3503
          %v3505 = vpop.f32.mrf.mxu0
          %v3506 = vadd.f32 %v446, %v3505
          %3507 = vdwg.mxu0
          %3508 = vmatprep.subr.mxu0 0.0
          %3509 = vmatpush1.msra.mxu0 0.0
          %3510 = vmatprep.subr.mxu0 0.0
          %3511 = vmatpush1.msra.mxu0 0.0
          %3512 = vmatprep.subr.mxu0 0.0
          %3513 = vmatpush1.msra.mxu0 0.0
          %3514 = vmatprep.subr.mxu0 0.0
          %3515 = vmatpush1.msra.mxu0 0.0
          %3516 = vmatprep.subr.mxu0 0.0
          %3517 = vmatpush1.msra.mxu0 0.0
          %3518 = vmatprep.subr.mxu0 0.0
          %3519 = vmatpush1.msra.mxu0 0.0
          %3520 = vmatprep.subr.mxu0 0.0
          %3521 = vmatpush1.msra.mxu0 0.0
          %3522 = vmatprep.subr.mxu0 0.0
          %3523 = vmatpush1.msra.mxu0 0.0
          %3524 = vmatprep.subr.mxu0 0.0
          %3525 = vmatpush1.msra.mxu0 0.0
          %3526 = vmatprep.subr.mxu0 0.0
          %3527 = vmatpush1.msra.mxu0 0.0
          %3528 = vmatprep.subr.mxu0 0.0
          %3529 = vmatpush1.msra.mxu0 0.0
          %3530 = vmatprep.subr.mxu0 0.0
          %3531 = vmatpush1.msra.mxu0 0.0
          %3532 = vmatprep.subr.mxu0 %v362
          %3533 = vmatpush1.msra.mxu0 %v361
          %3534 = vmatprep.subr.mxu0 %v358
          %3535 = vmatpush1.msra.mxu0 %v357
          %3536 = vmatprep.subr.mxu0 %v354
          %3537 = vmatpush1.msra.mxu0 %v353
          %3538 = vmatprep.subr.mxu0 %v350
          %3539 = vmatpush1.msra.mxu0 %v349
          %3540 = vmatprep.subr.mxu0 0.0
          %3541 = vmatpush2.msra.mxu0 0.0
          %3542 = vmatprep.subr.mxu0 0.0
          %3543 = vmatpush2.msra.mxu0 0.0
          %3544 = vmatprep.subr.mxu0 0.0
          %3545 = vmatpush2.msra.mxu0 0.0
          %3546 = vmatprep.subr.mxu0 0.0
          %3547 = vmatpush2.msra.mxu0 0.0
          %3548 = vmatprep.subr.mxu0 0.0
          %3549 = vmatpush2.msra.mxu0 0.0
          %3550 = vmatprep.subr.mxu0 0.0
          %3551 = vmatpush2.msra.mxu0 0.0
          %3552 = vmatprep.subr.mxu0 0.0
          %3553 = vmatpush2.msra.mxu0 0.0
          %3554 = vmatprep.subr.mxu0 0.0
          %3555 = vmatpush2.msra.mxu0 0.0
          %3556 = vmatprep.subr.mxu0 0.0
          %3557 = vmatpush2.msra.mxu0 0.0
          %3558 = vmatprep.subr.mxu0 0.0
          %3559 = vmatpush2.msra.mxu0 0.0
          %3560 = vmatprep.subr.mxu0 0.0
          %3561 = vmatpush2.msra.mxu0 0.0
          %3562 = vmatprep.subr.mxu0 0.0
          %3563 = vmatpush2.msra.mxu0 0.0
          %3564 = vmatprep.subr.mxu0 0.0
          %3565 = vmatpush2.msra.mxu0 0.0
          %3566 = vmatprep.subr.mxu0 0.0
          %3567 = vmatpush2.msra.mxu0 0.0
          %3568 = vmatprep.subr.mxu0 0.0
          %3569 = vmatpush2.msra.mxu0 0.0
          %3570 = vmatprep.subr.mxu0 0.0
          %3571 = vmatpush2.msra.mxu0 0.0
          %3572 = vmatprep.mubr.f32.mxu0 0.0
          %3573 = vmatmul.mubr.f32.gmra.mxu0 %v3435
          %v3574 = vpop.f32.mrf.mxu0
          %v3575 = vadd.f32 %v450, %v3574
          %v3576 = vpop.f32.mrf.mxu0
          %v3577 = vadd.f32 %v454, %v3576
          %3578 = vdwg.mxu0
          %3579 = vmatprep.subr.mxu0 %v424
          %3580 = vmatpush1.msra.mxu0 %v423
          %3581 = vmatprep.subr.mxu0 %v420
          %3582 = vmatpush1.msra.mxu0 %v419
          %3583 = vmatprep.subr.mxu0 %v416
          %3584 = vmatpush1.msra.mxu0 %v415
          %3585 = vmatprep.subr.mxu0 %v412
          %3586 = vmatpush1.msra.mxu0 %v411
          %3587 = vmatprep.subr.mxu0 %v408
          %3588 = vmatpush1.msra.mxu0 %v407
          %3589 = vmatprep.subr.mxu0 %v404
          %3590 = vmatpush1.msra.mxu0 %v403
          %3591 = vmatprep.subr.mxu0 %v400
          %3592 = vmatpush1.msra.mxu0 %v399
          %3593 = vmatprep.subr.mxu0 %v396
          %3594 = vmatpush1.msra.mxu0 %v395
          %3595 = vmatprep.subr.mxu0 %v392
          %3596 = vmatpush1.msra.mxu0 %v391
          %3597 = vmatprep.subr.mxu0 %v388
          %3598 = vmatpush1.msra.mxu0 %v387
          %3599 = vmatprep.subr.mxu0 %v384
          %3600 = vmatpush1.msra.mxu0 %v383
          %3601 = vmatprep.subr.mxu0 %v380
          %3602 = vmatpush1.msra.mxu0 %v379
          %3603 = vmatprep.subr.mxu0 %v376
          %3604 = vmatpush1.msra.mxu0 %v375
          %3605 = vmatprep.subr.mxu0 %v372
          %3606 = vmatpush1.msra.mxu0 %v371
          %3607 = vmatprep.subr.mxu0 %v368
          %3608 = vmatpush1.msra.mxu0 %v367
          %3609 = vmatprep.subr.mxu0 %v364
          %3610 = vmatpush1.msra.mxu0 %v363
          %3611 = vmatprep.subr.mxu0 0.0
          %3612 = vmatpush2.msra.mxu0 0.0
          %3613 = vmatprep.subr.mxu0 0.0
          %3614 = vmatpush2.msra.mxu0 0.0
          %3615 = vmatprep.subr.mxu0 0.0
          %3616 = vmatpush2.msra.mxu0 0.0
          %3617 = vmatprep.subr.mxu0 0.0
          %3618 = vmatpush2.msra.mxu0 0.0
          %3619 = vmatprep.subr.mxu0 0.0
          %3620 = vmatpush2.msra.mxu0 0.0
          %3621 = vmatprep.subr.mxu0 0.0
          %3622 = vmatpush2.msra.mxu0 0.0
          %3623 = vmatprep.subr.mxu0 0.0
          %3624 = vmatpush2.msra.mxu0 0.0
          %3625 = vmatprep.subr.mxu0 0.0
          %3626 = vmatpush2.msra.mxu0 0.0
          %3627 = vmatprep.subr.mxu0 0.0
          %3628 = vmatpush2.msra.mxu0 0.0
          %3629 = vmatprep.subr.mxu0 0.0
          %3630 = vmatpush2.msra.mxu0 0.0
          %3631 = vmatprep.subr.mxu0 0.0
          %3632 = vmatpush2.msra.mxu0 0.0
          %3633 = vmatprep.subr.mxu0 0.0
          %3634 = vmatpush2.msra.mxu0 0.0
          %3635 = vmatprep.subr.mxu0 0.0
          %3636 = vmatpush2.msra.mxu0 0.0
          %3637 = vmatprep.subr.mxu0 0.0
          %3638 = vmatpush2.msra.mxu0 0.0
          %3639 = vmatprep.subr.mxu0 0.0
          %3640 = vmatpush2.msra.mxu0 0.0
          %3641 = vmatprep.subr.mxu0 0.0
          %3642 = vmatpush2.msra.mxu0 0.0
          %3643 = vmatprep.mubr.f32.mxu0 0.0
          %3644 = vmatmul.mubr.f32.gmra.mxu0 %v3336
          %v3645 = vpop.f32.mrf.mxu0
          %v3646 = vadd.f32 0.0, %v3645
          %v3647 = vpop.f32.mrf.mxu0
          %v3648 = vadd.f32 0.0, %v3647
          %3649 = vdwg.mxu0
          %3650 = vmatprep.subr.mxu0 %v426
          %3651 = vmatpush1.msra.mxu0 %v425
          %3652 = vmatprep.subr.mxu0 %v422
          %3653 = vmatpush1.msra.mxu0 %v421
          %3654 = vmatprep.subr.mxu0 %v418
          %3655 = vmatpush1.msra.mxu0 %v417
          %3656 = vmatprep.subr.mxu0 %v414
          %3657 = vmatpush1.msra.mxu0 %v413
          %3658 = vmatprep.subr.mxu0 %v410
          %3659 = vmatpush1.msra.mxu0 %v409
          %3660 = vmatprep.subr.mxu0 %v406
          %3661 = vmatpush1.msra.mxu0 %v405
          %3662 = vmatprep.subr.mxu0 %v402
          %3663 = vmatpush1.msra.mxu0 %v401
          %3664 = vmatprep.subr.mxu0 %v398
          %3665 = vmatpush1.msra.mxu0 %v397
          %3666 = vmatprep.subr.mxu0 %v394
          %3667 = vmatpush1.msra.mxu0 %v393
          %3668 = vmatprep.subr.mxu0 %v390
          %3669 = vmatpush1.msra.mxu0 %v389
          %3670 = vmatprep.subr.mxu0 %v386
          %3671 = vmatpush1.msra.mxu0 %v385
          %3672 = vmatprep.subr.mxu0 %v382
          %3673 = vmatpush1.msra.mxu0 %v381
          %3674 = vmatprep.subr.mxu0 %v378
          %3675 = vmatpush1.msra.mxu0 %v377
          %3676 = vmatprep.subr.mxu0 %v374
          %3677 = vmatpush1.msra.mxu0 %v373
          %3678 = vmatprep.subr.mxu0 %v370
          %3679 = vmatpush1.msra.mxu0 %v369
          %3680 = vmatprep.subr.mxu0 %v366
          %3681 = vmatpush1.msra.mxu0 %v365
          %3682 = vmatprep.subr.mxu0 0.0
          %3683 = vmatpush2.msra.mxu0 0.0
          %3684 = vmatprep.subr.mxu0 0.0
          %3685 = vmatpush2.msra.mxu0 0.0
          %3686 = vmatprep.subr.mxu0 0.0
          %3687 = vmatpush2.msra.mxu0 0.0
          %3688 = vmatprep.subr.mxu0 0.0
          %3689 = vmatpush2.msra.mxu0 0.0
          %3690 = vmatprep.subr.mxu0 0.0
          %3691 = vmatpush2.msra.mxu0 0.0
          %3692 = vmatprep.subr.mxu0 0.0
          %3693 = vmatpush2.msra.mxu0 0.0
          %3694 = vmatprep.subr.mxu0 0.0
          %3695 = vmatpush2.msra.mxu0 0.0
          %3696 = vmatprep.subr.mxu0 0.0
          %3697 = vmatpush2.msra.mxu0 0.0
          %3698 = vmatprep.subr.mxu0 0.0
          %3699 = vmatpush2.msra.mxu0 0.0
          %3700 = vmatprep.subr.mxu0 0.0
          %3701 = vmatpush2.msra.mxu0 0.0
          %3702 = vmatprep.subr.mxu0 0.0
          %3703 = vmatpush2.msra.mxu0 0.0
          %3704 = vmatprep.subr.mxu0 0.0
          %3705 = vmatpush2.msra.mxu0 0.0
          %3706 = vmatprep.subr.mxu0 0.0
          %3707 = vmatpush2.msra.mxu0 0.0
          %3708 = vmatprep.subr.mxu0 0.0
          %3709 = vmatpush2.msra.mxu0 0.0
          %3710 = vmatprep.subr.mxu0 0.0
          %3711 = vmatpush2.msra.mxu0 0.0
          %3712 = vmatprep.subr.mxu0 0.0
          %3713 = vmatpush2.msra.mxu0 0.0
          %3714 = vmatprep.mubr.f32.mxu0 0.0
          %3715 = vmatmul.mubr.f32.gmra.mxu0 %v3336
          %v3716 = vpop.f32.mrf.mxu0
          %v3717 = vadd.f32 0.0, %v3716
          %v3718 = vpop.f32.mrf.mxu0
          %v3719 = vadd.f32 0.0, %v3718
          %3720 = vdwg.mxu0
          %v3721 = vadd.f32 %v3504, %v3646
          %v3722 = vadd.f32 %v3506, %v3648
          %v3723 = vadd.f32 %v3575, %v3717
          %v3724 = vadd.f32 %v3577, %v3719
          %v3725 = vxor.u32 %v3721, 2147483648
          %v3726 = vmul.f32 %v3725, 1.442695
          %v3727 = vpow.pop %v3726
          %v3728 = vadd.f32 %v3727, 1.0
          %v3729 = vrcp.pop %v3728
          %v3730 = vmul.f32 1.0, %v3729
          %v3731 = vxor.u32 %v3722, 2147483648
          %v3732 = vmul.f32 %v3731, 1.442695
          %v3733 = vpow.pop %v3732
          %v3734 = vadd.f32 %v3733, 1.0
          %v3735 = vrcp.pop %v3734
          %v3736 = vmul.f32 1.0, %v3735
          %v3737 = vtanh.pop %v3723
          %v3738 = vxor.u32 %v3724, 2147483648
          %v3739 = vmul.f32 %v3738, 1.442695
          %v3740 = vpow.pop %v3739
          %v3741 = vadd.f32 %v3740, 1.0
          %v3742 = vrcp.pop %v3741
          %v3743 = vmul.f32 1.0, %v3742
          %v3744 = vmul.f32 %v3736, %v3337
          %v3745 = vmul.f32 %v3730, %v3737
          %v3746 = vadd.f32 %v3744, %v3745
          %v3747 = vtanh.pop %v3746
          %v3748 = vmul.f32 %v3743, %v3747
          %s3749 = sadd.s32 %s334, 7
          %v3750 = vstv %s3749
          %vm3751 = vcmp.lt.s32.totalorder %v3750, %v346
          %v3752 = vsel %vm3751, 1, 0
          %3753 = vset.pattern.permute.xlu0 0
          %3754 = vperm.xlu0 %3753, %v3752
          %v3755 = vpop.permute.xlu0 %3754
          %vm3756 = vcmp.eq.s32.totalorder %v3755, 1
          %v3757 = vsel %vm3756, %v3748, %v3336
          %v3758 = vsel %vm3756, %v3746, %v3337
          %v3759 = vsel %vm3756, %v3748, 0.0
          %v3761 = vcombine.high %v3759, %v3759
          %v3763 = vunpack.c.l.s4 1966171168
          %v3764 = vunpack.c.0.s8 %v3763
          %v3765 = vlaneseq
          %v3766 = vshrl.u32 %v3765, 7
          %v3767 = vsub.s32 %v3764, %v3766
          %v3768 = vrot.slane %v3759, %v3767
          %v3770 = vunpack.c.l.s4 1966171168
          %v3771 = vunpack.c.0.s8 %v3770
          %v3772 = vlaneseq
          %v3773 = vshrl.u32 %v3772, 7
          %v3774 = vsub.s32 %v3771, %v3773
          %v3775 = vrot.slane %v3761, %v3774
          %v3776 = vcombine.high %v3768, %v3768
          %v3777 = vcombine.high %v3775, %v3775
          %v3779 = vunpack.c.l.s4 1966171168
          %v3780 = vunpack.c.0.s8 %v3779
          %v3781 = vlaneseq
          %v3782 = vshrl.u32 %v3781, 7
          %v3783 = vsub.s32 %v3780, %v3782
          %v3784 = vrot.slane %v3768, %v3783
          %v3786 = vunpack.c.l.s4 1966171168
          %v3787 = vunpack.c.0.s8 %v3786
          %v3788 = vlaneseq
          %v3789 = vshrl.u32 %v3788, 7
          %v3790 = vsub.s32 %v3787, %v3789
          %v3791 = vrot.slane %v3775, %v3790
          %v3793 = vunpack.c.l.s4 1966171168
          %v3794 = vunpack.c.0.s8 %v3793
          %v3795 = vlaneseq
          %v3796 = vshrl.u32 %v3795, 7
          %v3797 = vsub.s32 %v3794, %v3796
          %v3798 = vrot.slane %v3776, %v3797
          %v3800 = vunpack.c.l.s4 1966171168
          %v3801 = vunpack.c.0.s8 %v3800
          %v3802 = vlaneseq
          %v3803 = vshrl.u32 %v3802, 7
          %v3804 = vsub.s32 %v3801, %v3803
          %v3805 = vrot.slane %v3777, %v3804
          %v3806 = vcombine.high %v3784, %v3784
          %v3807 = vcombine.high %v3791, %v3791
          %v3808 = vcombine.high %v3798, %v3798
          %v3809 = vcombine.high %v3805, %v3805
          %3818 = vst [vmem:[%s331 + $0x7] sm:$0x1] %v3784
          %3819 = vst [vmem:[%s331 + $0x17] sm:$0x1] %v3798
          %3820 = vst [vmem:[%s331 + $0x27] sm:$0x1] %v3806
          %3821 = vst [vmem:[%s331 + $0x37] sm:$0x1] %v3808
          %3822 = vst [vmem:[%s331 + $0x47] sm:$0x1] %v3791
          %3823 = vst [vmem:[%s331 + $0x57] sm:$0x1] %v3805
          %3824 = vst [vmem:[%s331 + $0x67] sm:$0x1] %v3807
          %3825 = vst [vmem:[%s331 + $0x77] sm:$0x1] %v3809
          %v3826 = vld [vmem:[%s319 + $0x8] sm:$0x1]
          %v3827 = vld [vmem:[%s319 + $0x18] sm:$0x1]
          %v3828 = vld [vmem:[%s319 + $0x28] sm:$0x1]
          %v3829 = vld [vmem:[%s319 + $0x38] sm:$0x1]
          %v3830 = vld [vmem:[%s319 + $0x48] sm:$0x1]
          %v3831 = vld [vmem:[%s319 + $0x58] sm:$0x1]
          %v3832 = vld [vmem:[%s319 + $0x68] sm:$0x1]
          %v3833 = vld [vmem:[%s319 + $0x78] sm:$0x1]
          %v3842 = vrot.slane %v3827, 7
          %v3843 = vsel %vm468, %v3842, %v3826
          %v3844 = vrot.slane %v3828, 6
          %v3845 = vsel %vm471, %v3844, %v3843
          %v3846 = vrot.slane %v3829, 5
          %v3847 = vsel %vm474, %v3846, %v3845
          %v3848 = vrot.slane %v3830, 4
          %v3849 = vsel %vm477, %v3848, %v3847
          %v3850 = vrot.slane %v3831, 3
          %v3851 = vsel %vm480, %v3850, %v3849
          %v3852 = vrot.slane %v3832, 2
          %v3853 = vsel %vm483, %v3852, %v3851
          %v3854 = vrot.slane %v3833, 1
          %v3855 = vsel %vm486, %v3854, %v3853
          %v3856 = vsel %vm488, %v3855, 0
          %3858 = vmatprep.subr.mxu0 0.0
          %3859 = vmatpush1.msra.mxu0 0.0
          %3860 = vmatprep.subr.mxu0 0.0
          %3861 = vmatpush1.msra.mxu0 0.0
          %3862 = vmatprep.subr.mxu0 0.0
          %3863 = vmatpush1.msra.mxu0 0.0
          %3864 = vmatprep.subr.mxu0 0.0
          %3865 = vmatpush1.msra.mxu0 0.0
          %3866 = vmatprep.subr.mxu0 0.0
          %3867 = vmatpush1.msra.mxu0 0.0
          %3868 = vmatprep.subr.mxu0 0.0
          %3869 = vmatpush1.msra.mxu0 0.0
          %3870 = vmatprep.subr.mxu0 0.0
          %3871 = vmatpush1.msra.mxu0 0.0
          %3872 = vmatprep.subr.mxu0 0.0
          %3873 = vmatpush1.msra.mxu0 0.0
          %3874 = vmatprep.subr.mxu0 0.0
          %3875 = vmatpush1.msra.mxu0 0.0
          %3876 = vmatprep.subr.mxu0 0.0
          %3877 = vmatpush1.msra.mxu0 0.0
          %3878 = vmatprep.subr.mxu0 0.0
          %3879 = vmatpush1.msra.mxu0 0.0
          %3880 = vmatprep.subr.mxu0 0.0
          %3881 = vmatpush1.msra.mxu0 0.0
          %3882 = vmatprep.subr.mxu0 %v360
          %3883 = vmatpush1.msra.mxu0 %v359
          %3884 = vmatprep.subr.mxu0 %v356
          %3885 = vmatpush1.msra.mxu0 %v355
          %3886 = vmatprep.subr.mxu0 %v352
          %3887 = vmatpush1.msra.mxu0 %v351
          %3888 = vmatprep.subr.mxu0 %v348
          %3889 = vmatpush1.msra.mxu0 %v347
          %3890 = vmatprep.subr.mxu0 0.0
          %3891 = vmatpush2.msra.mxu0 0.0
          %3892 = vmatprep.subr.mxu0 0.0
          %3893 = vmatpush2.msra.mxu0 0.0
          %3894 = vmatprep.subr.mxu0 0.0
          %3895 = vmatpush2.msra.mxu0 0.0
          %3896 = vmatprep.subr.mxu0 0.0
          %3897 = vmatpush2.msra.mxu0 0.0
          %3898 = vmatprep.subr.mxu0 0.0
          %3899 = vmatpush2.msra.mxu0 0.0
          %3900 = vmatprep.subr.mxu0 0.0
          %3901 = vmatpush2.msra.mxu0 0.0
          %3902 = vmatprep.subr.mxu0 0.0
          %3903 = vmatpush2.msra.mxu0 0.0
          %3904 = vmatprep.subr.mxu0 0.0
          %3905 = vmatpush2.msra.mxu0 0.0
          %3906 = vmatprep.subr.mxu0 0.0
          %3907 = vmatpush2.msra.mxu0 0.0
          %3908 = vmatprep.subr.mxu0 0.0
          %3909 = vmatpush2.msra.mxu0 0.0
          %3910 = vmatprep.subr.mxu0 0.0
          %3911 = vmatpush2.msra.mxu0 0.0
          %3912 = vmatprep.subr.mxu0 0.0
          %3913 = vmatpush2.msra.mxu0 0.0
          %3914 = vmatprep.subr.mxu0 0.0
          %3915 = vmatpush2.msra.mxu0 0.0
          %3916 = vmatprep.subr.mxu0 0.0
          %3917 = vmatpush2.msra.mxu0 0.0
          %3918 = vmatprep.subr.mxu0 0.0
          %3919 = vmatpush2.msra.mxu0 0.0
          %3920 = vmatprep.subr.mxu0 0.0
          %3921 = vmatpush2.msra.mxu0 0.0
          %3922 = vmatprep.mubr.f32.mxu0 0.0
          %3923 = vmatmul.mubr.f32.gmra.mxu0 %v3856
          %v3924 = vpop.f32.mrf.mxu0
          %v3925 = vadd.f32 %v442, %v3924
          %v3926 = vpop.f32.mrf.mxu0
          %v3927 = vadd.f32 %v446, %v3926
          %3928 = vdwg.mxu0
          %3929 = vmatprep.subr.mxu0 0.0
          %3930 = vmatpush1.msra.mxu0 0.0
          %3931 = vmatprep.subr.mxu0 0.0
          %3932 = vmatpush1.msra.mxu0 0.0
          %3933 = vmatprep.subr.mxu0 0.0
          %3934 = vmatpush1.msra.mxu0 0.0
          %3935 = vmatprep.subr.mxu0 0.0
          %3936 = vmatpush1.msra.mxu0 0.0
          %3937 = vmatprep.subr.mxu0 0.0
          %3938 = vmatpush1.msra.mxu0 0.0
          %3939 = vmatprep.subr.mxu0 0.0
          %3940 = vmatpush1.msra.mxu0 0.0
          %3941 = vmatprep.subr.mxu0 0.0
          %3942 = vmatpush1.msra.mxu0 0.0
          %3943 = vmatprep.subr.mxu0 0.0
          %3944 = vmatpush1.msra.mxu0 0.0
          %3945 = vmatprep.subr.mxu0 0.0
          %3946 = vmatpush1.msra.mxu0 0.0
          %3947 = vmatprep.subr.mxu0 0.0
          %3948 = vmatpush1.msra.mxu0 0.0
          %3949 = vmatprep.subr.mxu0 0.0
          %3950 = vmatpush1.msra.mxu0 0.0
          %3951 = vmatprep.subr.mxu0 0.0
          %3952 = vmatpush1.msra.mxu0 0.0
          %3953 = vmatprep.subr.mxu0 %v362
          %3954 = vmatpush1.msra.mxu0 %v361
          %3955 = vmatprep.subr.mxu0 %v358
          %3956 = vmatpush1.msra.mxu0 %v357
          %3957 = vmatprep.subr.mxu0 %v354
          %3958 = vmatpush1.msra.mxu0 %v353
          %3959 = vmatprep.subr.mxu0 %v350
          %3960 = vmatpush1.msra.mxu0 %v349
          %3961 = vmatprep.subr.mxu0 0.0
          %3962 = vmatpush2.msra.mxu0 0.0
          %3963 = vmatprep.subr.mxu0 0.0
          %3964 = vmatpush2.msra.mxu0 0.0
          %3965 = vmatprep.subr.mxu0 0.0
          %3966 = vmatpush2.msra.mxu0 0.0
          %3967 = vmatprep.subr.mxu0 0.0
          %3968 = vmatpush2.msra.mxu0 0.0
          %3969 = vmatprep.subr.mxu0 0.0
          %3970 = vmatpush2.msra.mxu0 0.0
          %3971 = vmatprep.subr.mxu0 0.0
          %3972 = vmatpush2.msra.mxu0 0.0
          %3973 = vmatprep.subr.mxu0 0.0
          %3974 = vmatpush2.msra.mxu0 0.0
          %3975 = vmatprep.subr.mxu0 0.0
          %3976 = vmatpush2.msra.mxu0 0.0
          %3977 = vmatprep.subr.mxu0 0.0
          %3978 = vmatpush2.msra.mxu0 0.0
          %3979 = vmatprep.subr.mxu0 0.0
          %3980 = vmatpush2.msra.mxu0 0.0
          %3981 = vmatprep.subr.mxu0 0.0
          %3982 = vmatpush2.msra.mxu0 0.0
          %3983 = vmatprep.subr.mxu0 0.0
          %3984 = vmatpush2.msra.mxu0 0.0
          %3985 = vmatprep.subr.mxu0 0.0
          %3986 = vmatpush2.msra.mxu0 0.0
          %3987 = vmatprep.subr.mxu0 0.0
          %3988 = vmatpush2.msra.mxu0 0.0
          %3989 = vmatprep.subr.mxu0 0.0
          %3990 = vmatpush2.msra.mxu0 0.0
          %3991 = vmatprep.subr.mxu0 0.0
          %3992 = vmatpush2.msra.mxu0 0.0
          %3993 = vmatprep.mubr.f32.mxu0 0.0
          %3994 = vmatmul.mubr.f32.gmra.mxu0 %v3856
          %v3995 = vpop.f32.mrf.mxu0
          %v3996 = vadd.f32 %v450, %v3995
          %v3997 = vpop.f32.mrf.mxu0
          %v3998 = vadd.f32 %v454, %v3997
          %3999 = vdwg.mxu0
          %4000 = vmatprep.subr.mxu0 %v424
          %4001 = vmatpush1.msra.mxu0 %v423
          %4002 = vmatprep.subr.mxu0 %v420
          %4003 = vmatpush1.msra.mxu0 %v419
          %4004 = vmatprep.subr.mxu0 %v416
          %4005 = vmatpush1.msra.mxu0 %v415
          %4006 = vmatprep.subr.mxu0 %v412
          %4007 = vmatpush1.msra.mxu0 %v411
          %4008 = vmatprep.subr.mxu0 %v408
          %4009 = vmatpush1.msra.mxu0 %v407
          %4010 = vmatprep.subr.mxu0 %v404
          %4011 = vmatpush1.msra.mxu0 %v403
          %4012 = vmatprep.subr.mxu0 %v400
          %4013 = vmatpush1.msra.mxu0 %v399
          %4014 = vmatprep.subr.mxu0 %v396
          %4015 = vmatpush1.msra.mxu0 %v395
          %4016 = vmatprep.subr.mxu0 %v392
          %4017 = vmatpush1.msra.mxu0 %v391
          %4018 = vmatprep.subr.mxu0 %v388
          %4019 = vmatpush1.msra.mxu0 %v387
          %4020 = vmatprep.subr.mxu0 %v384
          %4021 = vmatpush1.msra.mxu0 %v383
          %4022 = vmatprep.subr.mxu0 %v380
          %4023 = vmatpush1.msra.mxu0 %v379
          %4024 = vmatprep.subr.mxu0 %v376
          %4025 = vmatpush1.msra.mxu0 %v375
          %4026 = vmatprep.subr.mxu0 %v372
          %4027 = vmatpush1.msra.mxu0 %v371
          %4028 = vmatprep.subr.mxu0 %v368
          %4029 = vmatpush1.msra.mxu0 %v367
          %4030 = vmatprep.subr.mxu0 %v364
          %4031 = vmatpush1.msra.mxu0 %v363
          %4032 = vmatprep.subr.mxu0 0.0
          %4033 = vmatpush2.msra.mxu0 0.0
          %4034 = vmatprep.subr.mxu0 0.0
          %4035 = vmatpush2.msra.mxu0 0.0
          %4036 = vmatprep.subr.mxu0 0.0
          %4037 = vmatpush2.msra.mxu0 0.0
          %4038 = vmatprep.subr.mxu0 0.0
          %4039 = vmatpush2.msra.mxu0 0.0
          %4040 = vmatprep.subr.mxu0 0.0
          %4041 = vmatpush2.msra.mxu0 0.0
          %4042 = vmatprep.subr.mxu0 0.0
          %4043 = vmatpush2.msra.mxu0 0.0
          %4044 = vmatprep.subr.mxu0 0.0
          %4045 = vmatpush2.msra.mxu0 0.0
          %4046 = vmatprep.subr.mxu0 0.0
          %4047 = vmatpush2.msra.mxu0 0.0
          %4048 = vmatprep.subr.mxu0 0.0
          %4049 = vmatpush2.msra.mxu0 0.0
          %4050 = vmatprep.subr.mxu0 0.0
          %4051 = vmatpush2.msra.mxu0 0.0
          %4052 = vmatprep.subr.mxu0 0.0
          %4053 = vmatpush2.msra.mxu0 0.0
          %4054 = vmatprep.subr.mxu0 0.0
          %4055 = vmatpush2.msra.mxu0 0.0
          %4056 = vmatprep.subr.mxu0 0.0
          %4057 = vmatpush2.msra.mxu0 0.0
          %4058 = vmatprep.subr.mxu0 0.0
          %4059 = vmatpush2.msra.mxu0 0.0
          %4060 = vmatprep.subr.mxu0 0.0
          %4061 = vmatpush2.msra.mxu0 0.0
          %4062 = vmatprep.subr.mxu0 0.0
          %4063 = vmatpush2.msra.mxu0 0.0
          %4064 = vmatprep.mubr.f32.mxu0 0.0
          %4065 = vmatmul.mubr.f32.gmra.mxu0 %v3757
          %v4066 = vpop.f32.mrf.mxu0
          %v4067 = vadd.f32 0.0, %v4066
          %v4068 = vpop.f32.mrf.mxu0
          %v4069 = vadd.f32 0.0, %v4068
          %4070 = vdwg.mxu0
          %4071 = vmatprep.subr.mxu0 %v426
          %4072 = vmatpush1.msra.mxu0 %v425
          %4073 = vmatprep.subr.mxu0 %v422
          %4074 = vmatpush1.msra.mxu0 %v421
          %4075 = vmatprep.subr.mxu0 %v418
          %4076 = vmatpush1.msra.mxu0 %v417
          %4077 = vmatprep.subr.mxu0 %v414
          %4078 = vmatpush1.msra.mxu0 %v413
          %4079 = vmatprep.subr.mxu0 %v410
          %4080 = vmatpush1.msra.mxu0 %v409
          %4081 = vmatprep.subr.mxu0 %v406
          %4082 = vmatpush1.msra.mxu0 %v405
          %4083 = vmatprep.subr.mxu0 %v402
          %4084 = vmatpush1.msra.mxu0 %v401
          %4085 = vmatprep.subr.mxu0 %v398
          %4086 = vmatpush1.msra.mxu0 %v397
          %4087 = vmatprep.subr.mxu0 %v394
          %4088 = vmatpush1.msra.mxu0 %v393
          %4089 = vmatprep.subr.mxu0 %v390
          %4090 = vmatpush1.msra.mxu0 %v389
          %4091 = vmatprep.subr.mxu0 %v386
          %4092 = vmatpush1.msra.mxu0 %v385
          %4093 = vmatprep.subr.mxu0 %v382
          %4094 = vmatpush1.msra.mxu0 %v381
          %4095 = vmatprep.subr.mxu0 %v378
          %4096 = vmatpush1.msra.mxu0 %v377
          %4097 = vmatprep.subr.mxu0 %v374
          %4098 = vmatpush1.msra.mxu0 %v373
          %4099 = vmatprep.subr.mxu0 %v370
          %4100 = vmatpush1.msra.mxu0 %v369
          %4101 = vmatprep.subr.mxu0 %v366
          %4102 = vmatpush1.msra.mxu0 %v365
          %4103 = vmatprep.subr.mxu0 0.0
          %4104 = vmatpush2.msra.mxu0 0.0
          %4105 = vmatprep.subr.mxu0 0.0
          %4106 = vmatpush2.msra.mxu0 0.0
          %4107 = vmatprep.subr.mxu0 0.0
          %4108 = vmatpush2.msra.mxu0 0.0
          %4109 = vmatprep.subr.mxu0 0.0
          %4110 = vmatpush2.msra.mxu0 0.0
          %4111 = vmatprep.subr.mxu0 0.0
          %4112 = vmatpush2.msra.mxu0 0.0
          %4113 = vmatprep.subr.mxu0 0.0
          %4114 = vmatpush2.msra.mxu0 0.0
          %4115 = vmatprep.subr.mxu0 0.0
          %4116 = vmatpush2.msra.mxu0 0.0
          %4117 = vmatprep.subr.mxu0 0.0
          %4118 = vmatpush2.msra.mxu0 0.0
          %4119 = vmatprep.subr.mxu0 0.0
          %4120 = vmatpush2.msra.mxu0 0.0
          %4121 = vmatprep.subr.mxu0 0.0
          %4122 = vmatpush2.msra.mxu0 0.0
          %4123 = vmatprep.subr.mxu0 0.0
          %4124 = vmatpush2.msra.mxu0 0.0
          %4125 = vmatprep.subr.mxu0 0.0
          %4126 = vmatpush2.msra.mxu0 0.0
          %4127 = vmatprep.subr.mxu0 0.0
          %4128 = vmatpush2.msra.mxu0 0.0
          %4129 = vmatprep.subr.mxu0 0.0
          %4130 = vmatpush2.msra.mxu0 0.0
          %4131 = vmatprep.subr.mxu0 0.0
          %4132 = vmatpush2.msra.mxu0 0.0
          %4133 = vmatprep.subr.mxu0 0.0
          %4134 = vmatpush2.msra.mxu0 0.0
          %4135 = vmatprep.mubr.f32.mxu0 0.0
          %4136 = vmatmul.mubr.f32.gmra.mxu0 %v3757
          %v4137 = vpop.f32.mrf.mxu0
          %v4138 = vadd.f32 0.0, %v4137
          %v4139 = vpop.f32.mrf.mxu0
          %v4140 = vadd.f32 0.0, %v4139
          %4141 = vdwg.mxu0
          %v4142 = vadd.f32 %v3925, %v4067
          %v4143 = vadd.f32 %v3927, %v4069
          %v4144 = vadd.f32 %v3996, %v4138
          %v4145 = vadd.f32 %v3998, %v4140
          %v4146 = vxor.u32 %v4142, 2147483648
          %v4147 = vmul.f32 %v4146, 1.442695
          %v4148 = vpow.pop %v4147
          %v4149 = vadd.f32 %v4148, 1.0
          %v4150 = vrcp.pop %v4149
          %v4151 = vmul.f32 1.0, %v4150
          %v4152 = vxor.u32 %v4143, 2147483648
          %v4153 = vmul.f32 %v4152, 1.442695
          %v4154 = vpow.pop %v4153
          %v4155 = vadd.f32 %v4154, 1.0
          %v4156 = vrcp.pop %v4155
          %v4157 = vmul.f32 1.0, %v4156
          %v4158 = vtanh.pop %v4144
          %v4159 = vxor.u32 %v4145, 2147483648
          %v4160 = vmul.f32 %v4159, 1.442695
          %v4161 = vpow.pop %v4160
          %v4162 = vadd.f32 %v4161, 1.0
          %v4163 = vrcp.pop %v4162
          %v4164 = vmul.f32 1.0, %v4163
          %v4165 = vmul.f32 %v4157, %v3758
          %v4166 = vmul.f32 %v4151, %v4158
          %v4167 = vadd.f32 %v4165, %v4166
          %v4168 = vtanh.pop %v4167
          %v4169 = vmul.f32 %v4164, %v4168
          %s4170 = sadd.s32 %s334, 8
          %v4171 = vstv %s4170
          %vm4172 = vcmp.lt.s32.totalorder %v4171, %v346
          %v4173 = vsel %vm4172, 1, 0
          %4174 = vset.pattern.permute.xlu0 0
          %4175 = vperm.xlu0 %4174, %v4173
          %v4176 = vpop.permute.xlu0 %4175
          %vm4177 = vcmp.eq.s32.totalorder %v4176, 1
          %v4178 = vsel %vm4177, %v4169, %v3757
          %v4179 = vsel %vm4177, %v4167, %v3758
          %v4180 = vsel %vm4177, %v4169, 0.0
          %v4182 = vcombine.high %v4180, %v4180
          %v4184 = vunpack.c.l.s4 1966171168
          %v4185 = vunpack.c.0.s8 %v4184
          %v4186 = vlaneseq
          %v4187 = vshrl.u32 %v4186, 7
          %v4188 = vsub.s32 %v4185, %v4187
          %v4189 = vrot.slane %v4180, %v4188
          %v4191 = vunpack.c.l.s4 1966171168
          %v4192 = vunpack.c.0.s8 %v4191
          %v4193 = vlaneseq
          %v4194 = vshrl.u32 %v4193, 7
          %v4195 = vsub.s32 %v4192, %v4194
          %v4196 = vrot.slane %v4182, %v4195
          %v4197 = vcombine.high %v4189, %v4189
          %v4198 = vcombine.high %v4196, %v4196
          %v4200 = vunpack.c.l.s4 1966171168
          %v4201 = vunpack.c.0.s8 %v4200
          %v4202 = vlaneseq
          %v4203 = vshrl.u32 %v4202, 7
          %v4204 = vsub.s32 %v4201, %v4203
          %v4205 = vrot.slane %v4189, %v4204
          %v4207 = vunpack.c.l.s4 1966171168
          %v4208 = vunpack.c.0.s8 %v4207
          %v4209 = vlaneseq
          %v4210 = vshrl.u32 %v4209, 7
          %v4211 = vsub.s32 %v4208, %v4210
          %v4212 = vrot.slane %v4196, %v4211
          %v4214 = vunpack.c.l.s4 1966171168
          %v4215 = vunpack.c.0.s8 %v4214
          %v4216 = vlaneseq
          %v4217 = vshrl.u32 %v4216, 7
          %v4218 = vsub.s32 %v4215, %v4217
          %v4219 = vrot.slane %v4197, %v4218
          %v4221 = vunpack.c.l.s4 1966171168
          %v4222 = vunpack.c.0.s8 %v4221
          %v4223 = vlaneseq
          %v4224 = vshrl.u32 %v4223, 7
          %v4225 = vsub.s32 %v4222, %v4224
          %v4226 = vrot.slane %v4198, %v4225
          %v4227 = vcombine.high %v4205, %v4205
          %v4228 = vcombine.high %v4212, %v4212
          %v4229 = vcombine.high %v4219, %v4219
          %v4230 = vcombine.high %v4226, %v4226
          %4239 = vst [vmem:[%s331 + $0x8] sm:$0x1] %v4205
          %4240 = vst [vmem:[%s331 + $0x18] sm:$0x1] %v4219
          %4241 = vst [vmem:[%s331 + $0x28] sm:$0x1] %v4227
          %4242 = vst [vmem:[%s331 + $0x38] sm:$0x1] %v4229
          %4243 = vst [vmem:[%s331 + $0x48] sm:$0x1] %v4212
          %4244 = vst [vmem:[%s331 + $0x58] sm:$0x1] %v4226
          %4245 = vst [vmem:[%s331 + $0x68] sm:$0x1] %v4228
          %4246 = vst [vmem:[%s331 + $0x78] sm:$0x1] %v4230
          %v4247 = vld [vmem:[%s319 + $0x9] sm:$0x1]
          %v4248 = vld [vmem:[%s319 + $0x19] sm:$0x1]
          %v4249 = vld [vmem:[%s319 + $0x29] sm:$0x1]
          %v4250 = vld [vmem:[%s319 + $0x39] sm:$0x1]
          %v4251 = vld [vmem:[%s319 + $0x49] sm:$0x1]
          %v4252 = vld [vmem:[%s319 + $0x59] sm:$0x1]
          %v4253 = vld [vmem:[%s319 + $0x69] sm:$0x1]
          %v4254 = vld [vmem:[%s319 + $0x79] sm:$0x1]
          %v4263 = vrot.slane %v4248, 7
          %v4264 = vsel %vm468, %v4263, %v4247
          %v4265 = vrot.slane %v4249, 6
          %v4266 = vsel %vm471, %v4265, %v4264
          %v4267 = vrot.slane %v4250, 5
          %v4268 = vsel %vm474, %v4267, %v4266
          %v4269 = vrot.slane %v4251, 4
          %v4270 = vsel %vm477, %v4269, %v4268
          %v4271 = vrot.slane %v4252, 3
          %v4272 = vsel %vm480, %v4271, %v4270
          %v4273 = vrot.slane %v4253, 2
          %v4274 = vsel %vm483, %v4273, %v4272
          %v4275 = vrot.slane %v4254, 1
          %v4276 = vsel %vm486, %v4275, %v4274
          %v4277 = vsel %vm488, %v4276, 0
          %4279 = vmatprep.subr.mxu0 0.0
          %4280 = vmatpush1.msra.mxu0 0.0
          %4281 = vmatprep.subr.mxu0 0.0
          %4282 = vmatpush1.msra.mxu0 0.0
          %4283 = vmatprep.subr.mxu0 0.0
          %4284 = vmatpush1.msra.mxu0 0.0
          %4285 = vmatprep.subr.mxu0 0.0
          %4286 = vmatpush1.msra.mxu0 0.0
          %4287 = vmatprep.subr.mxu0 0.0
          %4288 = vmatpush1.msra.mxu0 0.0
          %4289 = vmatprep.subr.mxu0 0.0
          %4290 = vmatpush1.msra.mxu0 0.0
          %4291 = vmatprep.subr.mxu0 0.0
          %4292 = vmatpush1.msra.mxu0 0.0
          %4293 = vmatprep.subr.mxu0 0.0
          %4294 = vmatpush1.msra.mxu0 0.0
          %4295 = vmatprep.subr.mxu0 0.0
          %4296 = vmatpush1.msra.mxu0 0.0
          %4297 = vmatprep.subr.mxu0 0.0
          %4298 = vmatpush1.msra.mxu0 0.0
          %4299 = vmatprep.subr.mxu0 0.0
          %4300 = vmatpush1.msra.mxu0 0.0
          %4301 = vmatprep.subr.mxu0 0.0
          %4302 = vmatpush1.msra.mxu0 0.0
          %4303 = vmatprep.subr.mxu0 %v360
          %4304 = vmatpush1.msra.mxu0 %v359
          %4305 = vmatprep.subr.mxu0 %v356
          %4306 = vmatpush1.msra.mxu0 %v355
          %4307 = vmatprep.subr.mxu0 %v352
          %4308 = vmatpush1.msra.mxu0 %v351
          %4309 = vmatprep.subr.mxu0 %v348
          %4310 = vmatpush1.msra.mxu0 %v347
          %4311 = vmatprep.subr.mxu0 0.0
          %4312 = vmatpush2.msra.mxu0 0.0
          %4313 = vmatprep.subr.mxu0 0.0
          %4314 = vmatpush2.msra.mxu0 0.0
          %4315 = vmatprep.subr.mxu0 0.0
          %4316 = vmatpush2.msra.mxu0 0.0
          %4317 = vmatprep.subr.mxu0 0.0
          %4318 = vmatpush2.msra.mxu0 0.0
          %4319 = vmatprep.subr.mxu0 0.0
          %4320 = vmatpush2.msra.mxu0 0.0
          %4321 = vmatprep.subr.mxu0 0.0
          %4322 = vmatpush2.msra.mxu0 0.0
          %4323 = vmatprep.subr.mxu0 0.0
          %4324 = vmatpush2.msra.mxu0 0.0
          %4325 = vmatprep.subr.mxu0 0.0
          %4326 = vmatpush2.msra.mxu0 0.0
          %4327 = vmatprep.subr.mxu0 0.0
          %4328 = vmatpush2.msra.mxu0 0.0
          %4329 = vmatprep.subr.mxu0 0.0
          %4330 = vmatpush2.msra.mxu0 0.0
          %4331 = vmatprep.subr.mxu0 0.0
          %4332 = vmatpush2.msra.mxu0 0.0
          %4333 = vmatprep.subr.mxu0 0.0
          %4334 = vmatpush2.msra.mxu0 0.0
          %4335 = vmatprep.subr.mxu0 0.0
          %4336 = vmatpush2.msra.mxu0 0.0
          %4337 = vmatprep.subr.mxu0 0.0
          %4338 = vmatpush2.msra.mxu0 0.0
          %4339 = vmatprep.subr.mxu0 0.0
          %4340 = vmatpush2.msra.mxu0 0.0
          %4341 = vmatprep.subr.mxu0 0.0
          %4342 = vmatpush2.msra.mxu0 0.0
          %4343 = vmatprep.mubr.f32.mxu0 0.0
          %4344 = vmatmul.mubr.f32.gmra.mxu0 %v4277
          %v4345 = vpop.f32.mrf.mxu0
          %v4346 = vadd.f32 %v442, %v4345
          %v4347 = vpop.f32.mrf.mxu0
          %v4348 = vadd.f32 %v446, %v4347
          %4349 = vdwg.mxu0
          %4350 = vmatprep.subr.mxu0 0.0
          %4351 = vmatpush1.msra.mxu0 0.0
          %4352 = vmatprep.subr.mxu0 0.0
          %4353 = vmatpush1.msra.mxu0 0.0
          %4354 = vmatprep.subr.mxu0 0.0
          %4355 = vmatpush1.msra.mxu0 0.0
          %4356 = vmatprep.subr.mxu0 0.0
          %4357 = vmatpush1.msra.mxu0 0.0
          %4358 = vmatprep.subr.mxu0 0.0
          %4359 = vmatpush1.msra.mxu0 0.0
          %4360 = vmatprep.subr.mxu0 0.0
          %4361 = vmatpush1.msra.mxu0 0.0
          %4362 = vmatprep.subr.mxu0 0.0
          %4363 = vmatpush1.msra.mxu0 0.0
          %4364 = vmatprep.subr.mxu0 0.0
          %4365 = vmatpush1.msra.mxu0 0.0
          %4366 = vmatprep.subr.mxu0 0.0
          %4367 = vmatpush1.msra.mxu0 0.0
          %4368 = vmatprep.subr.mxu0 0.0
          %4369 = vmatpush1.msra.mxu0 0.0
          %4370 = vmatprep.subr.mxu0 0.0
          %4371 = vmatpush1.msra.mxu0 0.0
          %4372 = vmatprep.subr.mxu0 0.0
          %4373 = vmatpush1.msra.mxu0 0.0
          %4374 = vmatprep.subr.mxu0 %v362
          %4375 = vmatpush1.msra.mxu0 %v361
          %4376 = vmatprep.subr.mxu0 %v358
          %4377 = vmatpush1.msra.mxu0 %v357
          %4378 = vmatprep.subr.mxu0 %v354
          %4379 = vmatpush1.msra.mxu0 %v353
          %4380 = vmatprep.subr.mxu0 %v350
          %4381 = vmatpush1.msra.mxu0 %v349
          %4382 = vmatprep.subr.mxu0 0.0
          %4383 = vmatpush2.msra.mxu0 0.0
          %4384 = vmatprep.subr.mxu0 0.0
          %4385 = vmatpush2.msra.mxu0 0.0
          %4386 = vmatprep.subr.mxu0 0.0
          %4387 = vmatpush2.msra.mxu0 0.0
          %4388 = vmatprep.subr.mxu0 0.0
          %4389 = vmatpush2.msra.mxu0 0.0
          %4390 = vmatprep.subr.mxu0 0.0
          %4391 = vmatpush2.msra.mxu0 0.0
          %4392 = vmatprep.subr.mxu0 0.0
          %4393 = vmatpush2.msra.mxu0 0.0
          %4394 = vmatprep.subr.mxu0 0.0
          %4395 = vmatpush2.msra.mxu0 0.0
          %4396 = vmatprep.subr.mxu0 0.0
          %4397 = vmatpush2.msra.mxu0 0.0
          %4398 = vmatprep.subr.mxu0 0.0
          %4399 = vmatpush2.msra.mxu0 0.0
          %4400 = vmatprep.subr.mxu0 0.0
          %4401 = vmatpush2.msra.mxu0 0.0
          %4402 = vmatprep.subr.mxu0 0.0
          %4403 = vmatpush2.msra.mxu0 0.0
          %4404 = vmatprep.subr.mxu0 0.0
          %4405 = vmatpush2.msra.mxu0 0.0
          %4406 = vmatprep.subr.mxu0 0.0
          %4407 = vmatpush2.msra.mxu0 0.0
          %4408 = vmatprep.subr.mxu0 0.0
          %4409 = vmatpush2.msra.mxu0 0.0
          %4410 = vmatprep.subr.mxu0 0.0
          %4411 = vmatpush2.msra.mxu0 0.0
          %4412 = vmatprep.subr.mxu0 0.0
          %4413 = vmatpush2.msra.mxu0 0.0
          %4414 = vmatprep.mubr.f32.mxu0 0.0
          %4415 = vmatmul.mubr.f32.gmra.mxu0 %v4277
          %v4416 = vpop.f32.mrf.mxu0
          %v4417 = vadd.f32 %v450, %v4416
          %v4418 = vpop.f32.mrf.mxu0
          %v4419 = vadd.f32 %v454, %v4418
          %4420 = vdwg.mxu0
          %4421 = vmatprep.subr.mxu0 %v424
          %4422 = vmatpush1.msra.mxu0 %v423
          %4423 = vmatprep.subr.mxu0 %v420
          %4424 = vmatpush1.msra.mxu0 %v419
          %4425 = vmatprep.subr.mxu0 %v416
          %4426 = vmatpush1.msra.mxu0 %v415
          %4427 = vmatprep.subr.mxu0 %v412
          %4428 = vmatpush1.msra.mxu0 %v411
          %4429 = vmatprep.subr.mxu0 %v408
          %4430 = vmatpush1.msra.mxu0 %v407
          %4431 = vmatprep.subr.mxu0 %v404
          %4432 = vmatpush1.msra.mxu0 %v403
          %4433 = vmatprep.subr.mxu0 %v400
          %4434 = vmatpush1.msra.mxu0 %v399
          %4435 = vmatprep.subr.mxu0 %v396
          %4436 = vmatpush1.msra.mxu0 %v395
          %4437 = vmatprep.subr.mxu0 %v392
          %4438 = vmatpush1.msra.mxu0 %v391
          %4439 = vmatprep.subr.mxu0 %v388
          %4440 = vmatpush1.msra.mxu0 %v387
          %4441 = vmatprep.subr.mxu0 %v384
          %4442 = vmatpush1.msra.mxu0 %v383
          %4443 = vmatprep.subr.mxu0 %v380
          %4444 = vmatpush1.msra.mxu0 %v379
          %4445 = vmatprep.subr.mxu0 %v376
          %4446 = vmatpush1.msra.mxu0 %v375
          %4447 = vmatprep.subr.mxu0 %v372
          %4448 = vmatpush1.msra.mxu0 %v371
          %4449 = vmatprep.subr.mxu0 %v368
          %4450 = vmatpush1.msra.mxu0 %v367
          %4451 = vmatprep.subr.mxu0 %v364
          %4452 = vmatpush1.msra.mxu0 %v363
          %4453 = vmatprep.subr.mxu0 0.0
          %4454 = vmatpush2.msra.mxu0 0.0
          %4455 = vmatprep.subr.mxu0 0.0
          %4456 = vmatpush2.msra.mxu0 0.0
          %4457 = vmatprep.subr.mxu0 0.0
          %4458 = vmatpush2.msra.mxu0 0.0
          %4459 = vmatprep.subr.mxu0 0.0
          %4460 = vmatpush2.msra.mxu0 0.0
          %4461 = vmatprep.subr.mxu0 0.0
          %4462 = vmatpush2.msra.mxu0 0.0
          %4463 = vmatprep.subr.mxu0 0.0
          %4464 = vmatpush2.msra.mxu0 0.0
          %4465 = vmatprep.subr.mxu0 0.0
          %4466 = vmatpush2.msra.mxu0 0.0
          %4467 = vmatprep.subr.mxu0 0.0
          %4468 = vmatpush2.msra.mxu0 0.0
          %4469 = vmatprep.subr.mxu0 0.0
          %4470 = vmatpush2.msra.mxu0 0.0
          %4471 = vmatprep.subr.mxu0 0.0
          %4472 = vmatpush2.msra.mxu0 0.0
          %4473 = vmatprep.subr.mxu0 0.0
          %4474 = vmatpush2.msra.mxu0 0.0
          %4475 = vmatprep.subr.mxu0 0.0
          %4476 = vmatpush2.msra.mxu0 0.0
          %4477 = vmatprep.subr.mxu0 0.0
          %4478 = vmatpush2.msra.mxu0 0.0
          %4479 = vmatprep.subr.mxu0 0.0
          %4480 = vmatpush2.msra.mxu0 0.0
          %4481 = vmatprep.subr.mxu0 0.0
          %4482 = vmatpush2.msra.mxu0 0.0
          %4483 = vmatprep.subr.mxu0 0.0
          %4484 = vmatpush2.msra.mxu0 0.0
          %4485 = vmatprep.mubr.f32.mxu0 0.0
          %4486 = vmatmul.mubr.f32.gmra.mxu0 %v4178
          %v4487 = vpop.f32.mrf.mxu0
          %v4488 = vadd.f32 0.0, %v4487
          %v4489 = vpop.f32.mrf.mxu0
          %v4490 = vadd.f32 0.0, %v4489
          %4491 = vdwg.mxu0
          %4492 = vmatprep.subr.mxu0 %v426
          %4493 = vmatpush1.msra.mxu0 %v425
          %4494 = vmatprep.subr.mxu0 %v422
          %4495 = vmatpush1.msra.mxu0 %v421
          %4496 = vmatprep.subr.mxu0 %v418
          %4497 = vmatpush1.msra.mxu0 %v417
          %4498 = vmatprep.subr.mxu0 %v414
          %4499 = vmatpush1.msra.mxu0 %v413
          %4500 = vmatprep.subr.mxu0 %v410
          %4501 = vmatpush1.msra.mxu0 %v409
          %4502 = vmatprep.subr.mxu0 %v406
          %4503 = vmatpush1.msra.mxu0 %v405
          %4504 = vmatprep.subr.mxu0 %v402
          %4505 = vmatpush1.msra.mxu0 %v401
          %4506 = vmatprep.subr.mxu0 %v398
          %4507 = vmatpush1.msra.mxu0 %v397
          %4508 = vmatprep.subr.mxu0 %v394
          %4509 = vmatpush1.msra.mxu0 %v393
          %4510 = vmatprep.subr.mxu0 %v390
          %4511 = vmatpush1.msra.mxu0 %v389
          %4512 = vmatprep.subr.mxu0 %v386
          %4513 = vmatpush1.msra.mxu0 %v385
          %4514 = vmatprep.subr.mxu0 %v382
          %4515 = vmatpush1.msra.mxu0 %v381
          %4516 = vmatprep.subr.mxu0 %v378
          %4517 = vmatpush1.msra.mxu0 %v377
          %4518 = vmatprep.subr.mxu0 %v374
          %4519 = vmatpush1.msra.mxu0 %v373
          %4520 = vmatprep.subr.mxu0 %v370
          %4521 = vmatpush1.msra.mxu0 %v369
          %4522 = vmatprep.subr.mxu0 %v366
          %4523 = vmatpush1.msra.mxu0 %v365
          %4524 = vmatprep.subr.mxu0 0.0
          %4525 = vmatpush2.msra.mxu0 0.0
          %4526 = vmatprep.subr.mxu0 0.0
          %4527 = vmatpush2.msra.mxu0 0.0
          %4528 = vmatprep.subr.mxu0 0.0
          %4529 = vmatpush2.msra.mxu0 0.0
          %4530 = vmatprep.subr.mxu0 0.0
          %4531 = vmatpush2.msra.mxu0 0.0
          %4532 = vmatprep.subr.mxu0 0.0
          %4533 = vmatpush2.msra.mxu0 0.0
          %4534 = vmatprep.subr.mxu0 0.0
          %4535 = vmatpush2.msra.mxu0 0.0
          %4536 = vmatprep.subr.mxu0 0.0
          %4537 = vmatpush2.msra.mxu0 0.0
          %4538 = vmatprep.subr.mxu0 0.0
          %4539 = vmatpush2.msra.mxu0 0.0
          %4540 = vmatprep.subr.mxu0 0.0
          %4541 = vmatpush2.msra.mxu0 0.0
          %4542 = vmatprep.subr.mxu0 0.0
          %4543 = vmatpush2.msra.mxu0 0.0
          %4544 = vmatprep.subr.mxu0 0.0
          %4545 = vmatpush2.msra.mxu0 0.0
          %4546 = vmatprep.subr.mxu0 0.0
          %4547 = vmatpush2.msra.mxu0 0.0
          %4548 = vmatprep.subr.mxu0 0.0
          %4549 = vmatpush2.msra.mxu0 0.0
          %4550 = vmatprep.subr.mxu0 0.0
          %4551 = vmatpush2.msra.mxu0 0.0
          %4552 = vmatprep.subr.mxu0 0.0
          %4553 = vmatpush2.msra.mxu0 0.0
          %4554 = vmatprep.subr.mxu0 0.0
          %4555 = vmatpush2.msra.mxu0 0.0
          %4556 = vmatprep.mubr.f32.mxu0 0.0
          %4557 = vmatmul.mubr.f32.gmra.mxu0 %v4178
          %v4558 = vpop.f32.mrf.mxu0
          %v4559 = vadd.f32 0.0, %v4558
          %v4560 = vpop.f32.mrf.mxu0
          %v4561 = vadd.f32 0.0, %v4560
          %4562 = vdwg.mxu0
          %v4563 = vadd.f32 %v4346, %v4488
          %v4564 = vadd.f32 %v4348, %v4490
          %v4565 = vadd.f32 %v4417, %v4559
          %v4566 = vadd.f32 %v4419, %v4561
          %v4567 = vxor.u32 %v4563, 2147483648
          %v4568 = vmul.f32 %v4567, 1.442695
          %v4569 = vpow.pop %v4568
          %v4570 = vadd.f32 %v4569, 1.0
          %v4571 = vrcp.pop %v4570
          %v4572 = vmul.f32 1.0, %v4571
          %v4573 = vxor.u32 %v4564, 2147483648
          %v4574 = vmul.f32 %v4573, 1.442695
          %v4575 = vpow.pop %v4574
          %v4576 = vadd.f32 %v4575, 1.0
          %v4577 = vrcp.pop %v4576
          %v4578 = vmul.f32 1.0, %v4577
          %v4579 = vtanh.pop %v4565
          %v4580 = vxor.u32 %v4566, 2147483648
          %v4581 = vmul.f32 %v4580, 1.442695
          %v4582 = vpow.pop %v4581
          %v4583 = vadd.f32 %v4582, 1.0
          %v4584 = vrcp.pop %v4583
          %v4585 = vmul.f32 1.0, %v4584
          %v4586 = vmul.f32 %v4578, %v4179
          %v4587 = vmul.f32 %v4572, %v4579
          %v4588 = vadd.f32 %v4586, %v4587
          %v4589 = vtanh.pop %v4588
          %v4590 = vmul.f32 %v4585, %v4589
          %s4591 = sadd.s32 %s334, 9
          %v4592 = vstv %s4591
          %vm4593 = vcmp.lt.s32.totalorder %v4592, %v346
          %v4594 = vsel %vm4593, 1, 0
          %4595 = vset.pattern.permute.xlu0 0
          %4596 = vperm.xlu0 %4595, %v4594
          %v4597 = vpop.permute.xlu0 %4596
          %vm4598 = vcmp.eq.s32.totalorder %v4597, 1
          %v4599 = vsel %vm4598, %v4590, %v4178
          %v4600 = vsel %vm4598, %v4588, %v4179
          %v4601 = vsel %vm4598, %v4590, 0.0
          %v4603 = vcombine.high %v4601, %v4601
          %v4605 = vunpack.c.l.s4 1966171168
          %v4606 = vunpack.c.0.s8 %v4605
          %v4607 = vlaneseq
          %v4608 = vshrl.u32 %v4607, 7
          %v4609 = vsub.s32 %v4606, %v4608
          %v4610 = vrot.slane %v4601, %v4609
          %v4612 = vunpack.c.l.s4 1966171168
          %v4613 = vunpack.c.0.s8 %v4612
          %v4614 = vlaneseq
          %v4615 = vshrl.u32 %v4614, 7
          %v4616 = vsub.s32 %v4613, %v4615
          %v4617 = vrot.slane %v4603, %v4616
          %v4618 = vcombine.high %v4610, %v4610
          %v4619 = vcombine.high %v4617, %v4617
          %v4621 = vunpack.c.l.s4 1966171168
          %v4622 = vunpack.c.0.s8 %v4621
          %v4623 = vlaneseq
          %v4624 = vshrl.u32 %v4623, 7
          %v4625 = vsub.s32 %v4622, %v4624
          %v4626 = vrot.slane %v4610, %v4625
          %v4628 = vunpack.c.l.s4 1966171168
          %v4629 = vunpack.c.0.s8 %v4628
          %v4630 = vlaneseq
          %v4631 = vshrl.u32 %v4630, 7
          %v4632 = vsub.s32 %v4629, %v4631
          %v4633 = vrot.slane %v4617, %v4632
          %v4635 = vunpack.c.l.s4 1966171168
          %v4636 = vunpack.c.0.s8 %v4635
          %v4637 = vlaneseq
          %v4638 = vshrl.u32 %v4637, 7
          %v4639 = vsub.s32 %v4636, %v4638
          %v4640 = vrot.slane %v4618, %v4639
          %v4642 = vunpack.c.l.s4 1966171168
          %v4643 = vunpack.c.0.s8 %v4642
          %v4644 = vlaneseq
          %v4645 = vshrl.u32 %v4644, 7
          %v4646 = vsub.s32 %v4643, %v4645
          %v4647 = vrot.slane %v4619, %v4646
          %v4648 = vcombine.high %v4626, %v4626
          %v4649 = vcombine.high %v4633, %v4633
          %v4650 = vcombine.high %v4640, %v4640
          %v4651 = vcombine.high %v4647, %v4647
          %4660 = vst [vmem:[%s331 + $0x9] sm:$0x1] %v4626
          %4661 = vst [vmem:[%s331 + $0x19] sm:$0x1] %v4640
          %4662 = vst [vmem:[%s331 + $0x29] sm:$0x1] %v4648
          %4663 = vst [vmem:[%s331 + $0x39] sm:$0x1] %v4650
          %4664 = vst [vmem:[%s331 + $0x49] sm:$0x1] %v4633
          %4665 = vst [vmem:[%s331 + $0x59] sm:$0x1] %v4647
          %4666 = vst [vmem:[%s331 + $0x69] sm:$0x1] %v4649
          %4667 = vst [vmem:[%s331 + $0x79] sm:$0x1] %v4651
          %v4668 = vld [vmem:[%s319 + $0xa] sm:$0x1]
          %v4669 = vld [vmem:[%s319 + $0x1a] sm:$0x1]
          %v4670 = vld [vmem:[%s319 + $0x2a] sm:$0x1]
          %v4671 = vld [vmem:[%s319 + $0x3a] sm:$0x1]
          %v4672 = vld [vmem:[%s319 + $0x4a] sm:$0x1]
          %v4673 = vld [vmem:[%s319 + $0x5a] sm:$0x1]
          %v4674 = vld [vmem:[%s319 + $0x6a] sm:$0x1]
          %v4675 = vld [vmem:[%s319 + $0x7a] sm:$0x1]
          %v4684 = vrot.slane %v4669, 7
          %v4685 = vsel %vm468, %v4684, %v4668
          %v4686 = vrot.slane %v4670, 6
          %v4687 = vsel %vm471, %v4686, %v4685
          %v4688 = vrot.slane %v4671, 5
          %v4689 = vsel %vm474, %v4688, %v4687
          %v4690 = vrot.slane %v4672, 4
          %v4691 = vsel %vm477, %v4690, %v4689
          %v4692 = vrot.slane %v4673, 3
          %v4693 = vsel %vm480, %v4692, %v4691
          %v4694 = vrot.slane %v4674, 2
          %v4695 = vsel %vm483, %v4694, %v4693
          %v4696 = vrot.slane %v4675, 1
          %v4697 = vsel %vm486, %v4696, %v4695
          %v4698 = vsel %vm488, %v4697, 0
          %4700 = vmatprep.subr.mxu0 0.0
          %4701 = vmatpush1.msra.mxu0 0.0
          %4702 = vmatprep.subr.mxu0 0.0
          %4703 = vmatpush1.msra.mxu0 0.0
          %4704 = vmatprep.subr.mxu0 0.0
          %4705 = vmatpush1.msra.mxu0 0.0
          %4706 = vmatprep.subr.mxu0 0.0
          %4707 = vmatpush1.msra.mxu0 0.0
          %4708 = vmatprep.subr.mxu0 0.0
          %4709 = vmatpush1.msra.mxu0 0.0
          %4710 = vmatprep.subr.mxu0 0.0
          %4711 = vmatpush1.msra.mxu0 0.0
          %4712 = vmatprep.subr.mxu0 0.0
          %4713 = vmatpush1.msra.mxu0 0.0
          %4714 = vmatprep.subr.mxu0 0.0
          %4715 = vmatpush1.msra.mxu0 0.0
          %4716 = vmatprep.subr.mxu0 0.0
          %4717 = vmatpush1.msra.mxu0 0.0
          %4718 = vmatprep.subr.mxu0 0.0
          %4719 = vmatpush1.msra.mxu0 0.0
          %4720 = vmatprep.subr.mxu0 0.0
          %4721 = vmatpush1.msra.mxu0 0.0
          %4722 = vmatprep.subr.mxu0 0.0
          %4723 = vmatpush1.msra.mxu0 0.0
          %4724 = vmatprep.subr.mxu0 %v360
          %4725 = vmatpush1.msra.mxu0 %v359
          %4726 = vmatprep.subr.mxu0 %v356
          %4727 = vmatpush1.msra.mxu0 %v355
          %4728 = vmatprep.subr.mxu0 %v352
          %4729 = vmatpush1.msra.mxu0 %v351
          %4730 = vmatprep.subr.mxu0 %v348
          %4731 = vmatpush1.msra.mxu0 %v347
          %4732 = vmatprep.subr.mxu0 0.0
          %4733 = vmatpush2.msra.mxu0 0.0
          %4734 = vmatprep.subr.mxu0 0.0
          %4735 = vmatpush2.msra.mxu0 0.0
          %4736 = vmatprep.subr.mxu0 0.0
          %4737 = vmatpush2.msra.mxu0 0.0
          %4738 = vmatprep.subr.mxu0 0.0
          %4739 = vmatpush2.msra.mxu0 0.0
          %4740 = vmatprep.subr.mxu0 0.0
          %4741 = vmatpush2.msra.mxu0 0.0
          %4742 = vmatprep.subr.mxu0 0.0
          %4743 = vmatpush2.msra.mxu0 0.0
          %4744 = vmatprep.subr.mxu0 0.0
          %4745 = vmatpush2.msra.mxu0 0.0
          %4746 = vmatprep.subr.mxu0 0.0
          %4747 = vmatpush2.msra.mxu0 0.0
          %4748 = vmatprep.subr.mxu0 0.0
          %4749 = vmatpush2.msra.mxu0 0.0
          %4750 = vmatprep.subr.mxu0 0.0
          %4751 = vmatpush2.msra.mxu0 0.0
          %4752 = vmatprep.subr.mxu0 0.0
          %4753 = vmatpush2.msra.mxu0 0.0
          %4754 = vmatprep.subr.mxu0 0.0
          %4755 = vmatpush2.msra.mxu0 0.0
          %4756 = vmatprep.subr.mxu0 0.0
          %4757 = vmatpush2.msra.mxu0 0.0
          %4758 = vmatprep.subr.mxu0 0.0
          %4759 = vmatpush2.msra.mxu0 0.0
          %4760 = vmatprep.subr.mxu0 0.0
          %4761 = vmatpush2.msra.mxu0 0.0
          %4762 = vmatprep.subr.mxu0 0.0
          %4763 = vmatpush2.msra.mxu0 0.0
          %4764 = vmatprep.mubr.f32.mxu0 0.0
          %4765 = vmatmul.mubr.f32.gmra.mxu0 %v4698
          %v4766 = vpop.f32.mrf.mxu0
          %v4767 = vadd.f32 %v442, %v4766
          %v4768 = vpop.f32.mrf.mxu0
          %v4769 = vadd.f32 %v446, %v4768
          %4770 = vdwg.mxu0
          %4771 = vmatprep.subr.mxu0 0.0
          %4772 = vmatpush1.msra.mxu0 0.0
          %4773 = vmatprep.subr.mxu0 0.0
          %4774 = vmatpush1.msra.mxu0 0.0
          %4775 = vmatprep.subr.mxu0 0.0
          %4776 = vmatpush1.msra.mxu0 0.0
          %4777 = vmatprep.subr.mxu0 0.0
          %4778 = vmatpush1.msra.mxu0 0.0
          %4779 = vmatprep.subr.mxu0 0.0
          %4780 = vmatpush1.msra.mxu0 0.0
          %4781 = vmatprep.subr.mxu0 0.0
          %4782 = vmatpush1.msra.mxu0 0.0
          %4783 = vmatprep.subr.mxu0 0.0
          %4784 = vmatpush1.msra.mxu0 0.0
          %4785 = vmatprep.subr.mxu0 0.0
          %4786 = vmatpush1.msra.mxu0 0.0
          %4787 = vmatprep.subr.mxu0 0.0
          %4788 = vmatpush1.msra.mxu0 0.0
          %4789 = vmatprep.subr.mxu0 0.0
          %4790 = vmatpush1.msra.mxu0 0.0
          %4791 = vmatprep.subr.mxu0 0.0
          %4792 = vmatpush1.msra.mxu0 0.0
          %4793 = vmatprep.subr.mxu0 0.0
          %4794 = vmatpush1.msra.mxu0 0.0
          %4795 = vmatprep.subr.mxu0 %v362
          %4796 = vmatpush1.msra.mxu0 %v361
          %4797 = vmatprep.subr.mxu0 %v358
          %4798 = vmatpush1.msra.mxu0 %v357
          %4799 = vmatprep.subr.mxu0 %v354
          %4800 = vmatpush1.msra.mxu0 %v353
          %4801 = vmatprep.subr.mxu0 %v350
          %4802 = vmatpush1.msra.mxu0 %v349
          %4803 = vmatprep.subr.mxu0 0.0
          %4804 = vmatpush2.msra.mxu0 0.0
          %4805 = vmatprep.subr.mxu0 0.0
          %4806 = vmatpush2.msra.mxu0 0.0
          %4807 = vmatprep.subr.mxu0 0.0
          %4808 = vmatpush2.msra.mxu0 0.0
          %4809 = vmatprep.subr.mxu0 0.0
          %4810 = vmatpush2.msra.mxu0 0.0
          %4811 = vmatprep.subr.mxu0 0.0
          %4812 = vmatpush2.msra.mxu0 0.0
          %4813 = vmatprep.subr.mxu0 0.0
          %4814 = vmatpush2.msra.mxu0 0.0
          %4815 = vmatprep.subr.mxu0 0.0
          %4816 = vmatpush2.msra.mxu0 0.0
          %4817 = vmatprep.subr.mxu0 0.0
          %4818 = vmatpush2.msra.mxu0 0.0
          %4819 = vmatprep.subr.mxu0 0.0
          %4820 = vmatpush2.msra.mxu0 0.0
          %4821 = vmatprep.subr.mxu0 0.0
          %4822 = vmatpush2.msra.mxu0 0.0
          %4823 = vmatprep.subr.mxu0 0.0
          %4824 = vmatpush2.msra.mxu0 0.0
          %4825 = vmatprep.subr.mxu0 0.0
          %4826 = vmatpush2.msra.mxu0 0.0
          %4827 = vmatprep.subr.mxu0 0.0
          %4828 = vmatpush2.msra.mxu0 0.0
          %4829 = vmatprep.subr.mxu0 0.0
          %4830 = vmatpush2.msra.mxu0 0.0
          %4831 = vmatprep.subr.mxu0 0.0
          %4832 = vmatpush2.msra.mxu0 0.0
          %4833 = vmatprep.subr.mxu0 0.0
          %4834 = vmatpush2.msra.mxu0 0.0
          %4835 = vmatprep.mubr.f32.mxu0 0.0
          %4836 = vmatmul.mubr.f32.gmra.mxu0 %v4698
          %v4837 = vpop.f32.mrf.mxu0
          %v4838 = vadd.f32 %v450, %v4837
          %v4839 = vpop.f32.mrf.mxu0
          %v4840 = vadd.f32 %v454, %v4839
          %4841 = vdwg.mxu0
          %4842 = vmatprep.subr.mxu0 %v424
          %4843 = vmatpush1.msra.mxu0 %v423
          %4844 = vmatprep.subr.mxu0 %v420
          %4845 = vmatpush1.msra.mxu0 %v419
          %4846 = vmatprep.subr.mxu0 %v416
          %4847 = vmatpush1.msra.mxu0 %v415
          %4848 = vmatprep.subr.mxu0 %v412
          %4849 = vmatpush1.msra.mxu0 %v411
          %4850 = vmatprep.subr.mxu0 %v408
          %4851 = vmatpush1.msra.mxu0 %v407
          %4852 = vmatprep.subr.mxu0 %v404
          %4853 = vmatpush1.msra.mxu0 %v403
          %4854 = vmatprep.subr.mxu0 %v400
          %4855 = vmatpush1.msra.mxu0 %v399
          %4856 = vmatprep.subr.mxu0 %v396
          %4857 = vmatpush1.msra.mxu0 %v395
          %4858 = vmatprep.subr.mxu0 %v392
          %4859 = vmatpush1.msra.mxu0 %v391
          %4860 = vmatprep.subr.mxu0 %v388
          %4861 = vmatpush1.msra.mxu0 %v387
          %4862 = vmatprep.subr.mxu0 %v384
          %4863 = vmatpush1.msra.mxu0 %v383
          %4864 = vmatprep.subr.mxu0 %v380
          %4865 = vmatpush1.msra.mxu0 %v379
          %4866 = vmatprep.subr.mxu0 %v376
          %4867 = vmatpush1.msra.mxu0 %v375
          %4868 = vmatprep.subr.mxu0 %v372
          %4869 = vmatpush1.msra.mxu0 %v371
          %4870 = vmatprep.subr.mxu0 %v368
          %4871 = vmatpush1.msra.mxu0 %v367
          %4872 = vmatprep.subr.mxu0 %v364
          %4873 = vmatpush1.msra.mxu0 %v363
          %4874 = vmatprep.subr.mxu0 0.0
          %4875 = vmatpush2.msra.mxu0 0.0
          %4876 = vmatprep.subr.mxu0 0.0
          %4877 = vmatpush2.msra.mxu0 0.0
          %4878 = vmatprep.subr.mxu0 0.0
          %4879 = vmatpush2.msra.mxu0 0.0
          %4880 = vmatprep.subr.mxu0 0.0
          %4881 = vmatpush2.msra.mxu0 0.0
          %4882 = vmatprep.subr.mxu0 0.0
          %4883 = vmatpush2.msra.mxu0 0.0
          %4884 = vmatprep.subr.mxu0 0.0
          %4885 = vmatpush2.msra.mxu0 0.0
          %4886 = vmatprep.subr.mxu0 0.0
          %4887 = vmatpush2.msra.mxu0 0.0
          %4888 = vmatprep.subr.mxu0 0.0
          %4889 = vmatpush2.msra.mxu0 0.0
          %4890 = vmatprep.subr.mxu0 0.0
          %4891 = vmatpush2.msra.mxu0 0.0
          %4892 = vmatprep.subr.mxu0 0.0
          %4893 = vmatpush2.msra.mxu0 0.0
          %4894 = vmatprep.subr.mxu0 0.0
          %4895 = vmatpush2.msra.mxu0 0.0
          %4896 = vmatprep.subr.mxu0 0.0
          %4897 = vmatpush2.msra.mxu0 0.0
          %4898 = vmatprep.subr.mxu0 0.0
          %4899 = vmatpush2.msra.mxu0 0.0
          %4900 = vmatprep.subr.mxu0 0.0
          %4901 = vmatpush2.msra.mxu0 0.0
          %4902 = vmatprep.subr.mxu0 0.0
          %4903 = vmatpush2.msra.mxu0 0.0
          %4904 = vmatprep.subr.mxu0 0.0
          %4905 = vmatpush2.msra.mxu0 0.0
          %4906 = vmatprep.mubr.f32.mxu0 0.0
          %4907 = vmatmul.mubr.f32.gmra.mxu0 %v4599
          %v4908 = vpop.f32.mrf.mxu0
          %v4909 = vadd.f32 0.0, %v4908
          %v4910 = vpop.f32.mrf.mxu0
          %v4911 = vadd.f32 0.0, %v4910
          %4912 = vdwg.mxu0
          %4913 = vmatprep.subr.mxu0 %v426
          %4914 = vmatpush1.msra.mxu0 %v425
          %4915 = vmatprep.subr.mxu0 %v422
          %4916 = vmatpush1.msra.mxu0 %v421
          %4917 = vmatprep.subr.mxu0 %v418
          %4918 = vmatpush1.msra.mxu0 %v417
          %4919 = vmatprep.subr.mxu0 %v414
          %4920 = vmatpush1.msra.mxu0 %v413
          %4921 = vmatprep.subr.mxu0 %v410
          %4922 = vmatpush1.msra.mxu0 %v409
          %4923 = vmatprep.subr.mxu0 %v406
          %4924 = vmatpush1.msra.mxu0 %v405
          %4925 = vmatprep.subr.mxu0 %v402
          %4926 = vmatpush1.msra.mxu0 %v401
          %4927 = vmatprep.subr.mxu0 %v398
          %4928 = vmatpush1.msra.mxu0 %v397
          %4929 = vmatprep.subr.mxu0 %v394
          %4930 = vmatpush1.msra.mxu0 %v393
          %4931 = vmatprep.subr.mxu0 %v390
          %4932 = vmatpush1.msra.mxu0 %v389
          %4933 = vmatprep.subr.mxu0 %v386
          %4934 = vmatpush1.msra.mxu0 %v385
          %4935 = vmatprep.subr.mxu0 %v382
          %4936 = vmatpush1.msra.mxu0 %v381
          %4937 = vmatprep.subr.mxu0 %v378
          %4938 = vmatpush1.msra.mxu0 %v377
          %4939 = vmatprep.subr.mxu0 %v374
          %4940 = vmatpush1.msra.mxu0 %v373
          %4941 = vmatprep.subr.mxu0 %v370
          %4942 = vmatpush1.msra.mxu0 %v369
          %4943 = vmatprep.subr.mxu0 %v366
          %4944 = vmatpush1.msra.mxu0 %v365
          %4945 = vmatprep.subr.mxu0 0.0
          %4946 = vmatpush2.msra.mxu0 0.0
          %4947 = vmatprep.subr.mxu0 0.0
          %4948 = vmatpush2.msra.mxu0 0.0
          %4949 = vmatprep.subr.mxu0 0.0
          %4950 = vmatpush2.msra.mxu0 0.0
          %4951 = vmatprep.subr.mxu0 0.0
          %4952 = vmatpush2.msra.mxu0 0.0
          %4953 = vmatprep.subr.mxu0 0.0
          %4954 = vmatpush2.msra.mxu0 0.0
          %4955 = vmatprep.subr.mxu0 0.0
          %4956 = vmatpush2.msra.mxu0 0.0
          %4957 = vmatprep.subr.mxu0 0.0
          %4958 = vmatpush2.msra.mxu0 0.0
          %4959 = vmatprep.subr.mxu0 0.0
          %4960 = vmatpush2.msra.mxu0 0.0
          %4961 = vmatprep.subr.mxu0 0.0
          %4962 = vmatpush2.msra.mxu0 0.0
          %4963 = vmatprep.subr.mxu0 0.0
          %4964 = vmatpush2.msra.mxu0 0.0
          %4965 = vmatprep.subr.mxu0 0.0
          %4966 = vmatpush2.msra.mxu0 0.0
          %4967 = vmatprep.subr.mxu0 0.0
          %4968 = vmatpush2.msra.mxu0 0.0
          %4969 = vmatprep.subr.mxu0 0.0
          %4970 = vmatpush2.msra.mxu0 0.0
          %4971 = vmatprep.subr.mxu0 0.0
          %4972 = vmatpush2.msra.mxu0 0.0
          %4973 = vmatprep.subr.mxu0 0.0
          %4974 = vmatpush2.msra.mxu0 0.0
          %4975 = vmatprep.subr.mxu0 0.0
          %4976 = vmatpush2.msra.mxu0 0.0
          %4977 = vmatprep.mubr.f32.mxu0 0.0
          %4978 = vmatmul.mubr.f32.gmra.mxu0 %v4599
          %v4979 = vpop.f32.mrf.mxu0
          %v4980 = vadd.f32 0.0, %v4979
          %v4981 = vpop.f32.mrf.mxu0
          %v4982 = vadd.f32 0.0, %v4981
          %4983 = vdwg.mxu0
          %v4984 = vadd.f32 %v4767, %v4909
          %v4985 = vadd.f32 %v4769, %v4911
          %v4986 = vadd.f32 %v4838, %v4980
          %v4987 = vadd.f32 %v4840, %v4982
          %v4988 = vxor.u32 %v4984, 2147483648
          %v4989 = vmul.f32 %v4988, 1.442695
          %v4990 = vpow.pop %v4989
          %v4991 = vadd.f32 %v4990, 1.0
          %v4992 = vrcp.pop %v4991
          %v4993 = vmul.f32 1.0, %v4992
          %v4994 = vxor.u32 %v4985, 2147483648
          %v4995 = vmul.f32 %v4994, 1.442695
          %v4996 = vpow.pop %v4995
          %v4997 = vadd.f32 %v4996, 1.0
          %v4998 = vrcp.pop %v4997
          %v4999 = vmul.f32 1.0, %v4998
          %v5000 = vtanh.pop %v4986
          %v5001 = vxor.u32 %v4987, 2147483648
          %v5002 = vmul.f32 %v5001, 1.442695
          %v5003 = vpow.pop %v5002
          %v5004 = vadd.f32 %v5003, 1.0
          %v5005 = vrcp.pop %v5004
          %v5006 = vmul.f32 1.0, %v5005
          %v5007 = vmul.f32 %v4999, %v4600
          %v5008 = vmul.f32 %v4993, %v5000
          %v5009 = vadd.f32 %v5007, %v5008
          %v5010 = vtanh.pop %v5009
          %v5011 = vmul.f32 %v5006, %v5010
          %s5012 = sadd.s32 %s334, 10
          %v5013 = vstv %s5012
          %vm5014 = vcmp.lt.s32.totalorder %v5013, %v346
          %v5015 = vsel %vm5014, 1, 0
          %5016 = vset.pattern.permute.xlu0 0
          %5017 = vperm.xlu0 %5016, %v5015
          %v5018 = vpop.permute.xlu0 %5017
          %vm5019 = vcmp.eq.s32.totalorder %v5018, 1
          %v5020 = vsel %vm5019, %v5011, %v4599
          %v5021 = vsel %vm5019, %v5009, %v4600
          %v5022 = vsel %vm5019, %v5011, 0.0
          %v5024 = vcombine.high %v5022, %v5022
          %v5026 = vunpack.c.l.s4 1966171168
          %v5027 = vunpack.c.0.s8 %v5026
          %v5028 = vlaneseq
          %v5029 = vshrl.u32 %v5028, 7
          %v5030 = vsub.s32 %v5027, %v5029
          %v5031 = vrot.slane %v5022, %v5030
          %v5033 = vunpack.c.l.s4 1966171168
          %v5034 = vunpack.c.0.s8 %v5033
          %v5035 = vlaneseq
          %v5036 = vshrl.u32 %v5035, 7
          %v5037 = vsub.s32 %v5034, %v5036
          %v5038 = vrot.slane %v5024, %v5037
          %v5039 = vcombine.high %v5031, %v5031
          %v5040 = vcombine.high %v5038, %v5038
          %v5042 = vunpack.c.l.s4 1966171168
          %v5043 = vunpack.c.0.s8 %v5042
          %v5044 = vlaneseq
          %v5045 = vshrl.u32 %v5044, 7
          %v5046 = vsub.s32 %v5043, %v5045
          %v5047 = vrot.slane %v5031, %v5046
          %v5049 = vunpack.c.l.s4 1966171168
          %v5050 = vunpack.c.0.s8 %v5049
          %v5051 = vlaneseq
          %v5052 = vshrl.u32 %v5051, 7
          %v5053 = vsub.s32 %v5050, %v5052
          %v5054 = vrot.slane %v5038, %v5053
          %v5056 = vunpack.c.l.s4 1966171168
          %v5057 = vunpack.c.0.s8 %v5056
          %v5058 = vlaneseq
          %v5059 = vshrl.u32 %v5058, 7
          %v5060 = vsub.s32 %v5057, %v5059
          %v5061 = vrot.slane %v5039, %v5060
          %v5063 = vunpack.c.l.s4 1966171168
          %v5064 = vunpack.c.0.s8 %v5063
          %v5065 = vlaneseq
          %v5066 = vshrl.u32 %v5065, 7
          %v5067 = vsub.s32 %v5064, %v5066
          %v5068 = vrot.slane %v5040, %v5067
          %v5069 = vcombine.high %v5047, %v5047
          %v5070 = vcombine.high %v5054, %v5054
          %v5071 = vcombine.high %v5061, %v5061
          %v5072 = vcombine.high %v5068, %v5068
          %5081 = vst [vmem:[%s331 + $0xa] sm:$0x1] %v5047
          %5082 = vst [vmem:[%s331 + $0x1a] sm:$0x1] %v5061
          %5083 = vst [vmem:[%s331 + $0x2a] sm:$0x1] %v5069
          %5084 = vst [vmem:[%s331 + $0x3a] sm:$0x1] %v5071
          %5085 = vst [vmem:[%s331 + $0x4a] sm:$0x1] %v5054
          %5086 = vst [vmem:[%s331 + $0x5a] sm:$0x1] %v5068
          %5087 = vst [vmem:[%s331 + $0x6a] sm:$0x1] %v5070
          %5088 = vst [vmem:[%s331 + $0x7a] sm:$0x1] %v5072
          %v5089 = vld [vmem:[%s319 + $0xb] sm:$0x1]
          %v5090 = vld [vmem:[%s319 + $0x1b] sm:$0x1]
          %v5091 = vld [vmem:[%s319 + $0x2b] sm:$0x1]
          %v5092 = vld [vmem:[%s319 + $0x3b] sm:$0x1]
          %v5093 = vld [vmem:[%s319 + $0x4b] sm:$0x1]
          %v5094 = vld [vmem:[%s319 + $0x5b] sm:$0x1]
          %v5095 = vld [vmem:[%s319 + $0x6b] sm:$0x1]
          %v5096 = vld [vmem:[%s319 + $0x7b] sm:$0x1]
          %v5105 = vrot.slane %v5090, 7
          %v5106 = vsel %vm468, %v5105, %v5089
          %v5107 = vrot.slane %v5091, 6
          %v5108 = vsel %vm471, %v5107, %v5106
          %v5109 = vrot.slane %v5092, 5
          %v5110 = vsel %vm474, %v5109, %v5108
          %v5111 = vrot.slane %v5093, 4
          %v5112 = vsel %vm477, %v5111, %v5110
          %v5113 = vrot.slane %v5094, 3
          %v5114 = vsel %vm480, %v5113, %v5112
          %v5115 = vrot.slane %v5095, 2
          %v5116 = vsel %vm483, %v5115, %v5114
          %v5117 = vrot.slane %v5096, 1
          %v5118 = vsel %vm486, %v5117, %v5116
          %v5119 = vsel %vm488, %v5118, 0
          %5121 = vmatprep.subr.mxu0 0.0
          %5122 = vmatpush1.msra.mxu0 0.0
          %5123 = vmatprep.subr.mxu0 0.0
          %5124 = vmatpush1.msra.mxu0 0.0
          %5125 = vmatprep.subr.mxu0 0.0
          %5126 = vmatpush1.msra.mxu0 0.0
          %5127 = vmatprep.subr.mxu0 0.0
          %5128 = vmatpush1.msra.mxu0 0.0
          %5129 = vmatprep.subr.mxu0 0.0
          %5130 = vmatpush1.msra.mxu0 0.0
          %5131 = vmatprep.subr.mxu0 0.0
          %5132 = vmatpush1.msra.mxu0 0.0
          %5133 = vmatprep.subr.mxu0 0.0
          %5134 = vmatpush1.msra.mxu0 0.0
          %5135 = vmatprep.subr.mxu0 0.0
          %5136 = vmatpush1.msra.mxu0 0.0
          %5137 = vmatprep.subr.mxu0 0.0
          %5138 = vmatpush1.msra.mxu0 0.0
          %5139 = vmatprep.subr.mxu0 0.0
          %5140 = vmatpush1.msra.mxu0 0.0
          %5141 = vmatprep.subr.mxu0 0.0
          %5142 = vmatpush1.msra.mxu0 0.0
          %5143 = vmatprep.subr.mxu0 0.0
          %5144 = vmatpush1.msra.mxu0 0.0
          %5145 = vmatprep.subr.mxu0 %v360
          %5146 = vmatpush1.msra.mxu0 %v359
          %5147 = vmatprep.subr.mxu0 %v356
          %5148 = vmatpush1.msra.mxu0 %v355
          %5149 = vmatprep.subr.mxu0 %v352
          %5150 = vmatpush1.msra.mxu0 %v351
          %5151 = vmatprep.subr.mxu0 %v348
          %5152 = vmatpush1.msra.mxu0 %v347
          %5153 = vmatprep.subr.mxu0 0.0
          %5154 = vmatpush2.msra.mxu0 0.0
          %5155 = vmatprep.subr.mxu0 0.0
          %5156 = vmatpush2.msra.mxu0 0.0
          %5157 = vmatprep.subr.mxu0 0.0
          %5158 = vmatpush2.msra.mxu0 0.0
          %5159 = vmatprep.subr.mxu0 0.0
          %5160 = vmatpush2.msra.mxu0 0.0
          %5161 = vmatprep.subr.mxu0 0.0
          %5162 = vmatpush2.msra.mxu0 0.0
          %5163 = vmatprep.subr.mxu0 0.0
          %5164 = vmatpush2.msra.mxu0 0.0
          %5165 = vmatprep.subr.mxu0 0.0
          %5166 = vmatpush2.msra.mxu0 0.0
          %5167 = vmatprep.subr.mxu0 0.0
          %5168 = vmatpush2.msra.mxu0 0.0
          %5169 = vmatprep.subr.mxu0 0.0
          %5170 = vmatpush2.msra.mxu0 0.0
          %5171 = vmatprep.subr.mxu0 0.0
          %5172 = vmatpush2.msra.mxu0 0.0
          %5173 = vmatprep.subr.mxu0 0.0
          %5174 = vmatpush2.msra.mxu0 0.0
          %5175 = vmatprep.subr.mxu0 0.0
          %5176 = vmatpush2.msra.mxu0 0.0
          %5177 = vmatprep.subr.mxu0 0.0
          %5178 = vmatpush2.msra.mxu0 0.0
          %5179 = vmatprep.subr.mxu0 0.0
          %5180 = vmatpush2.msra.mxu0 0.0
          %5181 = vmatprep.subr.mxu0 0.0
          %5182 = vmatpush2.msra.mxu0 0.0
          %5183 = vmatprep.subr.mxu0 0.0
          %5184 = vmatpush2.msra.mxu0 0.0
          %5185 = vmatprep.mubr.f32.mxu0 0.0
          %5186 = vmatmul.mubr.f32.gmra.mxu0 %v5119
          %v5187 = vpop.f32.mrf.mxu0
          %v5188 = vadd.f32 %v442, %v5187
          %v5189 = vpop.f32.mrf.mxu0
          %v5190 = vadd.f32 %v446, %v5189
          %5191 = vdwg.mxu0
          %5192 = vmatprep.subr.mxu0 0.0
          %5193 = vmatpush1.msra.mxu0 0.0
          %5194 = vmatprep.subr.mxu0 0.0
          %5195 = vmatpush1.msra.mxu0 0.0
          %5196 = vmatprep.subr.mxu0 0.0
          %5197 = vmatpush1.msra.mxu0 0.0
          %5198 = vmatprep.subr.mxu0 0.0
          %5199 = vmatpush1.msra.mxu0 0.0
          %5200 = vmatprep.subr.mxu0 0.0
          %5201 = vmatpush1.msra.mxu0 0.0
          %5202 = vmatprep.subr.mxu0 0.0
          %5203 = vmatpush1.msra.mxu0 0.0
          %5204 = vmatprep.subr.mxu0 0.0
          %5205 = vmatpush1.msra.mxu0 0.0
          %5206 = vmatprep.subr.mxu0 0.0
          %5207 = vmatpush1.msra.mxu0 0.0
          %5208 = vmatprep.subr.mxu0 0.0
          %5209 = vmatpush1.msra.mxu0 0.0
          %5210 = vmatprep.subr.mxu0 0.0
          %5211 = vmatpush1.msra.mxu0 0.0
          %5212 = vmatprep.subr.mxu0 0.0
          %5213 = vmatpush1.msra.mxu0 0.0
          %5214 = vmatprep.subr.mxu0 0.0
          %5215 = vmatpush1.msra.mxu0 0.0
          %5216 = vmatprep.subr.mxu0 %v362
          %5217 = vmatpush1.msra.mxu0 %v361
          %5218 = vmatprep.subr.mxu0 %v358
          %5219 = vmatpush1.msra.mxu0 %v357
          %5220 = vmatprep.subr.mxu0 %v354
          %5221 = vmatpush1.msra.mxu0 %v353
          %5222 = vmatprep.subr.mxu0 %v350
          %5223 = vmatpush1.msra.mxu0 %v349
          %5224 = vmatprep.subr.mxu0 0.0
          %5225 = vmatpush2.msra.mxu0 0.0
          %5226 = vmatprep.subr.mxu0 0.0
          %5227 = vmatpush2.msra.mxu0 0.0
          %5228 = vmatprep.subr.mxu0 0.0
          %5229 = vmatpush2.msra.mxu0 0.0
          %5230 = vmatprep.subr.mxu0 0.0
          %5231 = vmatpush2.msra.mxu0 0.0
          %5232 = vmatprep.subr.mxu0 0.0
          %5233 = vmatpush2.msra.mxu0 0.0
          %5234 = vmatprep.subr.mxu0 0.0
          %5235 = vmatpush2.msra.mxu0 0.0
          %5236 = vmatprep.subr.mxu0 0.0
          %5237 = vmatpush2.msra.mxu0 0.0
          %5238 = vmatprep.subr.mxu0 0.0
          %5239 = vmatpush2.msra.mxu0 0.0
          %5240 = vmatprep.subr.mxu0 0.0
          %5241 = vmatpush2.msra.mxu0 0.0
          %5242 = vmatprep.subr.mxu0 0.0
          %5243 = vmatpush2.msra.mxu0 0.0
          %5244 = vmatprep.subr.mxu0 0.0
          %5245 = vmatpush2.msra.mxu0 0.0
          %5246 = vmatprep.subr.mxu0 0.0
          %5247 = vmatpush2.msra.mxu0 0.0
          %5248 = vmatprep.subr.mxu0 0.0
          %5249 = vmatpush2.msra.mxu0 0.0
          %5250 = vmatprep.subr.mxu0 0.0
          %5251 = vmatpush2.msra.mxu0 0.0
          %5252 = vmatprep.subr.mxu0 0.0
          %5253 = vmatpush2.msra.mxu0 0.0
          %5254 = vmatprep.subr.mxu0 0.0
          %5255 = vmatpush2.msra.mxu0 0.0
          %5256 = vmatprep.mubr.f32.mxu0 0.0
          %5257 = vmatmul.mubr.f32.gmra.mxu0 %v5119
          %v5258 = vpop.f32.mrf.mxu0
          %v5259 = vadd.f32 %v450, %v5258
          %v5260 = vpop.f32.mrf.mxu0
          %v5261 = vadd.f32 %v454, %v5260
          %5262 = vdwg.mxu0
          %5263 = vmatprep.subr.mxu0 %v424
          %5264 = vmatpush1.msra.mxu0 %v423
          %5265 = vmatprep.subr.mxu0 %v420
          %5266 = vmatpush1.msra.mxu0 %v419
          %5267 = vmatprep.subr.mxu0 %v416
          %5268 = vmatpush1.msra.mxu0 %v415
          %5269 = vmatprep.subr.mxu0 %v412
          %5270 = vmatpush1.msra.mxu0 %v411
          %5271 = vmatprep.subr.mxu0 %v408
          %5272 = vmatpush1.msra.mxu0 %v407
          %5273 = vmatprep.subr.mxu0 %v404
          %5274 = vmatpush1.msra.mxu0 %v403
          %5275 = vmatprep.subr.mxu0 %v400
          %5276 = vmatpush1.msra.mxu0 %v399
          %5277 = vmatprep.subr.mxu0 %v396
          %5278 = vmatpush1.msra.mxu0 %v395
          %5279 = vmatprep.subr.mxu0 %v392
          %5280 = vmatpush1.msra.mxu0 %v391
          %5281 = vmatprep.subr.mxu0 %v388
          %5282 = vmatpush1.msra.mxu0 %v387
          %5283 = vmatprep.subr.mxu0 %v384
          %5284 = vmatpush1.msra.mxu0 %v383
          %5285 = vmatprep.subr.mxu0 %v380
          %5286 = vmatpush1.msra.mxu0 %v379
          %5287 = vmatprep.subr.mxu0 %v376
          %5288 = vmatpush1.msra.mxu0 %v375
          %5289 = vmatprep.subr.mxu0 %v372
          %5290 = vmatpush1.msra.mxu0 %v371
          %5291 = vmatprep.subr.mxu0 %v368
          %5292 = vmatpush1.msra.mxu0 %v367
          %5293 = vmatprep.subr.mxu0 %v364
          %5294 = vmatpush1.msra.mxu0 %v363
          %5295 = vmatprep.subr.mxu0 0.0
          %5296 = vmatpush2.msra.mxu0 0.0
          %5297 = vmatprep.subr.mxu0 0.0
          %5298 = vmatpush2.msra.mxu0 0.0
          %5299 = vmatprep.subr.mxu0 0.0
          %5300 = vmatpush2.msra.mxu0 0.0
          %5301 = vmatprep.subr.mxu0 0.0
          %5302 = vmatpush2.msra.mxu0 0.0
          %5303 = vmatprep.subr.mxu0 0.0
          %5304 = vmatpush2.msra.mxu0 0.0
          %5305 = vmatprep.subr.mxu0 0.0
          %5306 = vmatpush2.msra.mxu0 0.0
          %5307 = vmatprep.subr.mxu0 0.0
          %5308 = vmatpush2.msra.mxu0 0.0
          %5309 = vmatprep.subr.mxu0 0.0
          %5310 = vmatpush2.msra.mxu0 0.0
          %5311 = vmatprep.subr.mxu0 0.0
          %5312 = vmatpush2.msra.mxu0 0.0
          %5313 = vmatprep.subr.mxu0 0.0
          %5314 = vmatpush2.msra.mxu0 0.0
          %5315 = vmatprep.subr.mxu0 0.0
          %5316 = vmatpush2.msra.mxu0 0.0
          %5317 = vmatprep.subr.mxu0 0.0
          %5318 = vmatpush2.msra.mxu0 0.0
          %5319 = vmatprep.subr.mxu0 0.0
          %5320 = vmatpush2.msra.mxu0 0.0
          %5321 = vmatprep.subr.mxu0 0.0
          %5322 = vmatpush2.msra.mxu0 0.0
          %5323 = vmatprep.subr.mxu0 0.0
          %5324 = vmatpush2.msra.mxu0 0.0
          %5325 = vmatprep.subr.mxu0 0.0
          %5326 = vmatpush2.msra.mxu0 0.0
          %5327 = vmatprep.mubr.f32.mxu0 0.0
          %5328 = vmatmul.mubr.f32.gmra.mxu0 %v5020
          %v5329 = vpop.f32.mrf.mxu0
          %v5330 = vadd.f32 0.0, %v5329
          %v5331 = vpop.f32.mrf.mxu0
          %v5332 = vadd.f32 0.0, %v5331
          %5333 = vdwg.mxu0
          %5334 = vmatprep.subr.mxu0 %v426
          %5335 = vmatpush1.msra.mxu0 %v425
          %5336 = vmatprep.subr.mxu0 %v422
          %5337 = vmatpush1.msra.mxu0 %v421
          %5338 = vmatprep.subr.mxu0 %v418
          %5339 = vmatpush1.msra.mxu0 %v417
          %5340 = vmatprep.subr.mxu0 %v414
          %5341 = vmatpush1.msra.mxu0 %v413
          %5342 = vmatprep.subr.mxu0 %v410
          %5343 = vmatpush1.msra.mxu0 %v409
          %5344 = vmatprep.subr.mxu0 %v406
          %5345 = vmatpush1.msra.mxu0 %v405
          %5346 = vmatprep.subr.mxu0 %v402
          %5347 = vmatpush1.msra.mxu0 %v401
          %5348 = vmatprep.subr.mxu0 %v398
          %5349 = vmatpush1.msra.mxu0 %v397
          %5350 = vmatprep.subr.mxu0 %v394
          %5351 = vmatpush1.msra.mxu0 %v393
          %5352 = vmatprep.subr.mxu0 %v390
          %5353 = vmatpush1.msra.mxu0 %v389
          %5354 = vmatprep.subr.mxu0 %v386
          %5355 = vmatpush1.msra.mxu0 %v385
          %5356 = vmatprep.subr.mxu0 %v382
          %5357 = vmatpush1.msra.mxu0 %v381
          %5358 = vmatprep.subr.mxu0 %v378
          %5359 = vmatpush1.msra.mxu0 %v377
          %5360 = vmatprep.subr.mxu0 %v374
          %5361 = vmatpush1.msra.mxu0 %v373
          %5362 = vmatprep.subr.mxu0 %v370
          %5363 = vmatpush1.msra.mxu0 %v369
          %5364 = vmatprep.subr.mxu0 %v366
          %5365 = vmatpush1.msra.mxu0 %v365
          %5366 = vmatprep.subr.mxu0 0.0
          %5367 = vmatpush2.msra.mxu0 0.0
          %5368 = vmatprep.subr.mxu0 0.0
          %5369 = vmatpush2.msra.mxu0 0.0
          %5370 = vmatprep.subr.mxu0 0.0
          %5371 = vmatpush2.msra.mxu0 0.0
          %5372 = vmatprep.subr.mxu0 0.0
          %5373 = vmatpush2.msra.mxu0 0.0
          %5374 = vmatprep.subr.mxu0 0.0
          %5375 = vmatpush2.msra.mxu0 0.0
          %5376 = vmatprep.subr.mxu0 0.0
          %5377 = vmatpush2.msra.mxu0 0.0
          %5378 = vmatprep.subr.mxu0 0.0
          %5379 = vmatpush2.msra.mxu0 0.0
          %5380 = vmatprep.subr.mxu0 0.0
          %5381 = vmatpush2.msra.mxu0 0.0
          %5382 = vmatprep.subr.mxu0 0.0
          %5383 = vmatpush2.msra.mxu0 0.0
          %5384 = vmatprep.subr.mxu0 0.0
          %5385 = vmatpush2.msra.mxu0 0.0
          %5386 = vmatprep.subr.mxu0 0.0
          %5387 = vmatpush2.msra.mxu0 0.0
          %5388 = vmatprep.subr.mxu0 0.0
          %5389 = vmatpush2.msra.mxu0 0.0
          %5390 = vmatprep.subr.mxu0 0.0
          %5391 = vmatpush2.msra.mxu0 0.0
          %5392 = vmatprep.subr.mxu0 0.0
          %5393 = vmatpush2.msra.mxu0 0.0
          %5394 = vmatprep.subr.mxu0 0.0
          %5395 = vmatpush2.msra.mxu0 0.0
          %5396 = vmatprep.subr.mxu0 0.0
          %5397 = vmatpush2.msra.mxu0 0.0
          %5398 = vmatprep.mubr.f32.mxu0 0.0
          %5399 = vmatmul.mubr.f32.gmra.mxu0 %v5020
          %v5400 = vpop.f32.mrf.mxu0
          %v5401 = vadd.f32 0.0, %v5400
          %v5402 = vpop.f32.mrf.mxu0
          %v5403 = vadd.f32 0.0, %v5402
          %5404 = vdwg.mxu0
          %v5405 = vadd.f32 %v5188, %v5330
          %v5406 = vadd.f32 %v5190, %v5332
          %v5407 = vadd.f32 %v5259, %v5401
          %v5408 = vadd.f32 %v5261, %v5403
          %v5409 = vxor.u32 %v5405, 2147483648
          %v5410 = vmul.f32 %v5409, 1.442695
          %v5411 = vpow.pop %v5410
          %v5412 = vadd.f32 %v5411, 1.0
          %v5413 = vrcp.pop %v5412
          %v5414 = vmul.f32 1.0, %v5413
          %v5415 = vxor.u32 %v5406, 2147483648
          %v5416 = vmul.f32 %v5415, 1.442695
          %v5417 = vpow.pop %v5416
          %v5418 = vadd.f32 %v5417, 1.0
          %v5419 = vrcp.pop %v5418
          %v5420 = vmul.f32 1.0, %v5419
          %v5421 = vtanh.pop %v5407
          %v5422 = vxor.u32 %v5408, 2147483648
          %v5423 = vmul.f32 %v5422, 1.442695
          %v5424 = vpow.pop %v5423
          %v5425 = vadd.f32 %v5424, 1.0
          %v5426 = vrcp.pop %v5425
          %v5427 = vmul.f32 1.0, %v5426
          %v5428 = vmul.f32 %v5420, %v5021
          %v5429 = vmul.f32 %v5414, %v5421
          %v5430 = vadd.f32 %v5428, %v5429
          %v5431 = vtanh.pop %v5430
          %v5432 = vmul.f32 %v5427, %v5431
          %s5433 = sadd.s32 %s334, 11
          %v5434 = vstv %s5433
          %vm5435 = vcmp.lt.s32.totalorder %v5434, %v346
          %v5436 = vsel %vm5435, 1, 0
          %5437 = vset.pattern.permute.xlu0 0
          %5438 = vperm.xlu0 %5437, %v5436
          %v5439 = vpop.permute.xlu0 %5438
          %vm5440 = vcmp.eq.s32.totalorder %v5439, 1
          %v5441 = vsel %vm5440, %v5432, %v5020
          %v5442 = vsel %vm5440, %v5430, %v5021
          %v5443 = vsel %vm5440, %v5432, 0.0
          %v5445 = vcombine.high %v5443, %v5443
          %v5447 = vunpack.c.l.s4 1966171168
          %v5448 = vunpack.c.0.s8 %v5447
          %v5449 = vlaneseq
          %v5450 = vshrl.u32 %v5449, 7
          %v5451 = vsub.s32 %v5448, %v5450
          %v5452 = vrot.slane %v5443, %v5451
          %v5454 = vunpack.c.l.s4 1966171168
          %v5455 = vunpack.c.0.s8 %v5454
          %v5456 = vlaneseq
          %v5457 = vshrl.u32 %v5456, 7
          %v5458 = vsub.s32 %v5455, %v5457
          %v5459 = vrot.slane %v5445, %v5458
          %v5460 = vcombine.high %v5452, %v5452
          %v5461 = vcombine.high %v5459, %v5459
          %v5463 = vunpack.c.l.s4 1966171168
          %v5464 = vunpack.c.0.s8 %v5463
          %v5465 = vlaneseq
          %v5466 = vshrl.u32 %v5465, 7
          %v5467 = vsub.s32 %v5464, %v5466
          %v5468 = vrot.slane %v5452, %v5467
          %v5470 = vunpack.c.l.s4 1966171168
          %v5471 = vunpack.c.0.s8 %v5470
          %v5472 = vlaneseq
          %v5473 = vshrl.u32 %v5472, 7
          %v5474 = vsub.s32 %v5471, %v5473
          %v5475 = vrot.slane %v5459, %v5474
          %v5477 = vunpack.c.l.s4 1966171168
          %v5478 = vunpack.c.0.s8 %v5477
          %v5479 = vlaneseq
          %v5480 = vshrl.u32 %v5479, 7
          %v5481 = vsub.s32 %v5478, %v5480
          %v5482 = vrot.slane %v5460, %v5481
          %v5484 = vunpack.c.l.s4 1966171168
          %v5485 = vunpack.c.0.s8 %v5484
          %v5486 = vlaneseq
          %v5487 = vshrl.u32 %v5486, 7
          %v5488 = vsub.s32 %v5485, %v5487
          %v5489 = vrot.slane %v5461, %v5488
          %v5490 = vcombine.high %v5468, %v5468
          %v5491 = vcombine.high %v5475, %v5475
          %v5492 = vcombine.high %v5482, %v5482
          %v5493 = vcombine.high %v5489, %v5489
          %5502 = vst [vmem:[%s331 + $0xb] sm:$0x1] %v5468
          %5503 = vst [vmem:[%s331 + $0x1b] sm:$0x1] %v5482
          %5504 = vst [vmem:[%s331 + $0x2b] sm:$0x1] %v5490
          %5505 = vst [vmem:[%s331 + $0x3b] sm:$0x1] %v5492
          %5506 = vst [vmem:[%s331 + $0x4b] sm:$0x1] %v5475
          %5507 = vst [vmem:[%s331 + $0x5b] sm:$0x1] %v5489
          %5508 = vst [vmem:[%s331 + $0x6b] sm:$0x1] %v5491
          %5509 = vst [vmem:[%s331 + $0x7b] sm:$0x1] %v5493
          %v5510 = vld [vmem:[%s319 + $0xc] sm:$0x1]
          %v5511 = vld [vmem:[%s319 + $0x1c] sm:$0x1]
          %v5512 = vld [vmem:[%s319 + $0x2c] sm:$0x1]
          %v5513 = vld [vmem:[%s319 + $0x3c] sm:$0x1]
          %v5514 = vld [vmem:[%s319 + $0x4c] sm:$0x1]
          %v5515 = vld [vmem:[%s319 + $0x5c] sm:$0x1]
          %v5516 = vld [vmem:[%s319 + $0x6c] sm:$0x1]
          %v5517 = vld [vmem:[%s319 + $0x7c] sm:$0x1]
          %v5526 = vrot.slane %v5511, 7
          %v5527 = vsel %vm468, %v5526, %v5510
          %v5528 = vrot.slane %v5512, 6
          %v5529 = vsel %vm471, %v5528, %v5527
          %v5530 = vrot.slane %v5513, 5
          %v5531 = vsel %vm474, %v5530, %v5529
          %v5532 = vrot.slane %v5514, 4
          %v5533 = vsel %vm477, %v5532, %v5531
          %v5534 = vrot.slane %v5515, 3
          %v5535 = vsel %vm480, %v5534, %v5533
          %v5536 = vrot.slane %v5516, 2
          %v5537 = vsel %vm483, %v5536, %v5535
          %v5538 = vrot.slane %v5517, 1
          %v5539 = vsel %vm486, %v5538, %v5537
          %v5540 = vsel %vm488, %v5539, 0
          %5542 = vmatprep.subr.mxu0 0.0
          %5543 = vmatpush1.msra.mxu0 0.0
          %5544 = vmatprep.subr.mxu0 0.0
          %5545 = vmatpush1.msra.mxu0 0.0
          %5546 = vmatprep.subr.mxu0 0.0
          %5547 = vmatpush1.msra.mxu0 0.0
          %5548 = vmatprep.subr.mxu0 0.0
          %5549 = vmatpush1.msra.mxu0 0.0
          %5550 = vmatprep.subr.mxu0 0.0
          %5551 = vmatpush1.msra.mxu0 0.0
          %5552 = vmatprep.subr.mxu0 0.0
          %5553 = vmatpush1.msra.mxu0 0.0
          %5554 = vmatprep.subr.mxu0 0.0
          %5555 = vmatpush1.msra.mxu0 0.0
          %5556 = vmatprep.subr.mxu0 0.0
          %5557 = vmatpush1.msra.mxu0 0.0
          %5558 = vmatprep.subr.mxu0 0.0
          %5559 = vmatpush1.msra.mxu0 0.0
          %5560 = vmatprep.subr.mxu0 0.0
          %5561 = vmatpush1.msra.mxu0 0.0
          %5562 = vmatprep.subr.mxu0 0.0
          %5563 = vmatpush1.msra.mxu0 0.0
          %5564 = vmatprep.subr.mxu0 0.0
          %5565 = vmatpush1.msra.mxu0 0.0
          %5566 = vmatprep.subr.mxu0 %v360
          %5567 = vmatpush1.msra.mxu0 %v359
          %5568 = vmatprep.subr.mxu0 %v356
          %5569 = vmatpush1.msra.mxu0 %v355
          %5570 = vmatprep.subr.mxu0 %v352
          %5571 = vmatpush1.msra.mxu0 %v351
          %5572 = vmatprep.subr.mxu0 %v348
          %5573 = vmatpush1.msra.mxu0 %v347
          %5574 = vmatprep.subr.mxu0 0.0
          %5575 = vmatpush2.msra.mxu0 0.0
          %5576 = vmatprep.subr.mxu0 0.0
          %5577 = vmatpush2.msra.mxu0 0.0
          %5578 = vmatprep.subr.mxu0 0.0
          %5579 = vmatpush2.msra.mxu0 0.0
          %5580 = vmatprep.subr.mxu0 0.0
          %5581 = vmatpush2.msra.mxu0 0.0
          %5582 = vmatprep.subr.mxu0 0.0
          %5583 = vmatpush2.msra.mxu0 0.0
          %5584 = vmatprep.subr.mxu0 0.0
          %5585 = vmatpush2.msra.mxu0 0.0
          %5586 = vmatprep.subr.mxu0 0.0
          %5587 = vmatpush2.msra.mxu0 0.0
          %5588 = vmatprep.subr.mxu0 0.0
          %5589 = vmatpush2.msra.mxu0 0.0
          %5590 = vmatprep.subr.mxu0 0.0
          %5591 = vmatpush2.msra.mxu0 0.0
          %5592 = vmatprep.subr.mxu0 0.0
          %5593 = vmatpush2.msra.mxu0 0.0
          %5594 = vmatprep.subr.mxu0 0.0
          %5595 = vmatpush2.msra.mxu0 0.0
          %5596 = vmatprep.subr.mxu0 0.0
          %5597 = vmatpush2.msra.mxu0 0.0
          %5598 = vmatprep.subr.mxu0 0.0
          %5599 = vmatpush2.msra.mxu0 0.0
          %5600 = vmatprep.subr.mxu0 0.0
          %5601 = vmatpush2.msra.mxu0 0.0
          %5602 = vmatprep.subr.mxu0 0.0
          %5603 = vmatpush2.msra.mxu0 0.0
          %5604 = vmatprep.subr.mxu0 0.0
          %5605 = vmatpush2.msra.mxu0 0.0
          %5606 = vmatprep.mubr.f32.mxu0 0.0
          %5607 = vmatmul.mubr.f32.gmra.mxu0 %v5540
          %v5608 = vpop.f32.mrf.mxu0
          %v5609 = vadd.f32 %v442, %v5608
          %v5610 = vpop.f32.mrf.mxu0
          %v5611 = vadd.f32 %v446, %v5610
          %5612 = vdwg.mxu0
          %5613 = vmatprep.subr.mxu0 0.0
          %5614 = vmatpush1.msra.mxu0 0.0
          %5615 = vmatprep.subr.mxu0 0.0
          %5616 = vmatpush1.msra.mxu0 0.0
          %5617 = vmatprep.subr.mxu0 0.0
          %5618 = vmatpush1.msra.mxu0 0.0
          %5619 = vmatprep.subr.mxu0 0.0
          %5620 = vmatpush1.msra.mxu0 0.0
          %5621 = vmatprep.subr.mxu0 0.0
          %5622 = vmatpush1.msra.mxu0 0.0
          %5623 = vmatprep.subr.mxu0 0.0
          %5624 = vmatpush1.msra.mxu0 0.0
          %5625 = vmatprep.subr.mxu0 0.0
          %5626 = vmatpush1.msra.mxu0 0.0
          %5627 = vmatprep.subr.mxu0 0.0
          %5628 = vmatpush1.msra.mxu0 0.0
          %5629 = vmatprep.subr.mxu0 0.0
          %5630 = vmatpush1.msra.mxu0 0.0
          %5631 = vmatprep.subr.mxu0 0.0
          %5632 = vmatpush1.msra.mxu0 0.0
          %5633 = vmatprep.subr.mxu0 0.0
          %5634 = vmatpush1.msra.mxu0 0.0
          %5635 = vmatprep.subr.mxu0 0.0
          %5636 = vmatpush1.msra.mxu0 0.0
          %5637 = vmatprep.subr.mxu0 %v362
          %5638 = vmatpush1.msra.mxu0 %v361
          %5639 = vmatprep.subr.mxu0 %v358
          %5640 = vmatpush1.msra.mxu0 %v357
          %5641 = vmatprep.subr.mxu0 %v354
          %5642 = vmatpush1.msra.mxu0 %v353
          %5643 = vmatprep.subr.mxu0 %v350
          %5644 = vmatpush1.msra.mxu0 %v349
          %5645 = vmatprep.subr.mxu0 0.0
          %5646 = vmatpush2.msra.mxu0 0.0
          %5647 = vmatprep.subr.mxu0 0.0
          %5648 = vmatpush2.msra.mxu0 0.0
          %5649 = vmatprep.subr.mxu0 0.0
          %5650 = vmatpush2.msra.mxu0 0.0
          %5651 = vmatprep.subr.mxu0 0.0
          %5652 = vmatpush2.msra.mxu0 0.0
          %5653 = vmatprep.subr.mxu0 0.0
          %5654 = vmatpush2.msra.mxu0 0.0
          %5655 = vmatprep.subr.mxu0 0.0
          %5656 = vmatpush2.msra.mxu0 0.0
          %5657 = vmatprep.subr.mxu0 0.0
          %5658 = vmatpush2.msra.mxu0 0.0
          %5659 = vmatprep.subr.mxu0 0.0
          %5660 = vmatpush2.msra.mxu0 0.0
          %5661 = vmatprep.subr.mxu0 0.0
          %5662 = vmatpush2.msra.mxu0 0.0
          %5663 = vmatprep.subr.mxu0 0.0
          %5664 = vmatpush2.msra.mxu0 0.0
          %5665 = vmatprep.subr.mxu0 0.0
          %5666 = vmatpush2.msra.mxu0 0.0
          %5667 = vmatprep.subr.mxu0 0.0
          %5668 = vmatpush2.msra.mxu0 0.0
          %5669 = vmatprep.subr.mxu0 0.0
          %5670 = vmatpush2.msra.mxu0 0.0
          %5671 = vmatprep.subr.mxu0 0.0
          %5672 = vmatpush2.msra.mxu0 0.0
          %5673 = vmatprep.subr.mxu0 0.0
          %5674 = vmatpush2.msra.mxu0 0.0
          %5675 = vmatprep.subr.mxu0 0.0
          %5676 = vmatpush2.msra.mxu0 0.0
          %5677 = vmatprep.mubr.f32.mxu0 0.0
          %5678 = vmatmul.mubr.f32.gmra.mxu0 %v5540
          %v5679 = vpop.f32.mrf.mxu0
          %v5680 = vadd.f32 %v450, %v5679
          %v5681 = vpop.f32.mrf.mxu0
          %v5682 = vadd.f32 %v454, %v5681
          %5683 = vdwg.mxu0
          %5684 = vmatprep.subr.mxu0 %v424
          %5685 = vmatpush1.msra.mxu0 %v423
          %5686 = vmatprep.subr.mxu0 %v420
          %5687 = vmatpush1.msra.mxu0 %v419
          %5688 = vmatprep.subr.mxu0 %v416
          %5689 = vmatpush1.msra.mxu0 %v415
          %5690 = vmatprep.subr.mxu0 %v412
          %5691 = vmatpush1.msra.mxu0 %v411
          %5692 = vmatprep.subr.mxu0 %v408
          %5693 = vmatpush1.msra.mxu0 %v407
          %5694 = vmatprep.subr.mxu0 %v404
          %5695 = vmatpush1.msra.mxu0 %v403
          %5696 = vmatprep.subr.mxu0 %v400
          %5697 = vmatpush1.msra.mxu0 %v399
          %5698 = vmatprep.subr.mxu0 %v396
          %5699 = vmatpush1.msra.mxu0 %v395
          %5700 = vmatprep.subr.mxu0 %v392
          %5701 = vmatpush1.msra.mxu0 %v391
          %5702 = vmatprep.subr.mxu0 %v388
          %5703 = vmatpush1.msra.mxu0 %v387
          %5704 = vmatprep.subr.mxu0 %v384
          %5705 = vmatpush1.msra.mxu0 %v383
          %5706 = vmatprep.subr.mxu0 %v380
          %5707 = vmatpush1.msra.mxu0 %v379
          %5708 = vmatprep.subr.mxu0 %v376
          %5709 = vmatpush1.msra.mxu0 %v375
          %5710 = vmatprep.subr.mxu0 %v372
          %5711 = vmatpush1.msra.mxu0 %v371
          %5712 = vmatprep.subr.mxu0 %v368
          %5713 = vmatpush1.msra.mxu0 %v367
          %5714 = vmatprep.subr.mxu0 %v364
          %5715 = vmatpush1.msra.mxu0 %v363
          %5716 = vmatprep.subr.mxu0 0.0
          %5717 = vmatpush2.msra.mxu0 0.0
          %5718 = vmatprep.subr.mxu0 0.0
          %5719 = vmatpush2.msra.mxu0 0.0
          %5720 = vmatprep.subr.mxu0 0.0
          %5721 = vmatpush2.msra.mxu0 0.0
          %5722 = vmatprep.subr.mxu0 0.0
          %5723 = vmatpush2.msra.mxu0 0.0
          %5724 = vmatprep.subr.mxu0 0.0
          %5725 = vmatpush2.msra.mxu0 0.0
          %5726 = vmatprep.subr.mxu0 0.0
          %5727 = vmatpush2.msra.mxu0 0.0
          %5728 = vmatprep.subr.mxu0 0.0
          %5729 = vmatpush2.msra.mxu0 0.0
          %5730 = vmatprep.subr.mxu0 0.0
          %5731 = vmatpush2.msra.mxu0 0.0
          %5732 = vmatprep.subr.mxu0 0.0
          %5733 = vmatpush2.msra.mxu0 0.0
          %5734 = vmatprep.subr.mxu0 0.0
          %5735 = vmatpush2.msra.mxu0 0.0
          %5736 = vmatprep.subr.mxu0 0.0
          %5737 = vmatpush2.msra.mxu0 0.0
          %5738 = vmatprep.subr.mxu0 0.0
          %5739 = vmatpush2.msra.mxu0 0.0
          %5740 = vmatprep.subr.mxu0 0.0
          %5741 = vmatpush2.msra.mxu0 0.0
          %5742 = vmatprep.subr.mxu0 0.0
          %5743 = vmatpush2.msra.mxu0 0.0
          %5744 = vmatprep.subr.mxu0 0.0
          %5745 = vmatpush2.msra.mxu0 0.0
          %5746 = vmatprep.subr.mxu0 0.0
          %5747 = vmatpush2.msra.mxu0 0.0
          %5748 = vmatprep.mubr.f32.mxu0 0.0
          %5749 = vmatmul.mubr.f32.gmra.mxu0 %v5441
          %v5750 = vpop.f32.mrf.mxu0
          %v5751 = vadd.f32 0.0, %v5750
          %v5752 = vpop.f32.mrf.mxu0
          %v5753 = vadd.f32 0.0, %v5752
          %5754 = vdwg.mxu0
          %5755 = vmatprep.subr.mxu0 %v426
          %5756 = vmatpush1.msra.mxu0 %v425
          %5757 = vmatprep.subr.mxu0 %v422
          %5758 = vmatpush1.msra.mxu0 %v421
          %5759 = vmatprep.subr.mxu0 %v418
          %5760 = vmatpush1.msra.mxu0 %v417
          %5761 = vmatprep.subr.mxu0 %v414
          %5762 = vmatpush1.msra.mxu0 %v413
          %5763 = vmatprep.subr.mxu0 %v410
          %5764 = vmatpush1.msra.mxu0 %v409
          %5765 = vmatprep.subr.mxu0 %v406
          %5766 = vmatpush1.msra.mxu0 %v405
          %5767 = vmatprep.subr.mxu0 %v402
          %5768 = vmatpush1.msra.mxu0 %v401
          %5769 = vmatprep.subr.mxu0 %v398
          %5770 = vmatpush1.msra.mxu0 %v397
          %5771 = vmatprep.subr.mxu0 %v394
          %5772 = vmatpush1.msra.mxu0 %v393
          %5773 = vmatprep.subr.mxu0 %v390
          %5774 = vmatpush1.msra.mxu0 %v389
          %5775 = vmatprep.subr.mxu0 %v386
          %5776 = vmatpush1.msra.mxu0 %v385
          %5777 = vmatprep.subr.mxu0 %v382
          %5778 = vmatpush1.msra.mxu0 %v381
          %5779 = vmatprep.subr.mxu0 %v378
          %5780 = vmatpush1.msra.mxu0 %v377
          %5781 = vmatprep.subr.mxu0 %v374
          %5782 = vmatpush1.msra.mxu0 %v373
          %5783 = vmatprep.subr.mxu0 %v370
          %5784 = vmatpush1.msra.mxu0 %v369
          %5785 = vmatprep.subr.mxu0 %v366
          %5786 = vmatpush1.msra.mxu0 %v365
          %5787 = vmatprep.subr.mxu0 0.0
          %5788 = vmatpush2.msra.mxu0 0.0
          %5789 = vmatprep.subr.mxu0 0.0
          %5790 = vmatpush2.msra.mxu0 0.0
          %5791 = vmatprep.subr.mxu0 0.0
          %5792 = vmatpush2.msra.mxu0 0.0
          %5793 = vmatprep.subr.mxu0 0.0
          %5794 = vmatpush2.msra.mxu0 0.0
          %5795 = vmatprep.subr.mxu0 0.0
          %5796 = vmatpush2.msra.mxu0 0.0
          %5797 = vmatprep.subr.mxu0 0.0
          %5798 = vmatpush2.msra.mxu0 0.0
          %5799 = vmatprep.subr.mxu0 0.0
          %5800 = vmatpush2.msra.mxu0 0.0
          %5801 = vmatprep.subr.mxu0 0.0
          %5802 = vmatpush2.msra.mxu0 0.0
          %5803 = vmatprep.subr.mxu0 0.0
          %5804 = vmatpush2.msra.mxu0 0.0
          %5805 = vmatprep.subr.mxu0 0.0
          %5806 = vmatpush2.msra.mxu0 0.0
          %5807 = vmatprep.subr.mxu0 0.0
          %5808 = vmatpush2.msra.mxu0 0.0
          %5809 = vmatprep.subr.mxu0 0.0
          %5810 = vmatpush2.msra.mxu0 0.0
          %5811 = vmatprep.subr.mxu0 0.0
          %5812 = vmatpush2.msra.mxu0 0.0
          %5813 = vmatprep.subr.mxu0 0.0
          %5814 = vmatpush2.msra.mxu0 0.0
          %5815 = vmatprep.subr.mxu0 0.0
          %5816 = vmatpush2.msra.mxu0 0.0
          %5817 = vmatprep.subr.mxu0 0.0
          %5818 = vmatpush2.msra.mxu0 0.0
          %5819 = vmatprep.mubr.f32.mxu0 0.0
          %5820 = vmatmul.mubr.f32.gmra.mxu0 %v5441
          %v5821 = vpop.f32.mrf.mxu0
          %v5822 = vadd.f32 0.0, %v5821
          %v5823 = vpop.f32.mrf.mxu0
          %v5824 = vadd.f32 0.0, %v5823
          %5825 = vdwg.mxu0
          %v5826 = vadd.f32 %v5609, %v5751
          %v5827 = vadd.f32 %v5611, %v5753
          %v5828 = vadd.f32 %v5680, %v5822
          %v5829 = vadd.f32 %v5682, %v5824
          %v5830 = vxor.u32 %v5826, 2147483648
          %v5831 = vmul.f32 %v5830, 1.442695
          %v5832 = vpow.pop %v5831
          %v5833 = vadd.f32 %v5832, 1.0
          %v5834 = vrcp.pop %v5833
          %v5835 = vmul.f32 1.0, %v5834
          %v5836 = vxor.u32 %v5827, 2147483648
          %v5837 = vmul.f32 %v5836, 1.442695
          %v5838 = vpow.pop %v5837
          %v5839 = vadd.f32 %v5838, 1.0
          %v5840 = vrcp.pop %v5839
          %v5841 = vmul.f32 1.0, %v5840
          %v5842 = vtanh.pop %v5828
          %v5843 = vxor.u32 %v5829, 2147483648
          %v5844 = vmul.f32 %v5843, 1.442695
          %v5845 = vpow.pop %v5844
          %v5846 = vadd.f32 %v5845, 1.0
          %v5847 = vrcp.pop %v5846
          %v5848 = vmul.f32 1.0, %v5847
          %v5849 = vmul.f32 %v5841, %v5442
          %v5850 = vmul.f32 %v5835, %v5842
          %v5851 = vadd.f32 %v5849, %v5850
          %v5852 = vtanh.pop %v5851
          %v5853 = vmul.f32 %v5848, %v5852
          %s5854 = sadd.s32 %s334, 12
          %v5855 = vstv %s5854
          %vm5856 = vcmp.lt.s32.totalorder %v5855, %v346
          %v5857 = vsel %vm5856, 1, 0
          %5858 = vset.pattern.permute.xlu0 0
          %5859 = vperm.xlu0 %5858, %v5857
          %v5860 = vpop.permute.xlu0 %5859
          %vm5861 = vcmp.eq.s32.totalorder %v5860, 1
          %v5862 = vsel %vm5861, %v5853, %v5441
          %v5863 = vsel %vm5861, %v5851, %v5442
          %v5864 = vsel %vm5861, %v5853, 0.0
          %v5866 = vcombine.high %v5864, %v5864
          %v5868 = vunpack.c.l.s4 1966171168
          %v5869 = vunpack.c.0.s8 %v5868
          %v5870 = vlaneseq
          %v5871 = vshrl.u32 %v5870, 7
          %v5872 = vsub.s32 %v5869, %v5871
          %v5873 = vrot.slane %v5864, %v5872
          %v5875 = vunpack.c.l.s4 1966171168
          %v5876 = vunpack.c.0.s8 %v5875
          %v5877 = vlaneseq
          %v5878 = vshrl.u32 %v5877, 7
          %v5879 = vsub.s32 %v5876, %v5878
          %v5880 = vrot.slane %v5866, %v5879
          %v5881 = vcombine.high %v5873, %v5873
          %v5882 = vcombine.high %v5880, %v5880
          %v5884 = vunpack.c.l.s4 1966171168
          %v5885 = vunpack.c.0.s8 %v5884
          %v5886 = vlaneseq
          %v5887 = vshrl.u32 %v5886, 7
          %v5888 = vsub.s32 %v5885, %v5887
          %v5889 = vrot.slane %v5873, %v5888
          %v5891 = vunpack.c.l.s4 1966171168
          %v5892 = vunpack.c.0.s8 %v5891
          %v5893 = vlaneseq
          %v5894 = vshrl.u32 %v5893, 7
          %v5895 = vsub.s32 %v5892, %v5894
          %v5896 = vrot.slane %v5880, %v5895
          %v5898 = vunpack.c.l.s4 1966171168
          %v5899 = vunpack.c.0.s8 %v5898
          %v5900 = vlaneseq
          %v5901 = vshrl.u32 %v5900, 7
          %v5902 = vsub.s32 %v5899, %v5901
          %v5903 = vrot.slane %v5881, %v5902
          %v5905 = vunpack.c.l.s4 1966171168
          %v5906 = vunpack.c.0.s8 %v5905
          %v5907 = vlaneseq
          %v5908 = vshrl.u32 %v5907, 7
          %v5909 = vsub.s32 %v5906, %v5908
          %v5910 = vrot.slane %v5882, %v5909
          %v5911 = vcombine.high %v5889, %v5889
          %v5912 = vcombine.high %v5896, %v5896
          %v5913 = vcombine.high %v5903, %v5903
          %v5914 = vcombine.high %v5910, %v5910
          %5923 = vst [vmem:[%s331 + $0xc] sm:$0x1] %v5889
          %5924 = vst [vmem:[%s331 + $0x1c] sm:$0x1] %v5903
          %5925 = vst [vmem:[%s331 + $0x2c] sm:$0x1] %v5911
          %5926 = vst [vmem:[%s331 + $0x3c] sm:$0x1] %v5913
          %5927 = vst [vmem:[%s331 + $0x4c] sm:$0x1] %v5896
          %5928 = vst [vmem:[%s331 + $0x5c] sm:$0x1] %v5910
          %5929 = vst [vmem:[%s331 + $0x6c] sm:$0x1] %v5912
          %5930 = vst [vmem:[%s331 + $0x7c] sm:$0x1] %v5914
          %v5931 = vld [vmem:[%s319 + $0xd] sm:$0x1]
          %v5932 = vld [vmem:[%s319 + $0x1d] sm:$0x1]
          %v5933 = vld [vmem:[%s319 + $0x2d] sm:$0x1]
          %v5934 = vld [vmem:[%s319 + $0x3d] sm:$0x1]
          %v5935 = vld [vmem:[%s319 + $0x4d] sm:$0x1]
          %v5936 = vld [vmem:[%s319 + $0x5d] sm:$0x1]
          %v5937 = vld [vmem:[%s319 + $0x6d] sm:$0x1]
          %v5938 = vld [vmem:[%s319 + $0x7d] sm:$0x1]
          %v5947 = vrot.slane %v5932, 7
          %v5948 = vsel %vm468, %v5947, %v5931
          %v5949 = vrot.slane %v5933, 6
          %v5950 = vsel %vm471, %v5949, %v5948
          %v5951 = vrot.slane %v5934, 5
          %v5952 = vsel %vm474, %v5951, %v5950
          %v5953 = vrot.slane %v5935, 4
          %v5954 = vsel %vm477, %v5953, %v5952
          %v5955 = vrot.slane %v5936, 3
          %v5956 = vsel %vm480, %v5955, %v5954
          %v5957 = vrot.slane %v5937, 2
          %v5958 = vsel %vm483, %v5957, %v5956
          %v5959 = vrot.slane %v5938, 1
          %v5960 = vsel %vm486, %v5959, %v5958
          %v5961 = vsel %vm488, %v5960, 0
          %5963 = vmatprep.subr.mxu0 0.0
          %5964 = vmatpush1.msra.mxu0 0.0
          %5965 = vmatprep.subr.mxu0 0.0
          %5966 = vmatpush1.msra.mxu0 0.0
          %5967 = vmatprep.subr.mxu0 0.0
          %5968 = vmatpush1.msra.mxu0 0.0
          %5969 = vmatprep.subr.mxu0 0.0
          %5970 = vmatpush1.msra.mxu0 0.0
          %5971 = vmatprep.subr.mxu0 0.0
          %5972 = vmatpush1.msra.mxu0 0.0
          %5973 = vmatprep.subr.mxu0 0.0
          %5974 = vmatpush1.msra.mxu0 0.0
          %5975 = vmatprep.subr.mxu0 0.0
          %5976 = vmatpush1.msra.mxu0 0.0
          %5977 = vmatprep.subr.mxu0 0.0
          %5978 = vmatpush1.msra.mxu0 0.0
          %5979 = vmatprep.subr.mxu0 0.0
          %5980 = vmatpush1.msra.mxu0 0.0
          %5981 = vmatprep.subr.mxu0 0.0
          %5982 = vmatpush1.msra.mxu0 0.0
          %5983 = vmatprep.subr.mxu0 0.0
          %5984 = vmatpush1.msra.mxu0 0.0
          %5985 = vmatprep.subr.mxu0 0.0
          %5986 = vmatpush1.msra.mxu0 0.0
          %5987 = vmatprep.subr.mxu0 %v360
          %5988 = vmatpush1.msra.mxu0 %v359
          %5989 = vmatprep.subr.mxu0 %v356
          %5990 = vmatpush1.msra.mxu0 %v355
          %5991 = vmatprep.subr.mxu0 %v352
          %5992 = vmatpush1.msra.mxu0 %v351
          %5993 = vmatprep.subr.mxu0 %v348
          %5994 = vmatpush1.msra.mxu0 %v347
          %5995 = vmatprep.subr.mxu0 0.0
          %5996 = vmatpush2.msra.mxu0 0.0
          %5997 = vmatprep.subr.mxu0 0.0
          %5998 = vmatpush2.msra.mxu0 0.0
          %5999 = vmatprep.subr.mxu0 0.0
          %6000 = vmatpush2.msra.mxu0 0.0
          %6001 = vmatprep.subr.mxu0 0.0
          %6002 = vmatpush2.msra.mxu0 0.0
          %6003 = vmatprep.subr.mxu0 0.0
          %6004 = vmatpush2.msra.mxu0 0.0
          %6005 = vmatprep.subr.mxu0 0.0
          %6006 = vmatpush2.msra.mxu0 0.0
          %6007 = vmatprep.subr.mxu0 0.0
          %6008 = vmatpush2.msra.mxu0 0.0
          %6009 = vmatprep.subr.mxu0 0.0
          %6010 = vmatpush2.msra.mxu0 0.0
          %6011 = vmatprep.subr.mxu0 0.0
          %6012 = vmatpush2.msra.mxu0 0.0
          %6013 = vmatprep.subr.mxu0 0.0
          %6014 = vmatpush2.msra.mxu0 0.0
          %6015 = vmatprep.subr.mxu0 0.0
          %6016 = vmatpush2.msra.mxu0 0.0
          %6017 = vmatprep.subr.mxu0 0.0
          %6018 = vmatpush2.msra.mxu0 0.0
          %6019 = vmatprep.subr.mxu0 0.0
          %6020 = vmatpush2.msra.mxu0 0.0
          %6021 = vmatprep.subr.mxu0 0.0
          %6022 = vmatpush2.msra.mxu0 0.0
          %6023 = vmatprep.subr.mxu0 0.0
          %6024 = vmatpush2.msra.mxu0 0.0
          %6025 = vmatprep.subr.mxu0 0.0
          %6026 = vmatpush2.msra.mxu0 0.0
          %6027 = vmatprep.mubr.f32.mxu0 0.0
          %6028 = vmatmul.mubr.f32.gmra.mxu0 %v5961
          %v6029 = vpop.f32.mrf.mxu0
          %v6030 = vadd.f32 %v442, %v6029
          %v6031 = vpop.f32.mrf.mxu0
          %v6032 = vadd.f32 %v446, %v6031
          %6033 = vdwg.mxu0
          %6034 = vmatprep.subr.mxu0 0.0
          %6035 = vmatpush1.msra.mxu0 0.0
          %6036 = vmatprep.subr.mxu0 0.0
          %6037 = vmatpush1.msra.mxu0 0.0
          %6038 = vmatprep.subr.mxu0 0.0
          %6039 = vmatpush1.msra.mxu0 0.0
          %6040 = vmatprep.subr.mxu0 0.0
          %6041 = vmatpush1.msra.mxu0 0.0
          %6042 = vmatprep.subr.mxu0 0.0
          %6043 = vmatpush1.msra.mxu0 0.0
          %6044 = vmatprep.subr.mxu0 0.0
          %6045 = vmatpush1.msra.mxu0 0.0
          %6046 = vmatprep.subr.mxu0 0.0
          %6047 = vmatpush1.msra.mxu0 0.0
          %6048 = vmatprep.subr.mxu0 0.0
          %6049 = vmatpush1.msra.mxu0 0.0
          %6050 = vmatprep.subr.mxu0 0.0
          %6051 = vmatpush1.msra.mxu0 0.0
          %6052 = vmatprep.subr.mxu0 0.0
          %6053 = vmatpush1.msra.mxu0 0.0
          %6054 = vmatprep.subr.mxu0 0.0
          %6055 = vmatpush1.msra.mxu0 0.0
          %6056 = vmatprep.subr.mxu0 0.0
          %6057 = vmatpush1.msra.mxu0 0.0
          %6058 = vmatprep.subr.mxu0 %v362
          %6059 = vmatpush1.msra.mxu0 %v361
          %6060 = vmatprep.subr.mxu0 %v358
          %6061 = vmatpush1.msra.mxu0 %v357
          %6062 = vmatprep.subr.mxu0 %v354
          %6063 = vmatpush1.msra.mxu0 %v353
          %6064 = vmatprep.subr.mxu0 %v350
          %6065 = vmatpush1.msra.mxu0 %v349
          %6066 = vmatprep.subr.mxu0 0.0
          %6067 = vmatpush2.msra.mxu0 0.0
          %6068 = vmatprep.subr.mxu0 0.0
          %6069 = vmatpush2.msra.mxu0 0.0
          %6070 = vmatprep.subr.mxu0 0.0
          %6071 = vmatpush2.msra.mxu0 0.0
          %6072 = vmatprep.subr.mxu0 0.0
          %6073 = vmatpush2.msra.mxu0 0.0
          %6074 = vmatprep.subr.mxu0 0.0
          %6075 = vmatpush2.msra.mxu0 0.0
          %6076 = vmatprep.subr.mxu0 0.0
          %6077 = vmatpush2.msra.mxu0 0.0
          %6078 = vmatprep.subr.mxu0 0.0
          %6079 = vmatpush2.msra.mxu0 0.0
          %6080 = vmatprep.subr.mxu0 0.0
          %6081 = vmatpush2.msra.mxu0 0.0
          %6082 = vmatprep.subr.mxu0 0.0
          %6083 = vmatpush2.msra.mxu0 0.0
          %6084 = vmatprep.subr.mxu0 0.0
          %6085 = vmatpush2.msra.mxu0 0.0
          %6086 = vmatprep.subr.mxu0 0.0
          %6087 = vmatpush2.msra.mxu0 0.0
          %6088 = vmatprep.subr.mxu0 0.0
          %6089 = vmatpush2.msra.mxu0 0.0
          %6090 = vmatprep.subr.mxu0 0.0
          %6091 = vmatpush2.msra.mxu0 0.0
          %6092 = vmatprep.subr.mxu0 0.0
          %6093 = vmatpush2.msra.mxu0 0.0
          %6094 = vmatprep.subr.mxu0 0.0
          %6095 = vmatpush2.msra.mxu0 0.0
          %6096 = vmatprep.subr.mxu0 0.0
          %6097 = vmatpush2.msra.mxu0 0.0
          %6098 = vmatprep.mubr.f32.mxu0 0.0
          %6099 = vmatmul.mubr.f32.gmra.mxu0 %v5961
          %v6100 = vpop.f32.mrf.mxu0
          %v6101 = vadd.f32 %v450, %v6100
          %v6102 = vpop.f32.mrf.mxu0
          %v6103 = vadd.f32 %v454, %v6102
          %6104 = vdwg.mxu0
          %6105 = vmatprep.subr.mxu0 %v424
          %6106 = vmatpush1.msra.mxu0 %v423
          %6107 = vmatprep.subr.mxu0 %v420
          %6108 = vmatpush1.msra.mxu0 %v419
          %6109 = vmatprep.subr.mxu0 %v416
          %6110 = vmatpush1.msra.mxu0 %v415
          %6111 = vmatprep.subr.mxu0 %v412
          %6112 = vmatpush1.msra.mxu0 %v411
          %6113 = vmatprep.subr.mxu0 %v408
          %6114 = vmatpush1.msra.mxu0 %v407
          %6115 = vmatprep.subr.mxu0 %v404
          %6116 = vmatpush1.msra.mxu0 %v403
          %6117 = vmatprep.subr.mxu0 %v400
          %6118 = vmatpush1.msra.mxu0 %v399
          %6119 = vmatprep.subr.mxu0 %v396
          %6120 = vmatpush1.msra.mxu0 %v395
          %6121 = vmatprep.subr.mxu0 %v392
          %6122 = vmatpush1.msra.mxu0 %v391
          %6123 = vmatprep.subr.mxu0 %v388
          %6124 = vmatpush1.msra.mxu0 %v387
          %6125 = vmatprep.subr.mxu0 %v384
          %6126 = vmatpush1.msra.mxu0 %v383
          %6127 = vmatprep.subr.mxu0 %v380
          %6128 = vmatpush1.msra.mxu0 %v379
          %6129 = vmatprep.subr.mxu0 %v376
          %6130 = vmatpush1.msra.mxu0 %v375
          %6131 = vmatprep.subr.mxu0 %v372
          %6132 = vmatpush1.msra.mxu0 %v371
          %6133 = vmatprep.subr.mxu0 %v368
          %6134 = vmatpush1.msra.mxu0 %v367
          %6135 = vmatprep.subr.mxu0 %v364
          %6136 = vmatpush1.msra.mxu0 %v363
          %6137 = vmatprep.subr.mxu0 0.0
          %6138 = vmatpush2.msra.mxu0 0.0
          %6139 = vmatprep.subr.mxu0 0.0
          %6140 = vmatpush2.msra.mxu0 0.0
          %6141 = vmatprep.subr.mxu0 0.0
          %6142 = vmatpush2.msra.mxu0 0.0
          %6143 = vmatprep.subr.mxu0 0.0
          %6144 = vmatpush2.msra.mxu0 0.0
          %6145 = vmatprep.subr.mxu0 0.0
          %6146 = vmatpush2.msra.mxu0 0.0
          %6147 = vmatprep.subr.mxu0 0.0
          %6148 = vmatpush2.msra.mxu0 0.0
          %6149 = vmatprep.subr.mxu0 0.0
          %6150 = vmatpush2.msra.mxu0 0.0
          %6151 = vmatprep.subr.mxu0 0.0
          %6152 = vmatpush2.msra.mxu0 0.0
          %6153 = vmatprep.subr.mxu0 0.0
          %6154 = vmatpush2.msra.mxu0 0.0
          %6155 = vmatprep.subr.mxu0 0.0
          %6156 = vmatpush2.msra.mxu0 0.0
          %6157 = vmatprep.subr.mxu0 0.0
          %6158 = vmatpush2.msra.mxu0 0.0
          %6159 = vmatprep.subr.mxu0 0.0
          %6160 = vmatpush2.msra.mxu0 0.0
          %6161 = vmatprep.subr.mxu0 0.0
          %6162 = vmatpush2.msra.mxu0 0.0
          %6163 = vmatprep.subr.mxu0 0.0
          %6164 = vmatpush2.msra.mxu0 0.0
          %6165 = vmatprep.subr.mxu0 0.0
          %6166 = vmatpush2.msra.mxu0 0.0
          %6167 = vmatprep.subr.mxu0 0.0
          %6168 = vmatpush2.msra.mxu0 0.0
          %6169 = vmatprep.mubr.f32.mxu0 0.0
          %6170 = vmatmul.mubr.f32.gmra.mxu0 %v5862
          %v6171 = vpop.f32.mrf.mxu0
          %v6172 = vadd.f32 0.0, %v6171
          %v6173 = vpop.f32.mrf.mxu0
          %v6174 = vadd.f32 0.0, %v6173
          %6175 = vdwg.mxu0
          %6176 = vmatprep.subr.mxu0 %v426
          %6177 = vmatpush1.msra.mxu0 %v425
          %6178 = vmatprep.subr.mxu0 %v422
          %6179 = vmatpush1.msra.mxu0 %v421
          %6180 = vmatprep.subr.mxu0 %v418
          %6181 = vmatpush1.msra.mxu0 %v417
          %6182 = vmatprep.subr.mxu0 %v414
          %6183 = vmatpush1.msra.mxu0 %v413
          %6184 = vmatprep.subr.mxu0 %v410
          %6185 = vmatpush1.msra.mxu0 %v409
          %6186 = vmatprep.subr.mxu0 %v406
          %6187 = vmatpush1.msra.mxu0 %v405
          %6188 = vmatprep.subr.mxu0 %v402
          %6189 = vmatpush1.msra.mxu0 %v401
          %6190 = vmatprep.subr.mxu0 %v398
          %6191 = vmatpush1.msra.mxu0 %v397
          %6192 = vmatprep.subr.mxu0 %v394
          %6193 = vmatpush1.msra.mxu0 %v393
          %6194 = vmatprep.subr.mxu0 %v390
          %6195 = vmatpush1.msra.mxu0 %v389
          %6196 = vmatprep.subr.mxu0 %v386
          %6197 = vmatpush1.msra.mxu0 %v385
          %6198 = vmatprep.subr.mxu0 %v382
          %6199 = vmatpush1.msra.mxu0 %v381
          %6200 = vmatprep.subr.mxu0 %v378
          %6201 = vmatpush1.msra.mxu0 %v377
          %6202 = vmatprep.subr.mxu0 %v374
          %6203 = vmatpush1.msra.mxu0 %v373
          %6204 = vmatprep.subr.mxu0 %v370
          %6205 = vmatpush1.msra.mxu0 %v369
          %6206 = vmatprep.subr.mxu0 %v366
          %6207 = vmatpush1.msra.mxu0 %v365
          %6208 = vmatprep.subr.mxu0 0.0
          %6209 = vmatpush2.msra.mxu0 0.0
          %6210 = vmatprep.subr.mxu0 0.0
          %6211 = vmatpush2.msra.mxu0 0.0
          %6212 = vmatprep.subr.mxu0 0.0
          %6213 = vmatpush2.msra.mxu0 0.0
          %6214 = vmatprep.subr.mxu0 0.0
          %6215 = vmatpush2.msra.mxu0 0.0
          %6216 = vmatprep.subr.mxu0 0.0
          %6217 = vmatpush2.msra.mxu0 0.0
          %6218 = vmatprep.subr.mxu0 0.0
          %6219 = vmatpush2.msra.mxu0 0.0
          %6220 = vmatprep.subr.mxu0 0.0
          %6221 = vmatpush2.msra.mxu0 0.0
          %6222 = vmatprep.subr.mxu0 0.0
          %6223 = vmatpush2.msra.mxu0 0.0
          %6224 = vmatprep.subr.mxu0 0.0
          %6225 = vmatpush2.msra.mxu0 0.0
          %6226 = vmatprep.subr.mxu0 0.0
          %6227 = vmatpush2.msra.mxu0 0.0
          %6228 = vmatprep.subr.mxu0 0.0
          %6229 = vmatpush2.msra.mxu0 0.0
          %6230 = vmatprep.subr.mxu0 0.0
          %6231 = vmatpush2.msra.mxu0 0.0
          %6232 = vmatprep.subr.mxu0 0.0
          %6233 = vmatpush2.msra.mxu0 0.0
          %6234 = vmatprep.subr.mxu0 0.0
          %6235 = vmatpush2.msra.mxu0 0.0
          %6236 = vmatprep.subr.mxu0 0.0
          %6237 = vmatpush2.msra.mxu0 0.0
          %6238 = vmatprep.subr.mxu0 0.0
          %6239 = vmatpush2.msra.mxu0 0.0
          %6240 = vmatprep.mubr.f32.mxu0 0.0
          %6241 = vmatmul.mubr.f32.gmra.mxu0 %v5862
          %v6242 = vpop.f32.mrf.mxu0
          %v6243 = vadd.f32 0.0, %v6242
          %v6244 = vpop.f32.mrf.mxu0
          %v6245 = vadd.f32 0.0, %v6244
          %6246 = vdwg.mxu0
          %v6247 = vadd.f32 %v6030, %v6172
          %v6248 = vadd.f32 %v6032, %v6174
          %v6249 = vadd.f32 %v6101, %v6243
          %v6250 = vadd.f32 %v6103, %v6245
          %v6251 = vxor.u32 %v6247, 2147483648
          %v6252 = vmul.f32 %v6251, 1.442695
          %v6253 = vpow.pop %v6252
          %v6254 = vadd.f32 %v6253, 1.0
          %v6255 = vrcp.pop %v6254
          %v6256 = vmul.f32 1.0, %v6255
          %v6257 = vxor.u32 %v6248, 2147483648
          %v6258 = vmul.f32 %v6257, 1.442695
          %v6259 = vpow.pop %v6258
          %v6260 = vadd.f32 %v6259, 1.0
          %v6261 = vrcp.pop %v6260
          %v6262 = vmul.f32 1.0, %v6261
          %v6263 = vtanh.pop %v6249
          %v6264 = vxor.u32 %v6250, 2147483648
          %v6265 = vmul.f32 %v6264, 1.442695
          %v6266 = vpow.pop %v6265
          %v6267 = vadd.f32 %v6266, 1.0
          %v6268 = vrcp.pop %v6267
          %v6269 = vmul.f32 1.0, %v6268
          %v6270 = vmul.f32 %v6262, %v5863
          %v6271 = vmul.f32 %v6256, %v6263
          %v6272 = vadd.f32 %v6270, %v6271
          %v6273 = vtanh.pop %v6272
          %v6274 = vmul.f32 %v6269, %v6273
          %s6275 = sadd.s32 %s334, 13
          %v6276 = vstv %s6275
          %vm6277 = vcmp.lt.s32.totalorder %v6276, %v346
          %v6278 = vsel %vm6277, 1, 0
          %6279 = vset.pattern.permute.xlu0 0
          %6280 = vperm.xlu0 %6279, %v6278
          %v6281 = vpop.permute.xlu0 %6280
          %vm6282 = vcmp.eq.s32.totalorder %v6281, 1
          %v6283 = vsel %vm6282, %v6274, %v5862
          %v6284 = vsel %vm6282, %v6272, %v5863
          %v6285 = vsel %vm6282, %v6274, 0.0
          %v6287 = vcombine.high %v6285, %v6285
          %v6289 = vunpack.c.l.s4 1966171168
          %v6290 = vunpack.c.0.s8 %v6289
          %v6291 = vlaneseq
          %v6292 = vshrl.u32 %v6291, 7
          %v6293 = vsub.s32 %v6290, %v6292
          %v6294 = vrot.slane %v6285, %v6293
          %v6296 = vunpack.c.l.s4 1966171168
          %v6297 = vunpack.c.0.s8 %v6296
          %v6298 = vlaneseq
          %v6299 = vshrl.u32 %v6298, 7
          %v6300 = vsub.s32 %v6297, %v6299
          %v6301 = vrot.slane %v6287, %v6300
          %v6302 = vcombine.high %v6294, %v6294
          %v6303 = vcombine.high %v6301, %v6301
          %v6305 = vunpack.c.l.s4 1966171168
          %v6306 = vunpack.c.0.s8 %v6305
          %v6307 = vlaneseq
          %v6308 = vshrl.u32 %v6307, 7
          %v6309 = vsub.s32 %v6306, %v6308
          %v6310 = vrot.slane %v6294, %v6309
          %v6312 = vunpack.c.l.s4 1966171168
          %v6313 = vunpack.c.0.s8 %v6312
          %v6314 = vlaneseq
          %v6315 = vshrl.u32 %v6314, 7
          %v6316 = vsub.s32 %v6313, %v6315
          %v6317 = vrot.slane %v6301, %v6316
          %v6319 = vunpack.c.l.s4 1966171168
          %v6320 = vunpack.c.0.s8 %v6319
          %v6321 = vlaneseq
          %v6322 = vshrl.u32 %v6321, 7
          %v6323 = vsub.s32 %v6320, %v6322
          %v6324 = vrot.slane %v6302, %v6323
          %v6326 = vunpack.c.l.s4 1966171168
          %v6327 = vunpack.c.0.s8 %v6326
          %v6328 = vlaneseq
          %v6329 = vshrl.u32 %v6328, 7
          %v6330 = vsub.s32 %v6327, %v6329
          %v6331 = vrot.slane %v6303, %v6330
          %v6332 = vcombine.high %v6310, %v6310
          %v6333 = vcombine.high %v6317, %v6317
          %v6334 = vcombine.high %v6324, %v6324
          %v6335 = vcombine.high %v6331, %v6331
          %6344 = vst [vmem:[%s331 + $0xd] sm:$0x1] %v6310
          %6345 = vst [vmem:[%s331 + $0x1d] sm:$0x1] %v6324
          %6346 = vst [vmem:[%s331 + $0x2d] sm:$0x1] %v6332
          %6347 = vst [vmem:[%s331 + $0x3d] sm:$0x1] %v6334
          %6348 = vst [vmem:[%s331 + $0x4d] sm:$0x1] %v6317
          %6349 = vst [vmem:[%s331 + $0x5d] sm:$0x1] %v6331
          %6350 = vst [vmem:[%s331 + $0x6d] sm:$0x1] %v6333
          %6351 = vst [vmem:[%s331 + $0x7d] sm:$0x1] %v6335
          %v6352 = vld [vmem:[%s319 + $0xe] sm:$0x1]
          %v6353 = vld [vmem:[%s319 + $0x1e] sm:$0x1]
          %v6354 = vld [vmem:[%s319 + $0x2e] sm:$0x1]
          %v6355 = vld [vmem:[%s319 + $0x3e] sm:$0x1]
          %v6356 = vld [vmem:[%s319 + $0x4e] sm:$0x1]
          %v6357 = vld [vmem:[%s319 + $0x5e] sm:$0x1]
          %v6358 = vld [vmem:[%s319 + $0x6e] sm:$0x1]
          %v6359 = vld [vmem:[%s319 + $0x7e] sm:$0x1]
          %v6368 = vrot.slane %v6353, 7
          %v6369 = vsel %vm468, %v6368, %v6352
          %v6370 = vrot.slane %v6354, 6
          %v6371 = vsel %vm471, %v6370, %v6369
          %v6372 = vrot.slane %v6355, 5
          %v6373 = vsel %vm474, %v6372, %v6371
          %v6374 = vrot.slane %v6356, 4
          %v6375 = vsel %vm477, %v6374, %v6373
          %v6376 = vrot.slane %v6357, 3
          %v6377 = vsel %vm480, %v6376, %v6375
          %v6378 = vrot.slane %v6358, 2
          %v6379 = vsel %vm483, %v6378, %v6377
          %v6380 = vrot.slane %v6359, 1
          %v6381 = vsel %vm486, %v6380, %v6379
          %v6382 = vsel %vm488, %v6381, 0
          %6384 = vmatprep.subr.mxu0 0.0
          %6385 = vmatpush1.msra.mxu0 0.0
          %6386 = vmatprep.subr.mxu0 0.0
          %6387 = vmatpush1.msra.mxu0 0.0
          %6388 = vmatprep.subr.mxu0 0.0
          %6389 = vmatpush1.msra.mxu0 0.0
          %6390 = vmatprep.subr.mxu0 0.0
          %6391 = vmatpush1.msra.mxu0 0.0
          %6392 = vmatprep.subr.mxu0 0.0
          %6393 = vmatpush1.msra.mxu0 0.0
          %6394 = vmatprep.subr.mxu0 0.0
          %6395 = vmatpush1.msra.mxu0 0.0
          %6396 = vmatprep.subr.mxu0 0.0
          %6397 = vmatpush1.msra.mxu0 0.0
          %6398 = vmatprep.subr.mxu0 0.0
          %6399 = vmatpush1.msra.mxu0 0.0
          %6400 = vmatprep.subr.mxu0 0.0
          %6401 = vmatpush1.msra.mxu0 0.0
          %6402 = vmatprep.subr.mxu0 0.0
          %6403 = vmatpush1.msra.mxu0 0.0
          %6404 = vmatprep.subr.mxu0 0.0
          %6405 = vmatpush1.msra.mxu0 0.0
          %6406 = vmatprep.subr.mxu0 0.0
          %6407 = vmatpush1.msra.mxu0 0.0
          %6408 = vmatprep.subr.mxu0 %v360
          %6409 = vmatpush1.msra.mxu0 %v359
          %6410 = vmatprep.subr.mxu0 %v356
          %6411 = vmatpush1.msra.mxu0 %v355
          %6412 = vmatprep.subr.mxu0 %v352
          %6413 = vmatpush1.msra.mxu0 %v351
          %6414 = vmatprep.subr.mxu0 %v348
          %6415 = vmatpush1.msra.mxu0 %v347
          %6416 = vmatprep.subr.mxu0 0.0
          %6417 = vmatpush2.msra.mxu0 0.0
          %6418 = vmatprep.subr.mxu0 0.0
          %6419 = vmatpush2.msra.mxu0 0.0
          %6420 = vmatprep.subr.mxu0 0.0
          %6421 = vmatpush2.msra.mxu0 0.0
          %6422 = vmatprep.subr.mxu0 0.0
          %6423 = vmatpush2.msra.mxu0 0.0
          %6424 = vmatprep.subr.mxu0 0.0
          %6425 = vmatpush2.msra.mxu0 0.0
          %6426 = vmatprep.subr.mxu0 0.0
          %6427 = vmatpush2.msra.mxu0 0.0
          %6428 = vmatprep.subr.mxu0 0.0
          %6429 = vmatpush2.msra.mxu0 0.0
          %6430 = vmatprep.subr.mxu0 0.0
          %6431 = vmatpush2.msra.mxu0 0.0
          %6432 = vmatprep.subr.mxu0 0.0
          %6433 = vmatpush2.msra.mxu0 0.0
          %6434 = vmatprep.subr.mxu0 0.0
          %6435 = vmatpush2.msra.mxu0 0.0
          %6436 = vmatprep.subr.mxu0 0.0
          %6437 = vmatpush2.msra.mxu0 0.0
          %6438 = vmatprep.subr.mxu0 0.0
          %6439 = vmatpush2.msra.mxu0 0.0
          %6440 = vmatprep.subr.mxu0 0.0
          %6441 = vmatpush2.msra.mxu0 0.0
          %6442 = vmatprep.subr.mxu0 0.0
          %6443 = vmatpush2.msra.mxu0 0.0
          %6444 = vmatprep.subr.mxu0 0.0
          %6445 = vmatpush2.msra.mxu0 0.0
          %6446 = vmatprep.subr.mxu0 0.0
          %6447 = vmatpush2.msra.mxu0 0.0
          %6448 = vmatprep.mubr.f32.mxu0 0.0
          %6449 = vmatmul.mubr.f32.gmra.mxu0 %v6382
          %v6450 = vpop.f32.mrf.mxu0
          %v6451 = vadd.f32 %v442, %v6450
          %v6452 = vpop.f32.mrf.mxu0
          %v6453 = vadd.f32 %v446, %v6452
          %6454 = vdwg.mxu0
          %6455 = vmatprep.subr.mxu0 0.0
          %6456 = vmatpush1.msra.mxu0 0.0
          %6457 = vmatprep.subr.mxu0 0.0
          %6458 = vmatpush1.msra.mxu0 0.0
          %6459 = vmatprep.subr.mxu0 0.0
          %6460 = vmatpush1.msra.mxu0 0.0
          %6461 = vmatprep.subr.mxu0 0.0
          %6462 = vmatpush1.msra.mxu0 0.0
          %6463 = vmatprep.subr.mxu0 0.0
          %6464 = vmatpush1.msra.mxu0 0.0
          %6465 = vmatprep.subr.mxu0 0.0
          %6466 = vmatpush1.msra.mxu0 0.0
          %6467 = vmatprep.subr.mxu0 0.0
          %6468 = vmatpush1.msra.mxu0 0.0
          %6469 = vmatprep.subr.mxu0 0.0
          %6470 = vmatpush1.msra.mxu0 0.0
          %6471 = vmatprep.subr.mxu0 0.0
          %6472 = vmatpush1.msra.mxu0 0.0
          %6473 = vmatprep.subr.mxu0 0.0
          %6474 = vmatpush1.msra.mxu0 0.0
          %6475 = vmatprep.subr.mxu0 0.0
          %6476 = vmatpush1.msra.mxu0 0.0
          %6477 = vmatprep.subr.mxu0 0.0
          %6478 = vmatpush1.msra.mxu0 0.0
          %6479 = vmatprep.subr.mxu0 %v362
          %6480 = vmatpush1.msra.mxu0 %v361
          %6481 = vmatprep.subr.mxu0 %v358
          %6482 = vmatpush1.msra.mxu0 %v357
          %6483 = vmatprep.subr.mxu0 %v354
          %6484 = vmatpush1.msra.mxu0 %v353
          %6485 = vmatprep.subr.mxu0 %v350
          %6486 = vmatpush1.msra.mxu0 %v349
          %6487 = vmatprep.subr.mxu0 0.0
          %6488 = vmatpush2.msra.mxu0 0.0
          %6489 = vmatprep.subr.mxu0 0.0
          %6490 = vmatpush2.msra.mxu0 0.0
          %6491 = vmatprep.subr.mxu0 0.0
          %6492 = vmatpush2.msra.mxu0 0.0
          %6493 = vmatprep.subr.mxu0 0.0
          %6494 = vmatpush2.msra.mxu0 0.0
          %6495 = vmatprep.subr.mxu0 0.0
          %6496 = vmatpush2.msra.mxu0 0.0
          %6497 = vmatprep.subr.mxu0 0.0
          %6498 = vmatpush2.msra.mxu0 0.0
          %6499 = vmatprep.subr.mxu0 0.0
          %6500 = vmatpush2.msra.mxu0 0.0
          %6501 = vmatprep.subr.mxu0 0.0
          %6502 = vmatpush2.msra.mxu0 0.0
          %6503 = vmatprep.subr.mxu0 0.0
          %6504 = vmatpush2.msra.mxu0 0.0
          %6505 = vmatprep.subr.mxu0 0.0
          %6506 = vmatpush2.msra.mxu0 0.0
          %6507 = vmatprep.subr.mxu0 0.0
          %6508 = vmatpush2.msra.mxu0 0.0
          %6509 = vmatprep.subr.mxu0 0.0
          %6510 = vmatpush2.msra.mxu0 0.0
          %6511 = vmatprep.subr.mxu0 0.0
          %6512 = vmatpush2.msra.mxu0 0.0
          %6513 = vmatprep.subr.mxu0 0.0
          %6514 = vmatpush2.msra.mxu0 0.0
          %6515 = vmatprep.subr.mxu0 0.0
          %6516 = vmatpush2.msra.mxu0 0.0
          %6517 = vmatprep.subr.mxu0 0.0
          %6518 = vmatpush2.msra.mxu0 0.0
          %6519 = vmatprep.mubr.f32.mxu0 0.0
          %6520 = vmatmul.mubr.f32.gmra.mxu0 %v6382
          %v6521 = vpop.f32.mrf.mxu0
          %v6522 = vadd.f32 %v450, %v6521
          %v6523 = vpop.f32.mrf.mxu0
          %v6524 = vadd.f32 %v454, %v6523
          %6525 = vdwg.mxu0
          %6526 = vmatprep.subr.mxu0 %v424
          %6527 = vmatpush1.msra.mxu0 %v423
          %6528 = vmatprep.subr.mxu0 %v420
          %6529 = vmatpush1.msra.mxu0 %v419
          %6530 = vmatprep.subr.mxu0 %v416
          %6531 = vmatpush1.msra.mxu0 %v415
          %6532 = vmatprep.subr.mxu0 %v412
          %6533 = vmatpush1.msra.mxu0 %v411
          %6534 = vmatprep.subr.mxu0 %v408
          %6535 = vmatpush1.msra.mxu0 %v407
          %6536 = vmatprep.subr.mxu0 %v404
          %6537 = vmatpush1.msra.mxu0 %v403
          %6538 = vmatprep.subr.mxu0 %v400
          %6539 = vmatpush1.msra.mxu0 %v399
          %6540 = vmatprep.subr.mxu0 %v396
          %6541 = vmatpush1.msra.mxu0 %v395
          %6542 = vmatprep.subr.mxu0 %v392
          %6543 = vmatpush1.msra.mxu0 %v391
          %6544 = vmatprep.subr.mxu0 %v388
          %6545 = vmatpush1.msra.mxu0 %v387
          %6546 = vmatprep.subr.mxu0 %v384
          %6547 = vmatpush1.msra.mxu0 %v383
          %6548 = vmatprep.subr.mxu0 %v380
          %6549 = vmatpush1.msra.mxu0 %v379
          %6550 = vmatprep.subr.mxu0 %v376
          %6551 = vmatpush1.msra.mxu0 %v375
          %6552 = vmatprep.subr.mxu0 %v372
          %6553 = vmatpush1.msra.mxu0 %v371
          %6554 = vmatprep.subr.mxu0 %v368
          %6555 = vmatpush1.msra.mxu0 %v367
          %6556 = vmatprep.subr.mxu0 %v364
          %6557 = vmatpush1.msra.mxu0 %v363
          %6558 = vmatprep.subr.mxu0 0.0
          %6559 = vmatpush2.msra.mxu0 0.0
          %6560 = vmatprep.subr.mxu0 0.0
          %6561 = vmatpush2.msra.mxu0 0.0
          %6562 = vmatprep.subr.mxu0 0.0
          %6563 = vmatpush2.msra.mxu0 0.0
          %6564 = vmatprep.subr.mxu0 0.0
          %6565 = vmatpush2.msra.mxu0 0.0
          %6566 = vmatprep.subr.mxu0 0.0
          %6567 = vmatpush2.msra.mxu0 0.0
          %6568 = vmatprep.subr.mxu0 0.0
          %6569 = vmatpush2.msra.mxu0 0.0
          %6570 = vmatprep.subr.mxu0 0.0
          %6571 = vmatpush2.msra.mxu0 0.0
          %6572 = vmatprep.subr.mxu0 0.0
          %6573 = vmatpush2.msra.mxu0 0.0
          %6574 = vmatprep.subr.mxu0 0.0
          %6575 = vmatpush2.msra.mxu0 0.0
          %6576 = vmatprep.subr.mxu0 0.0
          %6577 = vmatpush2.msra.mxu0 0.0
          %6578 = vmatprep.subr.mxu0 0.0
          %6579 = vmatpush2.msra.mxu0 0.0
          %6580 = vmatprep.subr.mxu0 0.0
          %6581 = vmatpush2.msra.mxu0 0.0
          %6582 = vmatprep.subr.mxu0 0.0
          %6583 = vmatpush2.msra.mxu0 0.0
          %6584 = vmatprep.subr.mxu0 0.0
          %6585 = vmatpush2.msra.mxu0 0.0
          %6586 = vmatprep.subr.mxu0 0.0
          %6587 = vmatpush2.msra.mxu0 0.0
          %6588 = vmatprep.subr.mxu0 0.0
          %6589 = vmatpush2.msra.mxu0 0.0
          %6590 = vmatprep.mubr.f32.mxu0 0.0
          %6591 = vmatmul.mubr.f32.gmra.mxu0 %v6283
          %v6592 = vpop.f32.mrf.mxu0
          %v6593 = vadd.f32 0.0, %v6592
          %v6594 = vpop.f32.mrf.mxu0
          %v6595 = vadd.f32 0.0, %v6594
          %6596 = vdwg.mxu0
          %6597 = vmatprep.subr.mxu0 %v426
          %6598 = vmatpush1.msra.mxu0 %v425
          %6599 = vmatprep.subr.mxu0 %v422
          %6600 = vmatpush1.msra.mxu0 %v421
          %6601 = vmatprep.subr.mxu0 %v418
          %6602 = vmatpush1.msra.mxu0 %v417
          %6603 = vmatprep.subr.mxu0 %v414
          %6604 = vmatpush1.msra.mxu0 %v413
          %6605 = vmatprep.subr.mxu0 %v410
          %6606 = vmatpush1.msra.mxu0 %v409
          %6607 = vmatprep.subr.mxu0 %v406
          %6608 = vmatpush1.msra.mxu0 %v405
          %6609 = vmatprep.subr.mxu0 %v402
          %6610 = vmatpush1.msra.mxu0 %v401
          %6611 = vmatprep.subr.mxu0 %v398
          %6612 = vmatpush1.msra.mxu0 %v397
          %6613 = vmatprep.subr.mxu0 %v394
          %6614 = vmatpush1.msra.mxu0 %v393
          %6615 = vmatprep.subr.mxu0 %v390
          %6616 = vmatpush1.msra.mxu0 %v389
          %6617 = vmatprep.subr.mxu0 %v386
          %6618 = vmatpush1.msra.mxu0 %v385
          %6619 = vmatprep.subr.mxu0 %v382
          %6620 = vmatpush1.msra.mxu0 %v381
          %6621 = vmatprep.subr.mxu0 %v378
          %6622 = vmatpush1.msra.mxu0 %v377
          %6623 = vmatprep.subr.mxu0 %v374
          %6624 = vmatpush1.msra.mxu0 %v373
          %6625 = vmatprep.subr.mxu0 %v370
          %6626 = vmatpush1.msra.mxu0 %v369
          %6627 = vmatprep.subr.mxu0 %v366
          %6628 = vmatpush1.msra.mxu0 %v365
          %6629 = vmatprep.subr.mxu0 0.0
          %6630 = vmatpush2.msra.mxu0 0.0
          %6631 = vmatprep.subr.mxu0 0.0
          %6632 = vmatpush2.msra.mxu0 0.0
          %6633 = vmatprep.subr.mxu0 0.0
          %6634 = vmatpush2.msra.mxu0 0.0
          %6635 = vmatprep.subr.mxu0 0.0
          %6636 = vmatpush2.msra.mxu0 0.0
          %6637 = vmatprep.subr.mxu0 0.0
          %6638 = vmatpush2.msra.mxu0 0.0
          %6639 = vmatprep.subr.mxu0 0.0
          %6640 = vmatpush2.msra.mxu0 0.0
          %6641 = vmatprep.subr.mxu0 0.0
          %6642 = vmatpush2.msra.mxu0 0.0
          %6643 = vmatprep.subr.mxu0 0.0
          %6644 = vmatpush2.msra.mxu0 0.0
          %6645 = vmatprep.subr.mxu0 0.0
          %6646 = vmatpush2.msra.mxu0 0.0
          %6647 = vmatprep.subr.mxu0 0.0
          %6648 = vmatpush2.msra.mxu0 0.0
          %6649 = vmatprep.subr.mxu0 0.0
          %6650 = vmatpush2.msra.mxu0 0.0
          %6651 = vmatprep.subr.mxu0 0.0
          %6652 = vmatpush2.msra.mxu0 0.0
          %6653 = vmatprep.subr.mxu0 0.0
          %6654 = vmatpush2.msra.mxu0 0.0
          %6655 = vmatprep.subr.mxu0 0.0
          %6656 = vmatpush2.msra.mxu0 0.0
          %6657 = vmatprep.subr.mxu0 0.0
          %6658 = vmatpush2.msra.mxu0 0.0
          %6659 = vmatprep.subr.mxu0 0.0
          %6660 = vmatpush2.msra.mxu0 0.0
          %6661 = vmatprep.mubr.f32.mxu0 0.0
          %6662 = vmatmul.mubr.f32.gmra.mxu0 %v6283
          %v6663 = vpop.f32.mrf.mxu0
          %v6664 = vadd.f32 0.0, %v6663
          %v6665 = vpop.f32.mrf.mxu0
          %v6666 = vadd.f32 0.0, %v6665
          %6667 = vdwg.mxu0
          %v6668 = vadd.f32 %v6451, %v6593
          %v6669 = vadd.f32 %v6453, %v6595
          %v6670 = vadd.f32 %v6522, %v6664
          %v6671 = vadd.f32 %v6524, %v6666
          %v6672 = vxor.u32 %v6668, 2147483648
          %v6673 = vmul.f32 %v6672, 1.442695
          %v6674 = vpow.pop %v6673
          %v6675 = vadd.f32 %v6674, 1.0
          %v6676 = vrcp.pop %v6675
          %v6677 = vmul.f32 1.0, %v6676
          %v6678 = vxor.u32 %v6669, 2147483648
          %v6679 = vmul.f32 %v6678, 1.442695
          %v6680 = vpow.pop %v6679
          %v6681 = vadd.f32 %v6680, 1.0
          %v6682 = vrcp.pop %v6681
          %v6683 = vmul.f32 1.0, %v6682
          %v6684 = vtanh.pop %v6670
          %v6685 = vxor.u32 %v6671, 2147483648
          %v6686 = vmul.f32 %v6685, 1.442695
          %v6687 = vpow.pop %v6686
          %v6688 = vadd.f32 %v6687, 1.0
          %v6689 = vrcp.pop %v6688
          %v6690 = vmul.f32 1.0, %v6689
          %v6691 = vmul.f32 %v6683, %v6284
          %v6692 = vmul.f32 %v6677, %v6684
          %v6693 = vadd.f32 %v6691, %v6692
          %v6694 = vtanh.pop %v6693
          %v6695 = vmul.f32 %v6690, %v6694
          %s6696 = sadd.s32 %s334, 14
          %v6697 = vstv %s6696
          %vm6698 = vcmp.lt.s32.totalorder %v6697, %v346
          %v6699 = vsel %vm6698, 1, 0
          %6700 = vset.pattern.permute.xlu0 0
          %6701 = vperm.xlu0 %6700, %v6699
          %v6702 = vpop.permute.xlu0 %6701
          %vm6703 = vcmp.eq.s32.totalorder %v6702, 1
          %v6704 = vsel %vm6703, %v6695, %v6283
          %v6705 = vsel %vm6703, %v6693, %v6284
          %v6706 = vsel %vm6703, %v6695, 0.0
          %v6708 = vcombine.high %v6706, %v6706
          %v6710 = vunpack.c.l.s4 1966171168
          %v6711 = vunpack.c.0.s8 %v6710
          %v6712 = vlaneseq
          %v6713 = vshrl.u32 %v6712, 7
          %v6714 = vsub.s32 %v6711, %v6713
          %v6715 = vrot.slane %v6706, %v6714
          %v6717 = vunpack.c.l.s4 1966171168
          %v6718 = vunpack.c.0.s8 %v6717
          %v6719 = vlaneseq
          %v6720 = vshrl.u32 %v6719, 7
          %v6721 = vsub.s32 %v6718, %v6720
          %v6722 = vrot.slane %v6708, %v6721
          %v6723 = vcombine.high %v6715, %v6715
          %v6724 = vcombine.high %v6722, %v6722
          %v6726 = vunpack.c.l.s4 1966171168
          %v6727 = vunpack.c.0.s8 %v6726
          %v6728 = vlaneseq
          %v6729 = vshrl.u32 %v6728, 7
          %v6730 = vsub.s32 %v6727, %v6729
          %v6731 = vrot.slane %v6715, %v6730
          %v6733 = vunpack.c.l.s4 1966171168
          %v6734 = vunpack.c.0.s8 %v6733
          %v6735 = vlaneseq
          %v6736 = vshrl.u32 %v6735, 7
          %v6737 = vsub.s32 %v6734, %v6736
          %v6738 = vrot.slane %v6722, %v6737
          %v6740 = vunpack.c.l.s4 1966171168
          %v6741 = vunpack.c.0.s8 %v6740
          %v6742 = vlaneseq
          %v6743 = vshrl.u32 %v6742, 7
          %v6744 = vsub.s32 %v6741, %v6743
          %v6745 = vrot.slane %v6723, %v6744
          %v6747 = vunpack.c.l.s4 1966171168
          %v6748 = vunpack.c.0.s8 %v6747
          %v6749 = vlaneseq
          %v6750 = vshrl.u32 %v6749, 7
          %v6751 = vsub.s32 %v6748, %v6750
          %v6752 = vrot.slane %v6724, %v6751
          %v6753 = vcombine.high %v6731, %v6731
          %v6754 = vcombine.high %v6738, %v6738
          %v6755 = vcombine.high %v6745, %v6745
          %v6756 = vcombine.high %v6752, %v6752
          %6765 = vst [vmem:[%s331 + $0xe] sm:$0x1] %v6731
          %6766 = vst [vmem:[%s331 + $0x1e] sm:$0x1] %v6745
          %6767 = vst [vmem:[%s331 + $0x2e] sm:$0x1] %v6753
          %6768 = vst [vmem:[%s331 + $0x3e] sm:$0x1] %v6755
          %6769 = vst [vmem:[%s331 + $0x4e] sm:$0x1] %v6738
          %6770 = vst [vmem:[%s331 + $0x5e] sm:$0x1] %v6752
          %6771 = vst [vmem:[%s331 + $0x6e] sm:$0x1] %v6754
          %6772 = vst [vmem:[%s331 + $0x7e] sm:$0x1] %v6756
          %v6773 = vld [vmem:[%s319 + $0xf] sm:$0x1]
          %v6774 = vld [vmem:[%s319 + $0x1f] sm:$0x1]
          %v6775 = vld [vmem:[%s319 + $0x2f] sm:$0x1]
          %v6776 = vld [vmem:[%s319 + $0x3f] sm:$0x1]
          %v6777 = vld [vmem:[%s319 + $0x4f] sm:$0x1]
          %v6778 = vld [vmem:[%s319 + $0x5f] sm:$0x1]
          %v6779 = vld [vmem:[%s319 + $0x6f] sm:$0x1]
          %v6780 = vld [vmem:[%s319 + $0x7f] sm:$0x1]
          %v6789 = vrot.slane %v6774, 7
          %v6790 = vsel %vm468, %v6789, %v6773
          %v6791 = vrot.slane %v6775, 6
          %v6792 = vsel %vm471, %v6791, %v6790
          %v6793 = vrot.slane %v6776, 5
          %v6794 = vsel %vm474, %v6793, %v6792
          %v6795 = vrot.slane %v6777, 4
          %v6796 = vsel %vm477, %v6795, %v6794
          %v6797 = vrot.slane %v6778, 3
          %v6798 = vsel %vm480, %v6797, %v6796
          %v6799 = vrot.slane %v6779, 2
          %v6800 = vsel %vm483, %v6799, %v6798
          %v6801 = vrot.slane %v6780, 1
          %v6802 = vsel %vm486, %v6801, %v6800
          %v6803 = vsel %vm488, %v6802, 0
          %6805 = vmatprep.subr.mxu0 0.0
          %6806 = vmatpush1.msra.mxu0 0.0
          %6807 = vmatprep.subr.mxu0 0.0
          %6808 = vmatpush1.msra.mxu0 0.0
          %6809 = vmatprep.subr.mxu0 0.0
          %6810 = vmatpush1.msra.mxu0 0.0
          %6811 = vmatprep.subr.mxu0 0.0
          %6812 = vmatpush1.msra.mxu0 0.0
          %6813 = vmatprep.subr.mxu0 0.0
          %6814 = vmatpush1.msra.mxu0 0.0
          %6815 = vmatprep.subr.mxu0 0.0
          %6816 = vmatpush1.msra.mxu0 0.0
          %6817 = vmatprep.subr.mxu0 0.0
          %6818 = vmatpush1.msra.mxu0 0.0
          %6819 = vmatprep.subr.mxu0 0.0
          %6820 = vmatpush1.msra.mxu0 0.0
          %6821 = vmatprep.subr.mxu0 0.0
          %6822 = vmatpush1.msra.mxu0 0.0
          %6823 = vmatprep.subr.mxu0 0.0
          %6824 = vmatpush1.msra.mxu0 0.0
          %6825 = vmatprep.subr.mxu0 0.0
          %6826 = vmatpush1.msra.mxu0 0.0
          %6827 = vmatprep.subr.mxu0 0.0
          %6828 = vmatpush1.msra.mxu0 0.0
          %6829 = vmatprep.subr.mxu0 %v360
          %6830 = vmatpush1.msra.mxu0 %v359
          %6831 = vmatprep.subr.mxu0 %v356
          %6832 = vmatpush1.msra.mxu0 %v355
          %6833 = vmatprep.subr.mxu0 %v352
          %6834 = vmatpush1.msra.mxu0 %v351
          %6835 = vmatprep.subr.mxu0 %v348
          %6836 = vmatpush1.msra.mxu0 %v347
          %6837 = vmatprep.subr.mxu0 0.0
          %6838 = vmatpush2.msra.mxu0 0.0
          %6839 = vmatprep.subr.mxu0 0.0
          %6840 = vmatpush2.msra.mxu0 0.0
          %6841 = vmatprep.subr.mxu0 0.0
          %6842 = vmatpush2.msra.mxu0 0.0
          %6843 = vmatprep.subr.mxu0 0.0
          %6844 = vmatpush2.msra.mxu0 0.0
          %6845 = vmatprep.subr.mxu0 0.0
          %6846 = vmatpush2.msra.mxu0 0.0
          %6847 = vmatprep.subr.mxu0 0.0
          %6848 = vmatpush2.msra.mxu0 0.0
          %6849 = vmatprep.subr.mxu0 0.0
          %6850 = vmatpush2.msra.mxu0 0.0
          %6851 = vmatprep.subr.mxu0 0.0
          %6852 = vmatpush2.msra.mxu0 0.0
          %6853 = vmatprep.subr.mxu0 0.0
          %6854 = vmatpush2.msra.mxu0 0.0
          %6855 = vmatprep.subr.mxu0 0.0
          %6856 = vmatpush2.msra.mxu0 0.0
          %6857 = vmatprep.subr.mxu0 0.0
          %6858 = vmatpush2.msra.mxu0 0.0
          %6859 = vmatprep.subr.mxu0 0.0
          %6860 = vmatpush2.msra.mxu0 0.0
          %6861 = vmatprep.subr.mxu0 0.0
          %6862 = vmatpush2.msra.mxu0 0.0
          %6863 = vmatprep.subr.mxu0 0.0
          %6864 = vmatpush2.msra.mxu0 0.0
          %6865 = vmatprep.subr.mxu0 0.0
          %6866 = vmatpush2.msra.mxu0 0.0
          %6867 = vmatprep.subr.mxu0 0.0
          %6868 = vmatpush2.msra.mxu0 0.0
          %6869 = vmatprep.mubr.f32.mxu0 0.0
          %6870 = vmatmul.mubr.f32.gmra.mxu0 %v6803
          %v6871 = vpop.f32.mrf.mxu0
          %v6872 = vadd.f32 %v442, %v6871
          %v6873 = vpop.f32.mrf.mxu0
          %v6874 = vadd.f32 %v446, %v6873
          %6875 = vdwg.mxu0
          %6876 = vmatprep.subr.mxu0 0.0
          %6877 = vmatpush1.msra.mxu0 0.0
          %6878 = vmatprep.subr.mxu0 0.0
          %6879 = vmatpush1.msra.mxu0 0.0
          %6880 = vmatprep.subr.mxu0 0.0
          %6881 = vmatpush1.msra.mxu0 0.0
          %6882 = vmatprep.subr.mxu0 0.0
          %6883 = vmatpush1.msra.mxu0 0.0
          %6884 = vmatprep.subr.mxu0 0.0
          %6885 = vmatpush1.msra.mxu0 0.0
          %6886 = vmatprep.subr.mxu0 0.0
          %6887 = vmatpush1.msra.mxu0 0.0
          %6888 = vmatprep.subr.mxu0 0.0
          %6889 = vmatpush1.msra.mxu0 0.0
          %6890 = vmatprep.subr.mxu0 0.0
          %6891 = vmatpush1.msra.mxu0 0.0
          %6892 = vmatprep.subr.mxu0 0.0
          %6893 = vmatpush1.msra.mxu0 0.0
          %6894 = vmatprep.subr.mxu0 0.0
          %6895 = vmatpush1.msra.mxu0 0.0
          %6896 = vmatprep.subr.mxu0 0.0
          %6897 = vmatpush1.msra.mxu0 0.0
          %6898 = vmatprep.subr.mxu0 0.0
          %6899 = vmatpush1.msra.mxu0 0.0
          %6900 = vmatprep.subr.mxu0 %v362
          %6901 = vmatpush1.msra.mxu0 %v361
          %6902 = vmatprep.subr.mxu0 %v358
          %6903 = vmatpush1.msra.mxu0 %v357
          %6904 = vmatprep.subr.mxu0 %v354
          %6905 = vmatpush1.msra.mxu0 %v353
          %6906 = vmatprep.subr.mxu0 %v350
          %6907 = vmatpush1.msra.mxu0 %v349
          %6908 = vmatprep.subr.mxu0 0.0
          %6909 = vmatpush2.msra.mxu0 0.0
          %6910 = vmatprep.subr.mxu0 0.0
          %6911 = vmatpush2.msra.mxu0 0.0
          %6912 = vmatprep.subr.mxu0 0.0
          %6913 = vmatpush2.msra.mxu0 0.0
          %6914 = vmatprep.subr.mxu0 0.0
          %6915 = vmatpush2.msra.mxu0 0.0
          %6916 = vmatprep.subr.mxu0 0.0
          %6917 = vmatpush2.msra.mxu0 0.0
          %6918 = vmatprep.subr.mxu0 0.0
          %6919 = vmatpush2.msra.mxu0 0.0
          %6920 = vmatprep.subr.mxu0 0.0
          %6921 = vmatpush2.msra.mxu0 0.0
          %6922 = vmatprep.subr.mxu0 0.0
          %6923 = vmatpush2.msra.mxu0 0.0
          %6924 = vmatprep.subr.mxu0 0.0
          %6925 = vmatpush2.msra.mxu0 0.0
          %6926 = vmatprep.subr.mxu0 0.0
          %6927 = vmatpush2.msra.mxu0 0.0
          %6928 = vmatprep.subr.mxu0 0.0
          %6929 = vmatpush2.msra.mxu0 0.0
          %6930 = vmatprep.subr.mxu0 0.0
          %6931 = vmatpush2.msra.mxu0 0.0
          %6932 = vmatprep.subr.mxu0 0.0
          %6933 = vmatpush2.msra.mxu0 0.0
          %6934 = vmatprep.subr.mxu0 0.0
          %6935 = vmatpush2.msra.mxu0 0.0
          %6936 = vmatprep.subr.mxu0 0.0
          %6937 = vmatpush2.msra.mxu0 0.0
          %6938 = vmatprep.subr.mxu0 0.0
          %6939 = vmatpush2.msra.mxu0 0.0
          %6940 = vmatprep.mubr.f32.mxu0 0.0
          %6941 = vmatmul.mubr.f32.gmra.mxu0 %v6803
          %v6942 = vpop.f32.mrf.mxu0
          %v6943 = vadd.f32 %v450, %v6942
          %v6944 = vpop.f32.mrf.mxu0
          %v6945 = vadd.f32 %v454, %v6944
          %6946 = vdwg.mxu0
          %6947 = vmatprep.subr.mxu0 %v424
          %6948 = vmatpush1.msra.mxu0 %v423
          %6949 = vmatprep.subr.mxu0 %v420
          %6950 = vmatpush1.msra.mxu0 %v419
          %6951 = vmatprep.subr.mxu0 %v416
          %6952 = vmatpush1.msra.mxu0 %v415
          %6953 = vmatprep.subr.mxu0 %v412
          %6954 = vmatpush1.msra.mxu0 %v411
          %6955 = vmatprep.subr.mxu0 %v408
          %6956 = vmatpush1.msra.mxu0 %v407
          %6957 = vmatprep.subr.mxu0 %v404
          %6958 = vmatpush1.msra.mxu0 %v403
          %6959 = vmatprep.subr.mxu0 %v400
          %6960 = vmatpush1.msra.mxu0 %v399
          %6961 = vmatprep.subr.mxu0 %v396
          %6962 = vmatpush1.msra.mxu0 %v395
          %6963 = vmatprep.subr.mxu0 %v392
          %6964 = vmatpush1.msra.mxu0 %v391
          %6965 = vmatprep.subr.mxu0 %v388
          %6966 = vmatpush1.msra.mxu0 %v387
          %6967 = vmatprep.subr.mxu0 %v384
          %6968 = vmatpush1.msra.mxu0 %v383
          %6969 = vmatprep.subr.mxu0 %v380
          %6970 = vmatpush1.msra.mxu0 %v379
          %6971 = vmatprep.subr.mxu0 %v376
          %6972 = vmatpush1.msra.mxu0 %v375
          %6973 = vmatprep.subr.mxu0 %v372
          %6974 = vmatpush1.msra.mxu0 %v371
          %6975 = vmatprep.subr.mxu0 %v368
          %6976 = vmatpush1.msra.mxu0 %v367
          %6977 = vmatprep.subr.mxu0 %v364
          %6978 = vmatpush1.msra.mxu0 %v363
          %6979 = vmatprep.subr.mxu0 0.0
          %6980 = vmatpush2.msra.mxu0 0.0
          %6981 = vmatprep.subr.mxu0 0.0
          %6982 = vmatpush2.msra.mxu0 0.0
          %6983 = vmatprep.subr.mxu0 0.0
          %6984 = vmatpush2.msra.mxu0 0.0
          %6985 = vmatprep.subr.mxu0 0.0
          %6986 = vmatpush2.msra.mxu0 0.0
          %6987 = vmatprep.subr.mxu0 0.0
          %6988 = vmatpush2.msra.mxu0 0.0
          %6989 = vmatprep.subr.mxu0 0.0
          %6990 = vmatpush2.msra.mxu0 0.0
          %6991 = vmatprep.subr.mxu0 0.0
          %6992 = vmatpush2.msra.mxu0 0.0
          %6993 = vmatprep.subr.mxu0 0.0
          %6994 = vmatpush2.msra.mxu0 0.0
          %6995 = vmatprep.subr.mxu0 0.0
          %6996 = vmatpush2.msra.mxu0 0.0
          %6997 = vmatprep.subr.mxu0 0.0
          %6998 = vmatpush2.msra.mxu0 0.0
          %6999 = vmatprep.subr.mxu0 0.0
          %7000 = vmatpush2.msra.mxu0 0.0
          %7001 = vmatprep.subr.mxu0 0.0
          %7002 = vmatpush2.msra.mxu0 0.0
          %7003 = vmatprep.subr.mxu0 0.0
          %7004 = vmatpush2.msra.mxu0 0.0
          %7005 = vmatprep.subr.mxu0 0.0
          %7006 = vmatpush2.msra.mxu0 0.0
          %7007 = vmatprep.subr.mxu0 0.0
          %7008 = vmatpush2.msra.mxu0 0.0
          %7009 = vmatprep.subr.mxu0 0.0
          %7010 = vmatpush2.msra.mxu0 0.0
          %7011 = vmatprep.mubr.f32.mxu0 0.0
          %7012 = vmatmul.mubr.f32.gmra.mxu0 %v6704
          %v7013 = vpop.f32.mrf.mxu0
          %v7014 = vadd.f32 0.0, %v7013
          %v7015 = vpop.f32.mrf.mxu0
          %v7016 = vadd.f32 0.0, %v7015
          %7017 = vdwg.mxu0
          %7018 = vmatprep.subr.mxu0 %v426
          %7019 = vmatpush1.msra.mxu0 %v425
          %7020 = vmatprep.subr.mxu0 %v422
          %7021 = vmatpush1.msra.mxu0 %v421
          %7022 = vmatprep.subr.mxu0 %v418
          %7023 = vmatpush1.msra.mxu0 %v417
          %7024 = vmatprep.subr.mxu0 %v414
          %7025 = vmatpush1.msra.mxu0 %v413
          %7026 = vmatprep.subr.mxu0 %v410
          %7027 = vmatpush1.msra.mxu0 %v409
          %7028 = vmatprep.subr.mxu0 %v406
          %7029 = vmatpush1.msra.mxu0 %v405
          %7030 = vmatprep.subr.mxu0 %v402
          %7031 = vmatpush1.msra.mxu0 %v401
          %7032 = vmatprep.subr.mxu0 %v398
          %7033 = vmatpush1.msra.mxu0 %v397
          %7034 = vmatprep.subr.mxu0 %v394
          %7035 = vmatpush1.msra.mxu0 %v393
          %7036 = vmatprep.subr.mxu0 %v390
          %7037 = vmatpush1.msra.mxu0 %v389
          %7038 = vmatprep.subr.mxu0 %v386
          %7039 = vmatpush1.msra.mxu0 %v385
          %7040 = vmatprep.subr.mxu0 %v382
          %7041 = vmatpush1.msra.mxu0 %v381
          %7042 = vmatprep.subr.mxu0 %v378
          %7043 = vmatpush1.msra.mxu0 %v377
          %7044 = vmatprep.subr.mxu0 %v374
          %7045 = vmatpush1.msra.mxu0 %v373
          %7046 = vmatprep.subr.mxu0 %v370
          %7047 = vmatpush1.msra.mxu0 %v369
          %7048 = vmatprep.subr.mxu0 %v366
          %7049 = vmatpush1.msra.mxu0 %v365
          %7050 = vmatprep.subr.mxu0 0.0
          %7051 = vmatpush2.msra.mxu0 0.0
          %7052 = vmatprep.subr.mxu0 0.0
          %7053 = vmatpush2.msra.mxu0 0.0
          %7054 = vmatprep.subr.mxu0 0.0
          %7055 = vmatpush2.msra.mxu0 0.0
          %7056 = vmatprep.subr.mxu0 0.0
          %7057 = vmatpush2.msra.mxu0 0.0
          %7058 = vmatprep.subr.mxu0 0.0
          %7059 = vmatpush2.msra.mxu0 0.0
          %7060 = vmatprep.subr.mxu0 0.0
          %7061 = vmatpush2.msra.mxu0 0.0
          %7062 = vmatprep.subr.mxu0 0.0
          %7063 = vmatpush2.msra.mxu0 0.0
          %7064 = vmatprep.subr.mxu0 0.0
          %7065 = vmatpush2.msra.mxu0 0.0
          %7066 = vmatprep.subr.mxu0 0.0
          %7067 = vmatpush2.msra.mxu0 0.0
          %7068 = vmatprep.subr.mxu0 0.0
          %7069 = vmatpush2.msra.mxu0 0.0
          %7070 = vmatprep.subr.mxu0 0.0
          %7071 = vmatpush2.msra.mxu0 0.0
          %7072 = vmatprep.subr.mxu0 0.0
          %7073 = vmatpush2.msra.mxu0 0.0
          %7074 = vmatprep.subr.mxu0 0.0
          %7075 = vmatpush2.msra.mxu0 0.0
          %7076 = vmatprep.subr.mxu0 0.0
          %7077 = vmatpush2.msra.mxu0 0.0
          %7078 = vmatprep.subr.mxu0 0.0
          %7079 = vmatpush2.msra.mxu0 0.0
          %7080 = vmatprep.subr.mxu0 0.0
          %7081 = vmatpush2.msra.mxu0 0.0
          %7082 = vmatprep.mubr.f32.mxu0 0.0
          %7083 = vmatmul.mubr.f32.gmra.mxu0 %v6704
          %v7084 = vpop.f32.mrf.mxu0
          %v7085 = vadd.f32 0.0, %v7084
          %v7086 = vpop.f32.mrf.mxu0
          %v7087 = vadd.f32 0.0, %v7086
          %7088 = vdwg.mxu0
          %v7089 = vadd.f32 %v6872, %v7014
          %v7090 = vadd.f32 %v6874, %v7016
          %v7091 = vadd.f32 %v6943, %v7085
          %v7092 = vadd.f32 %v6945, %v7087
          %v7093 = vxor.u32 %v7089, 2147483648
          %v7094 = vmul.f32 %v7093, 1.442695
          %v7095 = vpow.pop %v7094
          %v7096 = vadd.f32 %v7095, 1.0
          %v7097 = vrcp.pop %v7096
          %v7098 = vmul.f32 1.0, %v7097
          %v7099 = vxor.u32 %v7090, 2147483648
          %v7100 = vmul.f32 %v7099, 1.442695
          %v7101 = vpow.pop %v7100
          %v7102 = vadd.f32 %v7101, 1.0
          %v7103 = vrcp.pop %v7102
          %v7104 = vmul.f32 1.0, %v7103
          %v7105 = vtanh.pop %v7091
          %v7106 = vxor.u32 %v7092, 2147483648
          %v7107 = vmul.f32 %v7106, 1.442695
          %v7108 = vpow.pop %v7107
          %v7109 = vadd.f32 %v7108, 1.0
          %v7110 = vrcp.pop %v7109
          %v7111 = vmul.f32 1.0, %v7110
          %v7112 = vmul.f32 %v7104, %v6705
          %v7113 = vmul.f32 %v7098, %v7105
          %v7114 = vadd.f32 %v7112, %v7113
          %v7115 = vtanh.pop %v7114
          %v7116 = vmul.f32 %v7111, %v7115
          %s7117 = sadd.s32 %s334, 15
          %v7118 = vstv %s7117
          %vm7119 = vcmp.lt.s32.totalorder %v7118, %v346
          %v7120 = vsel %vm7119, 1, 0
          %7121 = vset.pattern.permute.xlu0 0
          %7122 = vperm.xlu0 %7121, %v7120
          %v7123 = vpop.permute.xlu0 %7122
          %vm7124 = vcmp.eq.s32.totalorder %v7123, 1
          %v7125 = vsel %vm7124, %v7116, %v6704
          %v7126 = vsel %vm7124, %v7114, %v6705
          %v7127 = vsel %vm7124, %v7116, 0.0
          %v7129 = vcombine.high %v7127, %v7127
          %v7131 = vunpack.c.l.s4 1966171168
          %v7132 = vunpack.c.0.s8 %v7131
          %v7133 = vlaneseq
          %v7134 = vshrl.u32 %v7133, 7
          %v7135 = vsub.s32 %v7132, %v7134
          %v7136 = vrot.slane %v7127, %v7135
          %v7138 = vunpack.c.l.s4 1966171168
          %v7139 = vunpack.c.0.s8 %v7138
          %v7140 = vlaneseq
          %v7141 = vshrl.u32 %v7140, 7
          %v7142 = vsub.s32 %v7139, %v7141
          %v7143 = vrot.slane %v7129, %v7142
          %v7144 = vcombine.high %v7136, %v7136
          %v7145 = vcombine.high %v7143, %v7143
          %v7147 = vunpack.c.l.s4 1966171168
          %v7148 = vunpack.c.0.s8 %v7147
          %v7149 = vlaneseq
          %v7150 = vshrl.u32 %v7149, 7
          %v7151 = vsub.s32 %v7148, %v7150
          %v7152 = vrot.slane %v7136, %v7151
          %v7154 = vunpack.c.l.s4 1966171168
          %v7155 = vunpack.c.0.s8 %v7154
          %v7156 = vlaneseq
          %v7157 = vshrl.u32 %v7156, 7
          %v7158 = vsub.s32 %v7155, %v7157
          %v7159 = vrot.slane %v7143, %v7158
          %v7161 = vunpack.c.l.s4 1966171168
          %v7162 = vunpack.c.0.s8 %v7161
          %v7163 = vlaneseq
          %v7164 = vshrl.u32 %v7163, 7
          %v7165 = vsub.s32 %v7162, %v7164
          %v7166 = vrot.slane %v7144, %v7165
          %v7168 = vunpack.c.l.s4 1966171168
          %v7169 = vunpack.c.0.s8 %v7168
          %v7170 = vlaneseq
          %v7171 = vshrl.u32 %v7170, 7
          %v7172 = vsub.s32 %v7169, %v7171
          %v7173 = vrot.slane %v7145, %v7172
          %v7174 = vcombine.high %v7152, %v7152
          %v7175 = vcombine.high %v7159, %v7159
          %v7176 = vcombine.high %v7166, %v7166
          %v7177 = vcombine.high %v7173, %v7173
          %7186 = vst [vmem:[%s331 + $0xf] sm:$0x1] %v7152
          %7187 = vst [vmem:[%s331 + $0x1f] sm:$0x1] %v7166
          %7188 = vst [vmem:[%s331 + $0x2f] sm:$0x1] %v7174
          %7189 = vst [vmem:[%s331 + $0x3f] sm:$0x1] %v7176
          %7190 = vst [vmem:[%s331 + $0x4f] sm:$0x1] %v7159
          %7191 = vst [vmem:[%s331 + $0x5f] sm:$0x1] %v7173
          %7192 = vst [vmem:[%s331 + $0x6f] sm:$0x1] %v7175
          %7193 = vst [vmem:[%s331 + $0x7f] sm:$0x1] %v7177
          %7194 = vst [vmem:[#allocation2] sm:$0xff] %v7125
          %7195 = vst [vmem:[#allocation3] sm:$0xff] %v7126
        $region48: #{lstm_forward.1} parent=39 // pred_fallthru
          _
        %p7196 = scmp.ge.s32.totalorder %s334, %s341
        // Predicated region
        $region49: #{lstm_forward.1} parent=39 // pred_check
          %p7197 = pneg %p7196
        $region50: #{lstm_forward.1} parent=39 // pred_check_branch
          %7199 = sbr.rel (%p7197) target = $region52
        $region51: #{lstm_forward.1} parent=39 // pred_region
          %7200 = vst [vmem:[%s331] sm:$0xff] 0.0
          %7201 = vst [vmem:[%s331 + $0x8] sm:$0xff] 0.0
          %7202 = vst [vmem:[%s331 + $0x10] sm:$0xff] 0.0
          %7203 = vst [vmem:[%s331 + $0x18] sm:$0xff] 0.0
          %7204 = vst [vmem:[%s331 + $0x20] sm:$0xff] 0.0
          %7205 = vst [vmem:[%s331 + $0x28] sm:$0xff] 0.0
          %7206 = vst [vmem:[%s331 + $0x30] sm:$0xff] 0.0
          %7207 = vst [vmem:[%s331 + $0x38] sm:$0xff] 0.0
          %7208 = vst [vmem:[%s331 + $0x40] sm:$0xff] 0.0
          %7209 = vst [vmem:[%s331 + $0x48] sm:$0xff] 0.0
          %7210 = vst [vmem:[%s331 + $0x50] sm:$0xff] 0.0
          %7211 = vst [vmem:[%s331 + $0x58] sm:$0xff] 0.0
          %7212 = vst [vmem:[%s331 + $0x60] sm:$0xff] 0.0
          %7213 = vst [vmem:[%s331 + $0x68] sm:$0xff] 0.0
          %7214 = vst [vmem:[%s331 + $0x70] sm:$0xff] 0.0
          %7215 = vst [vmem:[%s331 + $0x78] sm:$0xff] 0.0
        $region52: #{lstm_forward.1} parent=39 // pred_fallthru
          _
        // Predicated region
        $region53: #{lstm_forward.1} parent=39 // pred_check
          %p7216 = pneg %p335
        $region54: #{lstm_forward.1} parent=39 // pred_check_branch
          %7218 = sbr.rel (%p7216) target = $region56
        $region55: #{lstm_forward.1} parent=39 // pred_region
          %v7219 = vld [vmem:[#allocation2] sm:$0xff]
          %7220 = vst [vmem:[%s305] sm:$0xff] %v7219
        $region56: #{lstm_forward.1} parent=39 // pred_fallthru
          _
        %s7221 = smul.u32 8, %s32
        %s7222 = smul.u32 2, %s33
        %p7223 = scmp.lt.s32.totalorder %s7221, 15
        %s7224 = scalar_select %p7223, %s7221, 15
        %p7225 = scmp.lt.s32.totalorder %s7222, 1
        %s7226 = scalar_select %p7225, %s7222, 1
        %s7227 = smul.addr %s7224, 2
        %s7228 = sadd.s32 %s7226, %s7227
        %s7229 = smul.addr %s7228, 8
        %s7230 = scalar_lea.vmem %s6, %s7229
        %s7231 = sand.u32 %s193, 1
        %s7232 = scalar_lea.sflag [#allocation7], %s7231
        %s7233 = sand.u32 %s193, 1
        %s7234 = smul.addr %s7233, 8
        %s7235 = scalar_lea.vmem [#allocation6], %s7234
        // Predicated region
        $region57: #{lstm_forward.1} parent=39 // pred_check
          %p7236 = pneg %p177
        $region58: #{lstm_forward.1} parent=39 // pred_check_branch
          %7238 = sbr.rel (%p7236) target = $region60
        $region59: #{lstm_forward.1} parent=39 // pred_region
          %s7239 = smul.u32 8, %s32
          %s7240 = smul.u32 2, %s33
        $region60: #{lstm_forward.1} parent=39 // pred_fallthru
          _
        // Predicated region
        $region61: #{lstm_forward.1} parent=39 // pred_check
          %p7241 = pneg %p203
        $region62: #{lstm_forward.1} parent=39 // pred_check_branch
          %7243 = sbr.rel (%p7241) target = $region64
        $region63: #{lstm_forward.1} parent=39 // pred_region
          %s7245 = ssub.s32 128, 128
          %7246 = vsyncadd %s7232, %s7245
          %s7247 = smul.addr %s32, 128
          %s7248 = scalar_lea.hbm %s7, %s7247
          %s7250 = sshll.u32 %s7235, 4
          %s7251 = int_to_ptr.vmem [resolvable:$true] %s7250
          %7253 = dma.vmem_to_hbm [thread:$0]  %s7251, 128, %s7248, %s7232
        $region64: #{lstm_forward.1} parent=39 // pred_fallthru
          _
      $region40: #{lstm_forward.1} parent=5 // pred_fallthru
        _
      %p7254 = scmp.le.s32.totalorder 2, %s23
      // Predicated region
      $region65: #{lstm_forward.1} parent=5 // pred_check
        %p7255 = pneg %p7254
      $region66: #{lstm_forward.1} parent=5 // pred_check_branch
        %7257 = sbr.rel (%p7255) target = $region68
      $region67: #{lstm_forward.1} parent=5 // pred_region
        %s7258 = ssub.s32 %s23, 2
        // Predicated region
        $region69: #{lstm_forward.1} parent=67 // pred_check
          %p7259 = pneg %p183
        $region70: #{lstm_forward.1} parent=67 // pred_check_branch
          %7261 = sbr.rel (%p7259) target = $region72
        $region71: #{lstm_forward.1} parent=67 // pred_region
          %s7262 = smul.u32 8, %s34
          %s7263 = smul.u32 2, %s35
          %p7264 = scmp.lt.s32.totalorder %s7262, 15
          %s7265 = scalar_select %p7264, %s7262, 15
          %p7266 = scmp.lt.s32.totalorder %s7263, 1
          %s7267 = scalar_select %p7266, %s7263, 1
          %s7268 = smul.addr %s7265, 2
          %s7269 = sadd.s32 %s7267, %s7268
          %s7270 = smul.addr %s7269, 8
          %s7271 = scalar_lea.vmem %s6, %s7270
        $region72: #{lstm_forward.1} parent=67 // pred_fallthru
          _
        // Predicated region
        $region73: #{lstm_forward.1} parent=67 // pred_check
          %p7272 = pneg %p209
        $region74: #{lstm_forward.1} parent=67 // pred_check_branch
          %7274 = sbr.rel (%p7272) target = $region76
        $region75: #{lstm_forward.1} parent=67 // pred_region
          %s7275 = sand.u32 %s194, 1
          %s7276 = scalar_lea.sflag [#allocation7], %s7275
          %s7277 = sand.u32 %s194, 1
          %s7278 = smul.addr %s7277, 8
          %s7279 = scalar_lea.vmem [#allocation6], %s7278
          %7280 = dma.done %s7276, 128
        $region76: #{lstm_forward.1} parent=67 // pred_fallthru
          _
      $region68: #{lstm_forward.1} parent=5 // pred_fallthru
        _
    $region6: #{lstm_forward.1} parent=1 // loop_footer
      %s27 = sadd.s32 1, %s23
    $region7: #{lstm_forward.1} parent=1 // loop_footer_branch
      %22 = sbr.rel target = $region3
    $region8: #{lstm_forward.1} parent=1 // loop_exit
      _
    %7281 = vsyncpa [#allocation7], 1
    %s7282 = scalar_lea.sflag [#allocation7], 1
    %7283 = vsyncpa %s7282, 1

</llo_original>
